<compile_context>
chip_gen: v7x
topology: tpu7x:2x2x1
jax: 0.10.0
libtpu: 0.0.40
codegen_flags: <defaults>
</compile_context>

<pallas_src>
import functools
import math

import jax
import jax.numpy as jnp
from jax.experimental import pallas as pl
from jax.experimental.pallas import tpu as pltpu


# ----------------------------------------------------------------------------
# In-kernel math helpers (operate on loaded jnp values)
# ----------------------------------------------------------------------------


def _lin(x, w, bias=None, act=None):
    """y = act(x @ w + bias); x: (M, K), w: (K, N), bias: (1, N) or None."""
    y = jax.lax.dot_general(x, w, (((1,), (0,)), ((), ())),
                            preferred_element_type=jnp.float32)
    if bias is not None:
        y = y + bias
    if act == "relu":
        y = jnp.maximum(y, 0.0)
    elif act == "tanh":
        y = jnp.tanh(y)
    return y


def _layer_norm(x, g, b, eps):
    """LayerNorm over last dim; x: (M, D), g/b: (1, D)."""
    mu = jnp.mean(x, axis=-1, keepdims=True)
    xc = x - mu
    var = jnp.mean(xc * xc, axis=-1, keepdims=True)
    return xc * jax.lax.rsqrt(var + eps) * g + b


def _mha(q, k, v, o_w, o_b, nhead, bias3):
    """nn.MultiheadAttention core (inference, dropout=0).

    q: (b, Lq, d); k, v: (b, Lk, d); o_w: (d, d); o_b: (1, d);
    bias3: (b, 1, Lk) additive key bias (0 / -1e9) or None.  Returns (b*Lq, d).
    Head contexts are lane-concatenated (d fits in one vreg) so the output
    projection is a single matmul instead of one per head.
    """
    b, lq, d = q.shape
    hd = d // nhead
    scale = 1.0 / math.sqrt(hd)
    ctx = []
    for h in range(nhead):
        sl = slice(h * hd, (h + 1) * hd)
        s = jax.lax.dot_general(q[..., sl], k[..., sl],
                                (((2,), (2,)), ((0,), (0,))),
                                preferred_element_type=jnp.float32) * scale
        if bias3 is not None:
            # -1e9 additive mask; safe because position t1 is always unmasked,
            # so no key row is ever fully masked.
            s = s + bias3
        s = s - jnp.max(s, axis=-1, keepdims=True)
        p = jnp.exp(s)
        p = p / jnp.sum(p, axis=-1, keepdims=True)        # exact (parity)
        ctx.append(jax.lax.dot_general(p, v[..., sl],
                                       (((2,), (1,)), ((0,), (0,))),
                                       preferred_element_type=jnp.float32))
    ctx = jnp.concatenate(ctx, axis=-1).reshape(b * lq, d)
    return _lin(ctx, o_w, o_b)


# ----------------------------------------------------------------------------
# Static layout of the packed parameter stacks (pure Python, trace-time only)
# ----------------------------------------------------------------------------


def _roundup(x, m):
    return ((x + m - 1) // m) * m


def make_layout(cfg):
    L = cfg["layers"]
    dd = ["se_w", "gf_wvs", "gf_fc", "gf_ws_w", "gf_wg_w"]
    for l in range(L):
        dd.append(f"enc{l}_o_w")
    for l in range(L):
        dd += [f"dec{l}_sa_v_w", f"dec{l}_sa_o_w", f"dec{l}_ca_q_w", f"dec{l}_ca_o_w"]

    wide = []
    for l in range(L):
        wide += [f"enc{l}_qkv_w", f"enc{l}_lin1_w"]
    for l in range(L):
        wide += [f"dec{l}_ca_kv_w", f"dec{l}_lin1_w"]
    wide += ["out_w", "exp0_w"]

    tall = [f"enc{l}_lin2_w" for l in range(L)] + [f"dec{l}_lin2_w" for l in range(L)]

    v32 = ["se_b", "act_token", "gf_ln_g", "gf_ln_b", "gf_ws_b", "gf_wg_b"]
    for l in range(L):
        v32 += [f"enc{l}_{s}" for s in ("q_b", "k_b", "v_b", "o_b", "lin2_b",
                                        "n1_g", "n1_b", "n2_g", "n2_b")]
    v32 += ["enc_norm_g", "enc_norm_b"]
    for l in range(L):
        v32 += [f"dec{l}_{s}" for s in ("sa_v_b", "sa_o_b", "ca_q_b", "ca_k_b",
                                        "ca_v_b", "ca_o_b", "lin2_b",
                                        "n1_g", "n1_b", "n2_g", "n2_b",
                                        "n3_g", "n3_b")]
    v32 += ["dec_norm_g", "dec_norm_b"]

    v128 = [f"enc{l}_lin1_b" for l in range(L)] + [f"dec{l}_lin1_b" for l in range(L)]
    v128 += ["out_b", "exp0_b", "exp1_b", "exp2_b"]

    expw = ["exp1_w", "exp2_w"]

    idx = lambda names: {n: i for i, n in enumerate(names)}
    return {"L": L,
            "dd": idx(dd), "wide": idx(wide), "tall": idx(tall),
            "v32": idx(v32), "v128": idx(v128), "expw": idx(expw),
            "dd_names": dd, "wide_names": wide, "tall_names": tall,
            "v32_names": v32, "v128_names": v128, "expw_names": expw}


# ----------------------------------------------------------------------------
# One-time (load-time) parameter packing — NOT in the jitted per-call path
# ----------------------------------------------------------------------------


def pack_params(p, cfg):
    """Pack raw parameters into a handful of aligned stacks.

    Torch import note: torch Linear weights are (out, in) — transpose first;
    nn.MultiheadAttention in_proj packs rows [q; k; v] — split, transpose,
    then feed the same nested structure init_params() produces.
    """
    lay = make_layout(cfg)
    d, df, do, L = cfg["d_model"], cfg["dim_f"], cfg["dim_out"], cfg["layers"]
    assert cfg["state_dim"] <= d, "state_embd packing assumes state_dim <= d_model"
    assert do <= 64 and df <= 128 and d <= 128

    f32 = jnp.float32

    def pad2(a, rows, cols, r0=0, c0=0):
        a = jnp.asarray(a, f32)
        return jnp.zeros((rows, cols), f32).at[r0:r0 + a.shape[0],
                                               c0:c0 + a.shape[1]].set(a)

    def padrow(v, cols, c0=0):
        v = jnp.asarray(v, f32).reshape(1, -1)
        return jnp.zeros((1, cols), f32).at[:, c0:c0 + v.shape[1]].set(v)

    e_dd, e_wide, e_tall, e_v32, e_v128, e_expw = {}, {}, {}, {}, {}, {}

    # --- embeddings / gated fusion ---
    e_dd["se_w"] = pad2(p["state_embd"]["w"], d, d)
    e_v32["se_b"] = p["state_embd"]["b"]
    e_v32["act_token"] = jnp.asarray(p["act_token"], f32).reshape(-1)
    gf = p["gf"]
    e_dd["gf_wvs"], e_dd["gf_fc"] = gf["wvs"], gf["fc"]
    e_dd["gf_ws_w"], e_dd["gf_wg_w"] = gf["w_s"]["w"], gf["w_g"]["w"]
    e_v32["gf_ws_b"], e_v32["gf_wg_b"] = gf["w_s"]["b"], gf["w_g"]["b"]
    e_v32["gf_ln_g"], e_v32["gf_ln_b"] = gf["ln"]["g"], gf["ln"]["b"]
    # gf wqs / wks cancel exactly (length-1 goal sequence => softmax == 1).

    # --- goal MLP: dims zero-padded to lane multiples; bias as a trailing row ---
    l0, l1, l2 = p["goal_emb"]
    K1 = l0["w"].shape[0]; K1p = _roundup(K1, 8)
    N1 = l0["w"].shape[1]; N1p = _roundup(N1, 128)
    N2 = l1["w"].shape[1]; N2p = _roundup(N2, 128)
    g1 = pad2(l0["w"], K1p + 8, N1p).at[K1p:K1p + 1, :N1].set(
        jnp.asarray(l0["b"], f32).reshape(1, -1))
    g2 = pad2(l1["w"], N1p + 8, N2p).at[N1p:N1p + 1, :N2].set(
        jnp.asarray(l1["b"], f32).reshape(1, -1))
    g3 = pad2(l2["w"], N2p + 8, d).at[N2p:N2p + 1, :d].set(
        jnp.asarray(l2["b"], f32).reshape(1, -1))

    # --- encoder layers ---
    for l in range(L):
        e = p["enc"][l]; a = e["attn"]
        e_wide[f"enc{l}_qkv_w"] = pad2(
            jnp.concatenate([a["q"]["w"], a["k"]["w"], a["v"]["w"]], axis=1), d, 128)
        e_v32[f"enc{l}_q_b"], e_v32[f"enc{l}_k_b"], e_v32[f"enc{l}_v_b"] = \
            a["q"]["b"], a["k"]["b"], a["v"]["b"]
        e_dd[f"enc{l}_o_w"] = a["o"]["w"]; e_v32[f"enc{l}_o_b"] = a["o"]["b"]
        e_wide[f"enc{l}_lin1_w"] = pad2(e["lin1"]["w"], d, 128)
        e_v128[f"enc{l}_lin1_b"] = padrow(e["lin1"]["b"], 128)
        e_tall[f"enc{l}_lin2_w"] = pad2(e["lin2"]["w"], 128, d)
        e_v32[f"enc{l}_lin2_b"] = e["lin2"]["b"]
        for nm in ("n1", "n2"):
            e_v32[f"enc{l}_{nm}_g"] = e[nm]["g"]; e_v32[f"enc{l}_{nm}_b"] = e[nm]["b"]
    e_v32["enc_norm_g"], e_v32["enc_norm_b"] = p["enc_norm"]["g"], p["enc_norm"]["b"]

    # --- decoder layers ---
    for l in range(L):
        dcl = p["dec"][l]; sa = dcl["self_attn"]; ca = dcl["cross_attn"]
        # Length-1 target: self-attn == out_proj(v_proj(y)); q/k drop out exactly.
        e_dd[f"dec{l}_sa_v_w"] = sa["v"]["w"]; e_v32[f"dec{l}_sa_v_b"] = sa["v"]["b"]
        e_dd[f"dec{l}_sa_o_w"] = sa["o"]["w"]; e_v32[f"dec{l}_sa_o_b"] = sa["o"]["b"]
        e_dd[f"dec{l}_ca_q_w"] = ca["q"]["w"]; e_v32[f"dec{l}_ca_q_b"] = ca["q"]["b"]
        e_wide[f"dec{l}_ca_kv_w"] = pad2(
            jnp.concatenate([ca["k"]["w"], ca["v"]["w"]], axis=1), d, 128)
        e_v32[f"dec{l}_ca_k_b"], e_v32[f"dec{l}_ca_v_b"] = ca["k"]["b"], ca["v"]["b"]
        e_dd[f"dec{l}_ca_o_w"] = ca["o"]["w"]; e_v32[f"dec{l}_ca_o_b"] = ca["o"]["b"]
        e_wide[f"dec{l}_lin1_w"] = pad2(dcl["lin1"]["w"], d, 128)
        e_v128[f"dec{l}_lin1_b"] = padrow(dcl["lin1"]["b"], 128)
        e_tall[f"dec{l}_lin2_w"] = pad2(dcl["lin2"]["w"], 128, d)
        e_v32[f"dec{l}_lin2_b"] = dcl["lin2"]["b"]
        for nm in ("n1", "n2", "n3"):
            e_v32[f"dec{l}_{nm}_g"] = dcl[nm]["g"]; e_v32[f"dec{l}_{nm}_b"] = dcl[nm]["b"]
    e_v32["dec_norm_g"], e_v32["dec_norm_b"] = p["dec_norm"]["g"], p["dec_norm"]["b"]

    # --- heads: merged 128-lane output (acts in [0:dim_out], expansion in [64:128]) ---
    e_wide["out_w"] = pad2(p["out"]["w"], d, 128)
    e_v128["out_b"] = padrow(p["out"]["b"], 128)
    x0, x1, x2 = p["expander"]
    e_wide["exp0_w"] = pad2(x0["w"], d, 128)
    e_v128["exp0_b"] = padrow(x0["b"], 128)
    e_expw["exp1_w"] = pad2(x1["w"], 128, 128)
    e_v128["exp1_b"] = padrow(x1["b"], 128)
    e_expw["exp2_w"] = pad2(x2["w"], 128, 128, c0=64)     # expansion -> lanes 64:128
    e_v128["exp2_b"] = padrow(x2["b"], 128, c0=64)

    def stack(entries, names):
        return jnp.stack([jnp.asarray(entries[n], f32) for n in names])

    return {
        "g1": g1, "g2": g2, "g3": g3,
        "w_dd": stack(e_dd, lay["dd_names"]),
        "w_wide": stack(e_wide, lay["wide_names"]),
        "w_tall": stack(e_tall, lay["tall_names"]),
        "v32": jnp.stack([jnp.asarray(e_v32[n], f32).reshape(-1)
                          for n in lay["v32_names"]]),
        "v128": jnp.concatenate([e_v128[n] for n in lay["v128_names"]], axis=0),
        "w_exp": stack(e_expw, lay["expw_names"]),
    }


# ----------------------------------------------------------------------------
# The single fused kernel
# ----------------------------------------------------------------------------


def _fused_kernel(*refs, lay, nhead, expand):
    (obs_ref, goal_ref, kbias_ref, t2oh_ref,
     g1_ref, g2_ref, g3_ref,
     dd_ref, wide_ref, tall_ref, v32_ref, v128_ref) = refs[:12]
    expw_ref = refs[12] if expand else None
    out_ref = refs[-1]

    b, t, d = obs_ref.shape
    nh = nhead

    # static-index accessors into the packed stacks
    def DD(n):   return dd_ref[lay["dd"][n]]                      # (d, d)
    def WIDE(n): return wide_ref[lay["wide"][n]]                  # (d, 128)
    def TALL(n): return tall_ref[lay["tall"][n]]                  # (128, d)
    def EXPW(n): return expw_ref[lay["expw"][n]]                  # (128, 128)
    def V32(n):
        i = lay["v32"][n]; return v32_ref[i:i + 1, :]             # (1, d)
    def V128(n):
        i = lay["v128"][n]; return v128_ref[i:i + 1, :]           # (1, 128)

    # ---- goal embedding MLP (padded dims; bias stored as trailing row) ----
    K1 = goal_ref.shape[1]
    K1p = g1_ref.shape[0] - 8
    N1p = g2_ref.shape[0] - 8
    N2p = g3_ref.shape[0] - 8
    xg = _lin(goal_ref[...], g1_ref[0:K1, :], g1_ref[K1p:K1p + 1, :], act="relu")
    xg = _lin(xg, g2_ref[0:N1p, :], g2_ref[N1p:N1p + 1, :], act="relu")
    xg = _lin(xg, g3_ref[0:N2p, :], g3_ref[N2p:N2p + 1, :])              # (b, d)

    # ---- state embedding (obs features zero-padded to d lanes in wrapper) ----
    hs = _lin(obs_ref[...].reshape(b * t, d), DD("se_w"), V32("se_b"))   # (b*t, d)

    # ---- key-padding bias, hoisted once and reused by every attention block ----
    bias3 = kbias_ref[...].reshape(b, 1, t)                              # 0 / -1e9

    # ---- gated fusion ----
    # Goal "sequence" has length 1 => softmax over one key == 1, so the attended
    # value is exactly fc(w_vs(X_g)) broadcast over time (wqs/wks cancel).
    # MHA(residual=query input) uses LayerNorm eps=1e-6 per the reference impl.
    gv = _lin(xg, DD("gf_wvs"))
    fcv = _lin(gv, DD("gf_fc"))
    attn = jnp.broadcast_to(fcv[:, None, :], (b, t, d)).reshape(b * t, d) + hs
    attn = _layer_norm(attn, V32("gf_ln_g"), V32("gf_ln_b"), 1e-6)
    lam = jax.nn.sigmoid(_lin(hs, DD("gf_ws_w"), V32("gf_ws_b")) +
                         _lin(attn, DD("gf_wg_w"), V32("gf_wg_b")))
    h = ((1.0 - lam) * hs + lam * attn).reshape(b, t, d)
    # overwrite the goal slot: H[i, t2[i]] = X_g[i]
    oh = t2oh_ref[...][:, :, None]
    h = h * (1.0 - oh) + oh * xg[:, None, :]

    # ---- transformer encoder (post-norm, relu, eps=1e-5) ----
    x = h
    for l in range(lay["L"]):
        x2 = x.reshape(b * t, d)
        qkv = _lin(x2, WIDE(f"enc{l}_qkv_w"))                            # (b*t, 128)
        q = (qkv[:, 0 * d:1 * d] + V32(f"enc{l}_q_b")).reshape(b, t, d)
        k = (qkv[:, 1 * d:2 * d] + V32(f"enc{l}_k_b")).reshape(b, t, d)
        vv = (qkv[:, 2 * d:3 * d] + V32(f"enc{l}_v_b")).reshape(b, t, d)
        sa = _mha(q, k, vv, DD(f"enc{l}_o_w"), V32(f"enc{l}_o_b"), nh, bias3)
        x2 = _layer_norm(x2 + sa, V32(f"enc{l}_n1_g"), V32(f"enc{l}_n1_b"), 1e-5)
        ff = _lin(x2, WIDE(f"enc{l}_lin1_w"), V128(f"enc{l}_lin1_b"), act="relu")
        ff = _lin(ff, TALL(f"enc{l}_lin2_w"), V32(f"enc{l}_lin2_b"))
        x2 = _layer_norm(x2 + ff, V32(f"enc{l}_n2_g"), V32(f"enc{l}_n2_b"), 1e-5)
        x = x2.reshape(b, t, d)
    memory = _layer_norm(x.reshape(b * t, d),
                         V32("enc_norm_g"), V32("enc_norm_b"), 1e-5)     # (b*t, d)

    # ---- transformer decoder (tgt = act token, length 1) ----
    y2 = jnp.broadcast_to(V32("act_token"), (b, d))                      # (b, d)
    for l in range(lay["L"]):
        # self-attn on a length-1 target: softmax over one key == 1, so it is
        # exactly out_proj(v_proj(y)); the q/k projections cancel.
        sav = _lin(y2, DD(f"dec{l}_sa_v_w"), V32(f"dec{l}_sa_v_b"))
        sa = _lin(sav, DD(f"dec{l}_sa_o_w"), V32(f"dec{l}_sa_o_b"))
        y2 = _layer_norm(y2 + sa, V32(f"dec{l}_n1_g"), V32(f"dec{l}_n1_b"), 1e-5)
        # cross-attention over encoder memory (memory_key_padding_mask)
        qc = _lin(y2, DD(f"dec{l}_ca_q_w"), V32(f"dec{l}_ca_q_b")).reshape(b, 1, d)
        kv = _lin(memory, WIDE(f"dec{l}_ca_kv_w"))                       # (b*t, 128)
        kc = (kv[:, 0 * d:1 * d] + V32(f"dec{l}_ca_k_b")).reshape(b, t, d)
        vc = (kv[:, 1 * d:2 * d] + V32(f"dec{l}_ca_v_b")).reshape(b, t, d)
        ca = _mha(qc, kc, vc, DD(f"dec{l}_ca_o_w"), V32(f"dec{l}_ca_o_b"), nh, bias3)
        y2 = _layer_norm(y2 + ca, V32(f"dec{l}_n2_g"), V32(f"dec{l}_n2_b"), 1e-5)
        ff = _lin(y2, WIDE(f"dec{l}_lin1_w"), V128(f"dec{l}_lin1_b"), act="relu")
        ff = _lin(ff, TALL(f"dec{l}_lin2_w"), V32(f"dec{l}_lin2_b"))
        y2 = _layer_norm(y2 + ff, V32(f"dec{l}_n3_g"), V32(f"dec{l}_n3_b"), 1e-5)
    y2 = _layer_norm(y2, V32("dec_norm_g"), V32("dec_norm_b"), 1e-5)

    # ---- heads, merged into one lane-dense (b, 128) store ----
    acts = _lin(y2, WIDE("out_w"), V128("out_b"), act="tanh")   # lanes [do:128] == 0
    if expand:
        e = _lin(y2, WIDE("exp0_w"), V128("exp0_b"), act="relu")
        e = _lin(e, EXPW("exp1_w"), V128("exp1_b"), act="relu")
        e = _lin(e, EXPW("exp2_w"), V128("exp2_b"))             # lanes [0:64] == 0
        acts = acts + e
    out_ref[...] = acts


# ----------------------------------------------------------------------------
# JAX-side wrapper: gathers, mask construction, the single pallas_call
# ----------------------------------------------------------------------------


def forward(packed, obs, t1, t2, cfg, expand=False):
    """obs: (b, t, state_dim) f32; t1, t2: (b,) int32; packed from pack_params."""
    b, t, sd = obs.shape
    d, gd, do = cfg["d_model"], cfg["goal_dim"], cfg["dim_out"]
    lay = make_layout(cfg)
    idxs = jnp.arange(b)

    # TODO(synk): env.extract_goal / env.observation are environment-specific;
    # stand-ins: goal = first goal_dim state dims, observation = identity.
    x_g_raw = obs[idxs, t2][:, :gd]
    goal_in = jnp.concatenate([obs[idxs, t1], x_g_raw], axis=-1)        # (b, sd+gd)

    # key padding mask (True = padded): pos > t1 and pos != t2  ->  additive bias
    pos = jnp.arange(t)[None, :]
    pad_mask = (pos > t1[:, None]) & (pos != t2[:, None])
    key_bias = jnp.where(pad_mask, -1e9, 0.0).astype(jnp.float32)       # (b, t)
    t2_oh = (pos == t2[:, None]).astype(jnp.float32)                    # (b, t)

    obs_p = jnp.pad(obs, ((0, 0), (0, 0), (0, d - sd)))                 # lane-pad to d

    inputs = [obs_p, goal_in, key_bias, t2_oh,
              packed["g1"], packed["g2"], packed["g3"],
              packed["w_dd"], packed["w_wide"], packed["w_tall"],
              packed["v32"], packed["v128"]]
    if expand:
        inputs.append(packed["w_exp"])

    # Gridless single-TensorCore call (everything resident in VMEM).  For large
    # batches on v7x, add a batch grid axis with dimension_semantics=("parallel",).
    out = pl.pallas_call(
        functools.partial(_fused_kernel, lay=lay, nhead=cfg["nhead"], expand=expand),
        out_shape=jax.ShapeDtypeStruct((b, 128), jnp.float32),
        in_specs=[pl.BlockSpec(memory_space=pltpu.MemorySpace.VMEM)] * len(inputs),
        out_specs=pl.BlockSpec(memory_space=pltpu.MemorySpace.VMEM),
    )(*inputs)

    acts = out[:, :do].reshape(b, 1, do)
    if expand:
        return acts, out[:, 64:128].reshape(b, 1, 64)
    return acts


# ----------------------------------------------------------------------------
# Deterministic synthetic parameter init (mirrors the PyTorch module's shapes)
# ----------------------------------------------------------------------------


def init_params(key, cfg):
    sd, gd, d, nl, df, do = (cfg["state_dim"], cfg["goal_dim"], cfg["d_model"],
                             cfg["layers"], cfg["dim_f"], cfg["dim_out"])
    cnt = [0]

    def nxt(shape, scale=0.1):
        cnt[0] += 1
        return scale * jax.random.normal(jax.random.fold_in(key, cnt[0]), shape,
                                         jnp.float32)

    def lin(i, o):
        return {"w": nxt((i, o)), "b": nxt((o,))}

    def ln(dd):
        return {"g": jnp.ones((dd,), jnp.float32), "b": jnp.zeros((dd,), jnp.float32)}

    def mha(dd):
        return {"q": lin(dd, dd), "k": lin(dd, dd), "v": lin(dd, dd), "o": lin(dd, dd)}

    return {
        "state_embd": lin(sd, d),
        "goal_emb": [lin(sd + gd, 400), lin(400, 300), lin(300, d)],
        "act_token": nxt((1, d)),
        "gf": {"wqs": nxt((d, d)), "wks": nxt((d, d)), "wvs": nxt((d, d)),
               "fc": nxt((d, d)), "ln": ln(d), "w_s": lin(d, d), "w_g": lin(d, d)},
        "enc": [{"attn": mha(d), "lin1": lin(d, df), "lin2": lin(df, d),
                 "n1": ln(d), "n2": ln(d)} for _ in range(nl)],
        "enc_norm": ln(d),
        "dec": [{"self_attn": mha(d), "cross_attn": mha(d),
                 "lin1": lin(d, df), "lin2": lin(df, d),
                 "n1": ln(d), "n2": ln(d), "n3": ln(d)} for _ in range(nl)],
        "dec_norm": ln(d),
        "out": lin(d, do),
        "expander": [lin(d, 128), lin(128, 128), lin(128, 64)],
    }


# ----------------------------------------------------------------------------


if __name__ == "__main__":
    cfg = dict(state_dim=12, goal_dim=4, d_model=32, nhead=2, layers=2,
               dim_f=64, dim_out=9)

    key = jax.random.PRNGKey(0)
    params = init_params(jax.random.fold_in(key, 1), cfg)
    packed = pack_params(params, cfg)   # one-time packing, outside the jitted path

    b, t = 2, 8
    obs = jax.random.normal(jax.random.fold_in(key, 2), (b, t, cfg["state_dim"]),
                            jnp.float32)
    t1 = jnp.array([3, 5], dtype=jnp.int32)
    t2 = jnp.array([5, 7], dtype=jnp.int32)

    fwd = jax.jit(lambda pk, o, a1, a2: forward(pk, o, a1, a2, cfg, expand=True))
    acts, expansion = fwd(packed, obs, t1, t2)
    jax.block_until_ready((acts, expansion))

    assert acts.shape == (b, 1, cfg["dim_out"])
    assert expansion.shape == (b, 1, 64)
    assert bool(jnp.all(jnp.isfinite(acts))) and bool(jnp.all(jnp.isfinite(expansion)))
    print("KERNEL_OK")
</pallas_src>

<mosaic_0001>
module attributes {stable_mosaic.version = 11 : i64} {
  func.func @_fused_kernel(%arg0: memref<2x8x32xf32, #tpu.memory_space<vmem>>, %arg1: memref<2x16xf32, #tpu.memory_space<vmem>>, %arg2: memref<2x8xf32, #tpu.memory_space<vmem>>, %arg3: memref<2x8xf32, #tpu.memory_space<vmem>>, %arg4: memref<24x512xf32, #tpu.memory_space<vmem>>, %arg5: memref<520x384xf32, #tpu.memory_space<vmem>>, %arg6: memref<392x32xf32, #tpu.memory_space<vmem>>, %arg7: memref<15x32x32xf32, #tpu.memory_space<vmem>>, %arg8: memref<10x32x128xf32, #tpu.memory_space<vmem>>, %arg9: memref<4x128x32xf32, #tpu.memory_space<vmem>>, %arg10: memref<54x32xf32, #tpu.memory_space<vmem>>, %arg11: memref<8x128xf32, #tpu.memory_space<vmem>>, %arg12: memref<2x128x128xf32, #tpu.memory_space<vmem>>, %arg13: memref<2x128xf32, #tpu.memory_space<vmem>>) attributes {dimension_semantics = [], scalar_prefetch = 0 : i64, scratch_operands = 0 : i64, tpu.core_type = #tpu.core_type<tc>} {
    %c0 = arith.constant 0 : index
    %c0_0 = arith.constant 0 : index
    %0 = vector.load %arg1[%c0, %c0_0] : memref<2x16xf32, #tpu.memory_space<vmem>>, vector<2x16xf32>
    %c0_1 = arith.constant 0 : index
    %c0_2 = arith.constant 0 : index
    %1 = vector.load %arg4[%c0_1, %c0_2] : memref<24x512xf32, #tpu.memory_space<vmem>>, vector<16x512xf32>
    %c16 = arith.constant 16 : index
    %c0_3 = arith.constant 0 : index
    %2 = vector.load %arg4[%c16, %c0_3] : memref<24x512xf32, #tpu.memory_space<vmem>>, vector<1x512xf32>
    %cst = arith.constant dense<0.000000e+00> : vector<2x512xf32>
    %3 = tpu.matmul %0, %1, %cst {dimension_numbers = #tpu.dot_dimension_numbers<[1], [0], [0], [1], [0, 0, 1, 1], [], []>} : vector<2x16xf32>, vector<16x512xf32>, vector<2x512xf32> -> vector<2x512xf32>
    %4 = vector.broadcast %2 : vector<1x512xf32> to vector<2x512xf32>
    %5 = arith.addf %3, %4 : vector<2x512xf32>
    %cst_4 = arith.constant 0.000000e+00 : f32
    %6 = vector.broadcast %cst_4 : f32 to vector<2x512xf32>
    %7 = arith.maximumf %5, %6 : vector<2x512xf32>
    %c0_5 = arith.constant 0 : index
    %c0_6 = arith.constant 0 : index
    %8 = vector.load %arg5[%c0_5, %c0_6] : memref<520x384xf32, #tpu.memory_space<vmem>>, vector<512x384xf32>
    %c512 = arith.constant 512 : index
    %c0_7 = arith.constant 0 : index
    %9 = vector.load %arg5[%c512, %c0_7] : memref<520x384xf32, #tpu.memory_space<vmem>>, vector<1x384xf32>
    %cst_8 = arith.constant dense<0.000000e+00> : vector<2x384xf32>
    %10 = tpu.matmul %7, %8, %cst_8 {dimension_numbers = #tpu.dot_dimension_numbers<[1], [0], [0], [1], [0, 0, 1, 1], [], []>} : vector<2x512xf32>, vector<512x384xf32>, vector<2x384xf32> -> vector<2x384xf32>
    %11 = vector.broadcast %9 : vector<1x384xf32> to vector<2x384xf32>
    %12 = arith.addf %10, %11 : vector<2x384xf32>
    %cst_9 = arith.constant 0.000000e+00 : f32
    %13 = vector.broadcast %cst_9 : f32 to vector<2x384xf32>
    %14 = arith.maximumf %12, %13 : vector<2x384xf32>
    %c0_10 = arith.constant 0 : index
    %c0_11 = arith.constant 0 : index
    %15 = vector.load %arg6[%c0_10, %c0_11] : memref<392x32xf32, #tpu.memory_space<vmem>>, vector<384x32xf32>
    %c384 = arith.constant 384 : index
    %c0_12 = arith.constant 0 : index
    %16 = vector.load %arg6[%c384, %c0_12] : memref<392x32xf32, #tpu.memory_space<vmem>>, vector<1x32xf32>
    %cst_13 = arith.constant dense<0.000000e+00> : vector<2x32xf32>
    %17 = tpu.matmul %14, %15, %cst_13 {dimension_numbers = #tpu.dot_dimension_numbers<[1], [0], [0], [1], [0, 0, 1, 1], [], []>} : vector<2x384xf32>, vector<384x32xf32>, vector<2x32xf32> -> vector<2x32xf32>
    %18 = vector.broadcast %16 : vector<1x32xf32> to vector<2x32xf32>
    %19 = arith.addf %17, %18 : vector<2x32xf32>
    %c0_14 = arith.constant 0 : index
    %c0_15 = arith.constant 0 : index
    %c0_16 = arith.constant 0 : index
    %20 = vector.load %arg0[%c0_14, %c0_15, %c0_16] : memref<2x8x32xf32, #tpu.memory_space<vmem>>, vector<2x8x32xf32>
    %21 = vector.shape_cast %20 : vector<2x8x32xf32> to vector<16x32xf32>
    %c0_17 = arith.constant 0 : index
    %c0_18 = arith.constant 0 : index
    %c0_19 = arith.constant 0 : index
    %22 = vector.load %arg7[%c0_17, %c0_18, %c0_19] : memref<15x32x32xf32, #tpu.memory_space<vmem>>, vector<1x32x32xf32>
    %23 = vector.shape_cast %22 : vector<1x32x32xf32> to vector<32x32xf32>
    %c0_20 = arith.constant 0 : index
    %c0_21 = arith.constant 0 : index
    %24 = vector.load %arg10[%c0_20, %c0_21] : memref<54x32xf32, #tpu.memory_space<vmem>>, vector<1x32xf32>
    %cst_22 = arith.constant dense<0.000000e+00> : vector<16x32xf32>
    %25 = tpu.matmul %21, %23, %cst_22 {dimension_numbers = #tpu.dot_dimension_numbers<[1], [0], [0], [1], [0, 0, 1, 1], [], []>} : vector<16x32xf32>, vector<32x32xf32>, vector<16x32xf32> -> vector<16x32xf32>
    %26 = vector.broadcast %24 : vector<1x32xf32> to vector<16x32xf32>
    %27 = arith.addf %25, %26 : vector<16x32xf32>
    %c0_23 = arith.constant 0 : index
    %c0_24 = arith.constant 0 : index
    %28 = vector.load %arg2[%c0_23, %c0_24] : memref<2x8xf32, #tpu.memory_space<vmem>>, vector<2x8xf32>
    %29 = vector.shape_cast %28 : vector<2x8xf32> to vector<2x1x8xf32>
    %c1 = arith.constant 1 : index
    %c0_25 = arith.constant 0 : index
    %c0_26 = arith.constant 0 : index
    %30 = vector.load %arg7[%c1, %c0_25, %c0_26] : memref<15x32x32xf32, #tpu.memory_space<vmem>>, vector<1x32x32xf32>
    %31 = vector.shape_cast %30 : vector<1x32x32xf32> to vector<32x32xf32>
    %cst_27 = arith.constant dense<0.000000e+00> : vector<2x32xf32>
    %32 = tpu.matmul %19, %31, %cst_27 {dimension_numbers = #tpu.dot_dimension_numbers<[1], [0], [0], [1], [0, 0, 1, 1], [], []>} : vector<2x32xf32>, vector<32x32xf32>, vector<2x32xf32> -> vector<2x32xf32>
    %c2 = arith.constant 2 : index
    %c0_28 = arith.constant 0 : index
    %c0_29 = arith.constant 0 : index
    %33 = vector.load %arg7[%c2, %c0_28, %c0_29] : memref<15x32x32xf32, #tpu.memory_space<vmem>>, vector<1x32x32xf32>
    %34 = vector.shape_cast %33 : vector<1x32x32xf32> to vector<32x32xf32>
    %cst_30 = arith.constant dense<0.000000e+00> : vector<2x32xf32>
    %35 = tpu.matmul %32, %34, %cst_30 {dimension_numbers = #tpu.dot_dimension_numbers<[1], [0], [0], [1], [0, 0, 1, 1], [], []>} : vector<2x32xf32>, vector<32x32xf32>, vector<2x32xf32> -> vector<2x32xf32>
    %36 = vector.shape_cast %35 : vector<2x32xf32> to vector<2x1x32xf32>
    %37 = vector.shape_cast %36 : vector<2x1x32xf32> to vector<2x1x32xf32>
    %38 = vector.broadcast %37 : vector<2x1x32xf32> to vector<2x8x32xf32>
    %39 = vector.shape_cast %38 : vector<2x8x32xf32> to vector<16x32xf32>
    %40 = arith.addf %39, %27 : vector<16x32xf32>
    %c2_31 = arith.constant 2 : index
    %c0_32 = arith.constant 0 : index
    %41 = vector.load %arg10[%c2_31, %c0_32] : memref<54x32xf32, #tpu.memory_space<vmem>>, vector<1x32xf32>
    %c3 = arith.constant 3 : index
    %c0_33 = arith.constant 0 : index
    %42 = vector.load %arg10[%c3, %c0_33] : memref<54x32xf32, #tpu.memory_space<vmem>>, vector<1x32xf32>
    %cst_34 = arith.constant dense<0.000000e+00> : vector<16xf32>
    %43 = vector.multi_reduction <add>, %40, %cst_34 [1] : vector<16x32xf32> to vector<16xf32>
    %44 = vector.shape_cast %43 : vector<16xf32> to vector<16x1xf32>
    %cst_35 = arith.constant 3.200000e+01 : f32
    %45 = vector.broadcast %cst_35 : f32 to vector<16x1xf32>
    %46 = arith.divf %44, %45 : vector<16x1xf32>
    %47 = vector.broadcast %46 : vector<16x1xf32> to vector<16x32xf32>
    %48 = arith.subf %40, %47 : vector<16x32xf32>
    %49 = arith.mulf %48, %48 : vector<16x32xf32>
    %cst_36 = arith.constant dense<0.000000e+00> : vector<16xf32>
    %50 = vector.multi_reduction <add>, %49, %cst_36 [1] : vector<16x32xf32> to vector<16xf32>
    %51 = vector.shape_cast %50 : vector<16xf32> to vector<16x1xf32>
    %cst_37 = arith.constant 3.200000e+01 : f32
    %52 = vector.broadcast %cst_37 : f32 to vector<16x1xf32>
    %53 = arith.divf %51, %52 : vector<16x1xf32>
    %cst_38 = arith.constant 9.99999997E-7 : f32
    %54 = vector.broadcast %cst_38 : f32 to vector<16x1xf32>
    %55 = arith.addf %53, %54 : vector<16x1xf32>
    %56 = math.rsqrt %55 : vector<16x1xf32>
    %57 = vector.broadcast %56 : vector<16x1xf32> to vector<16x32xf32>
    %58 = arith.mulf %48, %57 : vector<16x32xf32>
    %59 = vector.broadcast %41 : vector<1x32xf32> to vector<16x32xf32>
    %60 = arith.mulf %58, %59 : vector<16x32xf32>
    %61 = vector.broadcast %42 : vector<1x32xf32> to vector<16x32xf32>
    %62 = arith.addf %60, %61 : vector<16x32xf32>
    %c3_39 = arith.constant 3 : index
    %c0_40 = arith.constant 0 : index
    %c0_41 = arith.constant 0 : index
    %63 = vector.load %arg7[%c3_39, %c0_40, %c0_41] : memref<15x32x32xf32, #tpu.memory_space<vmem>>, vector<1x32x32xf32>
    %64 = vector.shape_cast %63 : vector<1x32x32xf32> to vector<32x32xf32>
    %c4 = arith.constant 4 : index
    %c0_42 = arith.constant 0 : index
    %65 = vector.load %arg10[%c4, %c0_42] : memref<54x32xf32, #tpu.memory_space<vmem>>, vector<1x32xf32>
    %cst_43 = arith.constant dense<0.000000e+00> : vector<16x32xf32>
    %66 = tpu.matmul %27, %64, %cst_43 {dimension_numbers = #tpu.dot_dimension_numbers<[1], [0], [0], [1], [0, 0, 1, 1], [], []>} : vector<16x32xf32>, vector<32x32xf32>, vector<16x32xf32> -> vector<16x32xf32>
    %67 = vector.broadcast %65 : vector<1x32xf32> to vector<16x32xf32>
    %68 = arith.addf %66, %67 : vector<16x32xf32>
    %c4_44 = arith.constant 4 : index
    %c0_45 = arith.constant 0 : index
    %c0_46 = arith.constant 0 : index
    %69 = vector.load %arg7[%c4_44, %c0_45, %c0_46] : memref<15x32x32xf32, #tpu.memory_space<vmem>>, vector<1x32x32xf32>
    %70 = vector.shape_cast %69 : vector<1x32x32xf32> to vector<32x32xf32>
    %c5 = arith.constant 5 : index
    %c0_47 = arith.constant 0 : index
    %71 = vector.load %arg10[%c5, %c0_47] : memref<54x32xf32, #tpu.memory_space<vmem>>, vector<1x32xf32>
    %cst_48 = arith.constant dense<0.000000e+00> : vector<16x32xf32>
    %72 = tpu.matmul %62, %70, %cst_48 {dimension_numbers = #tpu.dot_dimension_numbers<[1], [0], [0], [1], [0, 0, 1, 1], [], []>} : vector<16x32xf32>, vector<32x32xf32>, vector<16x32xf32> -> vector<16x32xf32>
    %73 = vector.broadcast %71 : vector<1x32xf32> to vector<16x32xf32>
    %74 = arith.addf %72, %73 : vector<16x32xf32>
    %75 = arith.addf %68, %74 : vector<16x32xf32>
    %76 = arith.negf %75 : vector<16x32xf32>
    %77 = math.exp %76 : vector<16x32xf32>
    %cst_49 = arith.constant 1.000000e+00 : f32
    %78 = vector.broadcast %cst_49 : f32 to vector<16x32xf32>
    %79 = arith.addf %78, %77 : vector<16x32xf32>
    %80 = arith.divf %78, %79 : vector<16x32xf32>
    %cst_50 = arith.constant 1.000000e+00 : f32
    %81 = vector.broadcast %cst_50 : f32 to vector<16x32xf32>
    %82 = arith.subf %81, %80 : vector<16x32xf32>
    %83 = arith.mulf %82, %27 : vector<16x32xf32>
    %84 = arith.mulf %80, %62 : vector<16x32xf32>
    %85 = arith.addf %83, %84 : vector<16x32xf32>
    %86 = vector.shape_cast %85 : vector<16x32xf32> to vector<2x8x32xf32>
    %c0_51 = arith.constant 0 : index
    %c0_52 = arith.constant 0 : index
    %87 = vector.load %arg3[%c0_51, %c0_52] : memref<2x8xf32, #tpu.memory_space<vmem>>, vector<2x8xf32>
    %88 = vector.shape_cast %87 : vector<2x8xf32> to vector<2x8x1xf32>
    %cst_53 = arith.constant 1.000000e+00 : f32
    %89 = vector.broadcast %cst_53 : f32 to vector<2x8x1xf32>
    %90 = arith.subf %89, %88 : vector<2x8x1xf32>
    %91 = vector.broadcast %90 : vector<2x8x1xf32> to vector<2x8x32xf32>
    %92 = arith.mulf %86, %91 : vector<2x8x32xf32>
    %93 = vector.shape_cast %19 : vector<2x32xf32> to vector<2x1x32xf32>
    %94 = vector.broadcast %88 : vector<2x8x1xf32> to vector<2x8x32xf32>
    %95 = vector.broadcast %93 : vector<2x1x32xf32> to vector<2x8x32xf32>
    %96 = arith.mulf %94, %95 : vector<2x8x32xf32>
    %97 = arith.addf %92, %96 : vector<2x8x32xf32>
    %98 = vector.shape_cast %97 : vector<2x8x32xf32> to vector<16x32xf32>
    %c0_54 = arith.constant 0 : index
    %c0_55 = arith.constant 0 : index
    %c0_56 = arith.constant 0 : index
    %99 = vector.load %arg8[%c0_54, %c0_55, %c0_56] : memref<10x32x128xf32, #tpu.memory_space<vmem>>, vector<1x32x128xf32>
    %100 = vector.shape_cast %99 : vector<1x32x128xf32> to vector<32x128xf32>
    %cst_57 = arith.constant dense<0.000000e+00> : vector<16x128xf32>
    %101 = tpu.matmul %98, %100, %cst_57 {dimension_numbers = #tpu.dot_dimension_numbers<[1], [0], [0], [1], [0, 0, 1, 1], [], []>} : vector<16x32xf32>, vector<32x128xf32>, vector<16x128xf32> -> vector<16x128xf32>
    %102 = vector.extract_strided_slice %101 {offsets = [0, 0], sizes = [16, 32], strides = [1, 1]} : vector<16x128xf32> to vector<16x32xf32>
    %c6 = arith.constant 6 : index
    %c0_58 = arith.constant 0 : index
    %103 = vector.load %arg10[%c6, %c0_58] : memref<54x32xf32, #tpu.memory_space<vmem>>, vector<1x32xf32>
    %104 = vector.broadcast %103 : vector<1x32xf32> to vector<16x32xf32>
    %105 = arith.addf %102, %104 : vector<16x32xf32>
    %106 = vector.shape_cast %105 : vector<16x32xf32> to vector<2x8x32xf32>
    %107 = vector.extract_strided_slice %101 {offsets = [0, 32], sizes = [16, 32], strides = [1, 1]} : vector<16x128xf32> to vector<16x32xf32>
    %c7 = arith.constant 7 : index
    %c0_59 = arith.constant 0 : index
    %108 = vector.load %arg10[%c7, %c0_59] : memref<54x32xf32, #tpu.memory_space<vmem>>, vector<1x32xf32>
    %109 = vector.broadcast %108 : vector<1x32xf32> to vector<16x32xf32>
    %110 = arith.addf %107, %109 : vector<16x32xf32>
    %111 = vector.shape_cast %110 : vector<16x32xf32> to vector<2x8x32xf32>
    %112 = vector.extract_strided_slice %101 {offsets = [0, 64], sizes = [16, 32], strides = [1, 1]} : vector<16x128xf32> to vector<16x32xf32>
    %c8 = arith.constant 8 : index
    %c0_60 = arith.constant 0 : index
    %113 = vector.load %arg10[%c8, %c0_60] : memref<54x32xf32, #tpu.memory_space<vmem>>, vector<1x32xf32>
    %114 = vector.broadcast %113 : vector<1x32xf32> to vector<16x32xf32>
    %115 = arith.addf %112, %114 : vector<16x32xf32>
    %116 = vector.shape_cast %115 : vector<16x32xf32> to vector<2x8x32xf32>
    %c5_61 = arith.constant 5 : index
    %c0_62 = arith.constant 0 : index
    %c0_63 = arith.constant 0 : index
    %117 = vector.load %arg7[%c5_61, %c0_62, %c0_63] : memref<15x32x32xf32, #tpu.memory_space<vmem>>, vector<1x32x32xf32>
    %118 = vector.shape_cast %117 : vector<1x32x32xf32> to vector<32x32xf32>
    %c9 = arith.constant 9 : index
    %c0_64 = arith.constant 0 : index
    %119 = vector.load %arg10[%c9, %c0_64] : memref<54x32xf32, #tpu.memory_space<vmem>>, vector<1x32xf32>
    %120 = vector.extract_strided_slice %106 {offsets = [0, 0, 0], sizes = [2, 8, 16], strides = [1, 1, 1]} : vector<2x8x32xf32> to vector<2x8x16xf32>
    %121 = vector.extract_strided_slice %111 {offsets = [0, 0, 0], sizes = [2, 8, 16], strides = [1, 1, 1]} : vector<2x8x32xf32> to vector<2x8x16xf32>
    %cst_65 = arith.constant dense<0.000000e+00> : vector<2x8x8xf32>
    %122 = tpu.matmul %120, %121, %cst_65 {dimension_numbers = #tpu.dot_dimension_numbers<[2], [2], [1], [1], [0, 0, 0, 1, 1, 1], [0], [0]>} : vector<2x8x16xf32>, vector<2x8x16xf32>, vector<2x8x8xf32> -> vector<2x8x8xf32>
    %cst_66 = arith.constant 2.500000e-01 : f32
    %123 = vector.broadcast %cst_66 : f32 to vector<2x8x8xf32>
    %124 = arith.mulf %122, %123 : vector<2x8x8xf32>
    %125 = vector.broadcast %29 : vector<2x1x8xf32> to vector<2x8x8xf32>
    %126 = arith.addf %124, %125 : vector<2x8x8xf32>
    %cst_67 = arith.constant dense<0xFF800000> : vector<2x8xf32>
    %127 = vector.multi_reduction <maximumf>, %126, %cst_67 [2] : vector<2x8x8xf32> to vector<2x8xf32>
    %128 = vector.shape_cast %127 : vector<2x8xf32> to vector<2x8x1xf32>
    %129 = vector.broadcast %128 : vector<2x8x1xf32> to vector<2x8x8xf32>
    %130 = arith.subf %126, %129 : vector<2x8x8xf32>
    %131 = math.exp %130 : vector<2x8x8xf32>
    %cst_68 = arith.constant dense<0.000000e+00> : vector<2x8xf32>
    %132 = vector.multi_reduction <add>, %131, %cst_68 [2] : vector<2x8x8xf32> to vector<2x8xf32>
    %133 = vector.shape_cast %132 : vector<2x8xf32> to vector<2x8x1xf32>
    %134 = vector.broadcast %133 : vector<2x8x1xf32> to vector<2x8x8xf32>
    %135 = arith.divf %131, %134 : vector<2x8x8xf32>
    %136 = vector.extract_strided_slice %116 {offsets = [0, 0, 0], sizes = [2, 8, 16], strides = [1, 1, 1]} : vector<2x8x32xf32> to vector<2x8x16xf32>
    %cst_69 = arith.constant dense<0.000000e+00> : vector<2x8x16xf32>
    %137 = tpu.matmul %135, %136, %cst_69 {dimension_numbers = #tpu.dot_dimension_numbers<[2], [1], [1], [2], [0, 0, 0, 1, 1, 2], [0], [0]>} : vector<2x8x8xf32>, vector<2x8x16xf32>, vector<2x8x16xf32> -> vector<2x8x16xf32>
    %138 = vector.extract_strided_slice %106 {offsets = [0, 0, 16], sizes = [2, 8, 16], strides = [1, 1, 1]} : vector<2x8x32xf32> to vector<2x8x16xf32>
    %139 = vector.extract_strided_slice %111 {offsets = [0, 0, 16], sizes = [2, 8, 16], strides = [1, 1, 1]} : vector<2x8x32xf32> to vector<2x8x16xf32>
    %cst_70 = arith.constant dense<0.000000e+00> : vector<2x8x8xf32>
    %140 = tpu.matmul %138, %139, %cst_70 {dimension_numbers = #tpu.dot_dimension_numbers<[2], [2], [1], [1], [0, 0, 0, 1, 1, 1], [0], [0]>} : vector<2x8x16xf32>, vector<2x8x16xf32>, vector<2x8x8xf32> -> vector<2x8x8xf32>
    %cst_71 = arith.constant 2.500000e-01 : f32
    %141 = vector.broadcast %cst_71 : f32 to vector<2x8x8xf32>
    %142 = arith.mulf %140, %141 : vector<2x8x8xf32>
    %143 = vector.broadcast %29 : vector<2x1x8xf32> to vector<2x8x8xf32>
    %144 = arith.addf %142, %143 : vector<2x8x8xf32>
    %cst_72 = arith.constant dense<0xFF800000> : vector<2x8xf32>
    %145 = vector.multi_reduction <maximumf>, %144, %cst_72 [2] : vector<2x8x8xf32> to vector<2x8xf32>
    %146 = vector.shape_cast %145 : vector<2x8xf32> to vector<2x8x1xf32>
    %147 = vector.broadcast %146 : vector<2x8x1xf32> to vector<2x8x8xf32>
    %148 = arith.subf %144, %147 : vector<2x8x8xf32>
    %149 = math.exp %148 : vector<2x8x8xf32>
    %cst_73 = arith.constant dense<0.000000e+00> : vector<2x8xf32>
    %150 = vector.multi_reduction <add>, %149, %cst_73 [2] : vector<2x8x8xf32> to vector<2x8xf32>
    %151 = vector.shape_cast %150 : vector<2x8xf32> to vector<2x8x1xf32>
    %152 = vector.broadcast %151 : vector<2x8x1xf32> to vector<2x8x8xf32>
    %153 = arith.divf %149, %152 : vector<2x8x8xf32>
    %154 = vector.extract_strided_slice %116 {offsets = [0, 0, 16], sizes = [2, 8, 16], strides = [1, 1, 1]} : vector<2x8x32xf32> to vector<2x8x16xf32>
    %cst_74 = arith.constant dense<0.000000e+00> : vector<2x8x16xf32>
    %155 = tpu.matmul %153, %154, %cst_74 {dimension_numbers = #tpu.dot_dimension_numbers<[2], [1], [1], [2], [0, 0, 0, 1, 1, 2], [0], [0]>} : vector<2x8x8xf32>, vector<2x8x16xf32>, vector<2x8x16xf32> -> vector<2x8x16xf32>
    %156 = tpu.concatenate %137, %155 in 2 : vector<2x8x16xf32>, vector<2x8x16xf32> -> vector<2x8x32xf32>
    %157 = vector.shape_cast %156 : vector<2x8x32xf32> to vector<16x32xf32>
    %cst_75 = arith.constant dense<0.000000e+00> : vector<16x32xf32>
    %158 = tpu.matmul %157, %118, %cst_75 {dimension_numbers = #tpu.dot_dimension_numbers<[1], [0], [0], [1], [0, 0, 1, 1], [], []>} : vector<16x32xf32>, vector<32x32xf32>, vector<16x32xf32> -> vector<16x32xf32>
    %159 = vector.broadcast %119 : vector<1x32xf32> to vector<16x32xf32>
    %160 = arith.addf %158, %159 : vector<16x32xf32>
    %161 = arith.addf %98, %160 : vector<16x32xf32>
    %c11 = arith.constant 11 : index
    %c0_76 = arith.constant 0 : index
    %162 = vector.load %arg10[%c11, %c0_76] : memref<54x32xf32, #tpu.memory_space<vmem>>, vector<1x32xf32>
    %c12 = arith.constant 12 : index
    %c0_77 = arith.constant 0 : index
    %163 = vector.load %arg10[%c12, %c0_77] : memref<54x32xf32, #tpu.memory_space<vmem>>, vector<1x32xf32>
    %cst_78 = arith.constant dense<0.000000e+00> : vector<16xf32>
    %164 = vector.multi_reduction <add>, %161, %cst_78 [1] : vector<16x32xf32> to vector<16xf32>
    %165 = vector.shape_cast %164 : vector<16xf32> to vector<16x1xf32>
    %cst_79 = arith.constant 3.200000e+01 : f32
    %166 = vector.broadcast %cst_79 : f32 to vector<16x1xf32>
    %167 = arith.divf %165, %166 : vector<16x1xf32>
    %168 = vector.broadcast %167 : vector<16x1xf32> to vector<16x32xf32>
    %169 = arith.subf %161, %168 : vector<16x32xf32>
    %170 = arith.mulf %169, %169 : vector<16x32xf32>
    %cst_80 = arith.constant dense<0.000000e+00> : vector<16xf32>
    %171 = vector.multi_reduction <add>, %170, %cst_80 [1] : vector<16x32xf32> to vector<16xf32>
    %172 = vector.shape_cast %171 : vector<16xf32> to vector<16x1xf32>
    %cst_81 = arith.constant 3.200000e+01 : f32
    %173 = vector.broadcast %cst_81 : f32 to vector<16x1xf32>
    %174 = arith.divf %172, %173 : vector<16x1xf32>
    %cst_82 = arith.constant 9.99999974E-6 : f32
    %175 = vector.broadcast %cst_82 : f32 to vector<16x1xf32>
    %176 = arith.addf %174, %175 : vector<16x1xf32>
    %177 = math.rsqrt %176 : vector<16x1xf32>
    %178 = vector.broadcast %177 : vector<16x1xf32> to vector<16x32xf32>
    %179 = arith.mulf %169, %178 : vector<16x32xf32>
    %180 = vector.broadcast %162 : vector<1x32xf32> to vector<16x32xf32>
    %181 = arith.mulf %179, %180 : vector<16x32xf32>
    %182 = vector.broadcast %163 : vector<1x32xf32> to vector<16x32xf32>
    %183 = arith.addf %181, %182 : vector<16x32xf32>
    %c1_83 = arith.constant 1 : index
    %c0_84 = arith.constant 0 : index
    %c0_85 = arith.constant 0 : index
    %184 = vector.load %arg8[%c1_83, %c0_84, %c0_85] : memref<10x32x128xf32, #tpu.memory_space<vmem>>, vector<1x32x128xf32>
    %185 = vector.shape_cast %184 : vector<1x32x128xf32> to vector<32x128xf32>
    %c0_86 = arith.constant 0 : index
    %c0_87 = arith.constant 0 : index
    %186 = vector.load %arg11[%c0_86, %c0_87] : memref<8x128xf32, #tpu.memory_space<vmem>>, vector<1x128xf32>
    %cst_88 = arith.constant dense<0.000000e+00> : vector<16x128xf32>
    %187 = tpu.matmul %183, %185, %cst_88 {dimension_numbers = #tpu.dot_dimension_numbers<[1], [0], [0], [1], [0, 0, 1, 1], [], []>} : vector<16x32xf32>, vector<32x128xf32>, vector<16x128xf32> -> vector<16x128xf32>
    %188 = vector.broadcast %186 : vector<1x128xf32> to vector<16x128xf32>
    %189 = arith.addf %187, %188 : vector<16x128xf32>
    %cst_89 = arith.constant 0.000000e+00 : f32
    %190 = vector.broadcast %cst_89 : f32 to vector<16x128xf32>
    %191 = arith.maximumf %189, %190 : vector<16x128xf32>
    %c0_90 = arith.constant 0 : index
    %c0_91 = arith.constant 0 : index
    %c0_92 = arith.constant 0 : index
    %192 = vector.load %arg9[%c0_90, %c0_91, %c0_92] : memref<4x128x32xf32, #tpu.memory_space<vmem>>, vector<1x128x32xf32>
    %193 = vector.shape_cast %192 : vector<1x128x32xf32> to vector<128x32xf32>
    %c10 = arith.constant 10 : index
    %c0_93 = arith.constant 0 : index
    %194 = vector.load %arg10[%c10, %c0_93] : memref<54x32xf32, #tpu.memory_space<vmem>>, vector<1x32xf32>
    %cst_94 = arith.constant dense<0.000000e+00> : vector<16x32xf32>
    %195 = tpu.matmul %191, %193, %cst_94 {dimension_numbers = #tpu.dot_dimension_numbers<[1], [0], [0], [1], [0, 0, 1, 1], [], []>} : vector<16x128xf32>, vector<128x32xf32>, vector<16x32xf32> -> vector<16x32xf32>
    %196 = vector.broadcast %194 : vector<1x32xf32> to vector<16x32xf32>
    %197 = arith.addf %195, %196 : vector<16x32xf32>
    %198 = arith.addf %183, %197 : vector<16x32xf32>
    %c13 = arith.constant 13 : index
    %c0_95 = arith.constant 0 : index
    %199 = vector.load %arg10[%c13, %c0_95] : memref<54x32xf32, #tpu.memory_space<vmem>>, vector<1x32xf32>
    %c14 = arith.constant 14 : index
    %c0_96 = arith.constant 0 : index
    %200 = vector.load %arg10[%c14, %c0_96] : memref<54x32xf32, #tpu.memory_space<vmem>>, vector<1x32xf32>
    %cst_97 = arith.constant dense<0.000000e+00> : vector<16xf32>
    %201 = vector.multi_reduction <add>, %198, %cst_97 [1] : vector<16x32xf32> to vector<16xf32>
    %202 = vector.shape_cast %201 : vector<16xf32> to vector<16x1xf32>
    %cst_98 = arith.constant 3.200000e+01 : f32
    %203 = vector.broadcast %cst_98 : f32 to vector<16x1xf32>
    %204 = arith.divf %202, %203 : vector<16x1xf32>
    %205 = vector.broadcast %204 : vector<16x1xf32> to vector<16x32xf32>
    %206 = arith.subf %198, %205 : vector<16x32xf32>
    %207 = arith.mulf %206, %206 : vector<16x32xf32>
    %cst_99 = arith.constant dense<0.000000e+00> : vector<16xf32>
    %208 = vector.multi_reduction <add>, %207, %cst_99 [1] : vector<16x32xf32> to vector<16xf32>
    %209 = vector.shape_cast %208 : vector<16xf32> to vector<16x1xf32>
    %cst_100 = arith.constant 3.200000e+01 : f32
    %210 = vector.broadcast %cst_100 : f32 to vector<16x1xf32>
    %211 = arith.divf %209, %210 : vector<16x1xf32>
    %cst_101 = arith.constant 9.99999974E-6 : f32
    %212 = vector.broadcast %cst_101 : f32 to vector<16x1xf32>
    %213 = arith.addf %211, %212 : vector<16x1xf32>
    %214 = math.rsqrt %213 : vector<16x1xf32>
    %215 = vector.broadcast %214 : vector<16x1xf32> to vector<16x32xf32>
    %216 = arith.mulf %206, %215 : vector<16x32xf32>
    %217 = vector.broadcast %199 : vector<1x32xf32> to vector<16x32xf32>
    %218 = arith.mulf %216, %217 : vector<16x32xf32>
    %219 = vector.broadcast %200 : vector<1x32xf32> to vector<16x32xf32>
    %220 = arith.addf %218, %219 : vector<16x32xf32>
    %221 = vector.shape_cast %220 : vector<16x32xf32> to vector<2x8x32xf32>
    %222 = vector.shape_cast %221 : vector<2x8x32xf32> to vector<16x32xf32>
    %c2_102 = arith.constant 2 : index
    %c0_103 = arith.constant 0 : index
    %c0_104 = arith.constant 0 : index
    %223 = vector.load %arg8[%c2_102, %c0_103, %c0_104] : memref<10x32x128xf32, #tpu.memory_space<vmem>>, vector<1x32x128xf32>
    %224 = vector.shape_cast %223 : vector<1x32x128xf32> to vector<32x128xf32>
    %cst_105 = arith.constant dense<0.000000e+00> : vector<16x128xf32>
    %225 = tpu.matmul %222, %224, %cst_105 {dimension_numbers = #tpu.dot_dimension_numbers<[1], [0], [0], [1], [0, 0, 1, 1], [], []>} : vector<16x32xf32>, vector<32x128xf32>, vector<16x128xf32> -> vector<16x128xf32>
    %226 = vector.extract_strided_slice %225 {offsets = [0, 0], sizes = [16, 32], strides = [1, 1]} : vector<16x128xf32> to vector<16x32xf32>
    %c15 = arith.constant 15 : index
    %c0_106 = arith.constant 0 : index
    %227 = vector.load %arg10[%c15, %c0_106] : memref<54x32xf32, #tpu.memory_space<vmem>>, vector<1x32xf32>
    %228 = vector.broadcast %227 : vector<1x32xf32> to vector<16x32xf32>
    %229 = arith.addf %226, %228 : vector<16x32xf32>
    %230 = vector.shape_cast %229 : vector<16x32xf32> to vector<2x8x32xf32>
    %231 = vector.extract_strided_slice %225 {offsets = [0, 32], sizes = [16, 32], strides = [1, 1]} : vector<16x128xf32> to vector<16x32xf32>
    %c16_107 = arith.constant 16 : index
    %c0_108 = arith.constant 0 : index
    %232 = vector.load %arg10[%c16_107, %c0_108] : memref<54x32xf32, #tpu.memory_space<vmem>>, vector<1x32xf32>
    %233 = vector.broadcast %232 : vector<1x32xf32> to vector<16x32xf32>
    %234 = arith.addf %231, %233 : vector<16x32xf32>
    %235 = vector.shape_cast %234 : vector<16x32xf32> to vector<2x8x32xf32>
    %236 = vector.extract_strided_slice %225 {offsets = [0, 64], sizes = [16, 32], strides = [1, 1]} : vector<16x128xf32> to vector<16x32xf32>
    %c17 = arith.constant 17 : index
    %c0_109 = arith.constant 0 : index
    %237 = vector.load %arg10[%c17, %c0_109] : memref<54x32xf32, #tpu.memory_space<vmem>>, vector<1x32xf32>
    %238 = vector.broadcast %237 : vector<1x32xf32> to vector<16x32xf32>
    %239 = arith.addf %236, %238 : vector<16x32xf32>
    %240 = vector.shape_cast %239 : vector<16x32xf32> to vector<2x8x32xf32>
    %c6_110 = arith.constant 6 : index
    %c0_111 = arith.constant 0 : index
    %c0_112 = arith.constant 0 : index
    %241 = vector.load %arg7[%c6_110, %c0_111, %c0_112] : memref<15x32x32xf32, #tpu.memory_space<vmem>>, vector<1x32x32xf32>
    %242 = vector.shape_cast %241 : vector<1x32x32xf32> to vector<32x32xf32>
    %c18 = arith.constant 18 : index
    %c0_113 = arith.constant 0 : index
    %243 = vector.load %arg10[%c18, %c0_113] : memref<54x32xf32, #tpu.memory_space<vmem>>, vector<1x32xf32>
    %244 = vector.extract_strided_slice %230 {offsets = [0, 0, 0], sizes = [2, 8, 16], strides = [1, 1, 1]} : vector<2x8x32xf32> to vector<2x8x16xf32>
    %245 = vector.extract_strided_slice %235 {offsets = [0, 0, 0], sizes = [2, 8, 16], strides = [1, 1, 1]} : vector<2x8x32xf32> to vector<2x8x16xf32>
    %cst_114 = arith.constant dense<0.000000e+00> : vector<2x8x8xf32>
    %246 = tpu.matmul %244, %245, %cst_114 {dimension_numbers = #tpu.dot_dimension_numbers<[2], [2], [1], [1], [0, 0, 0, 1, 1, 1], [0], [0]>} : vector<2x8x16xf32>, vector<2x8x16xf32>, vector<2x8x8xf32> -> vector<2x8x8xf32>
    %cst_115 = arith.constant 2.500000e-01 : f32
    %247 = vector.broadcast %cst_115 : f32 to vector<2x8x8xf32>
    %248 = arith.mulf %246, %247 : vector<2x8x8xf32>
    %249 = vector.broadcast %29 : vector<2x1x8xf32> to vector<2x8x8xf32>
    %250 = arith.addf %248, %249 : vector<2x8x8xf32>
    %cst_116 = arith.constant dense<0xFF800000> : vector<2x8xf32>
    %251 = vector.multi_reduction <maximumf>, %250, %cst_116 [2] : vector<2x8x8xf32> to vector<2x8xf32>
    %252 = vector.shape_cast %251 : vector<2x8xf32> to vector<2x8x1xf32>
    %253 = vector.broadcast %252 : vector<2x8x1xf32> to vector<2x8x8xf32>
    %254 = arith.subf %250, %253 : vector<2x8x8xf32>
    %255 = math.exp %254 : vector<2x8x8xf32>
    %cst_117 = arith.constant dense<0.000000e+00> : vector<2x8xf32>
    %256 = vector.multi_reduction <add>, %255, %cst_117 [2] : vector<2x8x8xf32> to vector<2x8xf32>
    %257 = vector.shape_cast %256 : vector<2x8xf32> to vector<2x8x1xf32>
    %258 = vector.broadcast %257 : vector<2x8x1xf32> to vector<2x8x8xf32>
    %259 = arith.divf %255, %258 : vector<2x8x8xf32>
    %260 = vector.extract_strided_slice %240 {offsets = [0, 0, 0], sizes = [2, 8, 16], strides = [1, 1, 1]} : vector<2x8x32xf32> to vector<2x8x16xf32>
    %cst_118 = arith.constant dense<0.000000e+00> : vector<2x8x16xf32>
    %261 = tpu.matmul %259, %260, %cst_118 {dimension_numbers = #tpu.dot_dimension_numbers<[2], [1], [1], [2], [0, 0, 0, 1, 1, 2], [0], [0]>} : vector<2x8x8xf32>, vector<2x8x16xf32>, vector<2x8x16xf32> -> vector<2x8x16xf32>
    %262 = vector.extract_strided_slice %230 {offsets = [0, 0, 16], sizes = [2, 8, 16], strides = [1, 1, 1]} : vector<2x8x32xf32> to vector<2x8x16xf32>
    %263 = vector.extract_strided_slice %235 {offsets = [0, 0, 16], sizes = [2, 8, 16], strides = [1, 1, 1]} : vector<2x8x32xf32> to vector<2x8x16xf32>
    %cst_119 = arith.constant dense<0.000000e+00> : vector<2x8x8xf32>
    %264 = tpu.matmul %262, %263, %cst_119 {dimension_numbers = #tpu.dot_dimension_numbers<[2], [2], [1], [1], [0, 0, 0, 1, 1, 1], [0], [0]>} : vector<2x8x16xf32>, vector<2x8x16xf32>, vector<2x8x8xf32> -> vector<2x8x8xf32>
    %cst_120 = arith.constant 2.500000e-01 : f32
    %265 = vector.broadcast %cst_120 : f32 to vector<2x8x8xf32>
    %266 = arith.mulf %264, %265 : vector<2x8x8xf32>
    %267 = vector.broadcast %29 : vector<2x1x8xf32> to vector<2x8x8xf32>
    %268 = arith.addf %266, %267 : vector<2x8x8xf32>
    %cst_121 = arith.constant dense<0xFF800000> : vector<2x8xf32>
    %269 = vector.multi_reduction <maximumf>, %268, %cst_121 [2] : vector<2x8x8xf32> to vector<2x8xf32>
    %270 = vector.shape_cast %269 : vector<2x8xf32> to vector<2x8x1xf32>
    %271 = vector.broadcast %270 : vector<2x8x1xf32> to vector<2x8x8xf32>
    %272 = arith.subf %268, %271 : vector<2x8x8xf32>
    %273 = math.exp %272 : vector<2x8x8xf32>
    %cst_122 = arith.constant dense<0.000000e+00> : vector<2x8xf32>
    %274 = vector.multi_reduction <add>, %273, %cst_122 [2] : vector<2x8x8xf32> to vector<2x8xf32>
    %275 = vector.shape_cast %274 : vector<2x8xf32> to vector<2x8x1xf32>
    %276 = vector.broadcast %275 : vector<2x8x1xf32> to vector<2x8x8xf32>
    %277 = arith.divf %273, %276 : vector<2x8x8xf32>
    %278 = vector.extract_strided_slice %240 {offsets = [0, 0, 16], sizes = [2, 8, 16], strides = [1, 1, 1]} : vector<2x8x32xf32> to vector<2x8x16xf32>
    %cst_123 = arith.constant dense<0.000000e+00> : vector<2x8x16xf32>
    %279 = tpu.matmul %277, %278, %cst_123 {dimension_numbers = #tpu.dot_dimension_numbers<[2], [1], [1], [2], [0, 0, 0, 1, 1, 2], [0], [0]>} : vector<2x8x8xf32>, vector<2x8x16xf32>, vector<2x8x16xf32> -> vector<2x8x16xf32>
    %280 = tpu.concatenate %261, %279 in 2 : vector<2x8x16xf32>, vector<2x8x16xf32> -> vector<2x8x32xf32>
    %281 = vector.shape_cast %280 : vector<2x8x32xf32> to vector<16x32xf32>
    %cst_124 = arith.constant dense<0.000000e+00> : vector<16x32xf32>
    %282 = tpu.matmul %281, %242, %cst_124 {dimension_numbers = #tpu.dot_dimension_numbers<[1], [0], [0], [1], [0, 0, 1, 1], [], []>} : vector<16x32xf32>, vector<32x32xf32>, vector<16x32xf32> -> vector<16x32xf32>
    %283 = vector.broadcast %243 : vector<1x32xf32> to vector<16x32xf32>
    %284 = arith.addf %282, %283 : vector<16x32xf32>
    %285 = arith.addf %222, %284 : vector<16x32xf32>
    %c20 = arith.constant 20 : index
    %c0_125 = arith.constant 0 : index
    %286 = vector.load %arg10[%c20, %c0_125] : memref<54x32xf32, #tpu.memory_space<vmem>>, vector<1x32xf32>
    %c21 = arith.constant 21 : index
    %c0_126 = arith.constant 0 : index
    %287 = vector.load %arg10[%c21, %c0_126] : memref<54x32xf32, #tpu.memory_space<vmem>>, vector<1x32xf32>
    %cst_127 = arith.constant dense<0.000000e+00> : vector<16xf32>
    %288 = vector.multi_reduction <add>, %285, %cst_127 [1] : vector<16x32xf32> to vector<16xf32>
    %289 = vector.shape_cast %288 : vector<16xf32> to vector<16x1xf32>
    %cst_128 = arith.constant 3.200000e+01 : f32
    %290 = vector.broadcast %cst_128 : f32 to vector<16x1xf32>
    %291 = arith.divf %289, %290 : vector<16x1xf32>
    %292 = vector.broadcast %291 : vector<16x1xf32> to vector<16x32xf32>
    %293 = arith.subf %285, %292 : vector<16x32xf32>
    %294 = arith.mulf %293, %293 : vector<16x32xf32>
    %cst_129 = arith.constant dense<0.000000e+00> : vector<16xf32>
    %295 = vector.multi_reduction <add>, %294, %cst_129 [1] : vector<16x32xf32> to vector<16xf32>
    %296 = vector.shape_cast %295 : vector<16xf32> to vector<16x1xf32>
    %cst_130 = arith.constant 3.200000e+01 : f32
    %297 = vector.broadcast %cst_130 : f32 to vector<16x1xf32>
    %298 = arith.divf %296, %297 : vector<16x1xf32>
    %cst_131 = arith.constant 9.99999974E-6 : f32
    %299 = vector.broadcast %cst_131 : f32 to vector<16x1xf32>
    %300 = arith.addf %298, %299 : vector<16x1xf32>
    %301 = math.rsqrt %300 : vector<16x1xf32>
    %302 = vector.broadcast %301 : vector<16x1xf32> to vector<16x32xf32>
    %303 = arith.mulf %293, %302 : vector<16x32xf32>
    %304 = vector.broadcast %286 : vector<1x32xf32> to vector<16x32xf32>
    %305 = arith.mulf %303, %304 : vector<16x32xf32>
    %306 = vector.broadcast %287 : vector<1x32xf32> to vector<16x32xf32>
    %307 = arith.addf %305, %306 : vector<16x32xf32>
    %c3_132 = arith.constant 3 : index
    %c0_133 = arith.constant 0 : index
    %c0_134 = arith.constant 0 : index
    %308 = vector.load %arg8[%c3_132, %c0_133, %c0_134] : memref<10x32x128xf32, #tpu.memory_space<vmem>>, vector<1x32x128xf32>
    %309 = vector.shape_cast %308 : vector<1x32x128xf32> to vector<32x128xf32>
    %c1_135 = arith.constant 1 : index
    %c0_136 = arith.constant 0 : index
    %310 = vector.load %arg11[%c1_135, %c0_136] : memref<8x128xf32, #tpu.memory_space<vmem>>, vector<1x128xf32>
    %cst_137 = arith.constant dense<0.000000e+00> : vector<16x128xf32>
    %311 = tpu.matmul %307, %309, %cst_137 {dimension_numbers = #tpu.dot_dimension_numbers<[1], [0], [0], [1], [0, 0, 1, 1], [], []>} : vector<16x32xf32>, vector<32x128xf32>, vector<16x128xf32> -> vector<16x128xf32>
    %312 = vector.broadcast %310 : vector<1x128xf32> to vector<16x128xf32>
    %313 = arith.addf %311, %312 : vector<16x128xf32>
    %cst_138 = arith.constant 0.000000e+00 : f32
    %314 = vector.broadcast %cst_138 : f32 to vector<16x128xf32>
    %315 = arith.maximumf %313, %314 : vector<16x128xf32>
    %c1_139 = arith.constant 1 : index
    %c0_140 = arith.constant 0 : index
    %c0_141 = arith.constant 0 : index
    %316 = vector.load %arg9[%c1_139, %c0_140, %c0_141] : memref<4x128x32xf32, #tpu.memory_space<vmem>>, vector<1x128x32xf32>
    %317 = vector.shape_cast %316 : vector<1x128x32xf32> to vector<128x32xf32>
    %c19 = arith.constant 19 : index
    %c0_142 = arith.constant 0 : index
    %318 = vector.load %arg10[%c19, %c0_142] : memref<54x32xf32, #tpu.memory_space<vmem>>, vector<1x32xf32>
    %cst_143 = arith.constant dense<0.000000e+00> : vector<16x32xf32>
    %319 = tpu.matmul %315, %317, %cst_143 {dimension_numbers = #tpu.dot_dimension_numbers<[1], [0], [0], [1], [0, 0, 1, 1], [], []>} : vector<16x128xf32>, vector<128x32xf32>, vector<16x32xf32> -> vector<16x32xf32>
    %320 = vector.broadcast %318 : vector<1x32xf32> to vector<16x32xf32>
    %321 = arith.addf %319, %320 : vector<16x32xf32>
    %322 = arith.addf %307, %321 : vector<16x32xf32>
    %c22 = arith.constant 22 : index
    %c0_144 = arith.constant 0 : index
    %323 = vector.load %arg10[%c22, %c0_144] : memref<54x32xf32, #tpu.memory_space<vmem>>, vector<1x32xf32>
    %c23 = arith.constant 23 : index
    %c0_145 = arith.constant 0 : index
    %324 = vector.load %arg10[%c23, %c0_145] : memref<54x32xf32, #tpu.memory_space<vmem>>, vector<1x32xf32>
    %cst_146 = arith.constant dense<0.000000e+00> : vector<16xf32>
    %325 = vector.multi_reduction <add>, %322, %cst_146 [1] : vector<16x32xf32> to vector<16xf32>
    %326 = vector.shape_cast %325 : vector<16xf32> to vector<16x1xf32>
    %cst_147 = arith.constant 3.200000e+01 : f32
    %327 = vector.broadcast %cst_147 : f32 to vector<16x1xf32>
    %328 = arith.divf %326, %327 : vector<16x1xf32>
    %329 = vector.broadcast %328 : vector<16x1xf32> to vector<16x32xf32>
    %330 = arith.subf %322, %329 : vector<16x32xf32>
    %331 = arith.mulf %330, %330 : vector<16x32xf32>
    %cst_148 = arith.constant dense<0.000000e+00> : vector<16xf32>
    %332 = vector.multi_reduction <add>, %331, %cst_148 [1] : vector<16x32xf32> to vector<16xf32>
    %333 = vector.shape_cast %332 : vector<16xf32> to vector<16x1xf32>
    %cst_149 = arith.constant 3.200000e+01 : f32
    %334 = vector.broadcast %cst_149 : f32 to vector<16x1xf32>
    %335 = arith.divf %333, %334 : vector<16x1xf32>
    %cst_150 = arith.constant 9.99999974E-6 : f32
    %336 = vector.broadcast %cst_150 : f32 to vector<16x1xf32>
    %337 = arith.addf %335, %336 : vector<16x1xf32>
    %338 = math.rsqrt %337 : vector<16x1xf32>
    %339 = vector.broadcast %338 : vector<16x1xf32> to vector<16x32xf32>
    %340 = arith.mulf %330, %339 : vector<16x32xf32>
    %341 = vector.broadcast %323 : vector<1x32xf32> to vector<16x32xf32>
    %342 = arith.mulf %340, %341 : vector<16x32xf32>
    %343 = vector.broadcast %324 : vector<1x32xf32> to vector<16x32xf32>
    %344 = arith.addf %342, %343 : vector<16x32xf32>
    %345 = vector.shape_cast %344 : vector<16x32xf32> to vector<2x8x32xf32>
    %346 = vector.shape_cast %345 : vector<2x8x32xf32> to vector<16x32xf32>
    %c24 = arith.constant 24 : index
    %c0_151 = arith.constant 0 : index
    %347 = vector.load %arg10[%c24, %c0_151] : memref<54x32xf32, #tpu.memory_space<vmem>>, vector<1x32xf32>
    %c25 = arith.constant 25 : index
    %c0_152 = arith.constant 0 : index
    %348 = vector.load %arg10[%c25, %c0_152] : memref<54x32xf32, #tpu.memory_space<vmem>>, vector<1x32xf32>
    %cst_153 = arith.constant dense<0.000000e+00> : vector<16xf32>
    %349 = vector.multi_reduction <add>, %346, %cst_153 [1] : vector<16x32xf32> to vector<16xf32>
    %350 = vector.shape_cast %349 : vector<16xf32> to vector<16x1xf32>
    %cst_154 = arith.constant 3.200000e+01 : f32
    %351 = vector.broadcast %cst_154 : f32 to vector<16x1xf32>
    %352 = arith.divf %350, %351 : vector<16x1xf32>
    %353 = vector.broadcast %352 : vector<16x1xf32> to vector<16x32xf32>
    %354 = arith.subf %346, %353 : vector<16x32xf32>
    %355 = arith.mulf %354, %354 : vector<16x32xf32>
    %cst_155 = arith.constant dense<0.000000e+00> : vector<16xf32>
    %356 = vector.multi_reduction <add>, %355, %cst_155 [1] : vector<16x32xf32> to vector<16xf32>
    %357 = vector.shape_cast %356 : vector<16xf32> to vector<16x1xf32>
    %cst_156 = arith.constant 3.200000e+01 : f32
    %358 = vector.broadcast %cst_156 : f32 to vector<16x1xf32>
    %359 = arith.divf %357, %358 : vector<16x1xf32>
    %cst_157 = arith.constant 9.99999974E-6 : f32
    %360 = vector.broadcast %cst_157 : f32 to vector<16x1xf32>
    %361 = arith.addf %359, %360 : vector<16x1xf32>
    %362 = math.rsqrt %361 : vector<16x1xf32>
    %363 = vector.broadcast %362 : vector<16x1xf32> to vector<16x32xf32>
    %364 = arith.mulf %354, %363 : vector<16x32xf32>
    %365 = vector.broadcast %347 : vector<1x32xf32> to vector<16x32xf32>
    %366 = arith.mulf %364, %365 : vector<16x32xf32>
    %367 = vector.broadcast %348 : vector<1x32xf32> to vector<16x32xf32>
    %368 = arith.addf %366, %367 : vector<16x32xf32>
    %c1_158 = arith.constant 1 : index
    %c0_159 = arith.constant 0 : index
    %369 = vector.load %arg10[%c1_158, %c0_159] : memref<54x32xf32, #tpu.memory_space<vmem>>, vector<1x32xf32>
    %370 = vector.shape_cast %369 : vector<1x32xf32> to vector<1x32xf32>
    %371 = vector.broadcast %370 : vector<1x32xf32> to vector<2x32xf32>
    %c7_160 = arith.constant 7 : index
    %c0_161 = arith.constant 0 : index
    %c0_162 = arith.constant 0 : index
    %372 = vector.load %arg7[%c7_160, %c0_161, %c0_162] : memref<15x32x32xf32, #tpu.memory_space<vmem>>, vector<1x32x32xf32>
    %373 = vector.shape_cast %372 : vector<1x32x32xf32> to vector<32x32xf32>
    %c26 = arith.constant 26 : index
    %c0_163 = arith.constant 0 : index
    %374 = vector.load %arg10[%c26, %c0_163] : memref<54x32xf32, #tpu.memory_space<vmem>>, vector<1x32xf32>
    %cst_164 = arith.constant dense<0.000000e+00> : vector<2x32xf32>
    %375 = tpu.matmul %371, %373, %cst_164 {dimension_numbers = #tpu.dot_dimension_numbers<[1], [0], [0], [1], [0, 0, 1, 1], [], []>} : vector<2x32xf32>, vector<32x32xf32>, vector<2x32xf32> -> vector<2x32xf32>
    %376 = vector.broadcast %374 : vector<1x32xf32> to vector<2x32xf32>
    %377 = arith.addf %375, %376 : vector<2x32xf32>
    %c8_165 = arith.constant 8 : index
    %c0_166 = arith.constant 0 : index
    %c0_167 = arith.constant 0 : index
    %378 = vector.load %arg7[%c8_165, %c0_166, %c0_167] : memref<15x32x32xf32, #tpu.memory_space<vmem>>, vector<1x32x32xf32>
    %379 = vector.shape_cast %378 : vector<1x32x32xf32> to vector<32x32xf32>
    %c27 = arith.constant 27 : index
    %c0_168 = arith.constant 0 : index
    %380 = vector.load %arg10[%c27, %c0_168] : memref<54x32xf32, #tpu.memory_space<vmem>>, vector<1x32xf32>
    %cst_169 = arith.constant dense<0.000000e+00> : vector<2x32xf32>
    %381 = tpu.matmul %377, %379, %cst_169 {dimension_numbers = #tpu.dot_dimension_numbers<[1], [0], [0], [1], [0, 0, 1, 1], [], []>} : vector<2x32xf32>, vector<32x32xf32>, vector<2x32xf32> -> vector<2x32xf32>
    %382 = vector.broadcast %380 : vector<1x32xf32> to vector<2x32xf32>
    %383 = arith.addf %381, %382 : vector<2x32xf32>
    %384 = arith.addf %371, %383 : vector<2x32xf32>
    %c33 = arith.constant 33 : index
    %c0_170 = arith.constant 0 : index
    %385 = vector.load %arg10[%c33, %c0_170] : memref<54x32xf32, #tpu.memory_space<vmem>>, vector<1x32xf32>
    %c34 = arith.constant 34 : index
    %c0_171 = arith.constant 0 : index
    %386 = vector.load %arg10[%c34, %c0_171] : memref<54x32xf32, #tpu.memory_space<vmem>>, vector<1x32xf32>
    %cst_172 = arith.constant dense<0.000000e+00> : vector<2xf32>
    %387 = vector.multi_reduction <add>, %384, %cst_172 [1] : vector<2x32xf32> to vector<2xf32>
    %388 = vector.shape_cast %387 : vector<2xf32> to vector<2x1xf32>
    %cst_173 = arith.constant 3.200000e+01 : f32
    %389 = vector.broadcast %cst_173 : f32 to vector<2x1xf32>
    %390 = arith.divf %388, %389 : vector<2x1xf32>
    %391 = vector.broadcast %390 : vector<2x1xf32> to vector<2x32xf32>
    %392 = arith.subf %384, %391 : vector<2x32xf32>
    %393 = arith.mulf %392, %392 : vector<2x32xf32>
    %cst_174 = arith.constant dense<0.000000e+00> : vector<2xf32>
    %394 = vector.multi_reduction <add>, %393, %cst_174 [1] : vector<2x32xf32> to vector<2xf32>
    %395 = vector.shape_cast %394 : vector<2xf32> to vector<2x1xf32>
    %cst_175 = arith.constant 3.200000e+01 : f32
    %396 = vector.broadcast %cst_175 : f32 to vector<2x1xf32>
    %397 = arith.divf %395, %396 : vector<2x1xf32>
    %cst_176 = arith.constant 9.99999974E-6 : f32
    %398 = vector.broadcast %cst_176 : f32 to vector<2x1xf32>
    %399 = arith.addf %397, %398 : vector<2x1xf32>
    %400 = math.rsqrt %399 : vector<2x1xf32>
    %401 = vector.broadcast %400 : vector<2x1xf32> to vector<2x32xf32>
    %402 = arith.mulf %392, %401 : vector<2x32xf32>
    %403 = vector.broadcast %385 : vector<1x32xf32> to vector<2x32xf32>
    %404 = arith.mulf %402, %403 : vector<2x32xf32>
    %405 = vector.broadcast %386 : vector<1x32xf32> to vector<2x32xf32>
    %406 = arith.addf %404, %405 : vector<2x32xf32>
    %c9_177 = arith.constant 9 : index
    %c0_178 = arith.constant 0 : index
    %c0_179 = arith.constant 0 : index
    %407 = vector.load %arg7[%c9_177, %c0_178, %c0_179] : memref<15x32x32xf32, #tpu.memory_space<vmem>>, vector<1x32x32xf32>
    %408 = vector.shape_cast %407 : vector<1x32x32xf32> to vector<32x32xf32>
    %c28 = arith.constant 28 : index
    %c0_180 = arith.constant 0 : index
    %409 = vector.load %arg10[%c28, %c0_180] : memref<54x32xf32, #tpu.memory_space<vmem>>, vector<1x32xf32>
    %cst_181 = arith.constant dense<0.000000e+00> : vector<2x32xf32>
    %410 = tpu.matmul %406, %408, %cst_181 {dimension_numbers = #tpu.dot_dimension_numbers<[1], [0], [0], [1], [0, 0, 1, 1], [], []>} : vector<2x32xf32>, vector<32x32xf32>, vector<2x32xf32> -> vector<2x32xf32>
    %411 = vector.broadcast %409 : vector<1x32xf32> to vector<2x32xf32>
    %412 = arith.addf %410, %411 : vector<2x32xf32>
    %413 = vector.shape_cast %412 : vector<2x32xf32> to vector<2x1x32xf32>
    %c4_182 = arith.constant 4 : index
    %c0_183 = arith.constant 0 : index
    %c0_184 = arith.constant 0 : index
    %414 = vector.load %arg8[%c4_182, %c0_183, %c0_184] : memref<10x32x128xf32, #tpu.memory_space<vmem>>, vector<1x32x128xf32>
    %415 = vector.shape_cast %414 : vector<1x32x128xf32> to vector<32x128xf32>
    %cst_185 = arith.constant dense<0.000000e+00> : vector<16x128xf32>
    %416 = tpu.matmul %368, %415, %cst_185 {dimension_numbers = #tpu.dot_dimension_numbers<[1], [0], [0], [1], [0, 0, 1, 1], [], []>} : vector<16x32xf32>, vector<32x128xf32>, vector<16x128xf32> -> vector<16x128xf32>
    %417 = vector.extract_strided_slice %416 {offsets = [0, 0], sizes = [16, 32], strides = [1, 1]} : vector<16x128xf32> to vector<16x32xf32>
    %c29 = arith.constant 29 : index
    %c0_186 = arith.constant 0 : index
    %418 = vector.load %arg10[%c29, %c0_186] : memref<54x32xf32, #tpu.memory_space<vmem>>, vector<1x32xf32>
    %419 = vector.broadcast %418 : vector<1x32xf32> to vector<16x32xf32>
    %420 = arith.addf %417, %419 : vector<16x32xf32>
    %421 = vector.shape_cast %420 : vector<16x32xf32> to vector<2x8x32xf32>
    %422 = vector.extract_strided_slice %416 {offsets = [0, 32], sizes = [16, 32], strides = [1, 1]} : vector<16x128xf32> to vector<16x32xf32>
    %c30 = arith.constant 30 : index
    %c0_187 = arith.constant 0 : index
    %423 = vector.load %arg10[%c30, %c0_187] : memref<54x32xf32, #tpu.memory_space<vmem>>, vector<1x32xf32>
    %424 = vector.broadcast %423 : vector<1x32xf32> to vector<16x32xf32>
    %425 = arith.addf %422, %424 : vector<16x32xf32>
    %426 = vector.shape_cast %425 : vector<16x32xf32> to vector<2x8x32xf32>
    %c10_188 = arith.constant 10 : index
    %c0_189 = arith.constant 0 : index
    %c0_190 = arith.constant 0 : index
    %427 = vector.load %arg7[%c10_188, %c0_189, %c0_190] : memref<15x32x32xf32, #tpu.memory_space<vmem>>, vector<1x32x32xf32>
    %428 = vector.shape_cast %427 : vector<1x32x32xf32> to vector<32x32xf32>
    %c31 = arith.constant 31 : index
    %c0_191 = arith.constant 0 : index
    %429 = vector.load %arg10[%c31, %c0_191] : memref<54x32xf32, #tpu.memory_space<vmem>>, vector<1x32xf32>
    %430 = vector.extract_strided_slice %413 {offsets = [0, 0, 0], sizes = [2, 1, 16], strides = [1, 1, 1]} : vector<2x1x32xf32> to vector<2x1x16xf32>
    %431 = vector.extract_strided_slice %421 {offsets = [0, 0, 0], sizes = [2, 8, 16], strides = [1, 1, 1]} : vector<2x8x32xf32> to vector<2x8x16xf32>
    %cst_192 = arith.constant dense<0.000000e+00> : vector<2x1x8xf32>
    %432 = tpu.matmul %430, %431, %cst_192 {dimension_numbers = #tpu.dot_dimension_numbers<[2], [2], [1], [1], [0, 0, 0, 1, 1, 1], [0], [0]>} : vector<2x1x16xf32>, vector<2x8x16xf32>, vector<2x1x8xf32> -> vector<2x1x8xf32>
    %cst_193 = arith.constant 2.500000e-01 : f32
    %433 = vector.broadcast %cst_193 : f32 to vector<2x1x8xf32>
    %434 = arith.mulf %432, %433 : vector<2x1x8xf32>
    %435 = arith.addf %434, %29 : vector<2x1x8xf32>
    %cst_194 = arith.constant dense<0xFF800000> : vector<2x1xf32>
    %436 = vector.multi_reduction <maximumf>, %435, %cst_194 [2] : vector<2x1x8xf32> to vector<2x1xf32>
    %437 = vector.shape_cast %436 : vector<2x1xf32> to vector<2x1x1xf32>
    %438 = vector.broadcast %437 : vector<2x1x1xf32> to vector<2x1x8xf32>
    %439 = arith.subf %435, %438 : vector<2x1x8xf32>
    %440 = math.exp %439 : vector<2x1x8xf32>
    %cst_195 = arith.constant dense<0.000000e+00> : vector<2x1xf32>
    %441 = vector.multi_reduction <add>, %440, %cst_195 [2] : vector<2x1x8xf32> to vector<2x1xf32>
    %442 = vector.shape_cast %441 : vector<2x1xf32> to vector<2x1x1xf32>
    %443 = vector.broadcast %442 : vector<2x1x1xf32> to vector<2x1x8xf32>
    %444 = arith.divf %440, %443 : vector<2x1x8xf32>
    %445 = vector.extract_strided_slice %426 {offsets = [0, 0, 0], sizes = [2, 8, 16], strides = [1, 1, 1]} : vector<2x8x32xf32> to vector<2x8x16xf32>
    %cst_196 = arith.constant dense<0.000000e+00> : vector<2x1x16xf32>
    %446 = tpu.matmul %444, %445, %cst_196 {dimension_numbers = #tpu.dot_dimension_numbers<[2], [1], [1], [2], [0, 0, 0, 1, 1, 2], [0], [0]>} : vector<2x1x8xf32>, vector<2x8x16xf32>, vector<2x1x16xf32> -> vector<2x1x16xf32>
    %447 = vector.extract_strided_slice %413 {offsets = [0, 0, 16], sizes = [2, 1, 16], strides = [1, 1, 1]} : vector<2x1x32xf32> to vector<2x1x16xf32>
    %448 = vector.extract_strided_slice %421 {offsets = [0, 0, 16], sizes = [2, 8, 16], strides = [1, 1, 1]} : vector<2x8x32xf32> to vector<2x8x16xf32>
    %cst_197 = arith.constant dense<0.000000e+00> : vector<2x1x8xf32>
    %449 = tpu.matmul %447, %448, %cst_197 {dimension_numbers = #tpu.dot_dimension_numbers<[2], [2], [1], [1], [0, 0, 0, 1, 1, 1], [0], [0]>} : vector<2x1x16xf32>, vector<2x8x16xf32>, vector<2x1x8xf32> -> vector<2x1x8xf32>
    %cst_198 = arith.constant 2.500000e-01 : f32
    %450 = vector.broadcast %cst_198 : f32 to vector<2x1x8xf32>
    %451 = arith.mulf %449, %450 : vector<2x1x8xf32>
    %452 = arith.addf %451, %29 : vector<2x1x8xf32>
    %cst_199 = arith.constant dense<0xFF800000> : vector<2x1xf32>
    %453 = vector.multi_reduction <maximumf>, %452, %cst_199 [2] : vector<2x1x8xf32> to vector<2x1xf32>
    %454 = vector.shape_cast %453 : vector<2x1xf32> to vector<2x1x1xf32>
    %455 = vector.broadcast %454 : vector<2x1x1xf32> to vector<2x1x8xf32>
    %456 = arith.subf %452, %455 : vector<2x1x8xf32>
    %457 = math.exp %456 : vector<2x1x8xf32>
    %cst_200 = arith.constant dense<0.000000e+00> : vector<2x1xf32>
    %458 = vector.multi_reduction <add>, %457, %cst_200 [2] : vector<2x1x8xf32> to vector<2x1xf32>
    %459 = vector.shape_cast %458 : vector<2x1xf32> to vector<2x1x1xf32>
    %460 = vector.broadcast %459 : vector<2x1x1xf32> to vector<2x1x8xf32>
    %461 = arith.divf %457, %460 : vector<2x1x8xf32>
    %462 = vector.extract_strided_slice %426 {offsets = [0, 0, 16], sizes = [2, 8, 16], strides = [1, 1, 1]} : vector<2x8x32xf32> to vector<2x8x16xf32>
    %cst_201 = arith.constant dense<0.000000e+00> : vector<2x1x16xf32>
    %463 = tpu.matmul %461, %462, %cst_201 {dimension_numbers = #tpu.dot_dimension_numbers<[2], [1], [1], [2], [0, 0, 0, 1, 1, 2], [0], [0]>} : vector<2x1x8xf32>, vector<2x8x16xf32>, vector<2x1x16xf32> -> vector<2x1x16xf32>
    %464 = tpu.concatenate %446, %463 in 2 : vector<2x1x16xf32>, vector<2x1x16xf32> -> vector<2x1x32xf32>
    %465 = vector.shape_cast %464 : vector<2x1x32xf32> to vector<2x32xf32>
    %cst_202 = arith.constant dense<0.000000e+00> : vector<2x32xf32>
    %466 = tpu.matmul %465, %428, %cst_202 {dimension_numbers = #tpu.dot_dimension_numbers<[1], [0], [0], [1], [0, 0, 1, 1], [], []>} : vector<2x32xf32>, vector<32x32xf32>, vector<2x32xf32> -> vector<2x32xf32>
    %467 = vector.broadcast %429 : vector<1x32xf32> to vector<2x32xf32>
    %468 = arith.addf %466, %467 : vector<2x32xf32>
    %469 = arith.addf %406, %468 : vector<2x32xf32>
    %c35 = arith.constant 35 : index
    %c0_203 = arith.constant 0 : index
    %470 = vector.load %arg10[%c35, %c0_203] : memref<54x32xf32, #tpu.memory_space<vmem>>, vector<1x32xf32>
    %c36 = arith.constant 36 : index
    %c0_204 = arith.constant 0 : index
    %471 = vector.load %arg10[%c36, %c0_204] : memref<54x32xf32, #tpu.memory_space<vmem>>, vector<1x32xf32>
    %cst_205 = arith.constant dense<0.000000e+00> : vector<2xf32>
    %472 = vector.multi_reduction <add>, %469, %cst_205 [1] : vector<2x32xf32> to vector<2xf32>
    %473 = vector.shape_cast %472 : vector<2xf32> to vector<2x1xf32>
    %cst_206 = arith.constant 3.200000e+01 : f32
    %474 = vector.broadcast %cst_206 : f32 to vector<2x1xf32>
    %475 = arith.divf %473, %474 : vector<2x1xf32>
    %476 = vector.broadcast %475 : vector<2x1xf32> to vector<2x32xf32>
    %477 = arith.subf %469, %476 : vector<2x32xf32>
    %478 = arith.mulf %477, %477 : vector<2x32xf32>
    %cst_207 = arith.constant dense<0.000000e+00> : vector<2xf32>
    %479 = vector.multi_reduction <add>, %478, %cst_207 [1] : vector<2x32xf32> to vector<2xf32>
    %480 = vector.shape_cast %479 : vector<2xf32> to vector<2x1xf32>
    %cst_208 = arith.constant 3.200000e+01 : f32
    %481 = vector.broadcast %cst_208 : f32 to vector<2x1xf32>
    %482 = arith.divf %480, %481 : vector<2x1xf32>
    %cst_209 = arith.constant 9.99999974E-6 : f32
    %483 = vector.broadcast %cst_209 : f32 to vector<2x1xf32>
    %484 = arith.addf %482, %483 : vector<2x1xf32>
    %485 = math.rsqrt %484 : vector<2x1xf32>
    %486 = vector.broadcast %485 : vector<2x1xf32> to vector<2x32xf32>
    %487 = arith.mulf %477, %486 : vector<2x32xf32>
    %488 = vector.broadcast %470 : vector<1x32xf32> to vector<2x32xf32>
    %489 = arith.mulf %487, %488 : vector<2x32xf32>
    %490 = vector.broadcast %471 : vector<1x32xf32> to vector<2x32xf32>
    %491 = arith.addf %489, %490 : vector<2x32xf32>
    %c5_210 = arith.constant 5 : index
    %c0_211 = arith.constant 0 : index
    %c0_212 = arith.constant 0 : index
    %492 = vector.load %arg8[%c5_210, %c0_211, %c0_212] : memref<10x32x128xf32, #tpu.memory_space<vmem>>, vector<1x32x128xf32>
    %493 = vector.shape_cast %492 : vector<1x32x128xf32> to vector<32x128xf32>
    %c2_213 = arith.constant 2 : index
    %c0_214 = arith.constant 0 : index
    %494 = vector.load %arg11[%c2_213, %c0_214] : memref<8x128xf32, #tpu.memory_space<vmem>>, vector<1x128xf32>
    %cst_215 = arith.constant dense<0.000000e+00> : vector<2x128xf32>
    %495 = tpu.matmul %491, %493, %cst_215 {dimension_numbers = #tpu.dot_dimension_numbers<[1], [0], [0], [1], [0, 0, 1, 1], [], []>} : vector<2x32xf32>, vector<32x128xf32>, vector<2x128xf32> -> vector<2x128xf32>
    %496 = vector.broadcast %494 : vector<1x128xf32> to vector<2x128xf32>
    %497 = arith.addf %495, %496 : vector<2x128xf32>
    %cst_216 = arith.constant 0.000000e+00 : f32
    %498 = vector.broadcast %cst_216 : f32 to vector<2x128xf32>
    %499 = arith.maximumf %497, %498 : vector<2x128xf32>
    %c2_217 = arith.constant 2 : index
    %c0_218 = arith.constant 0 : index
    %c0_219 = arith.constant 0 : index
    %500 = vector.load %arg9[%c2_217, %c0_218, %c0_219] : memref<4x128x32xf32, #tpu.memory_space<vmem>>, vector<1x128x32xf32>
    %501 = vector.shape_cast %500 : vector<1x128x32xf32> to vector<128x32xf32>
    %c32 = arith.constant 32 : index
    %c0_220 = arith.constant 0 : index
    %502 = vector.load %arg10[%c32, %c0_220] : memref<54x32xf32, #tpu.memory_space<vmem>>, vector<1x32xf32>
    %cst_221 = arith.constant dense<0.000000e+00> : vector<2x32xf32>
    %503 = tpu.matmul %499, %501, %cst_221 {dimension_numbers = #tpu.dot_dimension_numbers<[1], [0], [0], [1], [0, 0, 1, 1], [], []>} : vector<2x128xf32>, vector<128x32xf32>, vector<2x32xf32> -> vector<2x32xf32>
    %504 = vector.broadcast %502 : vector<1x32xf32> to vector<2x32xf32>
    %505 = arith.addf %503, %504 : vector<2x32xf32>
    %506 = arith.addf %491, %505 : vector<2x32xf32>
    %c37 = arith.constant 37 : index
    %c0_222 = arith.constant 0 : index
    %507 = vector.load %arg10[%c37, %c0_222] : memref<54x32xf32, #tpu.memory_space<vmem>>, vector<1x32xf32>
    %c38 = arith.constant 38 : index
    %c0_223 = arith.constant 0 : index
    %508 = vector.load %arg10[%c38, %c0_223] : memref<54x32xf32, #tpu.memory_space<vmem>>, vector<1x32xf32>
    %cst_224 = arith.constant dense<0.000000e+00> : vector<2xf32>
    %509 = vector.multi_reduction <add>, %506, %cst_224 [1] : vector<2x32xf32> to vector<2xf32>
    %510 = vector.shape_cast %509 : vector<2xf32> to vector<2x1xf32>
    %cst_225 = arith.constant 3.200000e+01 : f32
    %511 = vector.broadcast %cst_225 : f32 to vector<2x1xf32>
    %512 = arith.divf %510, %511 : vector<2x1xf32>
    %513 = vector.broadcast %512 : vector<2x1xf32> to vector<2x32xf32>
    %514 = arith.subf %506, %513 : vector<2x32xf32>
    %515 = arith.mulf %514, %514 : vector<2x32xf32>
    %cst_226 = arith.constant dense<0.000000e+00> : vector<2xf32>
    %516 = vector.multi_reduction <add>, %515, %cst_226 [1] : vector<2x32xf32> to vector<2xf32>
    %517 = vector.shape_cast %516 : vector<2xf32> to vector<2x1xf32>
    %cst_227 = arith.constant 3.200000e+01 : f32
    %518 = vector.broadcast %cst_227 : f32 to vector<2x1xf32>
    %519 = arith.divf %517, %518 : vector<2x1xf32>
    %cst_228 = arith.constant 9.99999974E-6 : f32
    %520 = vector.broadcast %cst_228 : f32 to vector<2x1xf32>
    %521 = arith.addf %519, %520 : vector<2x1xf32>
    %522 = math.rsqrt %521 : vector<2x1xf32>
    %523 = vector.broadcast %522 : vector<2x1xf32> to vector<2x32xf32>
    %524 = arith.mulf %514, %523 : vector<2x32xf32>
    %525 = vector.broadcast %507 : vector<1x32xf32> to vector<2x32xf32>
    %526 = arith.mulf %524, %525 : vector<2x32xf32>
    %527 = vector.broadcast %508 : vector<1x32xf32> to vector<2x32xf32>
    %528 = arith.addf %526, %527 : vector<2x32xf32>
    %c11_229 = arith.constant 11 : index
    %c0_230 = arith.constant 0 : index
    %c0_231 = arith.constant 0 : index
    %529 = vector.load %arg7[%c11_229, %c0_230, %c0_231] : memref<15x32x32xf32, #tpu.memory_space<vmem>>, vector<1x32x32xf32>
    %530 = vector.shape_cast %529 : vector<1x32x32xf32> to vector<32x32xf32>
    %c39 = arith.constant 39 : index
    %c0_232 = arith.constant 0 : index
    %531 = vector.load %arg10[%c39, %c0_232] : memref<54x32xf32, #tpu.memory_space<vmem>>, vector<1x32xf32>
    %cst_233 = arith.constant dense<0.000000e+00> : vector<2x32xf32>
    %532 = tpu.matmul %528, %530, %cst_233 {dimension_numbers = #tpu.dot_dimension_numbers<[1], [0], [0], [1], [0, 0, 1, 1], [], []>} : vector<2x32xf32>, vector<32x32xf32>, vector<2x32xf32> -> vector<2x32xf32>
    %533 = vector.broadcast %531 : vector<1x32xf32> to vector<2x32xf32>
    %534 = arith.addf %532, %533 : vector<2x32xf32>
    %c12_234 = arith.constant 12 : index
    %c0_235 = arith.constant 0 : index
    %c0_236 = arith.constant 0 : index
    %535 = vector.load %arg7[%c12_234, %c0_235, %c0_236] : memref<15x32x32xf32, #tpu.memory_space<vmem>>, vector<1x32x32xf32>
    %536 = vector.shape_cast %535 : vector<1x32x32xf32> to vector<32x32xf32>
    %c40 = arith.constant 40 : index
    %c0_237 = arith.constant 0 : index
    %537 = vector.load %arg10[%c40, %c0_237] : memref<54x32xf32, #tpu.memory_space<vmem>>, vector<1x32xf32>
    %cst_238 = arith.constant dense<0.000000e+00> : vector<2x32xf32>
    %538 = tpu.matmul %534, %536, %cst_238 {dimension_numbers = #tpu.dot_dimension_numbers<[1], [0], [0], [1], [0, 0, 1, 1], [], []>} : vector<2x32xf32>, vector<32x32xf32>, vector<2x32xf32> -> vector<2x32xf32>
    %539 = vector.broadcast %537 : vector<1x32xf32> to vector<2x32xf32>
    %540 = arith.addf %538, %539 : vector<2x32xf32>
    %541 = arith.addf %528, %540 : vector<2x32xf32>
    %c46 = arith.constant 46 : index
    %c0_239 = arith.constant 0 : index
    %542 = vector.load %arg10[%c46, %c0_239] : memref<54x32xf32, #tpu.memory_space<vmem>>, vector<1x32xf32>
    %c47 = arith.constant 47 : index
    %c0_240 = arith.constant 0 : index
    %543 = vector.load %arg10[%c47, %c0_240] : memref<54x32xf32, #tpu.memory_space<vmem>>, vector<1x32xf32>
    %cst_241 = arith.constant dense<0.000000e+00> : vector<2xf32>
    %544 = vector.multi_reduction <add>, %541, %cst_241 [1] : vector<2x32xf32> to vector<2xf32>
    %545 = vector.shape_cast %544 : vector<2xf32> to vector<2x1xf32>
    %cst_242 = arith.constant 3.200000e+01 : f32
    %546 = vector.broadcast %cst_242 : f32 to vector<2x1xf32>
    %547 = arith.divf %545, %546 : vector<2x1xf32>
    %548 = vector.broadcast %547 : vector<2x1xf32> to vector<2x32xf32>
    %549 = arith.subf %541, %548 : vector<2x32xf32>
    %550 = arith.mulf %549, %549 : vector<2x32xf32>
    %cst_243 = arith.constant dense<0.000000e+00> : vector<2xf32>
    %551 = vector.multi_reduction <add>, %550, %cst_243 [1] : vector<2x32xf32> to vector<2xf32>
    %552 = vector.shape_cast %551 : vector<2xf32> to vector<2x1xf32>
    %cst_244 = arith.constant 3.200000e+01 : f32
    %553 = vector.broadcast %cst_244 : f32 to vector<2x1xf32>
    %554 = arith.divf %552, %553 : vector<2x1xf32>
    %cst_245 = arith.constant 9.99999974E-6 : f32
    %555 = vector.broadcast %cst_245 : f32 to vector<2x1xf32>
    %556 = arith.addf %554, %555 : vector<2x1xf32>
    %557 = math.rsqrt %556 : vector<2x1xf32>
    %558 = vector.broadcast %557 : vector<2x1xf32> to vector<2x32xf32>
    %559 = arith.mulf %549, %558 : vector<2x32xf32>
    %560 = vector.broadcast %542 : vector<1x32xf32> to vector<2x32xf32>
    %561 = arith.mulf %559, %560 : vector<2x32xf32>
    %562 = vector.broadcast %543 : vector<1x32xf32> to vector<2x32xf32>
    %563 = arith.addf %561, %562 : vector<2x32xf32>
    %c13_246 = arith.constant 13 : index
    %c0_247 = arith.constant 0 : index
    %c0_248 = arith.constant 0 : index
    %564 = vector.load %arg7[%c13_246, %c0_247, %c0_248] : memref<15x32x32xf32, #tpu.memory_space<vmem>>, vector<1x32x32xf32>
    %565 = vector.shape_cast %564 : vector<1x32x32xf32> to vector<32x32xf32>
    %c41 = arith.constant 41 : index
    %c0_249 = arith.constant 0 : index
    %566 = vector.load %arg10[%c41, %c0_249] : memref<54x32xf32, #tpu.memory_space<vmem>>, vector<1x32xf32>
    %cst_250 = arith.constant dense<0.000000e+00> : vector<2x32xf32>
    %567 = tpu.matmul %563, %565, %cst_250 {dimension_numbers = #tpu.dot_dimension_numbers<[1], [0], [0], [1], [0, 0, 1, 1], [], []>} : vector<2x32xf32>, vector<32x32xf32>, vector<2x32xf32> -> vector<2x32xf32>
    %568 = vector.broadcast %566 : vector<1x32xf32> to vector<2x32xf32>
    %569 = arith.addf %567, %568 : vector<2x32xf32>
    %570 = vector.shape_cast %569 : vector<2x32xf32> to vector<2x1x32xf32>
    %c6_251 = arith.constant 6 : index
    %c0_252 = arith.constant 0 : index
    %c0_253 = arith.constant 0 : index
    %571 = vector.load %arg8[%c6_251, %c0_252, %c0_253] : memref<10x32x128xf32, #tpu.memory_space<vmem>>, vector<1x32x128xf32>
    %572 = vector.shape_cast %571 : vector<1x32x128xf32> to vector<32x128xf32>
    %cst_254 = arith.constant dense<0.000000e+00> : vector<16x128xf32>
    %573 = tpu.matmul %368, %572, %cst_254 {dimension_numbers = #tpu.dot_dimension_numbers<[1], [0], [0], [1], [0, 0, 1, 1], [], []>} : vector<16x32xf32>, vector<32x128xf32>, vector<16x128xf32> -> vector<16x128xf32>
    %574 = vector.extract_strided_slice %573 {offsets = [0, 0], sizes = [16, 32], strides = [1, 1]} : vector<16x128xf32> to vector<16x32xf32>
    %c42 = arith.constant 42 : index
    %c0_255 = arith.constant 0 : index
    %575 = vector.load %arg10[%c42, %c0_255] : memref<54x32xf32, #tpu.memory_space<vmem>>, vector<1x32xf32>
    %576 = vector.broadcast %575 : vector<1x32xf32> to vector<16x32xf32>
    %577 = arith.addf %574, %576 : vector<16x32xf32>
    %578 = vector.shape_cast %577 : vector<16x32xf32> to vector<2x8x32xf32>
    %579 = vector.extract_strided_slice %573 {offsets = [0, 32], sizes = [16, 32], strides = [1, 1]} : vector<16x128xf32> to vector<16x32xf32>
    %c43 = arith.constant 43 : index
    %c0_256 = arith.constant 0 : index
    %580 = vector.load %arg10[%c43, %c0_256] : memref<54x32xf32, #tpu.memory_space<vmem>>, vector<1x32xf32>
    %581 = vector.broadcast %580 : vector<1x32xf32> to vector<16x32xf32>
    %582 = arith.addf %579, %581 : vector<16x32xf32>
    %583 = vector.shape_cast %582 : vector<16x32xf32> to vector<2x8x32xf32>
    %c14_257 = arith.constant 14 : index
    %c0_258 = arith.constant 0 : index
    %c0_259 = arith.constant 0 : index
    %584 = vector.load %arg7[%c14_257, %c0_258, %c0_259] : memref<15x32x32xf32, #tpu.memory_space<vmem>>, vector<1x32x32xf32>
    %585 = vector.shape_cast %584 : vector<1x32x32xf32> to vector<32x32xf32>
    %c44 = arith.constant 44 : index
    %c0_260 = arith.constant 0 : index
    %586 = vector.load %arg10[%c44, %c0_260] : memref<54x32xf32, #tpu.memory_space<vmem>>, vector<1x32xf32>
    %587 = vector.extract_strided_slice %570 {offsets = [0, 0, 0], sizes = [2, 1, 16], strides = [1, 1, 1]} : vector<2x1x32xf32> to vector<2x1x16xf32>
    %588 = vector.extract_strided_slice %578 {offsets = [0, 0, 0], sizes = [2, 8, 16], strides = [1, 1, 1]} : vector<2x8x32xf32> to vector<2x8x16xf32>
    %cst_261 = arith.constant dense<0.000000e+00> : vector<2x1x8xf32>
    %589 = tpu.matmul %587, %588, %cst_261 {dimension_numbers = #tpu.dot_dimension_numbers<[2], [2], [1], [1], [0, 0, 0, 1, 1, 1], [0], [0]>} : vector<2x1x16xf32>, vector<2x8x16xf32>, vector<2x1x8xf32> -> vector<2x1x8xf32>
    %cst_262 = arith.constant 2.500000e-01 : f32
    %590 = vector.broadcast %cst_262 : f32 to vector<2x1x8xf32>
    %591 = arith.mulf %589, %590 : vector<2x1x8xf32>
    %592 = arith.addf %591, %29 : vector<2x1x8xf32>
    %cst_263 = arith.constant dense<0xFF800000> : vector<2x1xf32>
    %593 = vector.multi_reduction <maximumf>, %592, %cst_263 [2] : vector<2x1x8xf32> to vector<2x1xf32>
    %594 = vector.shape_cast %593 : vector<2x1xf32> to vector<2x1x1xf32>
    %595 = vector.broadcast %594 : vector<2x1x1xf32> to vector<2x1x8xf32>
    %596 = arith.subf %592, %595 : vector<2x1x8xf32>
    %597 = math.exp %596 : vector<2x1x8xf32>
    %cst_264 = arith.constant dense<0.000000e+00> : vector<2x1xf32>
    %598 = vector.multi_reduction <add>, %597, %cst_264 [2] : vector<2x1x8xf32> to vector<2x1xf32>
    %599 = vector.shape_cast %598 : vector<2x1xf32> to vector<2x1x1xf32>
    %600 = vector.broadcast %599 : vector<2x1x1xf32> to vector<2x1x8xf32>
    %601 = arith.divf %597, %600 : vector<2x1x8xf32>
    %602 = vector.extract_strided_slice %583 {offsets = [0, 0, 0], sizes = [2, 8, 16], strides = [1, 1, 1]} : vector<2x8x32xf32> to vector<2x8x16xf32>
    %cst_265 = arith.constant dense<0.000000e+00> : vector<2x1x16xf32>
    %603 = tpu.matmul %601, %602, %cst_265 {dimension_numbers = #tpu.dot_dimension_numbers<[2], [1], [1], [2], [0, 0, 0, 1, 1, 2], [0], [0]>} : vector<2x1x8xf32>, vector<2x8x16xf32>, vector<2x1x16xf32> -> vector<2x1x16xf32>
    %604 = vector.extract_strided_slice %570 {offsets = [0, 0, 16], sizes = [2, 1, 16], strides = [1, 1, 1]} : vector<2x1x32xf32> to vector<2x1x16xf32>
    %605 = vector.extract_strided_slice %578 {offsets = [0, 0, 16], sizes = [2, 8, 16], strides = [1, 1, 1]} : vector<2x8x32xf32> to vector<2x8x16xf32>
    %cst_266 = arith.constant dense<0.000000e+00> : vector<2x1x8xf32>
    %606 = tpu.matmul %604, %605, %cst_266 {dimension_numbers = #tpu.dot_dimension_numbers<[2], [2], [1], [1], [0, 0, 0, 1, 1, 1], [0], [0]>} : vector<2x1x16xf32>, vector<2x8x16xf32>, vector<2x1x8xf32> -> vector<2x1x8xf32>
    %cst_267 = arith.constant 2.500000e-01 : f32
    %607 = vector.broadcast %cst_267 : f32 to vector<2x1x8xf32>
    %608 = arith.mulf %606, %607 : vector<2x1x8xf32>
    %609 = arith.addf %608, %29 : vector<2x1x8xf32>
    %cst_268 = arith.constant dense<0xFF800000> : vector<2x1xf32>
    %610 = vector.multi_reduction <maximumf>, %609, %cst_268 [2] : vector<2x1x8xf32> to vector<2x1xf32>
    %611 = vector.shape_cast %610 : vector<2x1xf32> to vector<2x1x1xf32>
    %612 = vector.broadcast %611 : vector<2x1x1xf32> to vector<2x1x8xf32>
    %613 = arith.subf %609, %612 : vector<2x1x8xf32>
    %614 = math.exp %613 : vector<2x1x8xf32>
    %cst_269 = arith.constant dense<0.000000e+00> : vector<2x1xf32>
    %615 = vector.multi_reduction <add>, %614, %cst_269 [2] : vector<2x1x8xf32> to vector<2x1xf32>
    %616 = vector.shape_cast %615 : vector<2x1xf32> to vector<2x1x1xf32>
    %617 = vector.broadcast %616 : vector<2x1x1xf32> to vector<2x1x8xf32>
    %618 = arith.divf %614, %617 : vector<2x1x8xf32>
    %619 = vector.extract_strided_slice %583 {offsets = [0, 0, 16], sizes = [2, 8, 16], strides = [1, 1, 1]} : vector<2x8x32xf32> to vector<2x8x16xf32>
    %cst_270 = arith.constant dense<0.000000e+00> : vector<2x1x16xf32>
    %620 = tpu.matmul %618, %619, %cst_270 {dimension_numbers = #tpu.dot_dimension_numbers<[2], [1], [1], [2], [0, 0, 0, 1, 1, 2], [0], [0]>} : vector<2x1x8xf32>, vector<2x8x16xf32>, vector<2x1x16xf32> -> vector<2x1x16xf32>
    %621 = tpu.concatenate %603, %620 in 2 : vector<2x1x16xf32>, vector<2x1x16xf32> -> vector<2x1x32xf32>
    %622 = vector.shape_cast %621 : vector<2x1x32xf32> to vector<2x32xf32>
    %cst_271 = arith.constant dense<0.000000e+00> : vector<2x32xf32>
    %623 = tpu.matmul %622, %585, %cst_271 {dimension_numbers = #tpu.dot_dimension_numbers<[1], [0], [0], [1], [0, 0, 1, 1], [], []>} : vector<2x32xf32>, vector<32x32xf32>, vector<2x32xf32> -> vector<2x32xf32>
    %624 = vector.broadcast %586 : vector<1x32xf32> to vector<2x32xf32>
    %625 = arith.addf %623, %624 : vector<2x32xf32>
    %626 = arith.addf %563, %625 : vector<2x32xf32>
    %c48 = arith.constant 48 : index
    %c0_272 = arith.constant 0 : index
    %627 = vector.load %arg10[%c48, %c0_272] : memref<54x32xf32, #tpu.memory_space<vmem>>, vector<1x32xf32>
    %c49 = arith.constant 49 : index
    %c0_273 = arith.constant 0 : index
    %628 = vector.load %arg10[%c49, %c0_273] : memref<54x32xf32, #tpu.memory_space<vmem>>, vector<1x32xf32>
    %cst_274 = arith.constant dense<0.000000e+00> : vector<2xf32>
    %629 = vector.multi_reduction <add>, %626, %cst_274 [1] : vector<2x32xf32> to vector<2xf32>
    %630 = vector.shape_cast %629 : vector<2xf32> to vector<2x1xf32>
    %cst_275 = arith.constant 3.200000e+01 : f32
    %631 = vector.broadcast %cst_275 : f32 to vector<2x1xf32>
    %632 = arith.divf %630, %631 : vector<2x1xf32>
    %633 = vector.broadcast %632 : vector<2x1xf32> to vector<2x32xf32>
    %634 = arith.subf %626, %633 : vector<2x32xf32>
    %635 = arith.mulf %634, %634 : vector<2x32xf32>
    %cst_276 = arith.constant dense<0.000000e+00> : vector<2xf32>
    %636 = vector.multi_reduction <add>, %635, %cst_276 [1] : vector<2x32xf32> to vector<2xf32>
    %637 = vector.shape_cast %636 : vector<2xf32> to vector<2x1xf32>
    %cst_277 = arith.constant 3.200000e+01 : f32
    %638 = vector.broadcast %cst_277 : f32 to vector<2x1xf32>
    %639 = arith.divf %637, %638 : vector<2x1xf32>
    %cst_278 = arith.constant 9.99999974E-6 : f32
    %640 = vector.broadcast %cst_278 : f32 to vector<2x1xf32>
    %641 = arith.addf %639, %640 : vector<2x1xf32>
    %642 = math.rsqrt %641 : vector<2x1xf32>
    %643 = vector.broadcast %642 : vector<2x1xf32> to vector<2x32xf32>
    %644 = arith.mulf %634, %643 : vector<2x32xf32>
    %645 = vector.broadcast %627 : vector<1x32xf32> to vector<2x32xf32>
    %646 = arith.mulf %644, %645 : vector<2x32xf32>
    %647 = vector.broadcast %628 : vector<1x32xf32> to vector<2x32xf32>
    %648 = arith.addf %646, %647 : vector<2x32xf32>
    %c7_279 = arith.constant 7 : index
    %c0_280 = arith.constant 0 : index
    %c0_281 = arith.constant 0 : index
    %649 = vector.load %arg8[%c7_279, %c0_280, %c0_281] : memref<10x32x128xf32, #tpu.memory_space<vmem>>, vector<1x32x128xf32>
    %650 = vector.shape_cast %649 : vector<1x32x128xf32> to vector<32x128xf32>
    %c3_282 = arith.constant 3 : index
    %c0_283 = arith.constant 0 : index
    %651 = vector.load %arg11[%c3_282, %c0_283] : memref<8x128xf32, #tpu.memory_space<vmem>>, vector<1x128xf32>
    %cst_284 = arith.constant dense<0.000000e+00> : vector<2x128xf32>
    %652 = tpu.matmul %648, %650, %cst_284 {dimension_numbers = #tpu.dot_dimension_numbers<[1], [0], [0], [1], [0, 0, 1, 1], [], []>} : vector<2x32xf32>, vector<32x128xf32>, vector<2x128xf32> -> vector<2x128xf32>
    %653 = vector.broadcast %651 : vector<1x128xf32> to vector<2x128xf32>
    %654 = arith.addf %652, %653 : vector<2x128xf32>
    %cst_285 = arith.constant 0.000000e+00 : f32
    %655 = vector.broadcast %cst_285 : f32 to vector<2x128xf32>
    %656 = arith.maximumf %654, %655 : vector<2x128xf32>
    %c3_286 = arith.constant 3 : index
    %c0_287 = arith.constant 0 : index
    %c0_288 = arith.constant 0 : index
    %657 = vector.load %arg9[%c3_286, %c0_287, %c0_288] : memref<4x128x32xf32, #tpu.memory_space<vmem>>, vector<1x128x32xf32>
    %658 = vector.shape_cast %657 : vector<1x128x32xf32> to vector<128x32xf32>
    %c45 = arith.constant 45 : index
    %c0_289 = arith.constant 0 : index
    %659 = vector.load %arg10[%c45, %c0_289] : memref<54x32xf32, #tpu.memory_space<vmem>>, vector<1x32xf32>
    %cst_290 = arith.constant dense<0.000000e+00> : vector<2x32xf32>
    %660 = tpu.matmul %656, %658, %cst_290 {dimension_numbers = #tpu.dot_dimension_numbers<[1], [0], [0], [1], [0, 0, 1, 1], [], []>} : vector<2x128xf32>, vector<128x32xf32>, vector<2x32xf32> -> vector<2x32xf32>
    %661 = vector.broadcast %659 : vector<1x32xf32> to vector<2x32xf32>
    %662 = arith.addf %660, %661 : vector<2x32xf32>
    %663 = arith.addf %648, %662 : vector<2x32xf32>
    %c50 = arith.constant 50 : index
    %c0_291 = arith.constant 0 : index
    %664 = vector.load %arg10[%c50, %c0_291] : memref<54x32xf32, #tpu.memory_space<vmem>>, vector<1x32xf32>
    %c51 = arith.constant 51 : index
    %c0_292 = arith.constant 0 : index
    %665 = vector.load %arg10[%c51, %c0_292] : memref<54x32xf32, #tpu.memory_space<vmem>>, vector<1x32xf32>
    %cst_293 = arith.constant dense<0.000000e+00> : vector<2xf32>
    %666 = vector.multi_reduction <add>, %663, %cst_293 [1] : vector<2x32xf32> to vector<2xf32>
    %667 = vector.shape_cast %666 : vector<2xf32> to vector<2x1xf32>
    %cst_294 = arith.constant 3.200000e+01 : f32
    %668 = vector.broadcast %cst_294 : f32 to vector<2x1xf32>
    %669 = arith.divf %667, %668 : vector<2x1xf32>
    %670 = vector.broadcast %669 : vector<2x1xf32> to vector<2x32xf32>
    %671 = arith.subf %663, %670 : vector<2x32xf32>
    %672 = arith.mulf %671, %671 : vector<2x32xf32>
    %cst_295 = arith.constant dense<0.000000e+00> : vector<2xf32>
    %673 = vector.multi_reduction <add>, %672, %cst_295 [1] : vector<2x32xf32> to vector<2xf32>
    %674 = vector.shape_cast %673 : vector<2xf32> to vector<2x1xf32>
    %cst_296 = arith.constant 3.200000e+01 : f32
    %675 = vector.broadcast %cst_296 : f32 to vector<2x1xf32>
    %676 = arith.divf %674, %675 : vector<2x1xf32>
    %cst_297 = arith.constant 9.99999974E-6 : f32
    %677 = vector.broadcast %cst_297 : f32 to vector<2x1xf32>
    %678 = arith.addf %676, %677 : vector<2x1xf32>
    %679 = math.rsqrt %678 : vector<2x1xf32>
    %680 = vector.broadcast %679 : vector<2x1xf32> to vector<2x32xf32>
    %681 = arith.mulf %671, %680 : vector<2x32xf32>
    %682 = vector.broadcast %664 : vector<1x32xf32> to vector<2x32xf32>
    %683 = arith.mulf %681, %682 : vector<2x32xf32>
    %684 = vector.broadcast %665 : vector<1x32xf32> to vector<2x32xf32>
    %685 = arith.addf %683, %684 : vector<2x32xf32>
    %c52 = arith.constant 52 : index
    %c0_298 = arith.constant 0 : index
    %686 = vector.load %arg10[%c52, %c0_298] : memref<54x32xf32, #tpu.memory_space<vmem>>, vector<1x32xf32>
    %c53 = arith.constant 53 : index
    %c0_299 = arith.constant 0 : index
    %687 = vector.load %arg10[%c53, %c0_299] : memref<54x32xf32, #tpu.memory_space<vmem>>, vector<1x32xf32>
    %cst_300 = arith.constant dense<0.000000e+00> : vector<2xf32>
    %688 = vector.multi_reduction <add>, %685, %cst_300 [1] : vector<2x32xf32> to vector<2xf32>
    %689 = vector.shape_cast %688 : vector<2xf32> to vector<2x1xf32>
    %cst_301 = arith.constant 3.200000e+01 : f32
    %690 = vector.broadcast %cst_301 : f32 to vector<2x1xf32>
    %691 = arith.divf %689, %690 : vector<2x1xf32>
    %692 = vector.broadcast %691 : vector<2x1xf32> to vector<2x32xf32>
    %693 = arith.subf %685, %692 : vector<2x32xf32>
    %694 = arith.mulf %693, %693 : vector<2x32xf32>
    %cst_302 = arith.constant dense<0.000000e+00> : vector<2xf32>
    %695 = vector.multi_reduction <add>, %694, %cst_302 [1] : vector<2x32xf32> to vector<2xf32>
    %696 = vector.shape_cast %695 : vector<2xf32> to vector<2x1xf32>
    %cst_303 = arith.constant 3.200000e+01 : f32
    %697 = vector.broadcast %cst_303 : f32 to vector<2x1xf32>
    %698 = arith.divf %696, %697 : vector<2x1xf32>
    %cst_304 = arith.constant 9.99999974E-6 : f32
    %699 = vector.broadcast %cst_304 : f32 to vector<2x1xf32>
    %700 = arith.addf %698, %699 : vector<2x1xf32>
    %701 = math.rsqrt %700 : vector<2x1xf32>
    %702 = vector.broadcast %701 : vector<2x1xf32> to vector<2x32xf32>
    %703 = arith.mulf %693, %702 : vector<2x32xf32>
    %704 = vector.broadcast %686 : vector<1x32xf32> to vector<2x32xf32>
    %705 = arith.mulf %703, %704 : vector<2x32xf32>
    %706 = vector.broadcast %687 : vector<1x32xf32> to vector<2x32xf32>
    %707 = arith.addf %705, %706 : vector<2x32xf32>
    %c8_305 = arith.constant 8 : index
    %c0_306 = arith.constant 0 : index
    %c0_307 = arith.constant 0 : index
    %708 = vector.load %arg8[%c8_305, %c0_306, %c0_307] : memref<10x32x128xf32, #tpu.memory_space<vmem>>, vector<1x32x128xf32>
    %709 = vector.shape_cast %708 : vector<1x32x128xf32> to vector<32x128xf32>
    %c4_308 = arith.constant 4 : index
    %c0_309 = arith.constant 0 : index
    %710 = vector.load %arg11[%c4_308, %c0_309] : memref<8x128xf32, #tpu.memory_space<vmem>>, vector<1x128xf32>
    %cst_310 = arith.constant dense<0.000000e+00> : vector<2x128xf32>
    %711 = tpu.matmul %707, %709, %cst_310 {dimension_numbers = #tpu.dot_dimension_numbers<[1], [0], [0], [1], [0, 0, 1, 1], [], []>} : vector<2x32xf32>, vector<32x128xf32>, vector<2x128xf32> -> vector<2x128xf32>
    %712 = vector.broadcast %710 : vector<1x128xf32> to vector<2x128xf32>
    %713 = arith.addf %711, %712 : vector<2x128xf32>
    %714 = math.tanh %713 : vector<2x128xf32>
    %c9_311 = arith.constant 9 : index
    %c0_312 = arith.constant 0 : index
    %c0_313 = arith.constant 0 : index
    %715 = vector.load %arg8[%c9_311, %c0_312, %c0_313] : memref<10x32x128xf32, #tpu.memory_space<vmem>>, vector<1x32x128xf32>
    %716 = vector.shape_cast %715 : vector<1x32x128xf32> to vector<32x128xf32>
    %c5_314 = arith.constant 5 : index
    %c0_315 = arith.constant 0 : index
    %717 = vector.load %arg11[%c5_314, %c0_315] : memref<8x128xf32, #tpu.memory_space<vmem>>, vector<1x128xf32>
    %cst_316 = arith.constant dense<0.000000e+00> : vector<2x128xf32>
    %718 = tpu.matmul %707, %716, %cst_316 {dimension_numbers = #tpu.dot_dimension_numbers<[1], [0], [0], [1], [0, 0, 1, 1], [], []>} : vector<2x32xf32>, vector<32x128xf32>, vector<2x128xf32> -> vector<2x128xf32>
    %719 = vector.broadcast %717 : vector<1x128xf32> to vector<2x128xf32>
    %720 = arith.addf %718, %719 : vector<2x128xf32>
    %cst_317 = arith.constant 0.000000e+00 : f32
    %721 = vector.broadcast %cst_317 : f32 to vector<2x128xf32>
    %722 = arith.maximumf %720, %721 : vector<2x128xf32>
    %c0_318 = arith.constant 0 : index
    %c0_319 = arith.constant 0 : index
    %c0_320 = arith.constant 0 : index
    %723 = vector.load %arg12[%c0_318, %c0_319, %c0_320] : memref<2x128x128xf32, #tpu.memory_space<vmem>>, vector<1x128x128xf32>
    %724 = vector.shape_cast %723 : vector<1x128x128xf32> to vector<128x128xf32>
    %c6_321 = arith.constant 6 : index
    %c0_322 = arith.constant 0 : index
    %725 = vector.load %arg11[%c6_321, %c0_322] : memref<8x128xf32, #tpu.memory_space<vmem>>, vector<1x128xf32>
    %cst_323 = arith.constant dense<0.000000e+00> : vector<2x128xf32>
    %726 = tpu.matmul %722, %724, %cst_323 {dimension_numbers = #tpu.dot_dimension_numbers<[1], [0], [0], [1], [0, 0, 1, 1], [], []>} : vector<2x128xf32>, vector<128x128xf32>, vector<2x128xf32> -> vector<2x128xf32>
    %727 = vector.broadcast %725 : vector<1x128xf32> to vector<2x128xf32>
    %728 = arith.addf %726, %727 : vector<2x128xf32>
    %cst_324 = arith.constant 0.000000e+00 : f32
    %729 = vector.broadcast %cst_324 : f32 to vector<2x128xf32>
    %730 = arith.maximumf %728, %729 : vector<2x128xf32>
    %c1_325 = arith.constant 1 : index
    %c0_326 = arith.constant 0 : index
    %c0_327 = arith.constant 0 : index
    %731 = vector.load %arg12[%c1_325, %c0_326, %c0_327] : memref<2x128x128xf32, #tpu.memory_space<vmem>>, vector<1x128x128xf32>
    %732 = vector.shape_cast %731 : vector<1x128x128xf32> to vector<128x128xf32>
    %c7_328 = arith.constant 7 : index
    %c0_329 = arith.constant 0 : index
    %733 = vector.load %arg11[%c7_328, %c0_329] : memref<8x128xf32, #tpu.memory_space<vmem>>, vector<1x128xf32>
    %cst_330 = arith.constant dense<0.000000e+00> : vector<2x128xf32>
    %734 = tpu.matmul %730, %732, %cst_330 {dimension_numbers = #tpu.dot_dimension_numbers<[1], [0], [0], [1], [0, 0, 1, 1], [], []>} : vector<2x128xf32>, vector<128x128xf32>, vector<2x128xf32> -> vector<2x128xf32>
    %735 = vector.broadcast %733 : vector<1x128xf32> to vector<2x128xf32>
    %736 = arith.addf %734, %735 : vector<2x128xf32>
    %737 = arith.addf %714, %736 : vector<2x128xf32>
    %c0_331 = arith.constant 0 : index
    %c0_332 = arith.constant 0 : index
    %738 = vector.load %arg13[%c0_331, %c0_332] : memref<2x128xf32, #tpu.memory_space<vmem>>, vector<2x128xf32>
    tpu.vector_store %arg13[%c0_331, %c0_332], %737 {strides = array<i32>} : memref<2x128xf32, #tpu.memory_space<vmem>>, vector<2x128xf32>,
    return
  }
}

</mosaic_0001>

<llo_original>
// kernel: _lambda_.1
$region0: #{_lambda_.1}
  #allocation0 [shape = 'u32[]', space=smem, size = 0x4, offset = 0x4, fixed_abs, tag = 'smem constant byte address 0x4 - core index']
  #allocation1 [shape = 'u32[144,128]{1,0:T(1,128)}', space=vmem, size = 0x12000, scoped, tag = 'internal scratch']
  %s0 = inlined_call_operand.vmem [shape: f32[2,8,32], index: 0, kind: input, shape index: {}]
  %s1 = inlined_call_operand.vmem [shape: f32[2,16], index: 1, kind: input, shape index: {}]
  %s2 = inlined_call_operand.vmem [shape: f32[2,8], index: 2, kind: input, shape index: {}]
  %s3 = inlined_call_operand.vmem [shape: f32[2,8], index: 3, kind: input, shape index: {}]
  %s4 = inlined_call_operand.hbm [shape: f32[24,512], index: 4, kind: input, shape index: {}]
  %s5 = inlined_call_operand.hbm [shape: f32[520,384], index: 5, kind: input, shape index: {}]
  %s6 = inlined_call_operand.vmem [shape: f32[392,32], index: 6, kind: input, shape index: {}]
  %s7 = inlined_call_operand.vmem [shape: f32[15,32,32], index: 7, kind: input, shape index: {}]
  %s8 = inlined_call_operand.vmem [shape: f32[10,32,128], index: 8, kind: input, shape index: {}]
  %s9 = inlined_call_operand.vmem [shape: f32[4,128,32], index: 9, kind: input, shape index: {}]
  %s10 = inlined_call_operand.vmem [shape: f32[54,32], index: 10, kind: input, shape index: {}]
  %s11 = inlined_call_operand.vmem [shape: f32[8,128], index: 11, kind: input, shape index: {}]
  %s12 = inlined_call_operand.vmem [shape: f32[2,128,128], index: 12, kind: input, shape index: {}]
  %s13 = inlined_call_operand.vmem [shape: f32[2,128], index: 13, kind: output, shape index: {}]
  %s14 = sld [smem:[#allocation0]]
  $region70: #{_lambda_.1} parent=0
    _
  %s16 = ssub.s32 1, %s14
  %s17 = scalar_select 0, %s16, %s14
  $region1: #{_lambda_.1} parent=0
    #allocation2 [shape = 'u8[49152]{0}', space=vmem, size = 0xc000, scoped, tag = 'input window, operand 4, single buffered']
    #allocation3 [shape = 's32[1]{0}', space=sflag, size = 0x4, scoped, tag = 'scoped memory for _lambda_.1']
    #allocation4 [shape = 'u8[798720]{0}', space=vmem, size = 0xc3000, scoped, tag = 'input window, operand 5, single buffered']
    #allocation5 [shape = 's32[1]{0}', space=sflag, size = 0x4, scoped, tag = 'scoped memory for _lambda_.1']
    %18 = vsyncpa [#allocation3], 0
    %19 = vsyncpa [#allocation5], 0
    // Predicated region
    $region2: #{_lambda_.1} parent=1 // pred_check
      _
    $region3: #{_lambda_.1} parent=1 // pred_check_branch
      %21 = sbr.rel (0) target = $region5
    $region4: #{_lambda_.1} parent=1 // pred_region
      _
    $region5: #{_lambda_.1} parent=1 // pred_fallthru
      _
    // Predicated region
    $region6: #{_lambda_.1} parent=1 // pred_check
      _
    $region7: #{_lambda_.1} parent=1 // pred_check_branch
      %23 = sbr.rel (0) target = $region9
    $region8: #{_lambda_.1} parent=1 // pred_region
      _
    $region9: #{_lambda_.1} parent=1 // pred_fallthru
      _
    // Predicated region
    $region10: #{_lambda_.1} parent=1 // pred_check
      _
    $region11: #{_lambda_.1} parent=1 // pred_check_branch
      %25 = sbr.rel (0) target = $region13
    $region12: #{_lambda_.1} parent=1 // pred_region
      _
    $region13: #{_lambda_.1} parent=1 // pred_fallthru
      _
    // Predicated region
    $region14: #{_lambda_.1} parent=1 // pred_check
      _
    $region15: #{_lambda_.1} parent=1 // pred_check_branch
      %27 = sbr.rel (0) target = $region17
    $region16: #{_lambda_.1} parent=1 // pred_region
      _
    $region17: #{_lambda_.1} parent=1 // pred_fallthru
      _
    // Predicated region
    $region18: #{_lambda_.1} parent=1 // pred_check
      _
    $region19: #{_lambda_.1} parent=1 // pred_check_branch
      %29 = sbr.rel (0) target = $region21
    $region20: #{_lambda_.1} parent=1 // pred_region
      %s31 = ssub.s32 1536, 1536
      %32 = vsyncadd [#allocation3], %s31
      %s33 = sshll.u32 [#allocation2], 4
      %s34 = int_to_ptr.vmem [resolvable:$true] %s33
      %39 = dma.hbm_to_vmem [thread:$0]  %s4, 1536, %s34, [#allocation3], 512, 512, 32
    $region21: #{_lambda_.1} parent=1 // pred_fallthru
      _
    // Predicated region
    $region22: #{_lambda_.1} parent=1 // pred_check
      _
    $region23: #{_lambda_.1} parent=1 // pred_check_branch
      %41 = sbr.rel (0) target = $region25
    $region24: #{_lambda_.1} parent=1 // pred_region
      %s43 = ssub.s32 24960, 24960
      %44 = vsyncadd [#allocation5], %s43
      %s45 = sshll.u32 [#allocation4], 4
      %s46 = int_to_ptr.vmem [resolvable:$true] %s45
      %51 = dma.hbm_to_vmem [thread:$0]  %s5, 24960, %s46, [#allocation5], 384, 384, 24
    $region25: #{_lambda_.1} parent=1 // pred_fallthru
      _
    // Predicated region
    $region26: #{_lambda_.1} parent=1 // pred_check
      _
    $region27: #{_lambda_.1} parent=1 // pred_check_branch
      %53 = sbr.rel (0) target = $region29
    $region28: #{_lambda_.1} parent=1 // pred_region
      _
    $region29: #{_lambda_.1} parent=1 // pred_fallthru
      _
    // Predicated region
    $region30: #{_lambda_.1} parent=1 // pred_check
      _
    $region31: #{_lambda_.1} parent=1 // pred_check_branch
      %55 = sbr.rel (0) target = $region33
    $region32: #{_lambda_.1} parent=1 // pred_region
      _
    $region33: #{_lambda_.1} parent=1 // pred_fallthru
      _
    // Predicated region
    $region34: #{_lambda_.1} parent=1 // pred_check
      _
    $region35: #{_lambda_.1} parent=1 // pred_check_branch
      %57 = sbr.rel (0) target = $region37
    $region36: #{_lambda_.1} parent=1 // pred_region
      _
    $region37: #{_lambda_.1} parent=1 // pred_fallthru
      _
    // Predicated region
    $region38: #{_lambda_.1} parent=1 // pred_check
      _
    $region39: #{_lambda_.1} parent=1 // pred_check_branch
      %59 = sbr.rel (0) target = $region41
    $region40: #{_lambda_.1} parent=1 // pred_region
      _
    $region41: #{_lambda_.1} parent=1 // pred_fallthru
      _
    // Predicated region
    $region42: #{_lambda_.1} parent=1 // pred_check
      _
    $region43: #{_lambda_.1} parent=1 // pred_check_branch
      %61 = sbr.rel (0) target = $region45
    $region44: #{_lambda_.1} parent=1 // pred_region
      _
    $region45: #{_lambda_.1} parent=1 // pred_fallthru
      _
    // Predicated region
    $region46: #{_lambda_.1} parent=1 // pred_check
      _
    $region47: #{_lambda_.1} parent=1 // pred_check_branch
      %63 = sbr.rel (0) target = $region49
    $region48: #{_lambda_.1} parent=1 // pred_region
      _
    $region49: #{_lambda_.1} parent=1 // pred_fallthru
      _
    // Predicated region
    $region50: #{_lambda_.1} parent=1 // pred_check
      _
    $region51: #{_lambda_.1} parent=1 // pred_check_branch
      %65 = sbr.rel (0) target = $region53
    $region52: #{_lambda_.1} parent=1 // pred_region
      _
    $region53: #{_lambda_.1} parent=1 // pred_fallthru
      _
    // Predicated region
    $region54: #{_lambda_.1} parent=1 // pred_check
      _
    $region55: #{_lambda_.1} parent=1 // pred_check_branch
      %67 = sbr.rel (0) target = $region57
    $region56: #{_lambda_.1} parent=1 // pred_region
      %68 = dma.done [#allocation3], 1536
    $region57: #{_lambda_.1} parent=1 // pred_fallthru
      _
    // Predicated region
    $region58: #{_lambda_.1} parent=1 // pred_check
      _
    $region59: #{_lambda_.1} parent=1 // pred_check_branch
      %70 = sbr.rel (0) target = $region61
    $region60: #{_lambda_.1} parent=1 // pred_region
      %71 = dma.done [#allocation5], 24960
    $region61: #{_lambda_.1} parent=1 // pred_fallthru
      _
    %v72 = vld [vmem:[%s1] sm:$0x3]
    %v73 = vld [vmem:[#allocation2] sm:$0xff]
    %v74 = vld [vmem:[#allocation2 + $0x8] sm:$0xff]
    %v75 = vld [vmem:[#allocation2 + $0x10] sm:$0xff]
    %v76 = vld [vmem:[#allocation2 + $0x18] sm:$0xff]
    %v77 = vld [vmem:[#allocation2 + $0x20] sm:$0xff]
    %v78 = vld [vmem:[#allocation2 + $0x28] sm:$0xff]
    %v79 = vld [vmem:[#allocation2 + $0x30] sm:$0xff]
    %v80 = vld [vmem:[#allocation2 + $0x38] sm:$0xff]
    %s81 = scalar_lea.vmem [#allocation2], 64
    %v82 = vld [vmem:[%s81] ss:$8 sm:$0xf]
    %v84 = vlaneseq
    %v85 = vshrl.u32 %v84, 7
    %v86 = vsub.s32 0, %v85
    %v87 = vrot.slane %v82, %v86
    %v88 = vlaneseq
    %v89 = vshrl.u32 %v88, 7
    %v90 = vsub.s32 1, %v89
    %v91 = vrot.slane %v82, %v90
    %v92 = vlaneseq
    %v93 = vshrl.u32 %v92, 7
    %v94 = vsub.s32 2, %v93
    %v95 = vrot.slane %v82, %v94
    %v96 = vlaneseq
    %v97 = vshrl.u32 %v96, 7
    %v98 = vsub.s32 3, %v97
    %v99 = vrot.slane %v82, %v98
    %vm104 = vcmask 130048
    %v106 = vsel %vm104, %v72, 0
    %108 = vmatprep.subr.mxu0 %v74
    %109 = vmatpush1.msra.mxu0 %v73
    %110 = vmatprep.subr.mxu0 %v78
    %111 = vmatpush1.msra.mxu0 %v77
    %112 = vmatprep.subr.mxu0 0.0
    %113 = vmatpush1.msra.mxu0 0.0
    %114 = vmatprep.subr.mxu0 0.0
    %115 = vmatpush1.msra.mxu0 0.0
    %116 = vmatprep.subr.mxu0 0.0
    %117 = vmatpush1.msra.mxu0 0.0
    %118 = vmatprep.subr.mxu0 0.0
    %119 = vmatpush1.msra.mxu0 0.0
    %120 = vmatprep.subr.mxu0 0.0
    %121 = vmatpush1.msra.mxu0 0.0
    %122 = vmatprep.subr.mxu0 0.0
    %123 = vmatpush1.msra.mxu0 0.0
    %124 = vmatprep.subr.mxu0 0.0
    %125 = vmatpush1.msra.mxu0 0.0
    %126 = vmatprep.subr.mxu0 0.0
    %127 = vmatpush1.msra.mxu0 0.0
    %128 = vmatprep.subr.mxu0 0.0
    %129 = vmatpush1.msra.mxu0 0.0
    %130 = vmatprep.subr.mxu0 0.0
    %131 = vmatpush1.msra.mxu0 0.0
    %132 = vmatprep.subr.mxu0 0.0
    %133 = vmatpush1.msra.mxu0 0.0
    %134 = vmatprep.subr.mxu0 0.0
    %135 = vmatpush1.msra.mxu0 0.0
    %136 = vmatprep.subr.mxu0 0.0
    %137 = vmatpush1.msra.mxu0 0.0
    %138 = vmatprep.subr.mxu0 0.0
    %139 = vmatpush1.msra.mxu0 0.0
    %140 = vmatprep.subr.mxu0 0.0
    %141 = vmatpush1.msra.mxu0 0.0
    %142 = vmatprep.subr.mxu0 0.0
    %143 = vmatpush1.msra.mxu0 0.0
    %144 = vmatprep.subr.mxu0 0.0
    %145 = vmatpush1.msra.mxu0 0.0
    %146 = vmatprep.subr.mxu0 0.0
    %147 = vmatpush1.msra.mxu0 0.0
    %148 = vmatprep.subr.mxu0 0.0
    %149 = vmatpush1.msra.mxu0 0.0
    %150 = vmatprep.subr.mxu0 0.0
    %151 = vmatpush1.msra.mxu0 0.0
    %152 = vmatprep.subr.mxu0 0.0
    %153 = vmatpush1.msra.mxu0 0.0
    %154 = vmatprep.subr.mxu0 0.0
    %155 = vmatpush1.msra.mxu0 0.0
    %156 = vmatprep.subr.mxu0 0.0
    %157 = vmatpush1.msra.mxu0 0.0
    %158 = vmatprep.subr.mxu0 0.0
    %159 = vmatpush1.msra.mxu0 0.0
    %160 = vmatprep.subr.mxu0 0.0
    %161 = vmatpush1.msra.mxu0 0.0
    %162 = vmatprep.subr.mxu0 0.0
    %163 = vmatpush1.msra.mxu0 0.0
    %164 = vmatprep.subr.mxu0 0.0
    %165 = vmatpush1.msra.mxu0 0.0
    %166 = vmatprep.subr.mxu0 0.0
    %167 = vmatpush1.msra.mxu0 0.0
    %168 = vmatprep.subr.mxu0 0.0
    %169 = vmatpush1.msra.mxu0 0.0
    %170 = vmatprep.subr.mxu0 0.0
    %171 = vmatpush1.msra.mxu0 0.0
    %172 = vmatprep.mubr.f32.mxu0 0.0
    %173 = vmatmul.mubr.f32.gmra.mrb[0].mxu0 %v106
    %v174 = vpop.f32.mrb[0].mxu0
    %v175 = vadd.f32 %v87, %v174
    %v176 = vpop.f32.mrb[0].mxu0
    %v177 = vadd.f32 %v91, %v176
    %178 = vdwg.mxu0
    %179 = vmatprep.subr.mxu0 %v76
    %180 = vmatpush1.msra.mxu0 %v75
    %181 = vmatprep.subr.mxu0 %v80
    %182 = vmatpush1.msra.mxu0 %v79
    %183 = vmatprep.subr.mxu0 0.0
    %184 = vmatpush1.msra.mxu0 0.0
    %185 = vmatprep.subr.mxu0 0.0
    %186 = vmatpush1.msra.mxu0 0.0
    %187 = vmatprep.subr.mxu0 0.0
    %188 = vmatpush1.msra.mxu0 0.0
    %189 = vmatprep.subr.mxu0 0.0
    %190 = vmatpush1.msra.mxu0 0.0
    %191 = vmatprep.subr.mxu0 0.0
    %192 = vmatpush1.msra.mxu0 0.0
    %193 = vmatprep.subr.mxu0 0.0
    %194 = vmatpush1.msra.mxu0 0.0
    %195 = vmatprep.subr.mxu0 0.0
    %196 = vmatpush1.msra.mxu0 0.0
    %197 = vmatprep.subr.mxu0 0.0
    %198 = vmatpush1.msra.mxu0 0.0
    %199 = vmatprep.subr.mxu0 0.0
    %200 = vmatpush1.msra.mxu0 0.0
    %201 = vmatprep.subr.mxu0 0.0
    %202 = vmatpush1.msra.mxu0 0.0
    %203 = vmatprep.subr.mxu0 0.0
    %204 = vmatpush1.msra.mxu0 0.0
    %205 = vmatprep.subr.mxu0 0.0
    %206 = vmatpush1.msra.mxu0 0.0
    %207 = vmatprep.subr.mxu0 0.0
    %208 = vmatpush1.msra.mxu0 0.0
    %209 = vmatprep.subr.mxu0 0.0
    %210 = vmatpush1.msra.mxu0 0.0
    %211 = vmatprep.subr.mxu0 0.0
    %212 = vmatpush1.msra.mxu0 0.0
    %213 = vmatprep.subr.mxu0 0.0
    %214 = vmatpush1.msra.mxu0 0.0
    %215 = vmatprep.subr.mxu0 0.0
    %216 = vmatpush1.msra.mxu0 0.0
    %217 = vmatprep.subr.mxu0 0.0
    %218 = vmatpush1.msra.mxu0 0.0
    %219 = vmatprep.subr.mxu0 0.0
    %220 = vmatpush1.msra.mxu0 0.0
    %221 = vmatprep.subr.mxu0 0.0
    %222 = vmatpush1.msra.mxu0 0.0
    %223 = vmatprep.subr.mxu0 0.0
    %224 = vmatpush1.msra.mxu0 0.0
    %225 = vmatprep.subr.mxu0 0.0
    %226 = vmatpush1.msra.mxu0 0.0
    %227 = vmatprep.subr.mxu0 0.0
    %228 = vmatpush1.msra.mxu0 0.0
    %229 = vmatprep.subr.mxu0 0.0
    %230 = vmatpush1.msra.mxu0 0.0
    %231 = vmatprep.subr.mxu0 0.0
    %232 = vmatpush1.msra.mxu0 0.0
    %233 = vmatprep.subr.mxu0 0.0
    %234 = vmatpush1.msra.mxu0 0.0
    %235 = vmatprep.subr.mxu0 0.0
    %236 = vmatpush1.msra.mxu0 0.0
    %237 = vmatprep.subr.mxu0 0.0
    %238 = vmatpush1.msra.mxu0 0.0
    %239 = vmatprep.subr.mxu0 0.0
    %240 = vmatpush1.msra.mxu0 0.0
    %241 = vmatprep.subr.mxu0 0.0
    %242 = vmatpush1.msra.mxu0 0.0
    %243 = vmatprep.mubr.f32.mxu0 0.0
    %244 = vmatmul.mubr.f32.gmra.mrb[0].mxu0 %v106
    %v245 = vpop.f32.mrb[0].mxu0
    %v246 = vadd.f32 %v95, %v245
    %v247 = vpop.f32.mrb[0].mxu0
    %v248 = vadd.f32 %v99, %v247
    %249 = vdwg.mxu0
    %v250 = vmax.f32 %v175, 0.0
    %v251 = vmax.f32 %v177, 0.0
    %v252 = vmax.f32 %v246, 0.0
    %v253 = vmax.f32 %v248, 0.0
    %v254 = vld [vmem:[#allocation4] sm:$0xff]
    %v255 = vld [vmem:[#allocation4 + $0x8] sm:$0xff]
    %v256 = vld [vmem:[#allocation4 + $0x10] sm:$0xff]
    %v257 = vld [vmem:[#allocation4 + $0x18] sm:$0xff]
    %v258 = vld [vmem:[#allocation4 + $0x20] sm:$0xff]
    %v259 = vld [vmem:[#allocation4 + $0x28] sm:$0xff]
    %v260 = vld [vmem:[#allocation4 + $0x30] sm:$0xff]
    %v261 = vld [vmem:[#allocation4 + $0x38] sm:$0xff]
    %v262 = vld [vmem:[#allocation4 + $0x40] sm:$0xff]
    %v263 = vld [vmem:[#allocation4 + $0x48] sm:$0xff]
    %v264 = vld [vmem:[#allocation4 + $0x50] sm:$0xff]
    %v265 = vld [vmem:[#allocation4 + $0x58] sm:$0xff]
    %v266 = vld [vmem:[#allocation4 + $0x60] sm:$0xff]
    %v267 = vld [vmem:[#allocation4 + $0x68] sm:$0xff]
    %v268 = vld [vmem:[#allocation4 + $0x70] sm:$0xff]
    %v269 = vld [vmem:[#allocation4 + $0x78] sm:$0xff]
    %v270 = vld [vmem:[#allocation4 + $0x80] sm:$0xff]
    %v271 = vld [vmem:[#allocation4 + $0x88] sm:$0xff]
    %v272 = vld [vmem:[#allocation4 + $0x90] sm:$0xff]
    %v273 = vld [vmem:[#allocation4 + $0x98] sm:$0xff]
    %v274 = vld [vmem:[#allocation4 + $0xa0] sm:$0xff]
    %v275 = vld [vmem:[#allocation4 + $0xa8] sm:$0xff]
    %v276 = vld [vmem:[#allocation4 + $0xb0] sm:$0xff]
    %v277 = vld [vmem:[#allocation4 + $0xb8] sm:$0xff]
    %v278 = vld [vmem:[#allocation4 + $0xc0] sm:$0xff]
    %v279 = vld [vmem:[#allocation4 + $0xc8] sm:$0xff]
    %v280 = vld [vmem:[#allocation4 + $0xd0] sm:$0xff]
    %v281 = vld [vmem:[#allocation4 + $0xd8] sm:$0xff]
    %v282 = vld [vmem:[#allocation4 + $0xe0] sm:$0xff]
    %v283 = vld [vmem:[#allocation4 + $0xe8] sm:$0xff]
    %v284 = vld [vmem:[#allocation4 + $0xf0] sm:$0xff]
    %v285 = vld [vmem:[#allocation4 + $0xf8] sm:$0xff]
    %v286 = vld [vmem:[#allocation4 + $0x100] sm:$0xff]
    %v287 = vld [vmem:[#allocation4 + $0x108] sm:$0xff]
    %v288 = vld [vmem:[#allocation4 + $0x110] sm:$0xff]
    %v289 = vld [vmem:[#allocation4 + $0x118] sm:$0xff]
    %v290 = vld [vmem:[#allocation4 + $0x120] sm:$0xff]
    %v291 = vld [vmem:[#allocation4 + $0x128] sm:$0xff]
    %v292 = vld [vmem:[#allocation4 + $0x130] sm:$0xff]
    %v293 = vld [vmem:[#allocation4 + $0x138] sm:$0xff]
    %v294 = vld [vmem:[#allocation4 + $0x140] sm:$0xff]
    %v295 = vld [vmem:[#allocation4 + $0x148] sm:$0xff]
    %v296 = vld [vmem:[#allocation4 + $0x150] sm:$0xff]
    %v297 = vld [vmem:[#allocation4 + $0x158] sm:$0xff]
    %v298 = vld [vmem:[#allocation4 + $0x160] sm:$0xff]
    %v299 = vld [vmem:[#allocation4 + $0x168] sm:$0xff]
    %v300 = vld [vmem:[#allocation4 + $0x170] sm:$0xff]
    %v301 = vld [vmem:[#allocation4 + $0x178] sm:$0xff]
    %v302 = vld [vmem:[#allocation4 + $0x180] sm:$0xff]
    %v303 = vld [vmem:[#allocation4 + $0x188] sm:$0xff]
    %v304 = vld [vmem:[#allocation4 + $0x190] sm:$0xff]
    %v305 = vld [vmem:[#allocation4 + $0x198] sm:$0xff]
    %v306 = vld [vmem:[#allocation4 + $0x1a0] sm:$0xff]
    %v307 = vld [vmem:[#allocation4 + $0x1a8] sm:$0xff]
    %v308 = vld [vmem:[#allocation4 + $0x1b0] sm:$0xff]
    %v309 = vld [vmem:[#allocation4 + $0x1b8] sm:$0xff]
    %v310 = vld [vmem:[#allocation4 + $0x1c0] sm:$0xff]
    %v311 = vld [vmem:[#allocation4 + $0x1c8] sm:$0xff]
    %v312 = vld [vmem:[#allocation4 + $0x1d0] sm:$0xff]
    %v313 = vld [vmem:[#allocation4 + $0x1d8] sm:$0xff]
    %v314 = vld [vmem:[#allocation4 + $0x1e0] sm:$0xff]
    %v315 = vld [vmem:[#allocation4 + $0x1e8] sm:$0xff]
    %v316 = vld [vmem:[#allocation4 + $0x1f0] sm:$0xff]
    %v317 = vld [vmem:[#allocation4 + $0x1f8] sm:$0xff]
    %v318 = vld [vmem:[#allocation4 + $0x200] sm:$0xff]
    %v319 = vld [vmem:[#allocation4 + $0x208] sm:$0xff]
    %v320 = vld [vmem:[#allocation4 + $0x210] sm:$0xff]
    %v321 = vld [vmem:[#allocation4 + $0x218] sm:$0xff]
    %v322 = vld [vmem:[#allocation4 + $0x220] sm:$0xff]
    %v323 = vld [vmem:[#allocation4 + $0x228] sm:$0xff]
    %v324 = vld [vmem:[#allocation4 + $0x230] sm:$0xff]
    %v325 = vld [vmem:[#allocation4 + $0x238] sm:$0xff]
    %v326 = vld [vmem:[#allocation4 + $0x240] sm:$0xff]
    %v327 = vld [vmem:[#allocation4 + $0x248] sm:$0xff]
    %v328 = vld [vmem:[#allocation4 + $0x250] sm:$0xff]
    %v329 = vld [vmem:[#allocation4 + $0x258] sm:$0xff]
    %v330 = vld [vmem:[#allocation4 + $0x260] sm:$0xff]
    %v331 = vld [vmem:[#allocation4 + $0x268] sm:$0xff]
    %v332 = vld [vmem:[#allocation4 + $0x270] sm:$0xff]
    %v333 = vld [vmem:[#allocation4 + $0x278] sm:$0xff]
    %v334 = vld [vmem:[#allocation4 + $0x280] sm:$0xff]
    %v335 = vld [vmem:[#allocation4 + $0x288] sm:$0xff]
    %v336 = vld [vmem:[#allocation4 + $0x290] sm:$0xff]
    %v337 = vld [vmem:[#allocation4 + $0x298] sm:$0xff]
    %v338 = vld [vmem:[#allocation4 + $0x2a0] sm:$0xff]
    %v339 = vld [vmem:[#allocation4 + $0x2a8] sm:$0xff]
    %v340 = vld [vmem:[#allocation4 + $0x2b0] sm:$0xff]
    %v341 = vld [vmem:[#allocation4 + $0x2b8] sm:$0xff]
    %v342 = vld [vmem:[#allocation4 + $0x2c0] sm:$0xff]
    %v343 = vld [vmem:[#allocation4 + $0x2c8] sm:$0xff]
    %v344 = vld [vmem:[#allocation4 + $0x2d0] sm:$0xff]
    %v345 = vld [vmem:[#allocation4 + $0x2d8] sm:$0xff]
    %v346 = vld [vmem:[#allocation4 + $0x2e0] sm:$0xff]
    %v347 = vld [vmem:[#allocation4 + $0x2e8] sm:$0xff]
    %v348 = vld [vmem:[#allocation4 + $0x2f0] sm:$0xff]
    %v349 = vld [vmem:[#allocation4 + $0x2f8] sm:$0xff]
    %v350 = vld [vmem:[#allocation4 + $0x300] sm:$0xff]
    %v351 = vld [vmem:[#allocation4 + $0x308] sm:$0xff]
    %v352 = vld [vmem:[#allocation4 + $0x310] sm:$0xff]
    %v353 = vld [vmem:[#allocation4 + $0x318] sm:$0xff]
    %v354 = vld [vmem:[#allocation4 + $0x320] sm:$0xff]
    %v355 = vld [vmem:[#allocation4 + $0x328] sm:$0xff]
    %v356 = vld [vmem:[#allocation4 + $0x330] sm:$0xff]
    %v357 = vld [vmem:[#allocation4 + $0x338] sm:$0xff]
    %v358 = vld [vmem:[#allocation4 + $0x340] sm:$0xff]
    %v359 = vld [vmem:[#allocation4 + $0x348] sm:$0xff]
    %v360 = vld [vmem:[#allocation4 + $0x350] sm:$0xff]
    %v361 = vld [vmem:[#allocation4 + $0x358] sm:$0xff]
    %v362 = vld [vmem:[#allocation4 + $0x360] sm:$0xff]
    %v363 = vld [vmem:[#allocation4 + $0x368] sm:$0xff]
    %v364 = vld [vmem:[#allocation4 + $0x370] sm:$0xff]
    %v365 = vld [vmem:[#allocation4 + $0x378] sm:$0xff]
    %v366 = vld [vmem:[#allocation4 + $0x380] sm:$0xff]
    %v367 = vld [vmem:[#allocation4 + $0x388] sm:$0xff]
    %v368 = vld [vmem:[#allocation4 + $0x390] sm:$0xff]
    %v369 = vld [vmem:[#allocation4 + $0x398] sm:$0xff]
    %v370 = vld [vmem:[#allocation4 + $0x3a0] sm:$0xff]
    %v371 = vld [vmem:[#allocation4 + $0x3a8] sm:$0xff]
    %v372 = vld [vmem:[#allocation4 + $0x3b0] sm:$0xff]
    %v373 = vld [vmem:[#allocation4 + $0x3b8] sm:$0xff]
    %v374 = vld [vmem:[#allocation4 + $0x3c0] sm:$0xff]
    %v375 = vld [vmem:[#allocation4 + $0x3c8] sm:$0xff]
    %v376 = vld [vmem:[#allocation4 + $0x3d0] sm:$0xff]
    %v377 = vld [vmem:[#allocation4 + $0x3d8] sm:$0xff]
    %v378 = vld [vmem:[#allocation4 + $0x3e0] sm:$0xff]
    %v379 = vld [vmem:[#allocation4 + $0x3e8] sm:$0xff]
    %v380 = vld [vmem:[#allocation4 + $0x3f0] sm:$0xff]
    %v381 = vld [vmem:[#allocation4 + $0x3f8] sm:$0xff]
    %v382 = vld [vmem:[#allocation4 + $0x400] sm:$0xff]
    %v383 = vld [vmem:[#allocation4 + $0x408] sm:$0xff]
    %v384 = vld [vmem:[#allocation4 + $0x410] sm:$0xff]
    %v385 = vld [vmem:[#allocation4 + $0x418] sm:$0xff]
    %v386 = vld [vmem:[#allocation4 + $0x420] sm:$0xff]
    %v387 = vld [vmem:[#allocation4 + $0x428] sm:$0xff]
    %v388 = vld [vmem:[#allocation4 + $0x430] sm:$0xff]
    %v389 = vld [vmem:[#allocation4 + $0x438] sm:$0xff]
    %v390 = vld [vmem:[#allocation4 + $0x440] sm:$0xff]
    %v391 = vld [vmem:[#allocation4 + $0x448] sm:$0xff]
    %v392 = vld [vmem:[#allocation4 + $0x450] sm:$0xff]
    %v393 = vld [vmem:[#allocation4 + $0x458] sm:$0xff]
    %v394 = vld [vmem:[#allocation4 + $0x460] sm:$0xff]
    %v395 = vld [vmem:[#allocation4 + $0x468] sm:$0xff]
    %v396 = vld [vmem:[#allocation4 + $0x470] sm:$0xff]
    %v397 = vld [vmem:[#allocation4 + $0x478] sm:$0xff]
    %v398 = vld [vmem:[#allocation4 + $0x480] sm:$0xff]
    %v399 = vld [vmem:[#allocation4 + $0x488] sm:$0xff]
    %v400 = vld [vmem:[#allocation4 + $0x490] sm:$0xff]
    %v401 = vld [vmem:[#allocation4 + $0x498] sm:$0xff]
    %v402 = vld [vmem:[#allocation4 + $0x4a0] sm:$0xff]
    %v403 = vld [vmem:[#allocation4 + $0x4a8] sm:$0xff]
    %v404 = vld [vmem:[#allocation4 + $0x4b0] sm:$0xff]
    %v405 = vld [vmem:[#allocation4 + $0x4b8] sm:$0xff]
    %v406 = vld [vmem:[#allocation4 + $0x4c0] sm:$0xff]
    %v407 = vld [vmem:[#allocation4 + $0x4c8] sm:$0xff]
    %v408 = vld [vmem:[#allocation4 + $0x4d0] sm:$0xff]
    %v409 = vld [vmem:[#allocation4 + $0x4d8] sm:$0xff]
    %v410 = vld [vmem:[#allocation4 + $0x4e0] sm:$0xff]
    %v411 = vld [vmem:[#allocation4 + $0x4e8] sm:$0xff]
    %v412 = vld [vmem:[#allocation4 + $0x4f0] sm:$0xff]
    %v413 = vld [vmem:[#allocation4 + $0x4f8] sm:$0xff]
    %v414 = vld [vmem:[#allocation4 + $0x500] sm:$0xff]
    %v415 = vld [vmem:[#allocation4 + $0x508] sm:$0xff]
    %v416 = vld [vmem:[#allocation4 + $0x510] sm:$0xff]
    %v417 = vld [vmem:[#allocation4 + $0x518] sm:$0xff]
    %v418 = vld [vmem:[#allocation4 + $0x520] sm:$0xff]
    %v419 = vld [vmem:[#allocation4 + $0x528] sm:$0xff]
    %v420 = vld [vmem:[#allocation4 + $0x530] sm:$0xff]
    %v421 = vld [vmem:[#allocation4 + $0x538] sm:$0xff]
    %v422 = vld [vmem:[#allocation4 + $0x540] sm:$0xff]
    %v423 = vld [vmem:[#allocation4 + $0x548] sm:$0xff]
    %v424 = vld [vmem:[#allocation4 + $0x550] sm:$0xff]
    %v425 = vld [vmem:[#allocation4 + $0x558] sm:$0xff]
    %v426 = vld [vmem:[#allocation4 + $0x560] sm:$0xff]
    %v427 = vld [vmem:[#allocation4 + $0x568] sm:$0xff]
    %v428 = vld [vmem:[#allocation4 + $0x570] sm:$0xff]
    %v429 = vld [vmem:[#allocation4 + $0x578] sm:$0xff]
    %v430 = vld [vmem:[#allocation4 + $0x580] sm:$0xff]
    %v431 = vld [vmem:[#allocation4 + $0x588] sm:$0xff]
    %v432 = vld [vmem:[#allocation4 + $0x590] sm:$0xff]
    %v433 = vld [vmem:[#allocation4 + $0x598] sm:$0xff]
    %v434 = vld [vmem:[#allocation4 + $0x5a0] sm:$0xff]
    %v435 = vld [vmem:[#allocation4 + $0x5a8] sm:$0xff]
    %v436 = vld [vmem:[#allocation4 + $0x5b0] sm:$0xff]
    %v437 = vld [vmem:[#allocation4 + $0x5b8] sm:$0xff]
    %v438 = vld [vmem:[#allocation4 + $0x5c0] sm:$0xff]
    %v439 = vld [vmem:[#allocation4 + $0x5c8] sm:$0xff]
    %v440 = vld [vmem:[#allocation4 + $0x5d0] sm:$0xff]
    %v441 = vld [vmem:[#allocation4 + $0x5d8] sm:$0xff]
    %v442 = vld [vmem:[#allocation4 + $0x5e0] sm:$0xff]
    %v443 = vld [vmem:[#allocation4 + $0x5e8] sm:$0xff]
    %v444 = vld [vmem:[#allocation4 + $0x5f0] sm:$0xff]
    %v445 = vld [vmem:[#allocation4 + $0x5f8] sm:$0xff]
    %s446 = scalar_lea.vmem [#allocation4], 1536
    %v447 = vld [vmem:[%s446] ss:$8 sm:$0x7]
    %v449 = vlaneseq
    %v450 = vshrl.u32 %v449, 7
    %v451 = vsub.s32 0, %v450
    %v452 = vrot.slane %v447, %v451
    %v453 = vlaneseq
    %v454 = vshrl.u32 %v453, 7
    %v455 = vsub.s32 1, %v454
    %v456 = vrot.slane %v447, %v455
    %v457 = vlaneseq
    %v458 = vshrl.u32 %v457, 7
    %v459 = vsub.s32 2, %v458
    %v460 = vrot.slane %v447, %v459
    %464 = vmatprep.subr.mxu0 %v255
    %465 = vmatpush1.msra.mxu0 %v254
    %466 = vmatprep.subr.mxu0 %v258
    %467 = vmatpush1.msra.mxu0 %v257
    %468 = vmatprep.subr.mxu0 %v261
    %469 = vmatpush1.msra.mxu0 %v260
    %470 = vmatprep.subr.mxu0 %v264
    %471 = vmatpush1.msra.mxu0 %v263
    %472 = vmatprep.subr.mxu0 %v267
    %473 = vmatpush1.msra.mxu0 %v266
    %474 = vmatprep.subr.mxu0 %v270
    %475 = vmatpush1.msra.mxu0 %v269
    %476 = vmatprep.subr.mxu0 %v273
    %477 = vmatpush1.msra.mxu0 %v272
    %478 = vmatprep.subr.mxu0 %v276
    %479 = vmatpush1.msra.mxu0 %v275
    %480 = vmatprep.subr.mxu0 %v279
    %481 = vmatpush1.msra.mxu0 %v278
    %482 = vmatprep.subr.mxu0 %v282
    %483 = vmatpush1.msra.mxu0 %v281
    %484 = vmatprep.subr.mxu0 %v285
    %485 = vmatpush1.msra.mxu0 %v284
    %486 = vmatprep.subr.mxu0 %v288
    %487 = vmatpush1.msra.mxu0 %v287
    %488 = vmatprep.subr.mxu0 %v291
    %489 = vmatpush1.msra.mxu0 %v290
    %490 = vmatprep.subr.mxu0 %v294
    %491 = vmatpush1.msra.mxu0 %v293
    %492 = vmatprep.subr.mxu0 %v297
    %493 = vmatpush1.msra.mxu0 %v296
    %494 = vmatprep.subr.mxu0 %v300
    %495 = vmatpush1.msra.mxu0 %v299
    %496 = vmatprep.subr.mxu0 %v303
    %497 = vmatpush1.msra.mxu0 %v302
    %498 = vmatprep.subr.mxu0 %v306
    %499 = vmatpush1.msra.mxu0 %v305
    %500 = vmatprep.subr.mxu0 %v309
    %501 = vmatpush1.msra.mxu0 %v308
    %502 = vmatprep.subr.mxu0 %v312
    %503 = vmatpush1.msra.mxu0 %v311
    %504 = vmatprep.subr.mxu0 %v315
    %505 = vmatpush1.msra.mxu0 %v314
    %506 = vmatprep.subr.mxu0 %v318
    %507 = vmatpush1.msra.mxu0 %v317
    %508 = vmatprep.subr.mxu0 %v321
    %509 = vmatpush1.msra.mxu0 %v320
    %510 = vmatprep.subr.mxu0 %v324
    %511 = vmatpush1.msra.mxu0 %v323
    %512 = vmatprep.subr.mxu0 %v327
    %513 = vmatpush1.msra.mxu0 %v326
    %514 = vmatprep.subr.mxu0 %v330
    %515 = vmatpush1.msra.mxu0 %v329
    %516 = vmatprep.subr.mxu0 %v333
    %517 = vmatpush1.msra.mxu0 %v332
    %518 = vmatprep.subr.mxu0 %v336
    %519 = vmatpush1.msra.mxu0 %v335
    %520 = vmatprep.subr.mxu0 %v339
    %521 = vmatpush1.msra.mxu0 %v338
    %522 = vmatprep.subr.mxu0 %v342
    %523 = vmatpush1.msra.mxu0 %v341
    %524 = vmatprep.subr.mxu0 %v345
    %525 = vmatpush1.msra.mxu0 %v344
    %526 = vmatprep.subr.mxu0 %v348
    %527 = vmatpush1.msra.mxu0 %v347
    %528 = vmatprep.mubr.f32.mxu0 %v251
    %529 = vmatmul.mubr.f32.gmra.mrb[0].mxu0 %v250
    %v530 = vpop.f32.mrb[0].mxu0
    %v531 = vadd.f32 %v452, %v530
    %v532 = vpop.f32.mrb[0].mxu0
    %v533 = vadd.f32 %v456, %v532
    %534 = vdwg.mxu0
    %535 = vmatprep.subr.mxu0 %v351
    %536 = vmatpush1.msra.mxu0 %v350
    %537 = vmatprep.subr.mxu0 %v354
    %538 = vmatpush1.msra.mxu0 %v353
    %539 = vmatprep.subr.mxu0 %v357
    %540 = vmatpush1.msra.mxu0 %v356
    %541 = vmatprep.subr.mxu0 %v360
    %542 = vmatpush1.msra.mxu0 %v359
    %543 = vmatprep.subr.mxu0 %v363
    %544 = vmatpush1.msra.mxu0 %v362
    %545 = vmatprep.subr.mxu0 %v366
    %546 = vmatpush1.msra.mxu0 %v365
    %547 = vmatprep.subr.mxu0 %v369
    %548 = vmatpush1.msra.mxu0 %v368
    %549 = vmatprep.subr.mxu0 %v372
    %550 = vmatpush1.msra.mxu0 %v371
    %551 = vmatprep.subr.mxu0 %v375
    %552 = vmatpush1.msra.mxu0 %v374
    %553 = vmatprep.subr.mxu0 %v378
    %554 = vmatpush1.msra.mxu0 %v377
    %555 = vmatprep.subr.mxu0 %v381
    %556 = vmatpush1.msra.mxu0 %v380
    %557 = vmatprep.subr.mxu0 %v384
    %558 = vmatpush1.msra.mxu0 %v383
    %559 = vmatprep.subr.mxu0 %v387
    %560 = vmatpush1.msra.mxu0 %v386
    %561 = vmatprep.subr.mxu0 %v390
    %562 = vmatpush1.msra.mxu0 %v389
    %563 = vmatprep.subr.mxu0 %v393
    %564 = vmatpush1.msra.mxu0 %v392
    %565 = vmatprep.subr.mxu0 %v396
    %566 = vmatpush1.msra.mxu0 %v395
    %567 = vmatprep.subr.mxu0 %v399
    %568 = vmatpush1.msra.mxu0 %v398
    %569 = vmatprep.subr.mxu0 %v402
    %570 = vmatpush1.msra.mxu0 %v401
    %571 = vmatprep.subr.mxu0 %v405
    %572 = vmatpush1.msra.mxu0 %v404
    %573 = vmatprep.subr.mxu0 %v408
    %574 = vmatpush1.msra.mxu0 %v407
    %575 = vmatprep.subr.mxu0 %v411
    %576 = vmatpush1.msra.mxu0 %v410
    %577 = vmatprep.subr.mxu0 %v414
    %578 = vmatpush1.msra.mxu0 %v413
    %579 = vmatprep.subr.mxu0 %v417
    %580 = vmatpush1.msra.mxu0 %v416
    %581 = vmatprep.subr.mxu0 %v420
    %582 = vmatpush1.msra.mxu0 %v419
    %583 = vmatprep.subr.mxu0 %v423
    %584 = vmatpush1.msra.mxu0 %v422
    %585 = vmatprep.subr.mxu0 %v426
    %586 = vmatpush1.msra.mxu0 %v425
    %587 = vmatprep.subr.mxu0 %v429
    %588 = vmatpush1.msra.mxu0 %v428
    %589 = vmatprep.subr.mxu0 %v432
    %590 = vmatpush1.msra.mxu0 %v431
    %591 = vmatprep.subr.mxu0 %v435
    %592 = vmatpush1.msra.mxu0 %v434
    %593 = vmatprep.subr.mxu0 %v438
    %594 = vmatpush1.msra.mxu0 %v437
    %595 = vmatprep.subr.mxu0 %v441
    %596 = vmatpush1.msra.mxu0 %v440
    %597 = vmatprep.subr.mxu0 %v444
    %598 = vmatpush1.msra.mxu0 %v443
    %599 = vmatprep.mubr.f32.mxu0 %v253
    %600 = vmatmul.mubr.f32.gmra.mrb[0].mxu0 %v252
    %v601 = vpop.f32.mrb[0].mxu0
    %v602 = vadd.f32 %v531, %v601
    %v603 = vpop.f32.mrb[0].mxu0
    %v604 = vadd.f32 %v533, %v603
    %605 = vdwg.mxu0
    %606 = vmatprep.subr.mxu0 0.0
    %607 = vmatpush1.msra.mxu0 %v256
    %608 = vmatprep.subr.mxu0 0.0
    %609 = vmatpush1.msra.mxu0 %v259
    %610 = vmatprep.subr.mxu0 0.0
    %611 = vmatpush1.msra.mxu0 %v262
    %612 = vmatprep.subr.mxu0 0.0
    %613 = vmatpush1.msra.mxu0 %v265
    %614 = vmatprep.subr.mxu0 0.0
    %615 = vmatpush1.msra.mxu0 %v268
    %616 = vmatprep.subr.mxu0 0.0
    %617 = vmatpush1.msra.mxu0 %v271
    %618 = vmatprep.subr.mxu0 0.0
    %619 = vmatpush1.msra.mxu0 %v274
    %620 = vmatprep.subr.mxu0 0.0
    %621 = vmatpush1.msra.mxu0 %v277
    %622 = vmatprep.subr.mxu0 0.0
    %623 = vmatpush1.msra.mxu0 %v280
    %624 = vmatprep.subr.mxu0 0.0
    %625 = vmatpush1.msra.mxu0 %v283
    %626 = vmatprep.subr.mxu0 0.0
    %627 = vmatpush1.msra.mxu0 %v286
    %628 = vmatprep.subr.mxu0 0.0
    %629 = vmatpush1.msra.mxu0 %v289
    %630 = vmatprep.subr.mxu0 0.0
    %631 = vmatpush1.msra.mxu0 %v292
    %632 = vmatprep.subr.mxu0 0.0
    %633 = vmatpush1.msra.mxu0 %v295
    %634 = vmatprep.subr.mxu0 0.0
    %635 = vmatpush1.msra.mxu0 %v298
    %636 = vmatprep.subr.mxu0 0.0
    %637 = vmatpush1.msra.mxu0 %v301
    %638 = vmatprep.subr.mxu0 0.0
    %639 = vmatpush1.msra.mxu0 %v304
    %640 = vmatprep.subr.mxu0 0.0
    %641 = vmatpush1.msra.mxu0 %v307
    %642 = vmatprep.subr.mxu0 0.0
    %643 = vmatpush1.msra.mxu0 %v310
    %644 = vmatprep.subr.mxu0 0.0
    %645 = vmatpush1.msra.mxu0 %v313
    %646 = vmatprep.subr.mxu0 0.0
    %647 = vmatpush1.msra.mxu0 %v316
    %648 = vmatprep.subr.mxu0 0.0
    %649 = vmatpush1.msra.mxu0 %v319
    %650 = vmatprep.subr.mxu0 0.0
    %651 = vmatpush1.msra.mxu0 %v322
    %652 = vmatprep.subr.mxu0 0.0
    %653 = vmatpush1.msra.mxu0 %v325
    %654 = vmatprep.subr.mxu0 0.0
    %655 = vmatpush1.msra.mxu0 %v328
    %656 = vmatprep.subr.mxu0 0.0
    %657 = vmatpush1.msra.mxu0 %v331
    %658 = vmatprep.subr.mxu0 0.0
    %659 = vmatpush1.msra.mxu0 %v334
    %660 = vmatprep.subr.mxu0 0.0
    %661 = vmatpush1.msra.mxu0 %v337
    %662 = vmatprep.subr.mxu0 0.0
    %663 = vmatpush1.msra.mxu0 %v340
    %664 = vmatprep.subr.mxu0 0.0
    %665 = vmatpush1.msra.mxu0 %v343
    %666 = vmatprep.subr.mxu0 0.0
    %667 = vmatpush1.msra.mxu0 %v346
    %668 = vmatprep.subr.mxu0 0.0
    %669 = vmatpush1.msra.mxu0 %v349
    %670 = vmatprep.mubr.f32.mxu0 %v251
    %671 = vmatmul.mubr.f32.gmra.mrb[0].mxu0 %v250
    %v672 = vpop.f32.mrb[0].mxu0
    %v673 = vadd.f32 %v460, %v672
    %v674 = vpop.f32.mrb[0].mxu0
    %675 = vdwg.mxu0
    %676 = vmatprep.subr.mxu0 0.0
    %677 = vmatpush1.msra.mxu0 %v352
    %678 = vmatprep.subr.mxu0 0.0
    %679 = vmatpush1.msra.mxu0 %v355
    %680 = vmatprep.subr.mxu0 0.0
    %681 = vmatpush1.msra.mxu0 %v358
    %682 = vmatprep.subr.mxu0 0.0
    %683 = vmatpush1.msra.mxu0 %v361
    %684 = vmatprep.subr.mxu0 0.0
    %685 = vmatpush1.msra.mxu0 %v364
    %686 = vmatprep.subr.mxu0 0.0
    %687 = vmatpush1.msra.mxu0 %v367
    %688 = vmatprep.subr.mxu0 0.0
    %689 = vmatpush1.msra.mxu0 %v370
    %690 = vmatprep.subr.mxu0 0.0
    %691 = vmatpush1.msra.mxu0 %v373
    %692 = vmatprep.subr.mxu0 0.0
    %693 = vmatpush1.msra.mxu0 %v376
    %694 = vmatprep.subr.mxu0 0.0
    %695 = vmatpush1.msra.mxu0 %v379
    %696 = vmatprep.subr.mxu0 0.0
    %697 = vmatpush1.msra.mxu0 %v382
    %698 = vmatprep.subr.mxu0 0.0
    %699 = vmatpush1.msra.mxu0 %v385
    %700 = vmatprep.subr.mxu0 0.0
    %701 = vmatpush1.msra.mxu0 %v388
    %702 = vmatprep.subr.mxu0 0.0
    %703 = vmatpush1.msra.mxu0 %v391
    %704 = vmatprep.subr.mxu0 0.0
    %705 = vmatpush1.msra.mxu0 %v394
    %706 = vmatprep.subr.mxu0 0.0
    %707 = vmatpush1.msra.mxu0 %v397
    %708 = vmatprep.subr.mxu0 0.0
    %709 = vmatpush1.msra.mxu0 %v400
    %710 = vmatprep.subr.mxu0 0.0
    %711 = vmatpush1.msra.mxu0 %v403
    %712 = vmatprep.subr.mxu0 0.0
    %713 = vmatpush1.msra.mxu0 %v406
    %714 = vmatprep.subr.mxu0 0.0
    %715 = vmatpush1.msra.mxu0 %v409
    %716 = vmatprep.subr.mxu0 0.0
    %717 = vmatpush1.msra.mxu0 %v412
    %718 = vmatprep.subr.mxu0 0.0
    %719 = vmatpush1.msra.mxu0 %v415
    %720 = vmatprep.subr.mxu0 0.0
    %721 = vmatpush1.msra.mxu0 %v418
    %722 = vmatprep.subr.mxu0 0.0
    %723 = vmatpush1.msra.mxu0 %v421
    %724 = vmatprep.subr.mxu0 0.0
    %725 = vmatpush1.msra.mxu0 %v424
    %726 = vmatprep.subr.mxu0 0.0
    %727 = vmatpush1.msra.mxu0 %v427
    %728 = vmatprep.subr.mxu0 0.0
    %729 = vmatpush1.msra.mxu0 %v430
    %730 = vmatprep.subr.mxu0 0.0
    %731 = vmatpush1.msra.mxu0 %v433
    %732 = vmatprep.subr.mxu0 0.0
    %733 = vmatpush1.msra.mxu0 %v436
    %734 = vmatprep.subr.mxu0 0.0
    %735 = vmatpush1.msra.mxu0 %v439
    %736 = vmatprep.subr.mxu0 0.0
    %737 = vmatpush1.msra.mxu0 %v442
    %738 = vmatprep.subr.mxu0 0.0
    %739 = vmatpush1.msra.mxu0 %v445
    %740 = vmatprep.mubr.f32.mxu0 %v253
    %741 = vmatmul.mubr.f32.gmra.mrb[0].mxu0 %v252
    %v742 = vpop.f32.mrb[0].mxu0
    %v743 = vadd.f32 %v673, %v742
    %v744 = vpop.f32.mrb[0].mxu0
    %745 = vdwg.mxu0
    %v746 = vmax.f32 %v602, 0.0
    %v747 = vmax.f32 %v604, 0.0
    %v748 = vmax.f32 %v743, 0.0
    %v749 = vld [vmem:[%s6] sm:$0xff]
    %v750 = vld [vmem:[%s6 + $0x8] sm:$0xff]
    %v751 = vld [vmem:[%s6 + $0x10] sm:$0xff]
    %v752 = vld [vmem:[%s6 + $0x18] sm:$0xff]
    %v753 = vld [vmem:[%s6 + $0x20] sm:$0xff]
    %v754 = vld [vmem:[%s6 + $0x28] sm:$0xff]
    %v755 = vld [vmem:[%s6 + $0x30] sm:$0xff]
    %v756 = vld [vmem:[%s6 + $0x38] sm:$0xff]
    %v757 = vld [vmem:[%s6 + $0x40] sm:$0xff]
    %v758 = vld [vmem:[%s6 + $0x48] sm:$0xff]
    %v759 = vld [vmem:[%s6 + $0x50] sm:$0xff]
    %v760 = vld [vmem:[%s6 + $0x58] sm:$0xff]
    %v761 = vld [vmem:[%s6 + $0x60] sm:$0xff]
    %v762 = vld [vmem:[%s6 + $0x68] sm:$0xff]
    %v763 = vld [vmem:[%s6 + $0x70] sm:$0xff]
    %v764 = vld [vmem:[%s6 + $0x78] sm:$0xff]
    %v765 = vld [vmem:[%s6 + $0x80] sm:$0xff]
    %v766 = vld [vmem:[%s6 + $0x88] sm:$0xff]
    %v767 = vld [vmem:[%s6 + $0x90] sm:$0xff]
    %v768 = vld [vmem:[%s6 + $0x98] sm:$0xff]
    %v769 = vld [vmem:[%s6 + $0xa0] sm:$0xff]
    %v770 = vld [vmem:[%s6 + $0xa8] sm:$0xff]
    %v771 = vld [vmem:[%s6 + $0xb0] sm:$0xff]
    %v772 = vld [vmem:[%s6 + $0xb8] sm:$0xff]
    %v773 = vld [vmem:[%s6 + $0xc0] sm:$0xff]
    %v774 = vld [vmem:[%s6 + $0xc8] sm:$0xff]
    %v775 = vld [vmem:[%s6 + $0xd0] sm:$0xff]
    %v776 = vld [vmem:[%s6 + $0xd8] sm:$0xff]
    %v777 = vld [vmem:[%s6 + $0xe0] sm:$0xff]
    %v778 = vld [vmem:[%s6 + $0xe8] sm:$0xff]
    %v779 = vld [vmem:[%s6 + $0xf0] sm:$0xff]
    %v780 = vld [vmem:[%s6 + $0xf8] sm:$0xff]
    %v781 = vld [vmem:[%s6 + $0x100] sm:$0xff]
    %v782 = vld [vmem:[%s6 + $0x108] sm:$0xff]
    %v783 = vld [vmem:[%s6 + $0x110] sm:$0xff]
    %v784 = vld [vmem:[%s6 + $0x118] sm:$0xff]
    %v785 = vld [vmem:[%s6 + $0x120] sm:$0xff]
    %v786 = vld [vmem:[%s6 + $0x128] sm:$0xff]
    %v787 = vld [vmem:[%s6 + $0x130] sm:$0xff]
    %v788 = vld [vmem:[%s6 + $0x138] sm:$0xff]
    %v789 = vld [vmem:[%s6 + $0x140] sm:$0xff]
    %v790 = vld [vmem:[%s6 + $0x148] sm:$0xff]
    %v791 = vld [vmem:[%s6 + $0x150] sm:$0xff]
    %v792 = vld [vmem:[%s6 + $0x158] sm:$0xff]
    %v793 = vld [vmem:[%s6 + $0x160] sm:$0xff]
    %v794 = vld [vmem:[%s6 + $0x168] sm:$0xff]
    %v795 = vld [vmem:[%s6 + $0x170] sm:$0xff]
    %v796 = vld [vmem:[%s6 + $0x178] sm:$0xff]
    %v797 = vld [vmem:[%s6 + $0x180] sm:$0x1]
    %v798 = vlaneseq
    %v799 = vshrl.u32 %v798, 7
    %v800 = vsub.s32 0, %v799
    %v801 = vrot.slane %v797, %v800
    %802 = vmatprep.subr.mxu0 0.0
    %803 = vmatpush1.msra.mxu0 %v749
    %804 = vmatprep.subr.mxu0 0.0
    %805 = vmatpush1.msra.mxu0 %v750
    %806 = vmatprep.subr.mxu0 0.0
    %807 = vmatpush1.msra.mxu0 %v751
    %808 = vmatprep.subr.mxu0 0.0
    %809 = vmatpush1.msra.mxu0 %v752
    %810 = vmatprep.subr.mxu0 0.0
    %811 = vmatpush1.msra.mxu0 %v753
    %812 = vmatprep.subr.mxu0 0.0
    %813 = vmatpush1.msra.mxu0 %v754
    %814 = vmatprep.subr.mxu0 0.0
    %815 = vmatpush1.msra.mxu0 %v755
    %816 = vmatprep.subr.mxu0 0.0
    %817 = vmatpush1.msra.mxu0 %v756
    %818 = vmatprep.subr.mxu0 0.0
    %819 = vmatpush1.msra.mxu0 %v757
    %820 = vmatprep.subr.mxu0 0.0
    %821 = vmatpush1.msra.mxu0 %v758
    %822 = vmatprep.subr.mxu0 0.0
    %823 = vmatpush1.msra.mxu0 %v759
    %824 = vmatprep.subr.mxu0 0.0
    %825 = vmatpush1.msra.mxu0 %v760
    %826 = vmatprep.subr.mxu0 0.0
    %827 = vmatpush1.msra.mxu0 %v761
    %828 = vmatprep.subr.mxu0 0.0
    %829 = vmatpush1.msra.mxu0 %v762
    %830 = vmatprep.subr.mxu0 0.0
    %831 = vmatpush1.msra.mxu0 %v763
    %832 = vmatprep.subr.mxu0 0.0
    %833 = vmatpush1.msra.mxu0 %v764
    %834 = vmatprep.subr.mxu0 0.0
    %835 = vmatpush1.msra.mxu0 %v765
    %836 = vmatprep.subr.mxu0 0.0
    %837 = vmatpush1.msra.mxu0 %v766
    %838 = vmatprep.subr.mxu0 0.0
    %839 = vmatpush1.msra.mxu0 %v767
    %840 = vmatprep.subr.mxu0 0.0
    %841 = vmatpush1.msra.mxu0 %v768
    %842 = vmatprep.subr.mxu0 0.0
    %843 = vmatpush1.msra.mxu0 %v769
    %844 = vmatprep.subr.mxu0 0.0
    %845 = vmatpush1.msra.mxu0 %v770
    %846 = vmatprep.subr.mxu0 0.0
    %847 = vmatpush1.msra.mxu0 %v771
    %848 = vmatprep.subr.mxu0 0.0
    %849 = vmatpush1.msra.mxu0 %v772
    %850 = vmatprep.subr.mxu0 0.0
    %851 = vmatpush1.msra.mxu0 %v773
    %852 = vmatprep.subr.mxu0 0.0
    %853 = vmatpush1.msra.mxu0 %v774
    %854 = vmatprep.subr.mxu0 0.0
    %855 = vmatpush1.msra.mxu0 %v775
    %856 = vmatprep.subr.mxu0 0.0
    %857 = vmatpush1.msra.mxu0 %v776
    %858 = vmatprep.subr.mxu0 0.0
    %859 = vmatpush1.msra.mxu0 %v777
    %860 = vmatprep.subr.mxu0 0.0
    %861 = vmatpush1.msra.mxu0 %v778
    %862 = vmatprep.subr.mxu0 0.0
    %863 = vmatpush1.msra.mxu0 %v779
    %864 = vmatprep.subr.mxu0 0.0
    %865 = vmatpush1.msra.mxu0 %v780
    %866 = vmatprep.mubr.f32.mxu0 %v747
    %867 = vmatmul.mubr.f32.gmra.mrb[0].mxu0 %v746
    %v868 = vpop.f32.mrb[0].mxu0
    %v869 = vadd.f32 %v801, %v868
    %v870 = vpop.f32.mrb[0].mxu0
    %871 = vdwg.mxu0
    %872 = vmatprep.subr.mxu0 0.0
    %873 = vmatpush1.msra.mxu0 %v781
    %874 = vmatprep.subr.mxu0 0.0
    %875 = vmatpush1.msra.mxu0 %v782
    %876 = vmatprep.subr.mxu0 0.0
    %877 = vmatpush1.msra.mxu0 %v783
    %878 = vmatprep.subr.mxu0 0.0
    %879 = vmatpush1.msra.mxu0 %v784
    %880 = vmatprep.subr.mxu0 0.0
    %881 = vmatpush1.msra.mxu0 %v785
    %882 = vmatprep.subr.mxu0 0.0
    %883 = vmatpush1.msra.mxu0 %v786
    %884 = vmatprep.subr.mxu0 0.0
    %885 = vmatpush1.msra.mxu0 %v787
    %886 = vmatprep.subr.mxu0 0.0
    %887 = vmatpush1.msra.mxu0 %v788
    %888 = vmatprep.subr.mxu0 0.0
    %889 = vmatpush1.msra.mxu0 %v789
    %890 = vmatprep.subr.mxu0 0.0
    %891 = vmatpush1.msra.mxu0 %v790
    %892 = vmatprep.subr.mxu0 0.0
    %893 = vmatpush1.msra.mxu0 %v791
    %894 = vmatprep.subr.mxu0 0.0
    %895 = vmatpush1.msra.mxu0 %v792
    %896 = vmatprep.subr.mxu0 0.0
    %897 = vmatpush1.msra.mxu0 %v793
    %898 = vmatprep.subr.mxu0 0.0
    %899 = vmatpush1.msra.mxu0 %v794
    %900 = vmatprep.subr.mxu0 0.0
    %901 = vmatpush1.msra.mxu0 %v795
    %902 = vmatprep.subr.mxu0 0.0
    %903 = vmatpush1.msra.mxu0 %v796
    %904 = vmatprep.subr.mxu0 0.0
    %905 = vmatpush1.msra.mxu0 0.0
    %906 = vmatprep.subr.mxu0 0.0
    %907 = vmatpush1.msra.mxu0 0.0
    %908 = vmatprep.subr.mxu0 0.0
    %909 = vmatpush1.msra.mxu0 0.0
    %910 = vmatprep.subr.mxu0 0.0
    %911 = vmatpush1.msra.mxu0 0.0
    %912 = vmatprep.subr.mxu0 0.0
    %913 = vmatpush1.msra.mxu0 0.0
    %914 = vmatprep.subr.mxu0 0.0
    %915 = vmatpush1.msra.mxu0 0.0
    %916 = vmatprep.subr.mxu0 0.0
    %917 = vmatpush1.msra.mxu0 0.0
    %918 = vmatprep.subr.mxu0 0.0
    %919 = vmatpush1.msra.mxu0 0.0
    %920 = vmatprep.subr.mxu0 0.0
    %921 = vmatpush1.msra.mxu0 0.0
    %922 = vmatprep.subr.mxu0 0.0
    %923 = vmatpush1.msra.mxu0 0.0
    %924 = vmatprep.subr.mxu0 0.0
    %925 = vmatpush1.msra.mxu0 0.0
    %926 = vmatprep.subr.mxu0 0.0
    %927 = vmatpush1.msra.mxu0 0.0
    %928 = vmatprep.subr.mxu0 0.0
    %929 = vmatpush1.msra.mxu0 0.0
    %930 = vmatprep.subr.mxu0 0.0
    %931 = vmatpush1.msra.mxu0 0.0
    %932 = vmatprep.subr.mxu0 0.0
    %933 = vmatpush1.msra.mxu0 0.0
    %934 = vmatprep.subr.mxu0 0.0
    %935 = vmatpush1.msra.mxu0 0.0
    %936 = vmatprep.mubr.f32.mxu0 0.0
    %937 = vmatmul.mubr.f32.gmra.mrb[0].mxu0 %v748
    %v938 = vpop.f32.mrb[0].mxu0
    %v939 = vadd.f32 %v869, %v938
    %v940 = vpop.f32.mrb[0].mxu0
    %941 = vdwg.mxu0
    %v942 = vld [vmem:[%s0] sm:$0xff]
    %v943 = vld [vmem:[%s0 + $0x8] sm:$0xff]
    %v944 = vld [vmem:[%s7] sm:$0xff]
    %v945 = vld [vmem:[%s7 + $0x8] sm:$0xff]
    %v946 = vld [vmem:[%s7 + $0x10] sm:$0xff]
    %v947 = vld [vmem:[%s7 + $0x18] sm:$0xff]
    %v948 = vld [vmem:[%s10] sm:$0x1]
    %v949 = vlaneseq
    %v950 = vshrl.u32 %v949, 7
    %v951 = vsub.s32 0, %v950
    %v952 = vrot.slane %v948, %v951
    %vm953 = vcmask 261120
    %v955 = vsel %vm953, %v942, 0
    %v958 = vsel %vm953, %v943, 0
    %960 = vmatprep.subr.mxu0 0.0
    %961 = vmatpush1.msra.mxu0 %v944
    %962 = vmatprep.subr.mxu0 0.0
    %963 = vmatpush1.msra.mxu0 %v945
    %964 = vmatprep.subr.mxu0 0.0
    %965 = vmatpush1.msra.mxu0 %v946
    %966 = vmatprep.subr.mxu0 0.0
    %967 = vmatpush1.msra.mxu0 %v947
    %968 = vmatprep.subr.mxu0 0.0
    %969 = vmatpush1.msra.mxu0 0.0
    %970 = vmatprep.subr.mxu0 0.0
    %971 = vmatpush1.msra.mxu0 0.0
    %972 = vmatprep.subr.mxu0 0.0
    %973 = vmatpush1.msra.mxu0 0.0
    %974 = vmatprep.subr.mxu0 0.0
    %975 = vmatpush1.msra.mxu0 0.0
    %976 = vmatprep.subr.mxu0 0.0
    %977 = vmatpush1.msra.mxu0 0.0
    %978 = vmatprep.subr.mxu0 0.0
    %979 = vmatpush1.msra.mxu0 0.0
    %980 = vmatprep.subr.mxu0 0.0
    %981 = vmatpush1.msra.mxu0 0.0
    %982 = vmatprep.subr.mxu0 0.0
    %983 = vmatpush1.msra.mxu0 0.0
    %984 = vmatprep.subr.mxu0 0.0
    %985 = vmatpush1.msra.mxu0 0.0
    %986 = vmatprep.subr.mxu0 0.0
    %987 = vmatpush1.msra.mxu0 0.0
    %988 = vmatprep.subr.mxu0 0.0
    %989 = vmatpush1.msra.mxu0 0.0
    %990 = vmatprep.subr.mxu0 0.0
    %991 = vmatpush1.msra.mxu0 0.0
    %992 = vmatprep.subr.mxu0 0.0
    %993 = vmatpush1.msra.mxu0 0.0
    %994 = vmatprep.subr.mxu0 0.0
    %995 = vmatpush1.msra.mxu0 0.0
    %996 = vmatprep.subr.mxu0 0.0
    %997 = vmatpush1.msra.mxu0 0.0
    %998 = vmatprep.subr.mxu0 0.0
    %999 = vmatpush1.msra.mxu0 0.0
    %1000 = vmatprep.subr.mxu0 0.0
    %1001 = vmatpush1.msra.mxu0 0.0
    %1002 = vmatprep.subr.mxu0 0.0
    %1003 = vmatpush1.msra.mxu0 0.0
    %1004 = vmatprep.subr.mxu0 0.0
    %1005 = vmatpush1.msra.mxu0 0.0
    %1006 = vmatprep.subr.mxu0 0.0
    %1007 = vmatpush1.msra.mxu0 0.0
    %1008 = vmatprep.subr.mxu0 0.0
    %1009 = vmatpush1.msra.mxu0 0.0
    %1010 = vmatprep.subr.mxu0 0.0
    %1011 = vmatpush1.msra.mxu0 0.0
    %1012 = vmatprep.subr.mxu0 0.0
    %1013 = vmatpush1.msra.mxu0 0.0
    %1014 = vmatprep.subr.mxu0 0.0
    %1015 = vmatpush1.msra.mxu0 0.0
    %1016 = vmatprep.subr.mxu0 0.0
    %1017 = vmatpush1.msra.mxu0 0.0
    %1018 = vmatprep.subr.mxu0 0.0
    %1019 = vmatpush1.msra.mxu0 0.0
    %1020 = vmatprep.subr.mxu0 0.0
    %1021 = vmatpush1.msra.mxu0 0.0
    %1022 = vmatprep.subr.mxu0 0.0
    %1023 = vmatpush1.msra.mxu0 0.0
    %1024 = vmatprep.mubr.f32.mxu0 0.0
    %1025 = vmatmul.mubr.f32.gmra.mrb[0].mxu0 %v955
    %v1026 = vpop.f32.mrb[0].mxu0
    %v1027 = vadd.f32 %v952, %v1026
    %v1028 = vpop.f32.mrb[0].mxu0
    %1029 = vmatprep.mubr.f32.mxu0 0.0
    %1030 = vmatmul.mubr.f32.gmra.mrb[0].mxu0 %v958
    %v1031 = vpop.f32.mrb[0].mxu0
    %v1032 = vadd.f32 %v952, %v1031
    %v1033 = vpop.f32.mrb[0].mxu0
    %1034 = vdwg.mxu0
    %v1035 = vld [vmem:[%s2] sm:$0x3]
    %v1038 = vunpack.c.l.s4 1966171168
    %v1039 = vunpack.c.0.s8 %v1038
    %v1040 = vlaneseq
    %v1041 = vshrl.u32 %v1040, 7
    %v1042 = vsub.s32 %v1039, %v1041
    %v1043 = vrot.slane %v1035, %v1042
    %v1044 = vcombine.high %v1043, %v1043
    %v1046 = vunpack.c.l.s4 1966171168
    %v1047 = vunpack.c.0.s8 %v1046
    %v1048 = vlaneseq
    %v1049 = vshrl.u32 %v1048, 7
    %v1050 = vsub.s32 %v1047, %v1049
    %v1051 = vrot.slane %v1043, %v1050
    %v1053 = vunpack.c.l.s4 1966171168
    %v1054 = vunpack.c.0.s8 %v1053
    %v1055 = vlaneseq
    %v1056 = vshrl.u32 %v1055, 7
    %v1057 = vsub.s32 %v1054, %v1056
    %v1058 = vrot.slane %v1044, %v1057
    %s1061 = scalar_lea.vmem %s7, 32
    %v1062 = vld [vmem:[%s1061] sm:$0xff]
    %v1063 = vld [vmem:[%s1061 + $0x8] sm:$0xff]
    %v1064 = vld [vmem:[%s1061 + $0x10] sm:$0xff]
    %v1065 = vld [vmem:[%s1061 + $0x18] sm:$0xff]
    %v1067 = vsel %vm953, %v939, 0
    %1069 = vmatprep.subr.mxu0 0.0
    %1070 = vmatpush1.msra.mxu0 %v1062
    %1071 = vmatprep.subr.mxu0 0.0
    %1072 = vmatpush1.msra.mxu0 %v1063
    %1073 = vmatprep.subr.mxu0 0.0
    %1074 = vmatpush1.msra.mxu0 %v1064
    %1075 = vmatprep.subr.mxu0 0.0
    %1076 = vmatpush1.msra.mxu0 %v1065
    %1077 = vmatprep.subr.mxu0 0.0
    %1078 = vmatpush1.msra.mxu0 0.0
    %1079 = vmatprep.subr.mxu0 0.0
    %1080 = vmatpush1.msra.mxu0 0.0
    %1081 = vmatprep.subr.mxu0 0.0
    %1082 = vmatpush1.msra.mxu0 0.0
    %1083 = vmatprep.subr.mxu0 0.0
    %1084 = vmatpush1.msra.mxu0 0.0
    %1085 = vmatprep.subr.mxu0 0.0
    %1086 = vmatpush1.msra.mxu0 0.0
    %1087 = vmatprep.subr.mxu0 0.0
    %1088 = vmatpush1.msra.mxu0 0.0
    %1089 = vmatprep.subr.mxu0 0.0
    %1090 = vmatpush1.msra.mxu0 0.0
    %1091 = vmatprep.subr.mxu0 0.0
    %1092 = vmatpush1.msra.mxu0 0.0
    %1093 = vmatprep.subr.mxu0 0.0
    %1094 = vmatpush1.msra.mxu0 0.0
    %1095 = vmatprep.subr.mxu0 0.0
    %1096 = vmatpush1.msra.mxu0 0.0
    %1097 = vmatprep.subr.mxu0 0.0
    %1098 = vmatpush1.msra.mxu0 0.0
    %1099 = vmatprep.subr.mxu0 0.0
    %1100 = vmatpush1.msra.mxu0 0.0
    %1101 = vmatprep.subr.mxu0 0.0
    %1102 = vmatpush1.msra.mxu0 0.0
    %1103 = vmatprep.subr.mxu0 0.0
    %1104 = vmatpush1.msra.mxu0 0.0
    %1105 = vmatprep.subr.mxu0 0.0
    %1106 = vmatpush1.msra.mxu0 0.0
    %1107 = vmatprep.subr.mxu0 0.0
    %1108 = vmatpush1.msra.mxu0 0.0
    %1109 = vmatprep.subr.mxu0 0.0
    %1110 = vmatpush1.msra.mxu0 0.0
    %1111 = vmatprep.subr.mxu0 0.0
    %1112 = vmatpush1.msra.mxu0 0.0
    %1113 = vmatprep.subr.mxu0 0.0
    %1114 = vmatpush1.msra.mxu0 0.0
    %1115 = vmatprep.subr.mxu0 0.0
    %1116 = vmatpush1.msra.mxu0 0.0
    %1117 = vmatprep.subr.mxu0 0.0
    %1118 = vmatpush1.msra.mxu0 0.0
    %1119 = vmatprep.subr.mxu0 0.0
    %1120 = vmatpush1.msra.mxu0 0.0
    %1121 = vmatprep.subr.mxu0 0.0
    %1122 = vmatpush1.msra.mxu0 0.0
    %1123 = vmatprep.subr.mxu0 0.0
    %1124 = vmatpush1.msra.mxu0 0.0
    %1125 = vmatprep.subr.mxu0 0.0
    %1126 = vmatpush1.msra.mxu0 0.0
    %1127 = vmatprep.subr.mxu0 0.0
    %1128 = vmatpush1.msra.mxu0 0.0
    %1129 = vmatprep.subr.mxu0 0.0
    %1130 = vmatpush1.msra.mxu0 0.0
    %1131 = vmatprep.subr.mxu0 0.0
    %1132 = vmatpush1.msra.mxu0 0.0
    %1133 = vmatprep.mubr.f32.mxu0 0.0
    %1134 = vmatmul.mubr.f32.gmra.mrb[0].mxu0 %v1067
    %v1135 = vpop.f32.mrb[0].mxu0
    %v1136 = vadd.f32 0.0, %v1135
    %v1137 = vpop.f32.mrb[0].mxu0
    %1138 = vdwg.mxu0
    %s1139 = scalar_lea.vmem %s7, 64
    %v1140 = vld [vmem:[%s1139] sm:$0xff]
    %v1141 = vld [vmem:[%s1139 + $0x8] sm:$0xff]
    %v1142 = vld [vmem:[%s1139 + $0x10] sm:$0xff]
    %v1143 = vld [vmem:[%s1139 + $0x18] sm:$0xff]
    %v1145 = vsel %vm953, %v1136, 0
    %1147 = vmatprep.subr.mxu0 0.0
    %1148 = vmatpush1.msra.mxu0 %v1140
    %1149 = vmatprep.subr.mxu0 0.0
    %1150 = vmatpush1.msra.mxu0 %v1141
    %1151 = vmatprep.subr.mxu0 0.0
    %1152 = vmatpush1.msra.mxu0 %v1142
    %1153 = vmatprep.subr.mxu0 0.0
    %1154 = vmatpush1.msra.mxu0 %v1143
    %1155 = vmatprep.subr.mxu0 0.0
    %1156 = vmatpush1.msra.mxu0 0.0
    %1157 = vmatprep.subr.mxu0 0.0
    %1158 = vmatpush1.msra.mxu0 0.0
    %1159 = vmatprep.subr.mxu0 0.0
    %1160 = vmatpush1.msra.mxu0 0.0
    %1161 = vmatprep.subr.mxu0 0.0
    %1162 = vmatpush1.msra.mxu0 0.0
    %1163 = vmatprep.subr.mxu0 0.0
    %1164 = vmatpush1.msra.mxu0 0.0
    %1165 = vmatprep.subr.mxu0 0.0
    %1166 = vmatpush1.msra.mxu0 0.0
    %1167 = vmatprep.subr.mxu0 0.0
    %1168 = vmatpush1.msra.mxu0 0.0
    %1169 = vmatprep.subr.mxu0 0.0
    %1170 = vmatpush1.msra.mxu0 0.0
    %1171 = vmatprep.subr.mxu0 0.0
    %1172 = vmatpush1.msra.mxu0 0.0
    %1173 = vmatprep.subr.mxu0 0.0
    %1174 = vmatpush1.msra.mxu0 0.0
    %1175 = vmatprep.subr.mxu0 0.0
    %1176 = vmatpush1.msra.mxu0 0.0
    %1177 = vmatprep.subr.mxu0 0.0
    %1178 = vmatpush1.msra.mxu0 0.0
    %1179 = vmatprep.subr.mxu0 0.0
    %1180 = vmatpush1.msra.mxu0 0.0
    %1181 = vmatprep.subr.mxu0 0.0
    %1182 = vmatpush1.msra.mxu0 0.0
    %1183 = vmatprep.subr.mxu0 0.0
    %1184 = vmatpush1.msra.mxu0 0.0
    %1185 = vmatprep.subr.mxu0 0.0
    %1186 = vmatpush1.msra.mxu0 0.0
    %1187 = vmatprep.subr.mxu0 0.0
    %1188 = vmatpush1.msra.mxu0 0.0
    %1189 = vmatprep.subr.mxu0 0.0
    %1190 = vmatpush1.msra.mxu0 0.0
    %1191 = vmatprep.subr.mxu0 0.0
    %1192 = vmatpush1.msra.mxu0 0.0
    %1193 = vmatprep.subr.mxu0 0.0
    %1194 = vmatpush1.msra.mxu0 0.0
    %1195 = vmatprep.subr.mxu0 0.0
    %1196 = vmatpush1.msra.mxu0 0.0
    %1197 = vmatprep.subr.mxu0 0.0
    %1198 = vmatpush1.msra.mxu0 0.0
    %1199 = vmatprep.subr.mxu0 0.0
    %1200 = vmatpush1.msra.mxu0 0.0
    %1201 = vmatprep.subr.mxu0 0.0
    %1202 = vmatpush1.msra.mxu0 0.0
    %1203 = vmatprep.subr.mxu0 0.0
    %1204 = vmatpush1.msra.mxu0 0.0
    %1205 = vmatprep.subr.mxu0 0.0
    %1206 = vmatpush1.msra.mxu0 0.0
    %1207 = vmatprep.subr.mxu0 0.0
    %1208 = vmatpush1.msra.mxu0 0.0
    %1209 = vmatprep.subr.mxu0 0.0
    %1210 = vmatpush1.msra.mxu0 0.0
    %1211 = vmatprep.mubr.f32.mxu0 0.0
    %1212 = vmatmul.mubr.f32.gmra.mrb[0].mxu0 %v1145
    %v1213 = vpop.f32.mrb[0].mxu0
    %v1214 = vadd.f32 0.0, %v1213
    %v1215 = vpop.f32.mrb[0].mxu0
    %1216 = vdwg.mxu0
    %v1219 = vunpack.c.l.s4 1966171168
    %v1220 = vunpack.c.0.s8 %v1219
    %v1221 = vlaneseq
    %v1222 = vshrl.u32 %v1221, 7
    %v1223 = vsub.s32 %v1220, %v1222
    %v1224 = vrot.slane %v1214, %v1223
    %v1225 = vcombine.high %v1224, %v1224
    %v1227 = vunpack.c.l.s4 1966171168
    %v1228 = vunpack.c.0.s8 %v1227
    %v1229 = vlaneseq
    %v1230 = vshrl.u32 %v1229, 7
    %v1231 = vsub.s32 %v1228, %v1230
    %v1232 = vrot.slane %v1224, %v1231
    %v1234 = vunpack.c.l.s4 1966171168
    %v1235 = vunpack.c.0.s8 %v1234
    %v1236 = vlaneseq
    %v1237 = vshrl.u32 %v1236, 7
    %v1238 = vsub.s32 %v1235, %v1237
    %v1239 = vrot.slane %v1225, %v1238
    %v1240 = vlaneseq
    %v1241 = vshrl.u32 %v1240, 7
    %v1242 = vsub.s32 0, %v1241
    %v1243 = vrot.slane %v1232, %v1242
    %v1244 = vlaneseq
    %v1245 = vshrl.u32 %v1244, 7
    %v1246 = vsub.s32 0, %v1245
    %v1247 = vrot.slane %v1239, %v1246
    %v1250 = vadd.f32 %v1243, %v1027
    %v1251 = vadd.f32 %v1247, %v1032
    %v1252 = vld [vmem:[%s10 + $0x2] sm:$0x1]
    %v1253 = vld [vmem:[%s10 + $0x3] sm:$0x1]
    %v1254 = vsel %vm953, %v1250, 0.0
    %1255 = vadd.xlane.f32.xlu0 %v1254
    %v1256 = vpop.xlane.xlu0 %1255
    %v1257 = vsel %vm953, %v1251, 0.0
    %1258 = vadd.xlane.f32.xlu0 %v1257
    %v1259 = vpop.xlane.xlu0 %1258
    %v1260 = vrcp.pop 32.0
    %v1261 = vmul.f32 %v1256, %v1260
    %v1262 = vmul.f32 %v1259, %v1260
    %v1263 = vsub.f32 %v1250, %v1261
    %v1264 = vsub.f32 %v1251, %v1262
    %v1265 = vmul.f32 %v1263, %v1263
    %v1266 = vmul.f32 %v1264, %v1264
    %v1267 = vsel %vm953, %v1265, 0.0
    %1268 = vadd.xlane.f32.xlu0 %v1267
    %v1269 = vpop.xlane.xlu0 %1268
    %v1270 = vsel %vm953, %v1266, 0.0
    %1271 = vadd.xlane.f32.xlu0 %v1270
    %v1272 = vpop.xlane.xlu0 %1271
    %v1273 = vmul.f32 %v1269, %v1260
    %v1274 = vmul.f32 %v1272, %v1260
    %v1275 = vadd.f32 %v1273, 1e-06
    %v1276 = vadd.f32 %v1274, 1e-06
    %v1277 = vrsqrt.pop %v1275
    %v1278 = vrsqrt.pop %v1276
    %v1279 = vmul.f32 %v1263, %v1277
    %v1280 = vmul.f32 %v1264, %v1278
    %v1281 = vlaneseq
    %v1282 = vshrl.u32 %v1281, 7
    %v1283 = vsub.s32 0, %v1282
    %v1284 = vrot.slane %v1252, %v1283
    %v1285 = vmul.f32 %v1279, %v1284
    %v1286 = vmul.f32 %v1280, %v1284
    %v1287 = vlaneseq
    %v1288 = vshrl.u32 %v1287, 7
    %v1289 = vsub.s32 0, %v1288
    %v1290 = vrot.slane %v1253, %v1289
    %v1291 = vadd.f32 %v1285, %v1290
    %v1292 = vadd.f32 %v1286, %v1290
    %s1293 = scalar_lea.vmem %s7, 96
    %v1294 = vld [vmem:[%s1293] sm:$0xff]
    %v1295 = vld [vmem:[%s1293 + $0x8] sm:$0xff]
    %v1296 = vld [vmem:[%s1293 + $0x10] sm:$0xff]
    %v1297 = vld [vmem:[%s1293 + $0x18] sm:$0xff]
    %v1298 = vld [vmem:[%s10 + $0x4] sm:$0x1]
    %v1299 = vlaneseq
    %v1300 = vshrl.u32 %v1299, 7
    %v1301 = vsub.s32 0, %v1300
    %v1302 = vrot.slane %v1298, %v1301
    %v1304 = vsel %vm953, %v1027, 0
    %v1307 = vsel %vm953, %v1032, 0
    %1309 = vmatprep.subr.mxu0 0.0
    %1310 = vmatpush1.msra.mxu0 %v1294
    %1311 = vmatprep.subr.mxu0 0.0
    %1312 = vmatpush1.msra.mxu0 %v1295
    %1313 = vmatprep.subr.mxu0 0.0
    %1314 = vmatpush1.msra.mxu0 %v1296
    %1315 = vmatprep.subr.mxu0 0.0
    %1316 = vmatpush1.msra.mxu0 %v1297
    %1317 = vmatprep.subr.mxu0 0.0
    %1318 = vmatpush1.msra.mxu0 0.0
    %1319 = vmatprep.subr.mxu0 0.0
    %1320 = vmatpush1.msra.mxu0 0.0
    %1321 = vmatprep.subr.mxu0 0.0
    %1322 = vmatpush1.msra.mxu0 0.0
    %1323 = vmatprep.subr.mxu0 0.0
    %1324 = vmatpush1.msra.mxu0 0.0
    %1325 = vmatprep.subr.mxu0 0.0
    %1326 = vmatpush1.msra.mxu0 0.0
    %1327 = vmatprep.subr.mxu0 0.0
    %1328 = vmatpush1.msra.mxu0 0.0
    %1329 = vmatprep.subr.mxu0 0.0
    %1330 = vmatpush1.msra.mxu0 0.0
    %1331 = vmatprep.subr.mxu0 0.0
    %1332 = vmatpush1.msra.mxu0 0.0
    %1333 = vmatprep.subr.mxu0 0.0
    %1334 = vmatpush1.msra.mxu0 0.0
    %1335 = vmatprep.subr.mxu0 0.0
    %1336 = vmatpush1.msra.mxu0 0.0
    %1337 = vmatprep.subr.mxu0 0.0
    %1338 = vmatpush1.msra.mxu0 0.0
    %1339 = vmatprep.subr.mxu0 0.0
    %1340 = vmatpush1.msra.mxu0 0.0
    %1341 = vmatprep.subr.mxu0 0.0
    %1342 = vmatpush1.msra.mxu0 0.0
    %1343 = vmatprep.subr.mxu0 0.0
    %1344 = vmatpush1.msra.mxu0 0.0
    %1345 = vmatprep.subr.mxu0 0.0
    %1346 = vmatpush1.msra.mxu0 0.0
    %1347 = vmatprep.subr.mxu0 0.0
    %1348 = vmatpush1.msra.mxu0 0.0
    %1349 = vmatprep.subr.mxu0 0.0
    %1350 = vmatpush1.msra.mxu0 0.0
    %1351 = vmatprep.subr.mxu0 0.0
    %1352 = vmatpush1.msra.mxu0 0.0
    %1353 = vmatprep.subr.mxu0 0.0
    %1354 = vmatpush1.msra.mxu0 0.0
    %1355 = vmatprep.subr.mxu0 0.0
    %1356 = vmatpush1.msra.mxu0 0.0
    %1357 = vmatprep.subr.mxu0 0.0
    %1358 = vmatpush1.msra.mxu0 0.0
    %1359 = vmatprep.subr.mxu0 0.0
    %1360 = vmatpush1.msra.mxu0 0.0
    %1361 = vmatprep.subr.mxu0 0.0
    %1362 = vmatpush1.msra.mxu0 0.0
    %1363 = vmatprep.subr.mxu0 0.0
    %1364 = vmatpush1.msra.mxu0 0.0
    %1365 = vmatprep.subr.mxu0 0.0
    %1366 = vmatpush1.msra.mxu0 0.0
    %1367 = vmatprep.subr.mxu0 0.0
    %1368 = vmatpush1.msra.mxu0 0.0
    %1369 = vmatprep.subr.mxu0 0.0
    %1370 = vmatpush1.msra.mxu0 0.0
    %1371 = vmatprep.subr.mxu0 0.0
    %1372 = vmatpush1.msra.mxu0 0.0
    %1373 = vmatprep.mubr.f32.mxu0 0.0
    %1374 = vmatmul.mubr.f32.gmra.mrb[0].mxu0 %v1304
    %v1375 = vpop.f32.mrb[0].mxu0
    %v1376 = vadd.f32 %v1302, %v1375
    %v1377 = vpop.f32.mrb[0].mxu0
    %1378 = vmatprep.mubr.f32.mxu0 0.0
    %1379 = vmatmul.mubr.f32.gmra.mrb[0].mxu0 %v1307
    %v1380 = vpop.f32.mrb[0].mxu0
    %v1381 = vadd.f32 %v1302, %v1380
    %v1382 = vpop.f32.mrb[0].mxu0
    %1383 = vdwg.mxu0
    %s1384 = scalar_lea.vmem %s7, 128
    %v1385 = vld [vmem:[%s1384] sm:$0xff]
    %v1386 = vld [vmem:[%s1384 + $0x8] sm:$0xff]
    %v1387 = vld [vmem:[%s1384 + $0x10] sm:$0xff]
    %v1388 = vld [vmem:[%s1384 + $0x18] sm:$0xff]
    %v1389 = vld [vmem:[%s10 + $0x5] sm:$0x1]
    %v1390 = vlaneseq
    %v1391 = vshrl.u32 %v1390, 7
    %v1392 = vsub.s32 0, %v1391
    %v1393 = vrot.slane %v1389, %v1392
    %v1395 = vsel %vm953, %v1291, 0
    %v1398 = vsel %vm953, %v1292, 0
    %1400 = vmatprep.subr.mxu0 0.0
    %1401 = vmatpush1.msra.mxu0 %v1385
    %1402 = vmatprep.subr.mxu0 0.0
    %1403 = vmatpush1.msra.mxu0 %v1386
    %1404 = vmatprep.subr.mxu0 0.0
    %1405 = vmatpush1.msra.mxu0 %v1387
    %1406 = vmatprep.subr.mxu0 0.0
    %1407 = vmatpush1.msra.mxu0 %v1388
    %1408 = vmatprep.subr.mxu0 0.0
    %1409 = vmatpush1.msra.mxu0 0.0
    %1410 = vmatprep.subr.mxu0 0.0
    %1411 = vmatpush1.msra.mxu0 0.0
    %1412 = vmatprep.subr.mxu0 0.0
    %1413 = vmatpush1.msra.mxu0 0.0
    %1414 = vmatprep.subr.mxu0 0.0
    %1415 = vmatpush1.msra.mxu0 0.0
    %1416 = vmatprep.subr.mxu0 0.0
    %1417 = vmatpush1.msra.mxu0 0.0
    %1418 = vmatprep.subr.mxu0 0.0
    %1419 = vmatpush1.msra.mxu0 0.0
    %1420 = vmatprep.subr.mxu0 0.0
    %1421 = vmatpush1.msra.mxu0 0.0
    %1422 = vmatprep.subr.mxu0 0.0
    %1423 = vmatpush1.msra.mxu0 0.0
    %1424 = vmatprep.subr.mxu0 0.0
    %1425 = vmatpush1.msra.mxu0 0.0
    %1426 = vmatprep.subr.mxu0 0.0
    %1427 = vmatpush1.msra.mxu0 0.0
    %1428 = vmatprep.subr.mxu0 0.0
    %1429 = vmatpush1.msra.mxu0 0.0
    %1430 = vmatprep.subr.mxu0 0.0
    %1431 = vmatpush1.msra.mxu0 0.0
    %1432 = vmatprep.subr.mxu0 0.0
    %1433 = vmatpush1.msra.mxu0 0.0
    %1434 = vmatprep.subr.mxu0 0.0
    %1435 = vmatpush1.msra.mxu0 0.0
    %1436 = vmatprep.subr.mxu0 0.0
    %1437 = vmatpush1.msra.mxu0 0.0
    %1438 = vmatprep.subr.mxu0 0.0
    %1439 = vmatpush1.msra.mxu0 0.0
    %1440 = vmatprep.subr.mxu0 0.0
    %1441 = vmatpush1.msra.mxu0 0.0
    %1442 = vmatprep.subr.mxu0 0.0
    %1443 = vmatpush1.msra.mxu0 0.0
    %1444 = vmatprep.subr.mxu0 0.0
    %1445 = vmatpush1.msra.mxu0 0.0
    %1446 = vmatprep.subr.mxu0 0.0
    %1447 = vmatpush1.msra.mxu0 0.0
    %1448 = vmatprep.subr.mxu0 0.0
    %1449 = vmatpush1.msra.mxu0 0.0
    %1450 = vmatprep.subr.mxu0 0.0
    %1451 = vmatpush1.msra.mxu0 0.0
    %1452 = vmatprep.subr.mxu0 0.0
    %1453 = vmatpush1.msra.mxu0 0.0
    %1454 = vmatprep.subr.mxu0 0.0
    %1455 = vmatpush1.msra.mxu0 0.0
    %1456 = vmatprep.subr.mxu0 0.0
    %1457 = vmatpush1.msra.mxu0 0.0
    %1458 = vmatprep.subr.mxu0 0.0
    %1459 = vmatpush1.msra.mxu0 0.0
    %1460 = vmatprep.subr.mxu0 0.0
    %1461 = vmatpush1.msra.mxu0 0.0
    %1462 = vmatprep.subr.mxu0 0.0
    %1463 = vmatpush1.msra.mxu0 0.0
    %1464 = vmatprep.mubr.f32.mxu0 0.0
    %1465 = vmatmul.mubr.f32.gmra.mrb[0].mxu0 %v1395
    %v1466 = vpop.f32.mrb[0].mxu0
    %v1467 = vadd.f32 %v1393, %v1466
    %v1468 = vpop.f32.mrb[0].mxu0
    %1469 = vmatprep.mubr.f32.mxu0 0.0
    %1470 = vmatmul.mubr.f32.gmra.mrb[0].mxu0 %v1398
    %v1471 = vpop.f32.mrb[0].mxu0
    %v1472 = vadd.f32 %v1393, %v1471
    %v1473 = vpop.f32.mrb[0].mxu0
    %1474 = vdwg.mxu0
    %v1475 = vadd.f32 %v1376, %v1467
    %v1476 = vadd.f32 %v1381, %v1472
    %v1477 = vxor.u32 %v1475, 2147483648
    %v1478 = vxor.u32 %v1476, 2147483648
    %v1479 = vmul.f32 %v1477, 1.442695
    %v1480 = vpow.pop %v1479
    %v1481 = vmul.f32 %v1478, 1.442695
    %v1482 = vpow.pop %v1481
    %v1483 = vadd.f32 %v1480, 1.0
    %v1484 = vadd.f32 %v1482, 1.0
    %v1485 = vrcp.pop %v1483
    %v1486 = vmul.f32 1.0, %v1485
    %v1487 = vrcp.pop %v1484
    %v1488 = vmul.f32 1.0, %v1487
    %v1489 = vsub.f32 1.0, %v1486
    %v1490 = vsub.f32 1.0, %v1488
    %v1491 = vmul.f32 %v1489, %v1027
    %v1492 = vmul.f32 %v1490, %v1032
    %v1493 = vmul.f32 %v1486, %v1291
    %v1494 = vmul.f32 %v1488, %v1292
    %v1495 = vadd.f32 %v1491, %v1493
    %v1496 = vadd.f32 %v1492, %v1494
    %v1497 = vld [vmem:[%s3] sm:$0x3]
    %v1498 = vlaneseq
    %v1499 = vshrl.u32 %v1498, 7
    %v1500 = vsub.s32 0, %v1499
    %v1501 = vrot.slane %v1497, %v1500
    %1503 = vbcast.lane.b32.xlu0 %v1501, 256
    %v1504 = vpop.permute.xlu0 %1503
    %v1505 = vlaneseq
    %v1506 = vshrl.u32 %v1505, 7
    %v1507 = vsub.s32 1, %v1506
    %v1508 = vrot.slane %v1497, %v1507
    %1510 = vbcast.lane.b32.xlu0 %v1508, 256
    %v1511 = vpop.permute.xlu0 %1510
    %v1512 = vsub.f32 1.0, %v1504
    %v1513 = vsub.f32 1.0, %v1511
    %v1514 = vmul.f32 %v1495, %v1512
    %v1515 = vmul.f32 %v1496, %v1513
    %v1517 = vunpack.c.l.s4 1966171168
    %v1518 = vunpack.c.0.s8 %v1517
    %v1519 = vlaneseq
    %v1520 = vshrl.u32 %v1519, 7
    %v1521 = vsub.s32 %v1518, %v1520
    %v1522 = vrot.slane %v939, %v1521
    %v1523 = vcombine.high %v1522, %v1522
    %v1525 = vunpack.c.l.s4 1966171168
    %v1526 = vunpack.c.0.s8 %v1525
    %v1527 = vlaneseq
    %v1528 = vshrl.u32 %v1527, 7
    %v1529 = vsub.s32 %v1526, %v1528
    %v1530 = vrot.slane %v1522, %v1529
    %v1532 = vunpack.c.l.s4 1966171168
    %v1533 = vunpack.c.0.s8 %v1532
    %v1534 = vlaneseq
    %v1535 = vshrl.u32 %v1534, 7
    %v1536 = vsub.s32 %v1533, %v1535
    %v1537 = vrot.slane %v1523, %v1536
    %v1538 = vlaneseq
    %v1539 = vshrl.u32 %v1538, 7
    %v1540 = vsub.s32 0, %v1539
    %v1541 = vrot.slane %v1530, %v1540
    %v1542 = vlaneseq
    %v1543 = vshrl.u32 %v1542, 7
    %v1544 = vsub.s32 0, %v1543
    %v1545 = vrot.slane %v1537, %v1544
    %v1548 = vmul.f32 %v1504, %v1541
    %v1549 = vmul.f32 %v1511, %v1545
    %v1550 = vadd.f32 %v1514, %v1548
    %v1551 = vadd.f32 %v1515, %v1549
    %v1552 = vld [vmem:[%s8] sm:$0xff]
    %v1553 = vld [vmem:[%s8 + $0x8] sm:$0xff]
    %v1554 = vld [vmem:[%s8 + $0x10] sm:$0xff]
    %v1555 = vld [vmem:[%s8 + $0x18] sm:$0xff]
    %v1557 = vsel %vm953, %v1550, 0
    %v1560 = vsel %vm953, %v1551, 0
    %1562 = vmatprep.subr.mxu0 0.0
    %1563 = vmatpush1.msra.mxu0 %v1552
    %1564 = vmatprep.subr.mxu0 0.0
    %1565 = vmatpush1.msra.mxu0 %v1553
    %1566 = vmatprep.subr.mxu0 0.0
    %1567 = vmatpush1.msra.mxu0 %v1554
    %1568 = vmatprep.subr.mxu0 0.0
    %1569 = vmatpush1.msra.mxu0 %v1555
    %1570 = vmatprep.subr.mxu0 0.0
    %1571 = vmatpush1.msra.mxu0 0.0
    %1572 = vmatprep.subr.mxu0 0.0
    %1573 = vmatpush1.msra.mxu0 0.0
    %1574 = vmatprep.subr.mxu0 0.0
    %1575 = vmatpush1.msra.mxu0 0.0
    %1576 = vmatprep.subr.mxu0 0.0
    %1577 = vmatpush1.msra.mxu0 0.0
    %1578 = vmatprep.subr.mxu0 0.0
    %1579 = vmatpush1.msra.mxu0 0.0
    %1580 = vmatprep.subr.mxu0 0.0
    %1581 = vmatpush1.msra.mxu0 0.0
    %1582 = vmatprep.subr.mxu0 0.0
    %1583 = vmatpush1.msra.mxu0 0.0
    %1584 = vmatprep.subr.mxu0 0.0
    %1585 = vmatpush1.msra.mxu0 0.0
    %1586 = vmatprep.subr.mxu0 0.0
    %1587 = vmatpush1.msra.mxu0 0.0
    %1588 = vmatprep.subr.mxu0 0.0
    %1589 = vmatpush1.msra.mxu0 0.0
    %1590 = vmatprep.subr.mxu0 0.0
    %1591 = vmatpush1.msra.mxu0 0.0
    %1592 = vmatprep.subr.mxu0 0.0
    %1593 = vmatpush1.msra.mxu0 0.0
    %1594 = vmatprep.subr.mxu0 0.0
    %1595 = vmatpush1.msra.mxu0 0.0
    %1596 = vmatprep.subr.mxu0 0.0
    %1597 = vmatpush1.msra.mxu0 0.0
    %1598 = vmatprep.subr.mxu0 0.0
    %1599 = vmatpush1.msra.mxu0 0.0
    %1600 = vmatprep.subr.mxu0 0.0
    %1601 = vmatpush1.msra.mxu0 0.0
    %1602 = vmatprep.subr.mxu0 0.0
    %1603 = vmatpush1.msra.mxu0 0.0
    %1604 = vmatprep.subr.mxu0 0.0
    %1605 = vmatpush1.msra.mxu0 0.0
    %1606 = vmatprep.subr.mxu0 0.0
    %1607 = vmatpush1.msra.mxu0 0.0
    %1608 = vmatprep.subr.mxu0 0.0
    %1609 = vmatpush1.msra.mxu0 0.0
    %1610 = vmatprep.subr.mxu0 0.0
    %1611 = vmatpush1.msra.mxu0 0.0
    %1612 = vmatprep.subr.mxu0 0.0
    %1613 = vmatpush1.msra.mxu0 0.0
    %1614 = vmatprep.subr.mxu0 0.0
    %1615 = vmatpush1.msra.mxu0 0.0
    %1616 = vmatprep.subr.mxu0 0.0
    %1617 = vmatpush1.msra.mxu0 0.0
    %1618 = vmatprep.subr.mxu0 0.0
    %1619 = vmatpush1.msra.mxu0 0.0
    %1620 = vmatprep.subr.mxu0 0.0
    %1621 = vmatpush1.msra.mxu0 0.0
    %1622 = vmatprep.subr.mxu0 0.0
    %1623 = vmatpush1.msra.mxu0 0.0
    %1624 = vmatprep.subr.mxu0 0.0
    %1625 = vmatpush1.msra.mxu0 0.0
    %1626 = vmatprep.mubr.f32.mxu0 0.0
    %1627 = vmatmul.mubr.f32.gmra.mrb[0].mxu0 %v1557
    %v1628 = vpop.f32.mrb[0].mxu0
    %v1629 = vadd.f32 0.0, %v1628
    %v1630 = vpop.f32.mrb[0].mxu0
    %1631 = vmatprep.mubr.f32.mxu0 0.0
    %1632 = vmatmul.mubr.f32.gmra.mrb[0].mxu0 %v1560
    %v1633 = vpop.f32.mrb[0].mxu0
    %v1634 = vadd.f32 0.0, %v1633
    %v1635 = vpop.f32.mrb[0].mxu0
    %1636 = vdwg.mxu0
    %v1637 = vld [vmem:[%s10 + $0x6] sm:$0x1]
    %v1638 = vlaneseq
    %v1639 = vshrl.u32 %v1638, 7
    %v1640 = vsub.s32 0, %v1639
    %v1641 = vrot.slane %v1637, %v1640
    %v1642 = vadd.f32 %v1629, %v1641
    %v1643 = vadd.f32 %v1634, %v1641
    %v1644 = vld [vmem:[%s10 + $0x7] sm:$0x1]
    %v1645 = vlaneseq
    %v1646 = vshrl.u32 %v1645, 7
    %v1647 = vsub.s32 0, %v1646
    %v1648 = vrot.slane %v1644, %v1647
    %1650 = vrot.lane.b32.xlu0 %v1648, 32
    %v1651 = vpop.permute.xlu0 %1650
    %v1653 = vadd.f32 %v1629, %v1651
    %v1654 = vadd.f32 %v1634, %v1651
    %v1655 = vld [vmem:[%s10 + $0x8] sm:$0x1]
    %v1656 = vlaneseq
    %v1657 = vshrl.u32 %v1656, 7
    %v1658 = vsub.s32 0, %v1657
    %v1659 = vrot.slane %v1655, %v1658
    %1661 = vrot.lane.b32.xlu0 %v1659, 64
    %v1662 = vpop.permute.xlu0 %1661
    %v1664 = vadd.f32 %v1629, %v1662
    %v1665 = vadd.f32 %v1634, %v1662
    %s1666 = scalar_lea.vmem %s7, 160
    %v1667 = vld [vmem:[%s1666] sm:$0xff]
    %v1668 = vld [vmem:[%s1666 + $0x8] sm:$0xff]
    %v1669 = vld [vmem:[%s1666 + $0x10] sm:$0xff]
    %v1670 = vld [vmem:[%s1666 + $0x18] sm:$0xff]
    %v1671 = vld [vmem:[%s10 + $0x9] sm:$0x1]
    %1673 = vrot.lane.b32.xlu0 %v1653, 96
    %v1674 = vpop.permute.xlu0 %1673
    %v1676 = vsel %vm104, %v1642, 0
    %v1678 = vsel %vm104, %v1674, 0
    %1680 = vmatprep.subr.mxu0 0.0
    %1681 = vmatpush1.xpose.msra.mxu0 %v1678
    %1682 = vmatprep.subr.mxu0 0.0
    %1683 = vmatpush1.xpose.msra.mxu0 0.0
    %1684 = vmatprep.subr.mxu0 0.0
    %1685 = vmatpush1.xpose.msra.mxu0 0.0
    %1686 = vmatprep.subr.mxu0 0.0
    %1687 = vmatpush1.xpose.msra.mxu0 0.0
    %1688 = vmatprep.subr.mxu0 0.0
    %1689 = vmatpush1.xpose.msra.mxu0 0.0
    %1690 = vmatprep.subr.mxu0 0.0
    %1691 = vmatpush1.xpose.msra.mxu0 0.0
    %1692 = vmatprep.subr.mxu0 0.0
    %1693 = vmatpush1.xpose.msra.mxu0 0.0
    %1694 = vmatprep.subr.mxu0 0.0
    %1695 = vmatpush1.xpose.msra.mxu0 0.0
    %1696 = vmatprep.subr.mxu0 0.0
    %1697 = vmatpush1.xpose.msra.mxu0 0.0
    %1698 = vmatprep.subr.mxu0 0.0
    %1699 = vmatpush1.xpose.msra.mxu0 0.0
    %1700 = vmatprep.subr.mxu0 0.0
    %1701 = vmatpush1.xpose.msra.mxu0 0.0
    %1702 = vmatprep.subr.mxu0 0.0
    %1703 = vmatpush1.xpose.msra.mxu0 0.0
    %1704 = vmatprep.subr.mxu0 0.0
    %1705 = vmatpush1.xpose.msra.mxu0 0.0
    %1706 = vmatprep.subr.mxu0 0.0
    %1707 = vmatpush1.xpose.msra.mxu0 0.0
    %1708 = vmatprep.subr.mxu0 0.0
    %1709 = vmatpush1.xpose.msra.mxu0 0.0
    %1710 = vmatprep.subr.mxu0 0.0
    %1711 = vmatpush1.xpose.msra.mxu0 0.0
    %1712 = vmatprep.subr.mxu0 0.0
    %1713 = vmatpush1.xpose.msra.mxu0 0.0
    %1714 = vmatprep.subr.mxu0 0.0
    %1715 = vmatpush1.xpose.msra.mxu0 0.0
    %1716 = vmatprep.subr.mxu0 0.0
    %1717 = vmatpush1.xpose.msra.mxu0 0.0
    %1718 = vmatprep.subr.mxu0 0.0
    %1719 = vmatpush1.xpose.msra.mxu0 0.0
    %1720 = vmatprep.subr.mxu0 0.0
    %1721 = vmatpush1.xpose.msra.mxu0 0.0
    %1722 = vmatprep.subr.mxu0 0.0
    %1723 = vmatpush1.xpose.msra.mxu0 0.0
    %1724 = vmatprep.subr.mxu0 0.0
    %1725 = vmatpush1.xpose.msra.mxu0 0.0
    %1726 = vmatprep.subr.mxu0 0.0
    %1727 = vmatpush1.xpose.msra.mxu0 0.0
    %1728 = vmatprep.subr.mxu0 0.0
    %1729 = vmatpush1.xpose.msra.mxu0 0.0
    %1730 = vmatprep.subr.mxu0 0.0
    %1731 = vmatpush1.xpose.msra.mxu0 0.0
    %1732 = vmatprep.subr.mxu0 0.0
    %1733 = vmatpush1.xpose.msra.mxu0 0.0
    %1734 = vmatprep.subr.mxu0 0.0
    %1735 = vmatpush1.xpose.msra.mxu0 0.0
    %1736 = vmatprep.subr.mxu0 0.0
    %1737 = vmatpush1.xpose.msra.mxu0 0.0
    %1738 = vmatprep.subr.mxu0 0.0
    %1739 = vmatpush1.xpose.msra.mxu0 0.0
    %1740 = vmatprep.subr.mxu0 0.0
    %1741 = vmatpush1.xpose.msra.mxu0 0.0
    %1742 = vmatprep.subr.mxu0 0.0
    %1743 = vmatpush1.xpose.msra.mxu0 0.0
    %1744 = vmatprep.mubr.f32.mxu0 0.0
    %1745 = vmatmul.mubr.f32.gmra.mrb[0].mxu0 %v1676
    %v1746 = vpop.f32.mrb[0].mxu0
    %v1747 = vadd.f32 0.0, %v1746
    %v1748 = vpop.f32.mrb[0].mxu0
    %1749 = vdwg.mxu0
    %1751 = vrot.lane.b32.xlu0 %v1654, 96
    %v1752 = vpop.permute.xlu0 %1751
    %v1754 = vsel %vm104, %v1643, 0
    %v1756 = vsel %vm104, %v1752, 0
    %1758 = vmatprep.subr.mxu0 0.0
    %1759 = vmatpush1.xpose.msra.mxu0 %v1756
    %1760 = vmatprep.subr.mxu0 0.0
    %1761 = vmatpush1.xpose.msra.mxu0 0.0
    %1762 = vmatprep.subr.mxu0 0.0
    %1763 = vmatpush1.xpose.msra.mxu0 0.0
    %1764 = vmatprep.subr.mxu0 0.0
    %1765 = vmatpush1.xpose.msra.mxu0 0.0
    %1766 = vmatprep.subr.mxu0 0.0
    %1767 = vmatpush1.xpose.msra.mxu0 0.0
    %1768 = vmatprep.subr.mxu0 0.0
    %1769 = vmatpush1.xpose.msra.mxu0 0.0
    %1770 = vmatprep.subr.mxu0 0.0
    %1771 = vmatpush1.xpose.msra.mxu0 0.0
    %1772 = vmatprep.subr.mxu0 0.0
    %1773 = vmatpush1.xpose.msra.mxu0 0.0
    %1774 = vmatprep.subr.mxu0 0.0
    %1775 = vmatpush1.xpose.msra.mxu0 0.0
    %1776 = vmatprep.subr.mxu0 0.0
    %1777 = vmatpush1.xpose.msra.mxu0 0.0
    %1778 = vmatprep.subr.mxu0 0.0
    %1779 = vmatpush1.xpose.msra.mxu0 0.0
    %1780 = vmatprep.subr.mxu0 0.0
    %1781 = vmatpush1.xpose.msra.mxu0 0.0
    %1782 = vmatprep.subr.mxu0 0.0
    %1783 = vmatpush1.xpose.msra.mxu0 0.0
    %1784 = vmatprep.subr.mxu0 0.0
    %1785 = vmatpush1.xpose.msra.mxu0 0.0
    %1786 = vmatprep.subr.mxu0 0.0
    %1787 = vmatpush1.xpose.msra.mxu0 0.0
    %1788 = vmatprep.subr.mxu0 0.0
    %1789 = vmatpush1.xpose.msra.mxu0 0.0
    %1790 = vmatprep.subr.mxu0 0.0
    %1791 = vmatpush1.xpose.msra.mxu0 0.0
    %1792 = vmatprep.subr.mxu0 0.0
    %1793 = vmatpush1.xpose.msra.mxu0 0.0
    %1794 = vmatprep.subr.mxu0 0.0
    %1795 = vmatpush1.xpose.msra.mxu0 0.0
    %1796 = vmatprep.subr.mxu0 0.0
    %1797 = vmatpush1.xpose.msra.mxu0 0.0
    %1798 = vmatprep.subr.mxu0 0.0
    %1799 = vmatpush1.xpose.msra.mxu0 0.0
    %1800 = vmatprep.subr.mxu0 0.0
    %1801 = vmatpush1.xpose.msra.mxu0 0.0
    %1802 = vmatprep.subr.mxu0 0.0
    %1803 = vmatpush1.xpose.msra.mxu0 0.0
    %1804 = vmatprep.subr.mxu0 0.0
    %1805 = vmatpush1.xpose.msra.mxu0 0.0
    %1806 = vmatprep.subr.mxu0 0.0
    %1807 = vmatpush1.xpose.msra.mxu0 0.0
    %1808 = vmatprep.subr.mxu0 0.0
    %1809 = vmatpush1.xpose.msra.mxu0 0.0
    %1810 = vmatprep.subr.mxu0 0.0
    %1811 = vmatpush1.xpose.msra.mxu0 0.0
    %1812 = vmatprep.subr.mxu0 0.0
    %1813 = vmatpush1.xpose.msra.mxu0 0.0
    %1814 = vmatprep.subr.mxu0 0.0
    %1815 = vmatpush1.xpose.msra.mxu0 0.0
    %1816 = vmatprep.subr.mxu0 0.0
    %1817 = vmatpush1.xpose.msra.mxu0 0.0
    %1818 = vmatprep.subr.mxu0 0.0
    %1819 = vmatpush1.xpose.msra.mxu0 0.0
    %1820 = vmatprep.subr.mxu0 0.0
    %1821 = vmatpush1.xpose.msra.mxu0 0.0
    %1822 = vmatprep.mubr.f32.mxu0 0.0
    %1823 = vmatmul.mubr.f32.gmra.mrb[0].mxu0 %v1754
    %v1824 = vpop.f32.mrb[0].mxu0
    %v1825 = vadd.f32 0.0, %v1824
    %v1826 = vpop.f32.mrb[0].mxu0
    %1827 = vdwg.mxu0
    %v1828 = vmul.f32 %v1747, 0.25
    %v1829 = vmul.f32 %v1825, 0.25
    %v1830 = vlaneseq
    %v1831 = vshrl.u32 %v1830, 7
    %v1832 = vsub.s32 0, %v1831
    %v1833 = vrot.slane %v1051, %v1832
    %v1834 = vlaneseq
    %v1835 = vshrl.u32 %v1834, 7
    %v1836 = vsub.s32 0, %v1835
    %v1837 = vrot.slane %v1058, %v1836
    %v1840 = vadd.f32 %v1828, %v1833
    %v1841 = vadd.f32 %v1829, %v1837
    %vm1842 = vcmask 64512
    %v1843 = vsel %vm1842, %v1840, -inf
    %1844 = vmax.xlane.f32.xlu0 %v1843
    %v1845 = vpop.xlane.xlu0 %1844
    %v1846 = vsel %vm1842, %v1841, -inf
    %1847 = vmax.xlane.f32.xlu0 %v1846
    %v1848 = vpop.xlane.xlu0 %1847
    %v1849 = vsub.f32 %v1840, %v1845
    %v1850 = vsub.f32 %v1841, %v1848
    %v1851 = vmul.f32 %v1849, 1.442695
    %v1852 = vpow.pop %v1851
    %v1853 = vmul.f32 %v1850, 1.442695
    %v1854 = vpow.pop %v1853
    %v1855 = vsel %vm1842, %v1852, 0.0
    %1856 = vadd.xlane.f32.xlu0 %v1855
    %v1857 = vpop.xlane.xlu0 %1856
    %v1858 = vsel %vm1842, %v1854, 0.0
    %1859 = vadd.xlane.f32.xlu0 %v1858
    %v1860 = vpop.xlane.xlu0 %1859
    %v1861 = vrcp.pop %v1857
    %v1862 = vmul.f32 %v1852, %v1861
    %v1863 = vrcp.pop %v1860
    %v1864 = vmul.f32 %v1854, %v1863
    %1866 = vrot.lane.b32.xlu0 %v1664, 64
    %v1867 = vpop.permute.xlu0 %1866
    %v1870 = vsel %vm1842, %v1862, 0
    %1872 = vmatprep.subr.mxu0 0.0
    %1873 = vmatpush1.msra.mxu0 %v1867
    %1874 = vmatprep.subr.mxu0 0.0
    %1875 = vmatpush1.msra.mxu0 0.0
    %1876 = vmatprep.subr.mxu0 0.0
    %1877 = vmatpush1.msra.mxu0 0.0
    %1878 = vmatprep.subr.mxu0 0.0
    %1879 = vmatpush1.msra.mxu0 0.0
    %1880 = vmatprep.subr.mxu0 0.0
    %1881 = vmatpush1.msra.mxu0 0.0
    %1882 = vmatprep.subr.mxu0 0.0
    %1883 = vmatpush1.msra.mxu0 0.0
    %1884 = vmatprep.subr.mxu0 0.0
    %1885 = vmatpush1.msra.mxu0 0.0
    %1886 = vmatprep.subr.mxu0 0.0
    %1887 = vmatpush1.msra.mxu0 0.0
    %1888 = vmatprep.subr.mxu0 0.0
    %1889 = vmatpush1.msra.mxu0 0.0
    %1890 = vmatprep.subr.mxu0 0.0
    %1891 = vmatpush1.msra.mxu0 0.0
    %1892 = vmatprep.subr.mxu0 0.0
    %1893 = vmatpush1.msra.mxu0 0.0
    %1894 = vmatprep.subr.mxu0 0.0
    %1895 = vmatpush1.msra.mxu0 0.0
    %1896 = vmatprep.subr.mxu0 0.0
    %1897 = vmatpush1.msra.mxu0 0.0
    %1898 = vmatprep.subr.mxu0 0.0
    %1899 = vmatpush1.msra.mxu0 0.0
    %1900 = vmatprep.subr.mxu0 0.0
    %1901 = vmatpush1.msra.mxu0 0.0
    %1902 = vmatprep.subr.mxu0 0.0
    %1903 = vmatpush1.msra.mxu0 0.0
    %1904 = vmatprep.subr.mxu0 0.0
    %1905 = vmatpush1.msra.mxu0 0.0
    %1906 = vmatprep.subr.mxu0 0.0
    %1907 = vmatpush1.msra.mxu0 0.0
    %1908 = vmatprep.subr.mxu0 0.0
    %1909 = vmatpush1.msra.mxu0 0.0
    %1910 = vmatprep.subr.mxu0 0.0
    %1911 = vmatpush1.msra.mxu0 0.0
    %1912 = vmatprep.subr.mxu0 0.0
    %1913 = vmatpush1.msra.mxu0 0.0
    %1914 = vmatprep.subr.mxu0 0.0
    %1915 = vmatpush1.msra.mxu0 0.0
    %1916 = vmatprep.subr.mxu0 0.0
    %1917 = vmatpush1.msra.mxu0 0.0
    %1918 = vmatprep.subr.mxu0 0.0
    %1919 = vmatpush1.msra.mxu0 0.0
    %1920 = vmatprep.subr.mxu0 0.0
    %1921 = vmatpush1.msra.mxu0 0.0
    %1922 = vmatprep.subr.mxu0 0.0
    %1923 = vmatpush1.msra.mxu0 0.0
    %1924 = vmatprep.subr.mxu0 0.0
    %1925 = vmatpush1.msra.mxu0 0.0
    %1926 = vmatprep.subr.mxu0 0.0
    %1927 = vmatpush1.msra.mxu0 0.0
    %1928 = vmatprep.subr.mxu0 0.0
    %1929 = vmatpush1.msra.mxu0 0.0
    %1930 = vmatprep.subr.mxu0 0.0
    %1931 = vmatpush1.msra.mxu0 0.0
    %1932 = vmatprep.subr.mxu0 0.0
    %1933 = vmatpush1.msra.mxu0 0.0
    %1934 = vmatprep.subr.mxu0 0.0
    %1935 = vmatpush1.msra.mxu0 0.0
    %1936 = vmatprep.mubr.f32.mxu0 0.0
    %1937 = vmatmul.mubr.f32.gmra.mrb[0].mxu0 %v1870
    %v1938 = vpop.f32.mrb[0].mxu0
    %v1939 = vadd.f32 0.0, %v1938
    %v1940 = vpop.f32.mrb[0].mxu0
    %1941 = vdwg.mxu0
    %1943 = vrot.lane.b32.xlu0 %v1665, 64
    %v1944 = vpop.permute.xlu0 %1943
    %v1947 = vsel %vm1842, %v1864, 0
    %1949 = vmatprep.subr.mxu0 0.0
    %1950 = vmatpush1.msra.mxu0 %v1944
    %1951 = vmatprep.subr.mxu0 0.0
    %1952 = vmatpush1.msra.mxu0 0.0
    %1953 = vmatprep.subr.mxu0 0.0
    %1954 = vmatpush1.msra.mxu0 0.0
    %1955 = vmatprep.subr.mxu0 0.0
    %1956 = vmatpush1.msra.mxu0 0.0
    %1957 = vmatprep.subr.mxu0 0.0
    %1958 = vmatpush1.msra.mxu0 0.0
    %1959 = vmatprep.subr.mxu0 0.0
    %1960 = vmatpush1.msra.mxu0 0.0
    %1961 = vmatprep.subr.mxu0 0.0
    %1962 = vmatpush1.msra.mxu0 0.0
    %1963 = vmatprep.subr.mxu0 0.0
    %1964 = vmatpush1.msra.mxu0 0.0
    %1965 = vmatprep.subr.mxu0 0.0
    %1966 = vmatpush1.msra.mxu0 0.0
    %1967 = vmatprep.subr.mxu0 0.0
    %1968 = vmatpush1.msra.mxu0 0.0
    %1969 = vmatprep.subr.mxu0 0.0
    %1970 = vmatpush1.msra.mxu0 0.0
    %1971 = vmatprep.subr.mxu0 0.0
    %1972 = vmatpush1.msra.mxu0 0.0
    %1973 = vmatprep.subr.mxu0 0.0
    %1974 = vmatpush1.msra.mxu0 0.0
    %1975 = vmatprep.subr.mxu0 0.0
    %1976 = vmatpush1.msra.mxu0 0.0
    %1977 = vmatprep.subr.mxu0 0.0
    %1978 = vmatpush1.msra.mxu0 0.0
    %1979 = vmatprep.subr.mxu0 0.0
    %1980 = vmatpush1.msra.mxu0 0.0
    %1981 = vmatprep.subr.mxu0 0.0
    %1982 = vmatpush1.msra.mxu0 0.0
    %1983 = vmatprep.subr.mxu0 0.0
    %1984 = vmatpush1.msra.mxu0 0.0
    %1985 = vmatprep.subr.mxu0 0.0
    %1986 = vmatpush1.msra.mxu0 0.0
    %1987 = vmatprep.subr.mxu0 0.0
    %1988 = vmatpush1.msra.mxu0 0.0
    %1989 = vmatprep.subr.mxu0 0.0
    %1990 = vmatpush1.msra.mxu0 0.0
    %1991 = vmatprep.subr.mxu0 0.0
    %1992 = vmatpush1.msra.mxu0 0.0
    %1993 = vmatprep.subr.mxu0 0.0
    %1994 = vmatpush1.msra.mxu0 0.0
    %1995 = vmatprep.subr.mxu0 0.0
    %1996 = vmatpush1.msra.mxu0 0.0
    %1997 = vmatprep.subr.mxu0 0.0
    %1998 = vmatpush1.msra.mxu0 0.0
    %1999 = vmatprep.subr.mxu0 0.0
    %2000 = vmatpush1.msra.mxu0 0.0
    %2001 = vmatprep.subr.mxu0 0.0
    %2002 = vmatpush1.msra.mxu0 0.0
    %2003 = vmatprep.subr.mxu0 0.0
    %2004 = vmatpush1.msra.mxu0 0.0
    %2005 = vmatprep.subr.mxu0 0.0
    %2006 = vmatpush1.msra.mxu0 0.0
    %2007 = vmatprep.subr.mxu0 0.0
    %2008 = vmatpush1.msra.mxu0 0.0
    %2009 = vmatprep.subr.mxu0 0.0
    %2010 = vmatpush1.msra.mxu0 0.0
    %2011 = vmatprep.subr.mxu0 0.0
    %2012 = vmatpush1.msra.mxu0 0.0
    %2013 = vmatprep.mubr.f32.mxu0 0.0
    %2014 = vmatmul.mubr.f32.gmra.mrb[0].mxu0 %v1947
    %v2015 = vpop.f32.mrb[0].mxu0
    %v2016 = vadd.f32 0.0, %v2015
    %v2017 = vpop.f32.mrb[0].mxu0
    %2018 = vdwg.mxu0
    %2019 = vrot.lane.b32.xlu0 %v1642, 112
    %v2020 = vpop.permute.xlu0 %2019
    %2021 = vrot.lane.b32.xlu0 %v1653, 80
    %v2022 = vpop.permute.xlu0 %2021
    %v2023 = vsel %vm104, %v2020, 0
    %v2025 = vsel %vm104, %v2022, 0
    %2027 = vmatprep.subr.mxu0 0.0
    %2028 = vmatpush1.xpose.msra.mxu0 %v2025
    %2029 = vmatprep.subr.mxu0 0.0
    %2030 = vmatpush1.xpose.msra.mxu0 0.0
    %2031 = vmatprep.subr.mxu0 0.0
    %2032 = vmatpush1.xpose.msra.mxu0 0.0
    %2033 = vmatprep.subr.mxu0 0.0
    %2034 = vmatpush1.xpose.msra.mxu0 0.0
    %2035 = vmatprep.subr.mxu0 0.0
    %2036 = vmatpush1.xpose.msra.mxu0 0.0
    %2037 = vmatprep.subr.mxu0 0.0
    %2038 = vmatpush1.xpose.msra.mxu0 0.0
    %2039 = vmatprep.subr.mxu0 0.0
    %2040 = vmatpush1.xpose.msra.mxu0 0.0
    %2041 = vmatprep.subr.mxu0 0.0
    %2042 = vmatpush1.xpose.msra.mxu0 0.0
    %2043 = vmatprep.subr.mxu0 0.0
    %2044 = vmatpush1.xpose.msra.mxu0 0.0
    %2045 = vmatprep.subr.mxu0 0.0
    %2046 = vmatpush1.xpose.msra.mxu0 0.0
    %2047 = vmatprep.subr.mxu0 0.0
    %2048 = vmatpush1.xpose.msra.mxu0 0.0
    %2049 = vmatprep.subr.mxu0 0.0
    %2050 = vmatpush1.xpose.msra.mxu0 0.0
    %2051 = vmatprep.subr.mxu0 0.0
    %2052 = vmatpush1.xpose.msra.mxu0 0.0
    %2053 = vmatprep.subr.mxu0 0.0
    %2054 = vmatpush1.xpose.msra.mxu0 0.0
    %2055 = vmatprep.subr.mxu0 0.0
    %2056 = vmatpush1.xpose.msra.mxu0 0.0
    %2057 = vmatprep.subr.mxu0 0.0
    %2058 = vmatpush1.xpose.msra.mxu0 0.0
    %2059 = vmatprep.subr.mxu0 0.0
    %2060 = vmatpush1.xpose.msra.mxu0 0.0
    %2061 = vmatprep.subr.mxu0 0.0
    %2062 = vmatpush1.xpose.msra.mxu0 0.0
    %2063 = vmatprep.subr.mxu0 0.0
    %2064 = vmatpush1.xpose.msra.mxu0 0.0
    %2065 = vmatprep.subr.mxu0 0.0
    %2066 = vmatpush1.xpose.msra.mxu0 0.0
    %2067 = vmatprep.subr.mxu0 0.0
    %2068 = vmatpush1.xpose.msra.mxu0 0.0
    %2069 = vmatprep.subr.mxu0 0.0
    %2070 = vmatpush1.xpose.msra.mxu0 0.0
    %2071 = vmatprep.subr.mxu0 0.0
    %2072 = vmatpush1.xpose.msra.mxu0 0.0
    %2073 = vmatprep.subr.mxu0 0.0
    %2074 = vmatpush1.xpose.msra.mxu0 0.0
    %2075 = vmatprep.subr.mxu0 0.0
    %2076 = vmatpush1.xpose.msra.mxu0 0.0
    %2077 = vmatprep.subr.mxu0 0.0
    %2078 = vmatpush1.xpose.msra.mxu0 0.0
    %2079 = vmatprep.subr.mxu0 0.0
    %2080 = vmatpush1.xpose.msra.mxu0 0.0
    %2081 = vmatprep.subr.mxu0 0.0
    %2082 = vmatpush1.xpose.msra.mxu0 0.0
    %2083 = vmatprep.subr.mxu0 0.0
    %2084 = vmatpush1.xpose.msra.mxu0 0.0
    %2085 = vmatprep.subr.mxu0 0.0
    %2086 = vmatpush1.xpose.msra.mxu0 0.0
    %2087 = vmatprep.subr.mxu0 0.0
    %2088 = vmatpush1.xpose.msra.mxu0 0.0
    %2089 = vmatprep.subr.mxu0 0.0
    %2090 = vmatpush1.xpose.msra.mxu0 0.0
    %2091 = vmatprep.mubr.f32.mxu0 0.0
    %2092 = vmatmul.mubr.f32.gmra.mrb[0].mxu0 %v2023
    %v2093 = vpop.f32.mrb[0].mxu0
    %v2094 = vadd.f32 0.0, %v2093
    %v2095 = vpop.f32.mrb[0].mxu0
    %2096 = vdwg.mxu0
    %2097 = vrot.lane.b32.xlu0 %v1643, 112
    %v2098 = vpop.permute.xlu0 %2097
    %2099 = vrot.lane.b32.xlu0 %v1654, 80
    %v2100 = vpop.permute.xlu0 %2099
    %v2101 = vsel %vm104, %v2098, 0
    %v2103 = vsel %vm104, %v2100, 0
    %2105 = vmatprep.subr.mxu0 0.0
    %2106 = vmatpush1.xpose.msra.mxu0 %v2103
    %2107 = vmatprep.subr.mxu0 0.0
    %2108 = vmatpush1.xpose.msra.mxu0 0.0
    %2109 = vmatprep.subr.mxu0 0.0
    %2110 = vmatpush1.xpose.msra.mxu0 0.0
    %2111 = vmatprep.subr.mxu0 0.0
    %2112 = vmatpush1.xpose.msra.mxu0 0.0
    %2113 = vmatprep.subr.mxu0 0.0
    %2114 = vmatpush1.xpose.msra.mxu0 0.0
    %2115 = vmatprep.subr.mxu0 0.0
    %2116 = vmatpush1.xpose.msra.mxu0 0.0
    %2117 = vmatprep.subr.mxu0 0.0
    %2118 = vmatpush1.xpose.msra.mxu0 0.0
    %2119 = vmatprep.subr.mxu0 0.0
    %2120 = vmatpush1.xpose.msra.mxu0 0.0
    %2121 = vmatprep.subr.mxu0 0.0
    %2122 = vmatpush1.xpose.msra.mxu0 0.0
    %2123 = vmatprep.subr.mxu0 0.0
    %2124 = vmatpush1.xpose.msra.mxu0 0.0
    %2125 = vmatprep.subr.mxu0 0.0
    %2126 = vmatpush1.xpose.msra.mxu0 0.0
    %2127 = vmatprep.subr.mxu0 0.0
    %2128 = vmatpush1.xpose.msra.mxu0 0.0
    %2129 = vmatprep.subr.mxu0 0.0
    %2130 = vmatpush1.xpose.msra.mxu0 0.0
    %2131 = vmatprep.subr.mxu0 0.0
    %2132 = vmatpush1.xpose.msra.mxu0 0.0
    %2133 = vmatprep.subr.mxu0 0.0
    %2134 = vmatpush1.xpose.msra.mxu0 0.0
    %2135 = vmatprep.subr.mxu0 0.0
    %2136 = vmatpush1.xpose.msra.mxu0 0.0
    %2137 = vmatprep.subr.mxu0 0.0
    %2138 = vmatpush1.xpose.msra.mxu0 0.0
    %2139 = vmatprep.subr.mxu0 0.0
    %2140 = vmatpush1.xpose.msra.mxu0 0.0
    %2141 = vmatprep.subr.mxu0 0.0
    %2142 = vmatpush1.xpose.msra.mxu0 0.0
    %2143 = vmatprep.subr.mxu0 0.0
    %2144 = vmatpush1.xpose.msra.mxu0 0.0
    %2145 = vmatprep.subr.mxu0 0.0
    %2146 = vmatpush1.xpose.msra.mxu0 0.0
    %2147 = vmatprep.subr.mxu0 0.0
    %2148 = vmatpush1.xpose.msra.mxu0 0.0
    %2149 = vmatprep.subr.mxu0 0.0
    %2150 = vmatpush1.xpose.msra.mxu0 0.0
    %2151 = vmatprep.subr.mxu0 0.0
    %2152 = vmatpush1.xpose.msra.mxu0 0.0
    %2153 = vmatprep.subr.mxu0 0.0
    %2154 = vmatpush1.xpose.msra.mxu0 0.0
    %2155 = vmatprep.subr.mxu0 0.0
    %2156 = vmatpush1.xpose.msra.mxu0 0.0
    %2157 = vmatprep.subr.mxu0 0.0
    %2158 = vmatpush1.xpose.msra.mxu0 0.0
    %2159 = vmatprep.subr.mxu0 0.0
    %2160 = vmatpush1.xpose.msra.mxu0 0.0
    %2161 = vmatprep.subr.mxu0 0.0
    %2162 = vmatpush1.xpose.msra.mxu0 0.0
    %2163 = vmatprep.subr.mxu0 0.0
    %2164 = vmatpush1.xpose.msra.mxu0 0.0
    %2165 = vmatprep.subr.mxu0 0.0
    %2166 = vmatpush1.xpose.msra.mxu0 0.0
    %2167 = vmatprep.subr.mxu0 0.0
    %2168 = vmatpush1.xpose.msra.mxu0 0.0
    %2169 = vmatprep.mubr.f32.mxu0 0.0
    %2170 = vmatmul.mubr.f32.gmra.mrb[0].mxu0 %v2101
    %v2171 = vpop.f32.mrb[0].mxu0
    %v2172 = vadd.f32 0.0, %v2171
    %v2173 = vpop.f32.mrb[0].mxu0
    %2174 = vdwg.mxu0
    %v2175 = vmul.f32 %v2094, 0.25
    %v2176 = vmul.f32 %v2172, 0.25
    %v2177 = vadd.f32 %v2175, %v1833
    %v2178 = vadd.f32 %v2176, %v1837
    %v2179 = vsel %vm1842, %v2177, -inf
    %2180 = vmax.xlane.f32.xlu0 %v2179
    %v2181 = vpop.xlane.xlu0 %2180
    %v2182 = vsel %vm1842, %v2178, -inf
    %2183 = vmax.xlane.f32.xlu0 %v2182
    %v2184 = vpop.xlane.xlu0 %2183
    %v2185 = vsub.f32 %v2177, %v2181
    %v2186 = vsub.f32 %v2178, %v2184
    %v2187 = vmul.f32 %v2185, 1.442695
    %v2188 = vpow.pop %v2187
    %v2189 = vmul.f32 %v2186, 1.442695
    %v2190 = vpow.pop %v2189
    %v2191 = vsel %vm1842, %v2188, 0.0
    %2192 = vadd.xlane.f32.xlu0 %v2191
    %v2193 = vpop.xlane.xlu0 %2192
    %v2194 = vsel %vm1842, %v2190, 0.0
    %2195 = vadd.xlane.f32.xlu0 %v2194
    %v2196 = vpop.xlane.xlu0 %2195
    %v2197 = vrcp.pop %v2193
    %v2198 = vmul.f32 %v2188, %v2197
    %v2199 = vrcp.pop %v2196
    %v2200 = vmul.f32 %v2190, %v2199
    %2201 = vrot.lane.b32.xlu0 %v1664, 48
    %v2202 = vpop.permute.xlu0 %2201
    %v2205 = vsel %vm1842, %v2198, 0
    %2207 = vmatprep.subr.mxu0 0.0
    %2208 = vmatpush1.msra.mxu0 %v2202
    %2209 = vmatprep.subr.mxu0 0.0
    %2210 = vmatpush1.msra.mxu0 0.0
    %2211 = vmatprep.subr.mxu0 0.0
    %2212 = vmatpush1.msra.mxu0 0.0
    %2213 = vmatprep.subr.mxu0 0.0
    %2214 = vmatpush1.msra.mxu0 0.0
    %2215 = vmatprep.subr.mxu0 0.0
    %2216 = vmatpush1.msra.mxu0 0.0
    %2217 = vmatprep.subr.mxu0 0.0
    %2218 = vmatpush1.msra.mxu0 0.0
    %2219 = vmatprep.subr.mxu0 0.0
    %2220 = vmatpush1.msra.mxu0 0.0
    %2221 = vmatprep.subr.mxu0 0.0
    %2222 = vmatpush1.msra.mxu0 0.0
    %2223 = vmatprep.subr.mxu0 0.0
    %2224 = vmatpush1.msra.mxu0 0.0
    %2225 = vmatprep.subr.mxu0 0.0
    %2226 = vmatpush1.msra.mxu0 0.0
    %2227 = vmatprep.subr.mxu0 0.0
    %2228 = vmatpush1.msra.mxu0 0.0
    %2229 = vmatprep.subr.mxu0 0.0
    %2230 = vmatpush1.msra.mxu0 0.0
    %2231 = vmatprep.subr.mxu0 0.0
    %2232 = vmatpush1.msra.mxu0 0.0
    %2233 = vmatprep.subr.mxu0 0.0
    %2234 = vmatpush1.msra.mxu0 0.0
    %2235 = vmatprep.subr.mxu0 0.0
    %2236 = vmatpush1.msra.mxu0 0.0
    %2237 = vmatprep.subr.mxu0 0.0
    %2238 = vmatpush1.msra.mxu0 0.0
    %2239 = vmatprep.subr.mxu0 0.0
    %2240 = vmatpush1.msra.mxu0 0.0
    %2241 = vmatprep.subr.mxu0 0.0
    %2242 = vmatpush1.msra.mxu0 0.0
    %2243 = vmatprep.subr.mxu0 0.0
    %2244 = vmatpush1.msra.mxu0 0.0
    %2245 = vmatprep.subr.mxu0 0.0
    %2246 = vmatpush1.msra.mxu0 0.0
    %2247 = vmatprep.subr.mxu0 0.0
    %2248 = vmatpush1.msra.mxu0 0.0
    %2249 = vmatprep.subr.mxu0 0.0
    %2250 = vmatpush1.msra.mxu0 0.0
    %2251 = vmatprep.subr.mxu0 0.0
    %2252 = vmatpush1.msra.mxu0 0.0
    %2253 = vmatprep.subr.mxu0 0.0
    %2254 = vmatpush1.msra.mxu0 0.0
    %2255 = vmatprep.subr.mxu0 0.0
    %2256 = vmatpush1.msra.mxu0 0.0
    %2257 = vmatprep.subr.mxu0 0.0
    %2258 = vmatpush1.msra.mxu0 0.0
    %2259 = vmatprep.subr.mxu0 0.0
    %2260 = vmatpush1.msra.mxu0 0.0
    %2261 = vmatprep.subr.mxu0 0.0
    %2262 = vmatpush1.msra.mxu0 0.0
    %2263 = vmatprep.subr.mxu0 0.0
    %2264 = vmatpush1.msra.mxu0 0.0
    %2265 = vmatprep.subr.mxu0 0.0
    %2266 = vmatpush1.msra.mxu0 0.0
    %2267 = vmatprep.subr.mxu0 0.0
    %2268 = vmatpush1.msra.mxu0 0.0
    %2269 = vmatprep.subr.mxu0 0.0
    %2270 = vmatpush1.msra.mxu0 0.0
    %2271 = vmatprep.mubr.f32.mxu0 0.0
    %2272 = vmatmul.mubr.f32.gmra.mrb[0].mxu0 %v2205
    %v2273 = vpop.f32.mrb[0].mxu0
    %v2274 = vadd.f32 0.0, %v2273
    %v2275 = vpop.f32.mrb[0].mxu0
    %2276 = vdwg.mxu0
    %2277 = vrot.lane.b32.xlu0 %v1665, 48
    %v2278 = vpop.permute.xlu0 %2277
    %v2281 = vsel %vm1842, %v2200, 0
    %2283 = vmatprep.subr.mxu0 0.0
    %2284 = vmatpush1.msra.mxu0 %v2278
    %2285 = vmatprep.subr.mxu0 0.0
    %2286 = vmatpush1.msra.mxu0 0.0
    %2287 = vmatprep.subr.mxu0 0.0
    %2288 = vmatpush1.msra.mxu0 0.0
    %2289 = vmatprep.subr.mxu0 0.0
    %2290 = vmatpush1.msra.mxu0 0.0
    %2291 = vmatprep.subr.mxu0 0.0
    %2292 = vmatpush1.msra.mxu0 0.0
    %2293 = vmatprep.subr.mxu0 0.0
    %2294 = vmatpush1.msra.mxu0 0.0
    %2295 = vmatprep.subr.mxu0 0.0
    %2296 = vmatpush1.msra.mxu0 0.0
    %2297 = vmatprep.subr.mxu0 0.0
    %2298 = vmatpush1.msra.mxu0 0.0
    %2299 = vmatprep.subr.mxu0 0.0
    %2300 = vmatpush1.msra.mxu0 0.0
    %2301 = vmatprep.subr.mxu0 0.0
    %2302 = vmatpush1.msra.mxu0 0.0
    %2303 = vmatprep.subr.mxu0 0.0
    %2304 = vmatpush1.msra.mxu0 0.0
    %2305 = vmatprep.subr.mxu0 0.0
    %2306 = vmatpush1.msra.mxu0 0.0
    %2307 = vmatprep.subr.mxu0 0.0
    %2308 = vmatpush1.msra.mxu0 0.0
    %2309 = vmatprep.subr.mxu0 0.0
    %2310 = vmatpush1.msra.mxu0 0.0
    %2311 = vmatprep.subr.mxu0 0.0
    %2312 = vmatpush1.msra.mxu0 0.0
    %2313 = vmatprep.subr.mxu0 0.0
    %2314 = vmatpush1.msra.mxu0 0.0
    %2315 = vmatprep.subr.mxu0 0.0
    %2316 = vmatpush1.msra.mxu0 0.0
    %2317 = vmatprep.subr.mxu0 0.0
    %2318 = vmatpush1.msra.mxu0 0.0
    %2319 = vmatprep.subr.mxu0 0.0
    %2320 = vmatpush1.msra.mxu0 0.0
    %2321 = vmatprep.subr.mxu0 0.0
    %2322 = vmatpush1.msra.mxu0 0.0
    %2323 = vmatprep.subr.mxu0 0.0
    %2324 = vmatpush1.msra.mxu0 0.0
    %2325 = vmatprep.subr.mxu0 0.0
    %2326 = vmatpush1.msra.mxu0 0.0
    %2327 = vmatprep.subr.mxu0 0.0
    %2328 = vmatpush1.msra.mxu0 0.0
    %2329 = vmatprep.subr.mxu0 0.0
    %2330 = vmatpush1.msra.mxu0 0.0
    %2331 = vmatprep.subr.mxu0 0.0
    %2332 = vmatpush1.msra.mxu0 0.0
    %2333 = vmatprep.subr.mxu0 0.0
    %2334 = vmatpush1.msra.mxu0 0.0
    %2335 = vmatprep.subr.mxu0 0.0
    %2336 = vmatpush1.msra.mxu0 0.0
    %2337 = vmatprep.subr.mxu0 0.0
    %2338 = vmatpush1.msra.mxu0 0.0
    %2339 = vmatprep.subr.mxu0 0.0
    %2340 = vmatpush1.msra.mxu0 0.0
    %2341 = vmatprep.subr.mxu0 0.0
    %2342 = vmatpush1.msra.mxu0 0.0
    %2343 = vmatprep.subr.mxu0 0.0
    %2344 = vmatpush1.msra.mxu0 0.0
    %2345 = vmatprep.subr.mxu0 0.0
    %2346 = vmatpush1.msra.mxu0 0.0
    %2347 = vmatprep.mubr.f32.mxu0 0.0
    %2348 = vmatmul.mubr.f32.gmra.mrb[0].mxu0 %v2281
    %v2349 = vpop.f32.mrb[0].mxu0
    %v2350 = vadd.f32 0.0, %v2349
    %v2351 = vpop.f32.mrb[0].mxu0
    %2352 = vdwg.mxu0
    %2355 = vrot.lane.b32.xlu0 %v2274, 16
    %v2356 = vpop.permute.xlu0 %2355
    %2357 = vrot.lane.b32.xlu0 %v2350, 16
    %v2358 = vpop.permute.xlu0 %2357
    %v2361 = vsel %vm104, %v1939, %v2356
    %v2362 = vsel %vm104, %v2016, %v2358
    %v2363 = vlaneseq
    %v2364 = vshrl.u32 %v2363, 7
    %v2365 = vsub.s32 0, %v2364
    %v2366 = vrot.slane %v1671, %v2365
    %v2368 = vsel %vm953, %v2361, 0
    %v2371 = vsel %vm953, %v2362, 0
    %2373 = vmatprep.subr.mxu0 0.0
    %2374 = vmatpush1.msra.mxu0 %v1667
    %2375 = vmatprep.subr.mxu0 0.0
    %2376 = vmatpush1.msra.mxu0 %v1668
    %2377 = vmatprep.subr.mxu0 0.0
    %2378 = vmatpush1.msra.mxu0 %v1669
    %2379 = vmatprep.subr.mxu0 0.0
    %2380 = vmatpush1.msra.mxu0 %v1670
    %2381 = vmatprep.subr.mxu0 0.0
    %2382 = vmatpush1.msra.mxu0 0.0
    %2383 = vmatprep.subr.mxu0 0.0
    %2384 = vmatpush1.msra.mxu0 0.0
    %2385 = vmatprep.subr.mxu0 0.0
    %2386 = vmatpush1.msra.mxu0 0.0
    %2387 = vmatprep.subr.mxu0 0.0
    %2388 = vmatpush1.msra.mxu0 0.0
    %2389 = vmatprep.subr.mxu0 0.0
    %2390 = vmatpush1.msra.mxu0 0.0
    %2391 = vmatprep.subr.mxu0 0.0
    %2392 = vmatpush1.msra.mxu0 0.0
    %2393 = vmatprep.subr.mxu0 0.0
    %2394 = vmatpush1.msra.mxu0 0.0
    %2395 = vmatprep.subr.mxu0 0.0
    %2396 = vmatpush1.msra.mxu0 0.0
    %2397 = vmatprep.subr.mxu0 0.0
    %2398 = vmatpush1.msra.mxu0 0.0
    %2399 = vmatprep.subr.mxu0 0.0
    %2400 = vmatpush1.msra.mxu0 0.0
    %2401 = vmatprep.subr.mxu0 0.0
    %2402 = vmatpush1.msra.mxu0 0.0
    %2403 = vmatprep.subr.mxu0 0.0
    %2404 = vmatpush1.msra.mxu0 0.0
    %2405 = vmatprep.subr.mxu0 0.0
    %2406 = vmatpush1.msra.mxu0 0.0
    %2407 = vmatprep.subr.mxu0 0.0
    %2408 = vmatpush1.msra.mxu0 0.0
    %2409 = vmatprep.subr.mxu0 0.0
    %2410 = vmatpush1.msra.mxu0 0.0
    %2411 = vmatprep.subr.mxu0 0.0
    %2412 = vmatpush1.msra.mxu0 0.0
    %2413 = vmatprep.subr.mxu0 0.0
    %2414 = vmatpush1.msra.mxu0 0.0
    %2415 = vmatprep.subr.mxu0 0.0
    %2416 = vmatpush1.msra.mxu0 0.0
    %2417 = vmatprep.subr.mxu0 0.0
    %2418 = vmatpush1.msra.mxu0 0.0
    %2419 = vmatprep.subr.mxu0 0.0
    %2420 = vmatpush1.msra.mxu0 0.0
    %2421 = vmatprep.subr.mxu0 0.0
    %2422 = vmatpush1.msra.mxu0 0.0
    %2423 = vmatprep.subr.mxu0 0.0
    %2424 = vmatpush1.msra.mxu0 0.0
    %2425 = vmatprep.subr.mxu0 0.0
    %2426 = vmatpush1.msra.mxu0 0.0
    %2427 = vmatprep.subr.mxu0 0.0
    %2428 = vmatpush1.msra.mxu0 0.0
    %2429 = vmatprep.subr.mxu0 0.0
    %2430 = vmatpush1.msra.mxu0 0.0
    %2431 = vmatprep.subr.mxu0 0.0
    %2432 = vmatpush1.msra.mxu0 0.0
    %2433 = vmatprep.subr.mxu0 0.0
    %2434 = vmatpush1.msra.mxu0 0.0
    %2435 = vmatprep.subr.mxu0 0.0
    %2436 = vmatpush1.msra.mxu0 0.0
    %2437 = vmatprep.mubr.f32.mxu0 0.0
    %2438 = vmatmul.mubr.f32.gmra.mrb[0].mxu0 %v2368
    %v2439 = vpop.f32.mrb[0].mxu0
    %v2440 = vadd.f32 %v2366, %v2439
    %v2441 = vpop.f32.mrb[0].mxu0
    %2442 = vmatprep.mubr.f32.mxu0 0.0
    %2443 = vmatmul.mubr.f32.gmra.mrb[0].mxu0 %v2371
    %v2444 = vpop.f32.mrb[0].mxu0
    %v2445 = vadd.f32 %v2366, %v2444
    %v2446 = vpop.f32.mrb[0].mxu0
    %2447 = vdwg.mxu0
    %v2448 = vadd.f32 %v1550, %v2440
    %v2449 = vadd.f32 %v1551, %v2445
    %v2450 = vld [vmem:[%s10 + $0xb] sm:$0x1]
    %v2451 = vld [vmem:[%s10 + $0xc] sm:$0x1]
    %v2452 = vsel %vm953, %v2448, 0.0
    %2453 = vadd.xlane.f32.xlu0 %v2452
    %v2454 = vpop.xlane.xlu0 %2453
    %v2455 = vsel %vm953, %v2449, 0.0
    %2456 = vadd.xlane.f32.xlu0 %v2455
    %v2457 = vpop.xlane.xlu0 %2456
    %v2458 = vmul.f32 %v2454, %v1260
    %v2459 = vmul.f32 %v2457, %v1260
    %v2460 = vsub.f32 %v2448, %v2458
    %v2461 = vsub.f32 %v2449, %v2459
    %v2462 = vmul.f32 %v2460, %v2460
    %v2463 = vmul.f32 %v2461, %v2461
    %v2464 = vsel %vm953, %v2462, 0.0
    %2465 = vadd.xlane.f32.xlu0 %v2464
    %v2466 = vpop.xlane.xlu0 %2465
    %v2467 = vsel %vm953, %v2463, 0.0
    %2468 = vadd.xlane.f32.xlu0 %v2467
    %v2469 = vpop.xlane.xlu0 %2468
    %v2470 = vmul.f32 %v2466, %v1260
    %v2471 = vmul.f32 %v2469, %v1260
    %v2472 = vadd.f32 %v2470, 1e-05
    %v2473 = vadd.f32 %v2471, 1e-05
    %v2474 = vrsqrt.pop %v2472
    %v2475 = vrsqrt.pop %v2473
    %v2476 = vmul.f32 %v2460, %v2474
    %v2477 = vmul.f32 %v2461, %v2475
    %v2478 = vlaneseq
    %v2479 = vshrl.u32 %v2478, 7
    %v2480 = vsub.s32 0, %v2479
    %v2481 = vrot.slane %v2450, %v2480
    %v2482 = vmul.f32 %v2476, %v2481
    %v2483 = vmul.f32 %v2477, %v2481
    %v2484 = vlaneseq
    %v2485 = vshrl.u32 %v2484, 7
    %v2486 = vsub.s32 0, %v2485
    %v2487 = vrot.slane %v2451, %v2486
    %v2488 = vadd.f32 %v2482, %v2487
    %v2489 = vadd.f32 %v2483, %v2487
    %s2490 = scalar_lea.vmem %s8, 32
    %v2491 = vld [vmem:[%s2490] sm:$0xff]
    %v2492 = vld [vmem:[%s2490 + $0x8] sm:$0xff]
    %v2493 = vld [vmem:[%s2490 + $0x10] sm:$0xff]
    %v2494 = vld [vmem:[%s2490 + $0x18] sm:$0xff]
    %v2495 = vld [vmem:[%s11] sm:$0x1]
    %v2496 = vlaneseq
    %v2497 = vshrl.u32 %v2496, 7
    %v2498 = vsub.s32 0, %v2497
    %v2499 = vrot.slane %v2495, %v2498
    %v2501 = vsel %vm953, %v2488, 0
    %v2504 = vsel %vm953, %v2489, 0
    %2506 = vmatprep.subr.mxu0 0.0
    %2507 = vmatpush1.msra.mxu0 %v2491
    %2508 = vmatprep.subr.mxu0 0.0
    %2509 = vmatpush1.msra.mxu0 %v2492
    %2510 = vmatprep.subr.mxu0 0.0
    %2511 = vmatpush1.msra.mxu0 %v2493
    %2512 = vmatprep.subr.mxu0 0.0
    %2513 = vmatpush1.msra.mxu0 %v2494
    %2514 = vmatprep.subr.mxu0 0.0
    %2515 = vmatpush1.msra.mxu0 0.0
    %2516 = vmatprep.subr.mxu0 0.0
    %2517 = vmatpush1.msra.mxu0 0.0
    %2518 = vmatprep.subr.mxu0 0.0
    %2519 = vmatpush1.msra.mxu0 0.0
    %2520 = vmatprep.subr.mxu0 0.0
    %2521 = vmatpush1.msra.mxu0 0.0
    %2522 = vmatprep.subr.mxu0 0.0
    %2523 = vmatpush1.msra.mxu0 0.0
    %2524 = vmatprep.subr.mxu0 0.0
    %2525 = vmatpush1.msra.mxu0 0.0
    %2526 = vmatprep.subr.mxu0 0.0
    %2527 = vmatpush1.msra.mxu0 0.0
    %2528 = vmatprep.subr.mxu0 0.0
    %2529 = vmatpush1.msra.mxu0 0.0
    %2530 = vmatprep.subr.mxu0 0.0
    %2531 = vmatpush1.msra.mxu0 0.0
    %2532 = vmatprep.subr.mxu0 0.0
    %2533 = vmatpush1.msra.mxu0 0.0
    %2534 = vmatprep.subr.mxu0 0.0
    %2535 = vmatpush1.msra.mxu0 0.0
    %2536 = vmatprep.subr.mxu0 0.0
    %2537 = vmatpush1.msra.mxu0 0.0
    %2538 = vmatprep.subr.mxu0 0.0
    %2539 = vmatpush1.msra.mxu0 0.0
    %2540 = vmatprep.subr.mxu0 0.0
    %2541 = vmatpush1.msra.mxu0 0.0
    %2542 = vmatprep.subr.mxu0 0.0
    %2543 = vmatpush1.msra.mxu0 0.0
    %2544 = vmatprep.subr.mxu0 0.0
    %2545 = vmatpush1.msra.mxu0 0.0
    %2546 = vmatprep.subr.mxu0 0.0
    %2547 = vmatpush1.msra.mxu0 0.0
    %2548 = vmatprep.subr.mxu0 0.0
    %2549 = vmatpush1.msra.mxu0 0.0
    %2550 = vmatprep.subr.mxu0 0.0
    %2551 = vmatpush1.msra.mxu0 0.0
    %2552 = vmatprep.subr.mxu0 0.0
    %2553 = vmatpush1.msra.mxu0 0.0
    %2554 = vmatprep.subr.mxu0 0.0
    %2555 = vmatpush1.msra.mxu0 0.0
    %2556 = vmatprep.subr.mxu0 0.0
    %2557 = vmatpush1.msra.mxu0 0.0
    %2558 = vmatprep.subr.mxu0 0.0
    %2559 = vmatpush1.msra.mxu0 0.0
    %2560 = vmatprep.subr.mxu0 0.0
    %2561 = vmatpush1.msra.mxu0 0.0
    %2562 = vmatprep.subr.mxu0 0.0
    %2563 = vmatpush1.msra.mxu0 0.0
    %2564 = vmatprep.subr.mxu0 0.0
    %2565 = vmatpush1.msra.mxu0 0.0
    %2566 = vmatprep.subr.mxu0 0.0
    %2567 = vmatpush1.msra.mxu0 0.0
    %2568 = vmatprep.subr.mxu0 0.0
    %2569 = vmatpush1.msra.mxu0 0.0
    %2570 = vmatprep.mubr.f32.mxu0 0.0
    %2571 = vmatmul.mubr.f32.gmra.mrb[0].mxu0 %v2501
    %v2572 = vpop.f32.mrb[0].mxu0
    %v2573 = vadd.f32 %v2499, %v2572
    %v2574 = vpop.f32.mrb[0].mxu0
    %2575 = vmatprep.mubr.f32.mxu0 0.0
    %2576 = vmatmul.mubr.f32.gmra.mrb[0].mxu0 %v2504
    %v2577 = vpop.f32.mrb[0].mxu0
    %v2578 = vadd.f32 %v2499, %v2577
    %v2579 = vpop.f32.mrb[0].mxu0
    %2580 = vdwg.mxu0
    %v2581 = vmax.f32 %v2573, 0.0
    %v2582 = vmax.f32 %v2578, 0.0
    %v2583 = vld [vmem:[%s9] sm:$0xff]
    %v2584 = vld [vmem:[%s9 + $0x8] sm:$0xff]
    %v2585 = vld [vmem:[%s9 + $0x10] sm:$0xff]
    %v2586 = vld [vmem:[%s9 + $0x18] sm:$0xff]
    %v2587 = vld [vmem:[%s9 + $0x20] sm:$0xff]
    %v2588 = vld [vmem:[%s9 + $0x28] sm:$0xff]
    %v2589 = vld [vmem:[%s9 + $0x30] sm:$0xff]
    %v2590 = vld [vmem:[%s9 + $0x38] sm:$0xff]
    %v2591 = vld [vmem:[%s9 + $0x40] sm:$0xff]
    %v2592 = vld [vmem:[%s9 + $0x48] sm:$0xff]
    %v2593 = vld [vmem:[%s9 + $0x50] sm:$0xff]
    %v2594 = vld [vmem:[%s9 + $0x58] sm:$0xff]
    %v2595 = vld [vmem:[%s9 + $0x60] sm:$0xff]
    %v2596 = vld [vmem:[%s9 + $0x68] sm:$0xff]
    %v2597 = vld [vmem:[%s9 + $0x70] sm:$0xff]
    %v2598 = vld [vmem:[%s9 + $0x78] sm:$0xff]
    %v2599 = vld [vmem:[%s10 + $0xa] sm:$0x1]
    %v2600 = vlaneseq
    %v2601 = vshrl.u32 %v2600, 7
    %v2602 = vsub.s32 0, %v2601
    %v2603 = vrot.slane %v2599, %v2602
    %2604 = vmatprep.subr.mxu0 0.0
    %2605 = vmatpush1.msra.mxu0 %v2583
    %2606 = vmatprep.subr.mxu0 0.0
    %2607 = vmatpush1.msra.mxu0 %v2584
    %2608 = vmatprep.subr.mxu0 0.0
    %2609 = vmatpush1.msra.mxu0 %v2585
    %2610 = vmatprep.subr.mxu0 0.0
    %2611 = vmatpush1.msra.mxu0 %v2586
    %2612 = vmatprep.subr.mxu0 0.0
    %2613 = vmatpush1.msra.mxu0 %v2587
    %2614 = vmatprep.subr.mxu0 0.0
    %2615 = vmatpush1.msra.mxu0 %v2588
    %2616 = vmatprep.subr.mxu0 0.0
    %2617 = vmatpush1.msra.mxu0 %v2589
    %2618 = vmatprep.subr.mxu0 0.0
    %2619 = vmatpush1.msra.mxu0 %v2590
    %2620 = vmatprep.subr.mxu0 0.0
    %2621 = vmatpush1.msra.mxu0 %v2591
    %2622 = vmatprep.subr.mxu0 0.0
    %2623 = vmatpush1.msra.mxu0 %v2592
    %2624 = vmatprep.subr.mxu0 0.0
    %2625 = vmatpush1.msra.mxu0 %v2593
    %2626 = vmatprep.subr.mxu0 0.0
    %2627 = vmatpush1.msra.mxu0 %v2594
    %2628 = vmatprep.subr.mxu0 0.0
    %2629 = vmatpush1.msra.mxu0 %v2595
    %2630 = vmatprep.subr.mxu0 0.0
    %2631 = vmatpush1.msra.mxu0 %v2596
    %2632 = vmatprep.subr.mxu0 0.0
    %2633 = vmatpush1.msra.mxu0 %v2597
    %2634 = vmatprep.subr.mxu0 0.0
    %2635 = vmatpush1.msra.mxu0 %v2598
    %2636 = vmatprep.subr.mxu0 0.0
    %2637 = vmatpush1.msra.mxu0 0.0
    %2638 = vmatprep.subr.mxu0 0.0
    %2639 = vmatpush1.msra.mxu0 0.0
    %2640 = vmatprep.subr.mxu0 0.0
    %2641 = vmatpush1.msra.mxu0 0.0
    %2642 = vmatprep.subr.mxu0 0.0
    %2643 = vmatpush1.msra.mxu0 0.0
    %2644 = vmatprep.subr.mxu0 0.0
    %2645 = vmatpush1.msra.mxu0 0.0
    %2646 = vmatprep.subr.mxu0 0.0
    %2647 = vmatpush1.msra.mxu0 0.0
    %2648 = vmatprep.subr.mxu0 0.0
    %2649 = vmatpush1.msra.mxu0 0.0
    %2650 = vmatprep.subr.mxu0 0.0
    %2651 = vmatpush1.msra.mxu0 0.0
    %2652 = vmatprep.subr.mxu0 0.0
    %2653 = vmatpush1.msra.mxu0 0.0
    %2654 = vmatprep.subr.mxu0 0.0
    %2655 = vmatpush1.msra.mxu0 0.0
    %2656 = vmatprep.subr.mxu0 0.0
    %2657 = vmatpush1.msra.mxu0 0.0
    %2658 = vmatprep.subr.mxu0 0.0
    %2659 = vmatpush1.msra.mxu0 0.0
    %2660 = vmatprep.subr.mxu0 0.0
    %2661 = vmatpush1.msra.mxu0 0.0
    %2662 = vmatprep.subr.mxu0 0.0
    %2663 = vmatpush1.msra.mxu0 0.0
    %2664 = vmatprep.subr.mxu0 0.0
    %2665 = vmatpush1.msra.mxu0 0.0
    %2666 = vmatprep.subr.mxu0 0.0
    %2667 = vmatpush1.msra.mxu0 0.0
    %2668 = vmatprep.mubr.f32.mxu0 0.0
    %2669 = vmatmul.mubr.f32.gmra.mrb[0].mxu0 %v2581
    %v2670 = vpop.f32.mrb[0].mxu0
    %v2671 = vadd.f32 %v2603, %v2670
    %v2672 = vpop.f32.mrb[0].mxu0
    %2673 = vmatprep.mubr.f32.mxu0 0.0
    %2674 = vmatmul.mubr.f32.gmra.mrb[0].mxu0 %v2582
    %v2675 = vpop.f32.mrb[0].mxu0
    %v2676 = vadd.f32 %v2603, %v2675
    %v2677 = vpop.f32.mrb[0].mxu0
    %2678 = vdwg.mxu0
    %v2679 = vadd.f32 %v2488, %v2671
    %v2680 = vadd.f32 %v2489, %v2676
    %v2681 = vld [vmem:[%s10 + $0xd] sm:$0x1]
    %v2682 = vld [vmem:[%s10 + $0xe] sm:$0x1]
    %v2683 = vsel %vm953, %v2679, 0.0
    %2684 = vadd.xlane.f32.xlu0 %v2683
    %v2685 = vpop.xlane.xlu0 %2684
    %v2686 = vsel %vm953, %v2680, 0.0
    %2687 = vadd.xlane.f32.xlu0 %v2686
    %v2688 = vpop.xlane.xlu0 %2687
    %v2689 = vmul.f32 %v2685, %v1260
    %v2690 = vmul.f32 %v2688, %v1260
    %v2691 = vsub.f32 %v2679, %v2689
    %v2692 = vsub.f32 %v2680, %v2690
    %v2693 = vmul.f32 %v2691, %v2691
    %v2694 = vmul.f32 %v2692, %v2692
    %v2695 = vsel %vm953, %v2693, 0.0
    %2696 = vadd.xlane.f32.xlu0 %v2695
    %v2697 = vpop.xlane.xlu0 %2696
    %v2698 = vsel %vm953, %v2694, 0.0
    %2699 = vadd.xlane.f32.xlu0 %v2698
    %v2700 = vpop.xlane.xlu0 %2699
    %v2701 = vmul.f32 %v2697, %v1260
    %v2702 = vmul.f32 %v2700, %v1260
    %v2703 = vadd.f32 %v2701, 1e-05
    %v2704 = vadd.f32 %v2702, 1e-05
    %v2705 = vrsqrt.pop %v2703
    %v2706 = vrsqrt.pop %v2704
    %v2707 = vmul.f32 %v2691, %v2705
    %v2708 = vmul.f32 %v2692, %v2706
    %v2709 = vlaneseq
    %v2710 = vshrl.u32 %v2709, 7
    %v2711 = vsub.s32 0, %v2710
    %v2712 = vrot.slane %v2681, %v2711
    %v2713 = vmul.f32 %v2707, %v2712
    %v2714 = vmul.f32 %v2708, %v2712
    %v2715 = vlaneseq
    %v2716 = vshrl.u32 %v2715, 7
    %v2717 = vsub.s32 0, %v2716
    %v2718 = vrot.slane %v2682, %v2717
    %v2719 = vadd.f32 %v2713, %v2718
    %v2720 = vadd.f32 %v2714, %v2718
    %s2721 = scalar_lea.vmem %s8, 64
    %v2722 = vld [vmem:[%s2721] sm:$0xff]
    %v2723 = vld [vmem:[%s2721 + $0x8] sm:$0xff]
    %v2724 = vld [vmem:[%s2721 + $0x10] sm:$0xff]
    %v2725 = vld [vmem:[%s2721 + $0x18] sm:$0xff]
    %v2727 = vsel %vm953, %v2719, 0
    %v2730 = vsel %vm953, %v2720, 0
    %2732 = vmatprep.subr.mxu0 0.0
    %2733 = vmatpush1.msra.mxu0 %v2722
    %2734 = vmatprep.subr.mxu0 0.0
    %2735 = vmatpush1.msra.mxu0 %v2723
    %2736 = vmatprep.subr.mxu0 0.0
    %2737 = vmatpush1.msra.mxu0 %v2724
    %2738 = vmatprep.subr.mxu0 0.0
    %2739 = vmatpush1.msra.mxu0 %v2725
    %2740 = vmatprep.subr.mxu0 0.0
    %2741 = vmatpush1.msra.mxu0 0.0
    %2742 = vmatprep.subr.mxu0 0.0
    %2743 = vmatpush1.msra.mxu0 0.0
    %2744 = vmatprep.subr.mxu0 0.0
    %2745 = vmatpush1.msra.mxu0 0.0
    %2746 = vmatprep.subr.mxu0 0.0
    %2747 = vmatpush1.msra.mxu0 0.0
    %2748 = vmatprep.subr.mxu0 0.0
    %2749 = vmatpush1.msra.mxu0 0.0
    %2750 = vmatprep.subr.mxu0 0.0
    %2751 = vmatpush1.msra.mxu0 0.0
    %2752 = vmatprep.subr.mxu0 0.0
    %2753 = vmatpush1.msra.mxu0 0.0
    %2754 = vmatprep.subr.mxu0 0.0
    %2755 = vmatpush1.msra.mxu0 0.0
    %2756 = vmatprep.subr.mxu0 0.0
    %2757 = vmatpush1.msra.mxu0 0.0
    %2758 = vmatprep.subr.mxu0 0.0
    %2759 = vmatpush1.msra.mxu0 0.0
    %2760 = vmatprep.subr.mxu0 0.0
    %2761 = vmatpush1.msra.mxu0 0.0
    %2762 = vmatprep.subr.mxu0 0.0
    %2763 = vmatpush1.msra.mxu0 0.0
    %2764 = vmatprep.subr.mxu0 0.0
    %2765 = vmatpush1.msra.mxu0 0.0
    %2766 = vmatprep.subr.mxu0 0.0
    %2767 = vmatpush1.msra.mxu0 0.0
    %2768 = vmatprep.subr.mxu0 0.0
    %2769 = vmatpush1.msra.mxu0 0.0
    %2770 = vmatprep.subr.mxu0 0.0
    %2771 = vmatpush1.msra.mxu0 0.0
    %2772 = vmatprep.subr.mxu0 0.0
    %2773 = vmatpush1.msra.mxu0 0.0
    %2774 = vmatprep.subr.mxu0 0.0
    %2775 = vmatpush1.msra.mxu0 0.0
    %2776 = vmatprep.subr.mxu0 0.0
    %2777 = vmatpush1.msra.mxu0 0.0
    %2778 = vmatprep.subr.mxu0 0.0
    %2779 = vmatpush1.msra.mxu0 0.0
    %2780 = vmatprep.subr.mxu0 0.0
    %2781 = vmatpush1.msra.mxu0 0.0
    %2782 = vmatprep.subr.mxu0 0.0
    %2783 = vmatpush1.msra.mxu0 0.0
    %2784 = vmatprep.subr.mxu0 0.0
    %2785 = vmatpush1.msra.mxu0 0.0
    %2786 = vmatprep.subr.mxu0 0.0
    %2787 = vmatpush1.msra.mxu0 0.0
    %2788 = vmatprep.subr.mxu0 0.0
    %2789 = vmatpush1.msra.mxu0 0.0
    %2790 = vmatprep.subr.mxu0 0.0
    %2791 = vmatpush1.msra.mxu0 0.0
    %2792 = vmatprep.subr.mxu0 0.0
    %2793 = vmatpush1.msra.mxu0 0.0
    %2794 = vmatprep.subr.mxu0 0.0
    %2795 = vmatpush1.msra.mxu0 0.0
    %2796 = vmatprep.mubr.f32.mxu0 0.0
    %2797 = vmatmul.mubr.f32.gmra.mrb[0].mxu0 %v2727
    %v2798 = vpop.f32.mrb[0].mxu0
    %v2799 = vadd.f32 0.0, %v2798
    %v2800 = vpop.f32.mrb[0].mxu0
    %2801 = vmatprep.mubr.f32.mxu0 0.0
    %2802 = vmatmul.mubr.f32.gmra.mrb[0].mxu0 %v2730
    %v2803 = vpop.f32.mrb[0].mxu0
    %v2804 = vadd.f32 0.0, %v2803
    %v2805 = vpop.f32.mrb[0].mxu0
    %2806 = vdwg.mxu0
    %v2807 = vld [vmem:[%s10 + $0xf] sm:$0x1]
    %v2808 = vlaneseq
    %v2809 = vshrl.u32 %v2808, 7
    %v2810 = vsub.s32 0, %v2809
    %v2811 = vrot.slane %v2807, %v2810
    %v2812 = vadd.f32 %v2799, %v2811
    %v2813 = vadd.f32 %v2804, %v2811
    %v2814 = vld [vmem:[%s10 + $0x10] sm:$0x1]
    %v2815 = vlaneseq
    %v2816 = vshrl.u32 %v2815, 7
    %v2817 = vsub.s32 0, %v2816
    %v2818 = vrot.slane %v2814, %v2817
    %2820 = vrot.lane.b32.xlu0 %v2818, 32
    %v2821 = vpop.permute.xlu0 %2820
    %v2823 = vadd.f32 %v2799, %v2821
    %v2824 = vadd.f32 %v2804, %v2821
    %v2825 = vld [vmem:[%s10 + $0x11] sm:$0x1]
    %v2826 = vlaneseq
    %v2827 = vshrl.u32 %v2826, 7
    %v2828 = vsub.s32 0, %v2827
    %v2829 = vrot.slane %v2825, %v2828
    %2831 = vrot.lane.b32.xlu0 %v2829, 64
    %v2832 = vpop.permute.xlu0 %2831
    %v2834 = vadd.f32 %v2799, %v2832
    %v2835 = vadd.f32 %v2804, %v2832
    %s2836 = scalar_lea.vmem %s7, 192
    %v2837 = vld [vmem:[%s2836] sm:$0xff]
    %v2838 = vld [vmem:[%s2836 + $0x8] sm:$0xff]
    %v2839 = vld [vmem:[%s2836 + $0x10] sm:$0xff]
    %v2840 = vld [vmem:[%s2836 + $0x18] sm:$0xff]
    %v2841 = vld [vmem:[%s10 + $0x12] sm:$0x1]
    %2843 = vrot.lane.b32.xlu0 %v2823, 96
    %v2844 = vpop.permute.xlu0 %2843
    %v2846 = vsel %vm104, %v2812, 0
    %v2848 = vsel %vm104, %v2844, 0
    %2850 = vmatprep.subr.mxu0 0.0
    %2851 = vmatpush1.xpose.msra.mxu0 %v2848
    %2852 = vmatprep.subr.mxu0 0.0
    %2853 = vmatpush1.xpose.msra.mxu0 0.0
    %2854 = vmatprep.subr.mxu0 0.0
    %2855 = vmatpush1.xpose.msra.mxu0 0.0
    %2856 = vmatprep.subr.mxu0 0.0
    %2857 = vmatpush1.xpose.msra.mxu0 0.0
    %2858 = vmatprep.subr.mxu0 0.0
    %2859 = vmatpush1.xpose.msra.mxu0 0.0
    %2860 = vmatprep.subr.mxu0 0.0
    %2861 = vmatpush1.xpose.msra.mxu0 0.0
    %2862 = vmatprep.subr.mxu0 0.0
    %2863 = vmatpush1.xpose.msra.mxu0 0.0
    %2864 = vmatprep.subr.mxu0 0.0
    %2865 = vmatpush1.xpose.msra.mxu0 0.0
    %2866 = vmatprep.subr.mxu0 0.0
    %2867 = vmatpush1.xpose.msra.mxu0 0.0
    %2868 = vmatprep.subr.mxu0 0.0
    %2869 = vmatpush1.xpose.msra.mxu0 0.0
    %2870 = vmatprep.subr.mxu0 0.0
    %2871 = vmatpush1.xpose.msra.mxu0 0.0
    %2872 = vmatprep.subr.mxu0 0.0
    %2873 = vmatpush1.xpose.msra.mxu0 0.0
    %2874 = vmatprep.subr.mxu0 0.0
    %2875 = vmatpush1.xpose.msra.mxu0 0.0
    %2876 = vmatprep.subr.mxu0 0.0
    %2877 = vmatpush1.xpose.msra.mxu0 0.0
    %2878 = vmatprep.subr.mxu0 0.0
    %2879 = vmatpush1.xpose.msra.mxu0 0.0
    %2880 = vmatprep.subr.mxu0 0.0
    %2881 = vmatpush1.xpose.msra.mxu0 0.0
    %2882 = vmatprep.subr.mxu0 0.0
    %2883 = vmatpush1.xpose.msra.mxu0 0.0
    %2884 = vmatprep.subr.mxu0 0.0
    %2885 = vmatpush1.xpose.msra.mxu0 0.0
    %2886 = vmatprep.subr.mxu0 0.0
    %2887 = vmatpush1.xpose.msra.mxu0 0.0
    %2888 = vmatprep.subr.mxu0 0.0
    %2889 = vmatpush1.xpose.msra.mxu0 0.0
    %2890 = vmatprep.subr.mxu0 0.0
    %2891 = vmatpush1.xpose.msra.mxu0 0.0
    %2892 = vmatprep.subr.mxu0 0.0
    %2893 = vmatpush1.xpose.msra.mxu0 0.0
    %2894 = vmatprep.subr.mxu0 0.0
    %2895 = vmatpush1.xpose.msra.mxu0 0.0
    %2896 = vmatprep.subr.mxu0 0.0
    %2897 = vmatpush1.xpose.msra.mxu0 0.0
    %2898 = vmatprep.subr.mxu0 0.0
    %2899 = vmatpush1.xpose.msra.mxu0 0.0
    %2900 = vmatprep.subr.mxu0 0.0
    %2901 = vmatpush1.xpose.msra.mxu0 0.0
    %2902 = vmatprep.subr.mxu0 0.0
    %2903 = vmatpush1.xpose.msra.mxu0 0.0
    %2904 = vmatprep.subr.mxu0 0.0
    %2905 = vmatpush1.xpose.msra.mxu0 0.0
    %2906 = vmatprep.subr.mxu0 0.0
    %2907 = vmatpush1.xpose.msra.mxu0 0.0
    %2908 = vmatprep.subr.mxu0 0.0
    %2909 = vmatpush1.xpose.msra.mxu0 0.0
    %2910 = vmatprep.subr.mxu0 0.0
    %2911 = vmatpush1.xpose.msra.mxu0 0.0
    %2912 = vmatprep.subr.mxu0 0.0
    %2913 = vmatpush1.xpose.msra.mxu0 0.0
    %2914 = vmatprep.mubr.f32.mxu0 0.0
    %2915 = vmatmul.mubr.f32.gmra.mrb[0].mxu0 %v2846
    %v2916 = vpop.f32.mrb[0].mxu0
    %v2917 = vadd.f32 0.0, %v2916
    %v2918 = vpop.f32.mrb[0].mxu0
    %2919 = vdwg.mxu0
    %2921 = vrot.lane.b32.xlu0 %v2824, 96
    %v2922 = vpop.permute.xlu0 %2921
    %v2924 = vsel %vm104, %v2813, 0
    %v2926 = vsel %vm104, %v2922, 0
    %2928 = vmatprep.subr.mxu0 0.0
    %2929 = vmatpush1.xpose.msra.mxu0 %v2926
    %2930 = vmatprep.subr.mxu0 0.0
    %2931 = vmatpush1.xpose.msra.mxu0 0.0
    %2932 = vmatprep.subr.mxu0 0.0
    %2933 = vmatpush1.xpose.msra.mxu0 0.0
    %2934 = vmatprep.subr.mxu0 0.0
    %2935 = vmatpush1.xpose.msra.mxu0 0.0
    %2936 = vmatprep.subr.mxu0 0.0
    %2937 = vmatpush1.xpose.msra.mxu0 0.0
    %2938 = vmatprep.subr.mxu0 0.0
    %2939 = vmatpush1.xpose.msra.mxu0 0.0
    %2940 = vmatprep.subr.mxu0 0.0
    %2941 = vmatpush1.xpose.msra.mxu0 0.0
    %2942 = vmatprep.subr.mxu0 0.0
    %2943 = vmatpush1.xpose.msra.mxu0 0.0
    %2944 = vmatprep.subr.mxu0 0.0
    %2945 = vmatpush1.xpose.msra.mxu0 0.0
    %2946 = vmatprep.subr.mxu0 0.0
    %2947 = vmatpush1.xpose.msra.mxu0 0.0
    %2948 = vmatprep.subr.mxu0 0.0
    %2949 = vmatpush1.xpose.msra.mxu0 0.0
    %2950 = vmatprep.subr.mxu0 0.0
    %2951 = vmatpush1.xpose.msra.mxu0 0.0
    %2952 = vmatprep.subr.mxu0 0.0
    %2953 = vmatpush1.xpose.msra.mxu0 0.0
    %2954 = vmatprep.subr.mxu0 0.0
    %2955 = vmatpush1.xpose.msra.mxu0 0.0
    %2956 = vmatprep.subr.mxu0 0.0
    %2957 = vmatpush1.xpose.msra.mxu0 0.0
    %2958 = vmatprep.subr.mxu0 0.0
    %2959 = vmatpush1.xpose.msra.mxu0 0.0
    %2960 = vmatprep.subr.mxu0 0.0
    %2961 = vmatpush1.xpose.msra.mxu0 0.0
    %2962 = vmatprep.subr.mxu0 0.0
    %2963 = vmatpush1.xpose.msra.mxu0 0.0
    %2964 = vmatprep.subr.mxu0 0.0
    %2965 = vmatpush1.xpose.msra.mxu0 0.0
    %2966 = vmatprep.subr.mxu0 0.0
    %2967 = vmatpush1.xpose.msra.mxu0 0.0
    %2968 = vmatprep.subr.mxu0 0.0
    %2969 = vmatpush1.xpose.msra.mxu0 0.0
    %2970 = vmatprep.subr.mxu0 0.0
    %2971 = vmatpush1.xpose.msra.mxu0 0.0
    %2972 = vmatprep.subr.mxu0 0.0
    %2973 = vmatpush1.xpose.msra.mxu0 0.0
    %2974 = vmatprep.subr.mxu0 0.0
    %2975 = vmatpush1.xpose.msra.mxu0 0.0
    %2976 = vmatprep.subr.mxu0 0.0
    %2977 = vmatpush1.xpose.msra.mxu0 0.0
    %2978 = vmatprep.subr.mxu0 0.0
    %2979 = vmatpush1.xpose.msra.mxu0 0.0
    %2980 = vmatprep.subr.mxu0 0.0
    %2981 = vmatpush1.xpose.msra.mxu0 0.0
    %2982 = vmatprep.subr.mxu0 0.0
    %2983 = vmatpush1.xpose.msra.mxu0 0.0
    %2984 = vmatprep.subr.mxu0 0.0
    %2985 = vmatpush1.xpose.msra.mxu0 0.0
    %2986 = vmatprep.subr.mxu0 0.0
    %2987 = vmatpush1.xpose.msra.mxu0 0.0
    %2988 = vmatprep.subr.mxu0 0.0
    %2989 = vmatpush1.xpose.msra.mxu0 0.0
    %2990 = vmatprep.subr.mxu0 0.0
    %2991 = vmatpush1.xpose.msra.mxu0 0.0
    %2992 = vmatprep.mubr.f32.mxu0 0.0
    %2993 = vmatmul.mubr.f32.gmra.mrb[0].mxu0 %v2924
    %v2994 = vpop.f32.mrb[0].mxu0
    %v2995 = vadd.f32 0.0, %v2994
    %v2996 = vpop.f32.mrb[0].mxu0
    %2997 = vdwg.mxu0
    %v2998 = vmul.f32 %v2917, 0.25
    %v2999 = vmul.f32 %v2995, 0.25
    %v3000 = vadd.f32 %v2998, %v1833
    %v3001 = vadd.f32 %v2999, %v1837
    %v3002 = vsel %vm1842, %v3000, -inf
    %3003 = vmax.xlane.f32.xlu0 %v3002
    %v3004 = vpop.xlane.xlu0 %3003
    %v3005 = vsel %vm1842, %v3001, -inf
    %3006 = vmax.xlane.f32.xlu0 %v3005
    %v3007 = vpop.xlane.xlu0 %3006
    %v3008 = vsub.f32 %v3000, %v3004
    %v3009 = vsub.f32 %v3001, %v3007
    %v3010 = vmul.f32 %v3008, 1.442695
    %v3011 = vpow.pop %v3010
    %v3012 = vmul.f32 %v3009, 1.442695
    %v3013 = vpow.pop %v3012
    %v3014 = vsel %vm1842, %v3011, 0.0
    %3015 = vadd.xlane.f32.xlu0 %v3014
    %v3016 = vpop.xlane.xlu0 %3015
    %v3017 = vsel %vm1842, %v3013, 0.0
    %3018 = vadd.xlane.f32.xlu0 %v3017
    %v3019 = vpop.xlane.xlu0 %3018
    %v3020 = vrcp.pop %v3016
    %v3021 = vmul.f32 %v3011, %v3020
    %v3022 = vrcp.pop %v3019
    %v3023 = vmul.f32 %v3013, %v3022
    %3025 = vrot.lane.b32.xlu0 %v2834, 64
    %v3026 = vpop.permute.xlu0 %3025
    %v3029 = vsel %vm1842, %v3021, 0
    %3031 = vmatprep.subr.mxu0 0.0
    %3032 = vmatpush1.msra.mxu0 %v3026
    %3033 = vmatprep.subr.mxu0 0.0
    %3034 = vmatpush1.msra.mxu0 0.0
    %3035 = vmatprep.subr.mxu0 0.0
    %3036 = vmatpush1.msra.mxu0 0.0
    %3037 = vmatprep.subr.mxu0 0.0
    %3038 = vmatpush1.msra.mxu0 0.0
    %3039 = vmatprep.subr.mxu0 0.0
    %3040 = vmatpush1.msra.mxu0 0.0
    %3041 = vmatprep.subr.mxu0 0.0
    %3042 = vmatpush1.msra.mxu0 0.0
    %3043 = vmatprep.subr.mxu0 0.0
    %3044 = vmatpush1.msra.mxu0 0.0
    %3045 = vmatprep.subr.mxu0 0.0
    %3046 = vmatpush1.msra.mxu0 0.0
    %3047 = vmatprep.subr.mxu0 0.0
    %3048 = vmatpush1.msra.mxu0 0.0
    %3049 = vmatprep.subr.mxu0 0.0
    %3050 = vmatpush1.msra.mxu0 0.0
    %3051 = vmatprep.subr.mxu0 0.0
    %3052 = vmatpush1.msra.mxu0 0.0
    %3053 = vmatprep.subr.mxu0 0.0
    %3054 = vmatpush1.msra.mxu0 0.0
    %3055 = vmatprep.subr.mxu0 0.0
    %3056 = vmatpush1.msra.mxu0 0.0
    %3057 = vmatprep.subr.mxu0 0.0
    %3058 = vmatpush1.msra.mxu0 0.0
    %3059 = vmatprep.subr.mxu0 0.0
    %3060 = vmatpush1.msra.mxu0 0.0
    %3061 = vmatprep.subr.mxu0 0.0
    %3062 = vmatpush1.msra.mxu0 0.0
    %3063 = vmatprep.subr.mxu0 0.0
    %3064 = vmatpush1.msra.mxu0 0.0
    %3065 = vmatprep.subr.mxu0 0.0
    %3066 = vmatpush1.msra.mxu0 0.0
    %3067 = vmatprep.subr.mxu0 0.0
    %3068 = vmatpush1.msra.mxu0 0.0
    %3069 = vmatprep.subr.mxu0 0.0
    %3070 = vmatpush1.msra.mxu0 0.0
    %3071 = vmatprep.subr.mxu0 0.0
    %3072 = vmatpush1.msra.mxu0 0.0
    %3073 = vmatprep.subr.mxu0 0.0
    %3074 = vmatpush1.msra.mxu0 0.0
    %3075 = vmatprep.subr.mxu0 0.0
    %3076 = vmatpush1.msra.mxu0 0.0
    %3077 = vmatprep.subr.mxu0 0.0
    %3078 = vmatpush1.msra.mxu0 0.0
    %3079 = vmatprep.subr.mxu0 0.0
    %3080 = vmatpush1.msra.mxu0 0.0
    %3081 = vmatprep.subr.mxu0 0.0
    %3082 = vmatpush1.msra.mxu0 0.0
    %3083 = vmatprep.subr.mxu0 0.0
    %3084 = vmatpush1.msra.mxu0 0.0
    %3085 = vmatprep.subr.mxu0 0.0
    %3086 = vmatpush1.msra.mxu0 0.0
    %3087 = vmatprep.subr.mxu0 0.0
    %3088 = vmatpush1.msra.mxu0 0.0
    %3089 = vmatprep.subr.mxu0 0.0
    %3090 = vmatpush1.msra.mxu0 0.0
    %3091 = vmatprep.subr.mxu0 0.0
    %3092 = vmatpush1.msra.mxu0 0.0
    %3093 = vmatprep.subr.mxu0 0.0
    %3094 = vmatpush1.msra.mxu0 0.0
    %3095 = vmatprep.mubr.f32.mxu0 0.0
    %3096 = vmatmul.mubr.f32.gmra.mrb[0].mxu0 %v3029
    %v3097 = vpop.f32.mrb[0].mxu0
    %v3098 = vadd.f32 0.0, %v3097
    %v3099 = vpop.f32.mrb[0].mxu0
    %3100 = vdwg.mxu0
    %3102 = vrot.lane.b32.xlu0 %v2835, 64
    %v3103 = vpop.permute.xlu0 %3102
    %v3106 = vsel %vm1842, %v3023, 0
    %3108 = vmatprep.subr.mxu0 0.0
    %3109 = vmatpush1.msra.mxu0 %v3103
    %3110 = vmatprep.subr.mxu0 0.0
    %3111 = vmatpush1.msra.mxu0 0.0
    %3112 = vmatprep.subr.mxu0 0.0
    %3113 = vmatpush1.msra.mxu0 0.0
    %3114 = vmatprep.subr.mxu0 0.0
    %3115 = vmatpush1.msra.mxu0 0.0
    %3116 = vmatprep.subr.mxu0 0.0
    %3117 = vmatpush1.msra.mxu0 0.0
    %3118 = vmatprep.subr.mxu0 0.0
    %3119 = vmatpush1.msra.mxu0 0.0
    %3120 = vmatprep.subr.mxu0 0.0
    %3121 = vmatpush1.msra.mxu0 0.0
    %3122 = vmatprep.subr.mxu0 0.0
    %3123 = vmatpush1.msra.mxu0 0.0
    %3124 = vmatprep.subr.mxu0 0.0
    %3125 = vmatpush1.msra.mxu0 0.0
    %3126 = vmatprep.subr.mxu0 0.0
    %3127 = vmatpush1.msra.mxu0 0.0
    %3128 = vmatprep.subr.mxu0 0.0
    %3129 = vmatpush1.msra.mxu0 0.0
    %3130 = vmatprep.subr.mxu0 0.0
    %3131 = vmatpush1.msra.mxu0 0.0
    %3132 = vmatprep.subr.mxu0 0.0
    %3133 = vmatpush1.msra.mxu0 0.0
    %3134 = vmatprep.subr.mxu0 0.0
    %3135 = vmatpush1.msra.mxu0 0.0
    %3136 = vmatprep.subr.mxu0 0.0
    %3137 = vmatpush1.msra.mxu0 0.0
    %3138 = vmatprep.subr.mxu0 0.0
    %3139 = vmatpush1.msra.mxu0 0.0
    %3140 = vmatprep.subr.mxu0 0.0
    %3141 = vmatpush1.msra.mxu0 0.0
    %3142 = vmatprep.subr.mxu0 0.0
    %3143 = vmatpush1.msra.mxu0 0.0
    %3144 = vmatprep.subr.mxu0 0.0
    %3145 = vmatpush1.msra.mxu0 0.0
    %3146 = vmatprep.subr.mxu0 0.0
    %3147 = vmatpush1.msra.mxu0 0.0
    %3148 = vmatprep.subr.mxu0 0.0
    %3149 = vmatpush1.msra.mxu0 0.0
    %3150 = vmatprep.subr.mxu0 0.0
    %3151 = vmatpush1.msra.mxu0 0.0
    %3152 = vmatprep.subr.mxu0 0.0
    %3153 = vmatpush1.msra.mxu0 0.0
    %3154 = vmatprep.subr.mxu0 0.0
    %3155 = vmatpush1.msra.mxu0 0.0
    %3156 = vmatprep.subr.mxu0 0.0
    %3157 = vmatpush1.msra.mxu0 0.0
    %3158 = vmatprep.subr.mxu0 0.0
    %3159 = vmatpush1.msra.mxu0 0.0
    %3160 = vmatprep.subr.mxu0 0.0
    %3161 = vmatpush1.msra.mxu0 0.0
    %3162 = vmatprep.subr.mxu0 0.0
    %3163 = vmatpush1.msra.mxu0 0.0
    %3164 = vmatprep.subr.mxu0 0.0
    %3165 = vmatpush1.msra.mxu0 0.0
    %3166 = vmatprep.subr.mxu0 0.0
    %3167 = vmatpush1.msra.mxu0 0.0
    %3168 = vmatprep.subr.mxu0 0.0
    %3169 = vmatpush1.msra.mxu0 0.0
    %3170 = vmatprep.subr.mxu0 0.0
    %3171 = vmatpush1.msra.mxu0 0.0
    %3172 = vmatprep.mubr.f32.mxu0 0.0
    %3173 = vmatmul.mubr.f32.gmra.mrb[0].mxu0 %v3106
    %v3174 = vpop.f32.mrb[0].mxu0
    %v3175 = vadd.f32 0.0, %v3174
    %v3176 = vpop.f32.mrb[0].mxu0
    %3177 = vdwg.mxu0
    %3178 = vrot.lane.b32.xlu0 %v2812, 112
    %v3179 = vpop.permute.xlu0 %3178
    %3180 = vrot.lane.b32.xlu0 %v2823, 80
    %v3181 = vpop.permute.xlu0 %3180
    %v3182 = vsel %vm104, %v3179, 0
    %v3184 = vsel %vm104, %v3181, 0
    %3186 = vmatprep.subr.mxu0 0.0
    %3187 = vmatpush1.xpose.msra.mxu0 %v3184
    %3188 = vmatprep.subr.mxu0 0.0
    %3189 = vmatpush1.xpose.msra.mxu0 0.0
    %3190 = vmatprep.subr.mxu0 0.0
    %3191 = vmatpush1.xpose.msra.mxu0 0.0
    %3192 = vmatprep.subr.mxu0 0.0
    %3193 = vmatpush1.xpose.msra.mxu0 0.0
    %3194 = vmatprep.subr.mxu0 0.0
    %3195 = vmatpush1.xpose.msra.mxu0 0.0
    %3196 = vmatprep.subr.mxu0 0.0
    %3197 = vmatpush1.xpose.msra.mxu0 0.0
    %3198 = vmatprep.subr.mxu0 0.0
    %3199 = vmatpush1.xpose.msra.mxu0 0.0
    %3200 = vmatprep.subr.mxu0 0.0
    %3201 = vmatpush1.xpose.msra.mxu0 0.0
    %3202 = vmatprep.subr.mxu0 0.0
    %3203 = vmatpush1.xpose.msra.mxu0 0.0
    %3204 = vmatprep.subr.mxu0 0.0
    %3205 = vmatpush1.xpose.msra.mxu0 0.0
    %3206 = vmatprep.subr.mxu0 0.0
    %3207 = vmatpush1.xpose.msra.mxu0 0.0
    %3208 = vmatprep.subr.mxu0 0.0
    %3209 = vmatpush1.xpose.msra.mxu0 0.0
    %3210 = vmatprep.subr.mxu0 0.0
    %3211 = vmatpush1.xpose.msra.mxu0 0.0
    %3212 = vmatprep.subr.mxu0 0.0
    %3213 = vmatpush1.xpose.msra.mxu0 0.0
    %3214 = vmatprep.subr.mxu0 0.0
    %3215 = vmatpush1.xpose.msra.mxu0 0.0
    %3216 = vmatprep.subr.mxu0 0.0
    %3217 = vmatpush1.xpose.msra.mxu0 0.0
    %3218 = vmatprep.subr.mxu0 0.0
    %3219 = vmatpush1.xpose.msra.mxu0 0.0
    %3220 = vmatprep.subr.mxu0 0.0
    %3221 = vmatpush1.xpose.msra.mxu0 0.0
    %3222 = vmatprep.subr.mxu0 0.0
    %3223 = vmatpush1.xpose.msra.mxu0 0.0
    %3224 = vmatprep.subr.mxu0 0.0
    %3225 = vmatpush1.xpose.msra.mxu0 0.0
    %3226 = vmatprep.subr.mxu0 0.0
    %3227 = vmatpush1.xpose.msra.mxu0 0.0
    %3228 = vmatprep.subr.mxu0 0.0
    %3229 = vmatpush1.xpose.msra.mxu0 0.0
    %3230 = vmatprep.subr.mxu0 0.0
    %3231 = vmatpush1.xpose.msra.mxu0 0.0
    %3232 = vmatprep.subr.mxu0 0.0
    %3233 = vmatpush1.xpose.msra.mxu0 0.0
    %3234 = vmatprep.subr.mxu0 0.0
    %3235 = vmatpush1.xpose.msra.mxu0 0.0
    %3236 = vmatprep.subr.mxu0 0.0
    %3237 = vmatpush1.xpose.msra.mxu0 0.0
    %3238 = vmatprep.subr.mxu0 0.0
    %3239 = vmatpush1.xpose.msra.mxu0 0.0
    %3240 = vmatprep.subr.mxu0 0.0
    %3241 = vmatpush1.xpose.msra.mxu0 0.0
    %3242 = vmatprep.subr.mxu0 0.0
    %3243 = vmatpush1.xpose.msra.mxu0 0.0
    %3244 = vmatprep.subr.mxu0 0.0
    %3245 = vmatpush1.xpose.msra.mxu0 0.0
    %3246 = vmatprep.subr.mxu0 0.0
    %3247 = vmatpush1.xpose.msra.mxu0 0.0
    %3248 = vmatprep.subr.mxu0 0.0
    %3249 = vmatpush1.xpose.msra.mxu0 0.0
    %3250 = vmatprep.mubr.f32.mxu0 0.0
    %3251 = vmatmul.mubr.f32.gmra.mrb[0].mxu0 %v3182
    %v3252 = vpop.f32.mrb[0].mxu0
    %v3253 = vadd.f32 0.0, %v3252
    %v3254 = vpop.f32.mrb[0].mxu0
    %3255 = vdwg.mxu0
    %3256 = vrot.lane.b32.xlu0 %v2813, 112
    %v3257 = vpop.permute.xlu0 %3256
    %3258 = vrot.lane.b32.xlu0 %v2824, 80
    %v3259 = vpop.permute.xlu0 %3258
    %v3260 = vsel %vm104, %v3257, 0
    %v3262 = vsel %vm104, %v3259, 0
    %3264 = vmatprep.subr.mxu0 0.0
    %3265 = vmatpush1.xpose.msra.mxu0 %v3262
    %3266 = vmatprep.subr.mxu0 0.0
    %3267 = vmatpush1.xpose.msra.mxu0 0.0
    %3268 = vmatprep.subr.mxu0 0.0
    %3269 = vmatpush1.xpose.msra.mxu0 0.0
    %3270 = vmatprep.subr.mxu0 0.0
    %3271 = vmatpush1.xpose.msra.mxu0 0.0
    %3272 = vmatprep.subr.mxu0 0.0
    %3273 = vmatpush1.xpose.msra.mxu0 0.0
    %3274 = vmatprep.subr.mxu0 0.0
    %3275 = vmatpush1.xpose.msra.mxu0 0.0
    %3276 = vmatprep.subr.mxu0 0.0
    %3277 = vmatpush1.xpose.msra.mxu0 0.0
    %3278 = vmatprep.subr.mxu0 0.0
    %3279 = vmatpush1.xpose.msra.mxu0 0.0
    %3280 = vmatprep.subr.mxu0 0.0
    %3281 = vmatpush1.xpose.msra.mxu0 0.0
    %3282 = vmatprep.subr.mxu0 0.0
    %3283 = vmatpush1.xpose.msra.mxu0 0.0
    %3284 = vmatprep.subr.mxu0 0.0
    %3285 = vmatpush1.xpose.msra.mxu0 0.0
    %3286 = vmatprep.subr.mxu0 0.0
    %3287 = vmatpush1.xpose.msra.mxu0 0.0
    %3288 = vmatprep.subr.mxu0 0.0
    %3289 = vmatpush1.xpose.msra.mxu0 0.0
    %3290 = vmatprep.subr.mxu0 0.0
    %3291 = vmatpush1.xpose.msra.mxu0 0.0
    %3292 = vmatprep.subr.mxu0 0.0
    %3293 = vmatpush1.xpose.msra.mxu0 0.0
    %3294 = vmatprep.subr.mxu0 0.0
    %3295 = vmatpush1.xpose.msra.mxu0 0.0
    %3296 = vmatprep.subr.mxu0 0.0
    %3297 = vmatpush1.xpose.msra.mxu0 0.0
    %3298 = vmatprep.subr.mxu0 0.0
    %3299 = vmatpush1.xpose.msra.mxu0 0.0
    %3300 = vmatprep.subr.mxu0 0.0
    %3301 = vmatpush1.xpose.msra.mxu0 0.0
    %3302 = vmatprep.subr.mxu0 0.0
    %3303 = vmatpush1.xpose.msra.mxu0 0.0
    %3304 = vmatprep.subr.mxu0 0.0
    %3305 = vmatpush1.xpose.msra.mxu0 0.0
    %3306 = vmatprep.subr.mxu0 0.0
    %3307 = vmatpush1.xpose.msra.mxu0 0.0
    %3308 = vmatprep.subr.mxu0 0.0
    %3309 = vmatpush1.xpose.msra.mxu0 0.0
    %3310 = vmatprep.subr.mxu0 0.0
    %3311 = vmatpush1.xpose.msra.mxu0 0.0
    %3312 = vmatprep.subr.mxu0 0.0
    %3313 = vmatpush1.xpose.msra.mxu0 0.0
    %3314 = vmatprep.subr.mxu0 0.0
    %3315 = vmatpush1.xpose.msra.mxu0 0.0
    %3316 = vmatprep.subr.mxu0 0.0
    %3317 = vmatpush1.xpose.msra.mxu0 0.0
    %3318 = vmatprep.subr.mxu0 0.0
    %3319 = vmatpush1.xpose.msra.mxu0 0.0
    %3320 = vmatprep.subr.mxu0 0.0
    %3321 = vmatpush1.xpose.msra.mxu0 0.0
    %3322 = vmatprep.subr.mxu0 0.0
    %3323 = vmatpush1.xpose.msra.mxu0 0.0
    %3324 = vmatprep.subr.mxu0 0.0
    %3325 = vmatpush1.xpose.msra.mxu0 0.0
    %3326 = vmatprep.subr.mxu0 0.0
    %3327 = vmatpush1.xpose.msra.mxu0 0.0
    %3328 = vmatprep.mubr.f32.mxu0 0.0
    %3329 = vmatmul.mubr.f32.gmra.mrb[0].mxu0 %v3260
    %v3330 = vpop.f32.mrb[0].mxu0
    %v3331 = vadd.f32 0.0, %v3330
    %v3332 = vpop.f32.mrb[0].mxu0
    %3333 = vdwg.mxu0
    %v3334 = vmul.f32 %v3253, 0.25
    %v3335 = vmul.f32 %v3331, 0.25
    %v3336 = vadd.f32 %v3334, %v1833
    %v3337 = vadd.f32 %v3335, %v1837
    %v3338 = vsel %vm1842, %v3336, -inf
    %3339 = vmax.xlane.f32.xlu0 %v3338
    %v3340 = vpop.xlane.xlu0 %3339
    %v3341 = vsel %vm1842, %v3337, -inf
    %3342 = vmax.xlane.f32.xlu0 %v3341
    %v3343 = vpop.xlane.xlu0 %3342
    %v3344 = vsub.f32 %v3336, %v3340
    %v3345 = vsub.f32 %v3337, %v3343
    %v3346 = vmul.f32 %v3344, 1.442695
    %v3347 = vpow.pop %v3346
    %v3348 = vmul.f32 %v3345, 1.442695
    %v3349 = vpow.pop %v3348
    %v3350 = vsel %vm1842, %v3347, 0.0
    %3351 = vadd.xlane.f32.xlu0 %v3350
    %v3352 = vpop.xlane.xlu0 %3351
    %v3353 = vsel %vm1842, %v3349, 0.0
    %3354 = vadd.xlane.f32.xlu0 %v3353
    %v3355 = vpop.xlane.xlu0 %3354
    %v3356 = vrcp.pop %v3352
    %v3357 = vmul.f32 %v3347, %v3356
    %v3358 = vrcp.pop %v3355
    %v3359 = vmul.f32 %v3349, %v3358
    %3360 = vrot.lane.b32.xlu0 %v2834, 48
    %v3361 = vpop.permute.xlu0 %3360
    %v3364 = vsel %vm1842, %v3357, 0
    %3366 = vmatprep.subr.mxu0 0.0
    %3367 = vmatpush1.msra.mxu0 %v3361
    %3368 = vmatprep.subr.mxu0 0.0
    %3369 = vmatpush1.msra.mxu0 0.0
    %3370 = vmatprep.subr.mxu0 0.0
    %3371 = vmatpush1.msra.mxu0 0.0
    %3372 = vmatprep.subr.mxu0 0.0
    %3373 = vmatpush1.msra.mxu0 0.0
    %3374 = vmatprep.subr.mxu0 0.0
    %3375 = vmatpush1.msra.mxu0 0.0
    %3376 = vmatprep.subr.mxu0 0.0
    %3377 = vmatpush1.msra.mxu0 0.0
    %3378 = vmatprep.subr.mxu0 0.0
    %3379 = vmatpush1.msra.mxu0 0.0
    %3380 = vmatprep.subr.mxu0 0.0
    %3381 = vmatpush1.msra.mxu0 0.0
    %3382 = vmatprep.subr.mxu0 0.0
    %3383 = vmatpush1.msra.mxu0 0.0
    %3384 = vmatprep.subr.mxu0 0.0
    %3385 = vmatpush1.msra.mxu0 0.0
    %3386 = vmatprep.subr.mxu0 0.0
    %3387 = vmatpush1.msra.mxu0 0.0
    %3388 = vmatprep.subr.mxu0 0.0
    %3389 = vmatpush1.msra.mxu0 0.0
    %3390 = vmatprep.subr.mxu0 0.0
    %3391 = vmatpush1.msra.mxu0 0.0
    %3392 = vmatprep.subr.mxu0 0.0
    %3393 = vmatpush1.msra.mxu0 0.0
    %3394 = vmatprep.subr.mxu0 0.0
    %3395 = vmatpush1.msra.mxu0 0.0
    %3396 = vmatprep.subr.mxu0 0.0
    %3397 = vmatpush1.msra.mxu0 0.0
    %3398 = vmatprep.subr.mxu0 0.0
    %3399 = vmatpush1.msra.mxu0 0.0
    %3400 = vmatprep.subr.mxu0 0.0
    %3401 = vmatpush1.msra.mxu0 0.0
    %3402 = vmatprep.subr.mxu0 0.0
    %3403 = vmatpush1.msra.mxu0 0.0
    %3404 = vmatprep.subr.mxu0 0.0
    %3405 = vmatpush1.msra.mxu0 0.0
    %3406 = vmatprep.subr.mxu0 0.0
    %3407 = vmatpush1.msra.mxu0 0.0
    %3408 = vmatprep.subr.mxu0 0.0
    %3409 = vmatpush1.msra.mxu0 0.0
    %3410 = vmatprep.subr.mxu0 0.0
    %3411 = vmatpush1.msra.mxu0 0.0
    %3412 = vmatprep.subr.mxu0 0.0
    %3413 = vmatpush1.msra.mxu0 0.0
    %3414 = vmatprep.subr.mxu0 0.0
    %3415 = vmatpush1.msra.mxu0 0.0
    %3416 = vmatprep.subr.mxu0 0.0
    %3417 = vmatpush1.msra.mxu0 0.0
    %3418 = vmatprep.subr.mxu0 0.0
    %3419 = vmatpush1.msra.mxu0 0.0
    %3420 = vmatprep.subr.mxu0 0.0
    %3421 = vmatpush1.msra.mxu0 0.0
    %3422 = vmatprep.subr.mxu0 0.0
    %3423 = vmatpush1.msra.mxu0 0.0
    %3424 = vmatprep.subr.mxu0 0.0
    %3425 = vmatpush1.msra.mxu0 0.0
    %3426 = vmatprep.subr.mxu0 0.0
    %3427 = vmatpush1.msra.mxu0 0.0
    %3428 = vmatprep.subr.mxu0 0.0
    %3429 = vmatpush1.msra.mxu0 0.0
    %3430 = vmatprep.mubr.f32.mxu0 0.0
    %3431 = vmatmul.mubr.f32.gmra.mrb[0].mxu0 %v3364
    %v3432 = vpop.f32.mrb[0].mxu0
    %v3433 = vadd.f32 0.0, %v3432
    %v3434 = vpop.f32.mrb[0].mxu0
    %3435 = vdwg.mxu0
    %3436 = vrot.lane.b32.xlu0 %v2835, 48
    %v3437 = vpop.permute.xlu0 %3436
    %v3440 = vsel %vm1842, %v3359, 0
    %3442 = vmatprep.subr.mxu0 0.0
    %3443 = vmatpush1.msra.mxu0 %v3437
    %3444 = vmatprep.subr.mxu0 0.0
    %3445 = vmatpush1.msra.mxu0 0.0
    %3446 = vmatprep.subr.mxu0 0.0
    %3447 = vmatpush1.msra.mxu0 0.0
    %3448 = vmatprep.subr.mxu0 0.0
    %3449 = vmatpush1.msra.mxu0 0.0
    %3450 = vmatprep.subr.mxu0 0.0
    %3451 = vmatpush1.msra.mxu0 0.0
    %3452 = vmatprep.subr.mxu0 0.0
    %3453 = vmatpush1.msra.mxu0 0.0
    %3454 = vmatprep.subr.mxu0 0.0
    %3455 = vmatpush1.msra.mxu0 0.0
    %3456 = vmatprep.subr.mxu0 0.0
    %3457 = vmatpush1.msra.mxu0 0.0
    %3458 = vmatprep.subr.mxu0 0.0
    %3459 = vmatpush1.msra.mxu0 0.0
    %3460 = vmatprep.subr.mxu0 0.0
    %3461 = vmatpush1.msra.mxu0 0.0
    %3462 = vmatprep.subr.mxu0 0.0
    %3463 = vmatpush1.msra.mxu0 0.0
    %3464 = vmatprep.subr.mxu0 0.0
    %3465 = vmatpush1.msra.mxu0 0.0
    %3466 = vmatprep.subr.mxu0 0.0
    %3467 = vmatpush1.msra.mxu0 0.0
    %3468 = vmatprep.subr.mxu0 0.0
    %3469 = vmatpush1.msra.mxu0 0.0
    %3470 = vmatprep.subr.mxu0 0.0
    %3471 = vmatpush1.msra.mxu0 0.0
    %3472 = vmatprep.subr.mxu0 0.0
    %3473 = vmatpush1.msra.mxu0 0.0
    %3474 = vmatprep.subr.mxu0 0.0
    %3475 = vmatpush1.msra.mxu0 0.0
    %3476 = vmatprep.subr.mxu0 0.0
    %3477 = vmatpush1.msra.mxu0 0.0
    %3478 = vmatprep.subr.mxu0 0.0
    %3479 = vmatpush1.msra.mxu0 0.0
    %3480 = vmatprep.subr.mxu0 0.0
    %3481 = vmatpush1.msra.mxu0 0.0
    %3482 = vmatprep.subr.mxu0 0.0
    %3483 = vmatpush1.msra.mxu0 0.0
    %3484 = vmatprep.subr.mxu0 0.0
    %3485 = vmatpush1.msra.mxu0 0.0
    %3486 = vmatprep.subr.mxu0 0.0
    %3487 = vmatpush1.msra.mxu0 0.0
    %3488 = vmatprep.subr.mxu0 0.0
    %3489 = vmatpush1.msra.mxu0 0.0
    %3490 = vmatprep.subr.mxu0 0.0
    %3491 = vmatpush1.msra.mxu0 0.0
    %3492 = vmatprep.subr.mxu0 0.0
    %3493 = vmatpush1.msra.mxu0 0.0
    %3494 = vmatprep.subr.mxu0 0.0
    %3495 = vmatpush1.msra.mxu0 0.0
    %3496 = vmatprep.subr.mxu0 0.0
    %3497 = vmatpush1.msra.mxu0 0.0
    %3498 = vmatprep.subr.mxu0 0.0
    %3499 = vmatpush1.msra.mxu0 0.0
    %3500 = vmatprep.subr.mxu0 0.0
    %3501 = vmatpush1.msra.mxu0 0.0
    %3502 = vmatprep.subr.mxu0 0.0
    %3503 = vmatpush1.msra.mxu0 0.0
    %3504 = vmatprep.subr.mxu0 0.0
    %3505 = vmatpush1.msra.mxu0 0.0
    %3506 = vmatprep.mubr.f32.mxu0 0.0
    %3507 = vmatmul.mubr.f32.gmra.mrb[0].mxu0 %v3440
    %v3508 = vpop.f32.mrb[0].mxu0
    %v3509 = vadd.f32 0.0, %v3508
    %v3510 = vpop.f32.mrb[0].mxu0
    %3511 = vdwg.mxu0
    %3514 = vrot.lane.b32.xlu0 %v3433, 16
    %v3515 = vpop.permute.xlu0 %3514
    %3516 = vrot.lane.b32.xlu0 %v3509, 16
    %v3517 = vpop.permute.xlu0 %3516
    %v3520 = vsel %vm104, %v3098, %v3515
    %v3521 = vsel %vm104, %v3175, %v3517
    %v3522 = vlaneseq
    %v3523 = vshrl.u32 %v3522, 7
    %v3524 = vsub.s32 0, %v3523
    %v3525 = vrot.slane %v2841, %v3524
    %v3527 = vsel %vm953, %v3520, 0
    %v3530 = vsel %vm953, %v3521, 0
    %3532 = vmatprep.subr.mxu0 0.0
    %3533 = vmatpush1.msra.mxu0 %v2837
    %3534 = vmatprep.subr.mxu0 0.0
    %3535 = vmatpush1.msra.mxu0 %v2838
    %3536 = vmatprep.subr.mxu0 0.0
    %3537 = vmatpush1.msra.mxu0 %v2839
    %3538 = vmatprep.subr.mxu0 0.0
    %3539 = vmatpush1.msra.mxu0 %v2840
    %3540 = vmatprep.subr.mxu0 0.0
    %3541 = vmatpush1.msra.mxu0 0.0
    %3542 = vmatprep.subr.mxu0 0.0
    %3543 = vmatpush1.msra.mxu0 0.0
    %3544 = vmatprep.subr.mxu0 0.0
    %3545 = vmatpush1.msra.mxu0 0.0
    %3546 = vmatprep.subr.mxu0 0.0
    %3547 = vmatpush1.msra.mxu0 0.0
    %3548 = vmatprep.subr.mxu0 0.0
    %3549 = vmatpush1.msra.mxu0 0.0
    %3550 = vmatprep.subr.mxu0 0.0
    %3551 = vmatpush1.msra.mxu0 0.0
    %3552 = vmatprep.subr.mxu0 0.0
    %3553 = vmatpush1.msra.mxu0 0.0
    %3554 = vmatprep.subr.mxu0 0.0
    %3555 = vmatpush1.msra.mxu0 0.0
    %3556 = vmatprep.subr.mxu0 0.0
    %3557 = vmatpush1.msra.mxu0 0.0
    %3558 = vmatprep.subr.mxu0 0.0
    %3559 = vmatpush1.msra.mxu0 0.0
    %3560 = vmatprep.subr.mxu0 0.0
    %3561 = vmatpush1.msra.mxu0 0.0
    %3562 = vmatprep.subr.mxu0 0.0
    %3563 = vmatpush1.msra.mxu0 0.0
    %3564 = vmatprep.subr.mxu0 0.0
    %3565 = vmatpush1.msra.mxu0 0.0
    %3566 = vmatprep.subr.mxu0 0.0
    %3567 = vmatpush1.msra.mxu0 0.0
    %3568 = vmatprep.subr.mxu0 0.0
    %3569 = vmatpush1.msra.mxu0 0.0
    %3570 = vmatprep.subr.mxu0 0.0
    %3571 = vmatpush1.msra.mxu0 0.0
    %3572 = vmatprep.subr.mxu0 0.0
    %3573 = vmatpush1.msra.mxu0 0.0
    %3574 = vmatprep.subr.mxu0 0.0
    %3575 = vmatpush1.msra.mxu0 0.0
    %3576 = vmatprep.subr.mxu0 0.0
    %3577 = vmatpush1.msra.mxu0 0.0
    %3578 = vmatprep.subr.mxu0 0.0
    %3579 = vmatpush1.msra.mxu0 0.0
    %3580 = vmatprep.subr.mxu0 0.0
    %3581 = vmatpush1.msra.mxu0 0.0
    %3582 = vmatprep.subr.mxu0 0.0
    %3583 = vmatpush1.msra.mxu0 0.0
    %3584 = vmatprep.subr.mxu0 0.0
    %3585 = vmatpush1.msra.mxu0 0.0
    %3586 = vmatprep.subr.mxu0 0.0
    %3587 = vmatpush1.msra.mxu0 0.0
    %3588 = vmatprep.subr.mxu0 0.0
    %3589 = vmatpush1.msra.mxu0 0.0
    %3590 = vmatprep.subr.mxu0 0.0
    %3591 = vmatpush1.msra.mxu0 0.0
    %3592 = vmatprep.subr.mxu0 0.0
    %3593 = vmatpush1.msra.mxu0 0.0
    %3594 = vmatprep.subr.mxu0 0.0
    %3595 = vmatpush1.msra.mxu0 0.0
    %3596 = vmatprep.mubr.f32.mxu0 0.0
    %3597 = vmatmul.mubr.f32.gmra.mrb[0].mxu0 %v3527
    %v3598 = vpop.f32.mrb[0].mxu0
    %v3599 = vadd.f32 %v3525, %v3598
    %v3600 = vpop.f32.mrb[0].mxu0
    %3601 = vmatprep.mubr.f32.mxu0 0.0
    %3602 = vmatmul.mubr.f32.gmra.mrb[0].mxu0 %v3530
    %v3603 = vpop.f32.mrb[0].mxu0
    %v3604 = vadd.f32 %v3525, %v3603
    %v3605 = vpop.f32.mrb[0].mxu0
    %3606 = vdwg.mxu0
    %v3607 = vadd.f32 %v2719, %v3599
    %v3608 = vadd.f32 %v2720, %v3604
    %v3609 = vld [vmem:[%s10 + $0x14] sm:$0x1]
    %v3610 = vld [vmem:[%s10 + $0x15] sm:$0x1]
    %v3611 = vsel %vm953, %v3607, 0.0
    %3612 = vadd.xlane.f32.xlu0 %v3611
    %v3613 = vpop.xlane.xlu0 %3612
    %v3614 = vsel %vm953, %v3608, 0.0
    %3615 = vadd.xlane.f32.xlu0 %v3614
    %v3616 = vpop.xlane.xlu0 %3615
    %v3617 = vmul.f32 %v3613, %v1260
    %v3618 = vmul.f32 %v3616, %v1260
    %v3619 = vsub.f32 %v3607, %v3617
    %v3620 = vsub.f32 %v3608, %v3618
    %v3621 = vmul.f32 %v3619, %v3619
    %v3622 = vmul.f32 %v3620, %v3620
    %v3623 = vsel %vm953, %v3621, 0.0
    %3624 = vadd.xlane.f32.xlu0 %v3623
    %v3625 = vpop.xlane.xlu0 %3624
    %v3626 = vsel %vm953, %v3622, 0.0
    %3627 = vadd.xlane.f32.xlu0 %v3626
    %v3628 = vpop.xlane.xlu0 %3627
    %v3629 = vmul.f32 %v3625, %v1260
    %v3630 = vmul.f32 %v3628, %v1260
    %v3631 = vadd.f32 %v3629, 1e-05
    %v3632 = vadd.f32 %v3630, 1e-05
    %v3633 = vrsqrt.pop %v3631
    %v3634 = vrsqrt.pop %v3632
    %v3635 = vmul.f32 %v3619, %v3633
    %v3636 = vmul.f32 %v3620, %v3634
    %v3637 = vlaneseq
    %v3638 = vshrl.u32 %v3637, 7
    %v3639 = vsub.s32 0, %v3638
    %v3640 = vrot.slane %v3609, %v3639
    %v3641 = vmul.f32 %v3635, %v3640
    %v3642 = vmul.f32 %v3636, %v3640
    %v3643 = vlaneseq
    %v3644 = vshrl.u32 %v3643, 7
    %v3645 = vsub.s32 0, %v3644
    %v3646 = vrot.slane %v3610, %v3645
    %v3647 = vadd.f32 %v3641, %v3646
    %v3648 = vadd.f32 %v3642, %v3646
    %s3649 = scalar_lea.vmem %s8, 96
    %v3650 = vld [vmem:[%s3649] sm:$0xff]
    %v3651 = vld [vmem:[%s3649 + $0x8] sm:$0xff]
    %v3652 = vld [vmem:[%s3649 + $0x10] sm:$0xff]
    %v3653 = vld [vmem:[%s3649 + $0x18] sm:$0xff]
    %v3654 = vld [vmem:[%s11 + $0x1] sm:$0x1]
    %v3655 = vlaneseq
    %v3656 = vshrl.u32 %v3655, 7
    %v3657 = vsub.s32 0, %v3656
    %v3658 = vrot.slane %v3654, %v3657
    %v3660 = vsel %vm953, %v3647, 0
    %v3663 = vsel %vm953, %v3648, 0
    %3665 = vmatprep.subr.mxu0 0.0
    %3666 = vmatpush1.msra.mxu0 %v3650
    %3667 = vmatprep.subr.mxu0 0.0
    %3668 = vmatpush1.msra.mxu0 %v3651
    %3669 = vmatprep.subr.mxu0 0.0
    %3670 = vmatpush1.msra.mxu0 %v3652
    %3671 = vmatprep.subr.mxu0 0.0
    %3672 = vmatpush1.msra.mxu0 %v3653
    %3673 = vmatprep.subr.mxu0 0.0
    %3674 = vmatpush1.msra.mxu0 0.0
    %3675 = vmatprep.subr.mxu0 0.0
    %3676 = vmatpush1.msra.mxu0 0.0
    %3677 = vmatprep.subr.mxu0 0.0
    %3678 = vmatpush1.msra.mxu0 0.0
    %3679 = vmatprep.subr.mxu0 0.0
    %3680 = vmatpush1.msra.mxu0 0.0
    %3681 = vmatprep.subr.mxu0 0.0
    %3682 = vmatpush1.msra.mxu0 0.0
    %3683 = vmatprep.subr.mxu0 0.0
    %3684 = vmatpush1.msra.mxu0 0.0
    %3685 = vmatprep.subr.mxu0 0.0
    %3686 = vmatpush1.msra.mxu0 0.0
    %3687 = vmatprep.subr.mxu0 0.0
    %3688 = vmatpush1.msra.mxu0 0.0
    %3689 = vmatprep.subr.mxu0 0.0
    %3690 = vmatpush1.msra.mxu0 0.0
    %3691 = vmatprep.subr.mxu0 0.0
    %3692 = vmatpush1.msra.mxu0 0.0
    %3693 = vmatprep.subr.mxu0 0.0
    %3694 = vmatpush1.msra.mxu0 0.0
    %3695 = vmatprep.subr.mxu0 0.0
    %3696 = vmatpush1.msra.mxu0 0.0
    %3697 = vmatprep.subr.mxu0 0.0
    %3698 = vmatpush1.msra.mxu0 0.0
    %3699 = vmatprep.subr.mxu0 0.0
    %3700 = vmatpush1.msra.mxu0 0.0
    %3701 = vmatprep.subr.mxu0 0.0
    %3702 = vmatpush1.msra.mxu0 0.0
    %3703 = vmatprep.subr.mxu0 0.0
    %3704 = vmatpush1.msra.mxu0 0.0
    %3705 = vmatprep.subr.mxu0 0.0
    %3706 = vmatpush1.msra.mxu0 0.0
    %3707 = vmatprep.subr.mxu0 0.0
    %3708 = vmatpush1.msra.mxu0 0.0
    %3709 = vmatprep.subr.mxu0 0.0
    %3710 = vmatpush1.msra.mxu0 0.0
    %3711 = vmatprep.subr.mxu0 0.0
    %3712 = vmatpush1.msra.mxu0 0.0
    %3713 = vmatprep.subr.mxu0 0.0
    %3714 = vmatpush1.msra.mxu0 0.0
    %3715 = vmatprep.subr.mxu0 0.0
    %3716 = vmatpush1.msra.mxu0 0.0
    %3717 = vmatprep.subr.mxu0 0.0
    %3718 = vmatpush1.msra.mxu0 0.0
    %3719 = vmatprep.subr.mxu0 0.0
    %3720 = vmatpush1.msra.mxu0 0.0
    %3721 = vmatprep.subr.mxu0 0.0
    %3722 = vmatpush1.msra.mxu0 0.0
    %3723 = vmatprep.subr.mxu0 0.0
    %3724 = vmatpush1.msra.mxu0 0.0
    %3725 = vmatprep.subr.mxu0 0.0
    %3726 = vmatpush1.msra.mxu0 0.0
    %3727 = vmatprep.subr.mxu0 0.0
    %3728 = vmatpush1.msra.mxu0 0.0
    %3729 = vmatprep.mubr.f32.mxu0 0.0
    %3730 = vmatmul.mubr.f32.gmra.mrb[0].mxu0 %v3660
    %v3731 = vpop.f32.mrb[0].mxu0
    %v3732 = vadd.f32 %v3658, %v3731
    %v3733 = vpop.f32.mrb[0].mxu0
    %3734 = vmatprep.mubr.f32.mxu0 0.0
    %3735 = vmatmul.mubr.f32.gmra.mrb[0].mxu0 %v3663
    %v3736 = vpop.f32.mrb[0].mxu0
    %v3737 = vadd.f32 %v3658, %v3736
    %v3738 = vpop.f32.mrb[0].mxu0
    %3739 = vdwg.mxu0
    %v3740 = vmax.f32 %v3732, 0.0
    %v3741 = vmax.f32 %v3737, 0.0
    %s3742 = scalar_lea.vmem %s9, 128
    %v3743 = vld [vmem:[%s3742] sm:$0xff]
    %v3744 = vld [vmem:[%s3742 + $0x8] sm:$0xff]
    %v3745 = vld [vmem:[%s3742 + $0x10] sm:$0xff]
    %v3746 = vld [vmem:[%s3742 + $0x18] sm:$0xff]
    %v3747 = vld [vmem:[%s3742 + $0x20] sm:$0xff]
    %v3748 = vld [vmem:[%s3742 + $0x28] sm:$0xff]
    %v3749 = vld [vmem:[%s3742 + $0x30] sm:$0xff]
    %v3750 = vld [vmem:[%s3742 + $0x38] sm:$0xff]
    %v3751 = vld [vmem:[%s3742 + $0x40] sm:$0xff]
    %v3752 = vld [vmem:[%s3742 + $0x48] sm:$0xff]
    %v3753 = vld [vmem:[%s3742 + $0x50] sm:$0xff]
    %v3754 = vld [vmem:[%s3742 + $0x58] sm:$0xff]
    %v3755 = vld [vmem:[%s3742 + $0x60] sm:$0xff]
    %v3756 = vld [vmem:[%s3742 + $0x68] sm:$0xff]
    %v3757 = vld [vmem:[%s3742 + $0x70] sm:$0xff]
    %v3758 = vld [vmem:[%s3742 + $0x78] sm:$0xff]
    %v3759 = vld [vmem:[%s10 + $0x13] sm:$0x1]
    %v3760 = vlaneseq
    %v3761 = vshrl.u32 %v3760, 7
    %v3762 = vsub.s32 0, %v3761
    %v3763 = vrot.slane %v3759, %v3762
    %3764 = vmatprep.subr.mxu0 0.0
    %3765 = vmatpush1.msra.mxu0 %v3743
    %3766 = vmatprep.subr.mxu0 0.0
    %3767 = vmatpush1.msra.mxu0 %v3744
    %3768 = vmatprep.subr.mxu0 0.0
    %3769 = vmatpush1.msra.mxu0 %v3745
    %3770 = vmatprep.subr.mxu0 0.0
    %3771 = vmatpush1.msra.mxu0 %v3746
    %3772 = vmatprep.subr.mxu0 0.0
    %3773 = vmatpush1.msra.mxu0 %v3747
    %3774 = vmatprep.subr.mxu0 0.0
    %3775 = vmatpush1.msra.mxu0 %v3748
    %3776 = vmatprep.subr.mxu0 0.0
    %3777 = vmatpush1.msra.mxu0 %v3749
    %3778 = vmatprep.subr.mxu0 0.0
    %3779 = vmatpush1.msra.mxu0 %v3750
    %3780 = vmatprep.subr.mxu0 0.0
    %3781 = vmatpush1.msra.mxu0 %v3751
    %3782 = vmatprep.subr.mxu0 0.0
    %3783 = vmatpush1.msra.mxu0 %v3752
    %3784 = vmatprep.subr.mxu0 0.0
    %3785 = vmatpush1.msra.mxu0 %v3753
    %3786 = vmatprep.subr.mxu0 0.0
    %3787 = vmatpush1.msra.mxu0 %v3754
    %3788 = vmatprep.subr.mxu0 0.0
    %3789 = vmatpush1.msra.mxu0 %v3755
    %3790 = vmatprep.subr.mxu0 0.0
    %3791 = vmatpush1.msra.mxu0 %v3756
    %3792 = vmatprep.subr.mxu0 0.0
    %3793 = vmatpush1.msra.mxu0 %v3757
    %3794 = vmatprep.subr.mxu0 0.0
    %3795 = vmatpush1.msra.mxu0 %v3758
    %3796 = vmatprep.subr.mxu0 0.0
    %3797 = vmatpush1.msra.mxu0 0.0
    %3798 = vmatprep.subr.mxu0 0.0
    %3799 = vmatpush1.msra.mxu0 0.0
    %3800 = vmatprep.subr.mxu0 0.0
    %3801 = vmatpush1.msra.mxu0 0.0
    %3802 = vmatprep.subr.mxu0 0.0
    %3803 = vmatpush1.msra.mxu0 0.0
    %3804 = vmatprep.subr.mxu0 0.0
    %3805 = vmatpush1.msra.mxu0 0.0
    %3806 = vmatprep.subr.mxu0 0.0
    %3807 = vmatpush1.msra.mxu0 0.0
    %3808 = vmatprep.subr.mxu0 0.0
    %3809 = vmatpush1.msra.mxu0 0.0
    %3810 = vmatprep.subr.mxu0 0.0
    %3811 = vmatpush1.msra.mxu0 0.0
    %3812 = vmatprep.subr.mxu0 0.0
    %3813 = vmatpush1.msra.mxu0 0.0
    %3814 = vmatprep.subr.mxu0 0.0
    %3815 = vmatpush1.msra.mxu0 0.0
    %3816 = vmatprep.subr.mxu0 0.0
    %3817 = vmatpush1.msra.mxu0 0.0
    %3818 = vmatprep.subr.mxu0 0.0
    %3819 = vmatpush1.msra.mxu0 0.0
    %3820 = vmatprep.subr.mxu0 0.0
    %3821 = vmatpush1.msra.mxu0 0.0
    %3822 = vmatprep.subr.mxu0 0.0
    %3823 = vmatpush1.msra.mxu0 0.0
    %3824 = vmatprep.subr.mxu0 0.0
    %3825 = vmatpush1.msra.mxu0 0.0
    %3826 = vmatprep.subr.mxu0 0.0
    %3827 = vmatpush1.msra.mxu0 0.0
    %3828 = vmatprep.mubr.f32.mxu0 0.0
    %3829 = vmatmul.mubr.f32.gmra.mrb[0].mxu0 %v3740
    %v3830 = vpop.f32.mrb[0].mxu0
    %v3831 = vadd.f32 %v3763, %v3830
    %v3832 = vpop.f32.mrb[0].mxu0
    %3833 = vmatprep.mubr.f32.mxu0 0.0
    %3834 = vmatmul.mubr.f32.gmra.mrb[0].mxu0 %v3741
    %v3835 = vpop.f32.mrb[0].mxu0
    %v3836 = vadd.f32 %v3763, %v3835
    %v3837 = vpop.f32.mrb[0].mxu0
    %3838 = vdwg.mxu0
    %v3839 = vadd.f32 %v3647, %v3831
    %v3840 = vadd.f32 %v3648, %v3836
    %v3841 = vld [vmem:[%s10 + $0x16] sm:$0x1]
    %v3842 = vld [vmem:[%s10 + $0x17] sm:$0x1]
    %v3843 = vsel %vm953, %v3839, 0.0
    %3844 = vadd.xlane.f32.xlu0 %v3843
    %v3845 = vpop.xlane.xlu0 %3844
    %v3846 = vsel %vm953, %v3840, 0.0
    %3847 = vadd.xlane.f32.xlu0 %v3846
    %v3848 = vpop.xlane.xlu0 %3847
    %v3849 = vmul.f32 %v3845, %v1260
    %v3850 = vmul.f32 %v3848, %v1260
    %v3851 = vsub.f32 %v3839, %v3849
    %v3852 = vsub.f32 %v3840, %v3850
    %v3853 = vmul.f32 %v3851, %v3851
    %v3854 = vmul.f32 %v3852, %v3852
    %v3855 = vsel %vm953, %v3853, 0.0
    %3856 = vadd.xlane.f32.xlu0 %v3855
    %v3857 = vpop.xlane.xlu0 %3856
    %v3858 = vsel %vm953, %v3854, 0.0
    %3859 = vadd.xlane.f32.xlu0 %v3858
    %v3860 = vpop.xlane.xlu0 %3859
    %v3861 = vmul.f32 %v3857, %v1260
    %v3862 = vmul.f32 %v3860, %v1260
    %v3863 = vadd.f32 %v3861, 1e-05
    %v3864 = vadd.f32 %v3862, 1e-05
    %v3865 = vrsqrt.pop %v3863
    %v3866 = vrsqrt.pop %v3864
    %v3867 = vmul.f32 %v3851, %v3865
    %v3868 = vmul.f32 %v3852, %v3866
    %v3869 = vlaneseq
    %v3870 = vshrl.u32 %v3869, 7
    %v3871 = vsub.s32 0, %v3870
    %v3872 = vrot.slane %v3841, %v3871
    %v3873 = vmul.f32 %v3867, %v3872
    %v3874 = vmul.f32 %v3868, %v3872
    %v3875 = vlaneseq
    %v3876 = vshrl.u32 %v3875, 7
    %v3877 = vsub.s32 0, %v3876
    %v3878 = vrot.slane %v3842, %v3877
    %v3879 = vadd.f32 %v3873, %v3878
    %v3880 = vadd.f32 %v3874, %v3878
    %v3881 = vld [vmem:[%s10 + $0x18] sm:$0x1]
    %v3882 = vld [vmem:[%s10 + $0x19] sm:$0x1]
    %v3883 = vsel %vm953, %v3879, 0.0
    %3884 = vadd.xlane.f32.xlu0 %v3883
    %v3885 = vpop.xlane.xlu0 %3884
    %v3886 = vsel %vm953, %v3880, 0.0
    %3887 = vadd.xlane.f32.xlu0 %v3886
    %v3888 = vpop.xlane.xlu0 %3887
    %v3889 = vmul.f32 %v3885, %v1260
    %v3890 = vmul.f32 %v3888, %v1260
    %v3891 = vsub.f32 %v3879, %v3889
    %v3892 = vsub.f32 %v3880, %v3890
    %v3893 = vmul.f32 %v3891, %v3891
    %v3894 = vmul.f32 %v3892, %v3892
    %v3895 = vsel %vm953, %v3893, 0.0
    %3896 = vadd.xlane.f32.xlu0 %v3895
    %v3897 = vpop.xlane.xlu0 %3896
    %v3898 = vsel %vm953, %v3894, 0.0
    %3899 = vadd.xlane.f32.xlu0 %v3898
    %v3900 = vpop.xlane.xlu0 %3899
    %v3901 = vmul.f32 %v3897, %v1260
    %v3902 = vmul.f32 %v3900, %v1260
    %v3903 = vadd.f32 %v3901, 1e-05
    %v3904 = vadd.f32 %v3902, 1e-05
    %v3905 = vrsqrt.pop %v3903
    %v3906 = vrsqrt.pop %v3904
    %v3907 = vmul.f32 %v3891, %v3905
    %v3908 = vmul.f32 %v3892, %v3906
    %v3909 = vlaneseq
    %v3910 = vshrl.u32 %v3909, 7
    %v3911 = vsub.s32 0, %v3910
    %v3912 = vrot.slane %v3881, %v3911
    %v3913 = vmul.f32 %v3907, %v3912
    %v3914 = vmul.f32 %v3908, %v3912
    %v3915 = vlaneseq
    %v3916 = vshrl.u32 %v3915, 7
    %v3917 = vsub.s32 0, %v3916
    %v3918 = vrot.slane %v3882, %v3917
    %v3919 = vadd.f32 %v3913, %v3918
    %v3920 = vadd.f32 %v3914, %v3918
    %v3921 = vld [vmem:[%s10 + $0x1] sm:$0x1]
    %v3922 = vlaneseq
    %v3923 = vshrl.u32 %v3922, 7
    %v3924 = vsub.s32 0, %v3923
    %v3925 = vrot.slane %v3921, %v3924
    %s3926 = scalar_lea.vmem %s7, 224
    %v3927 = vld [vmem:[%s3926] sm:$0xff]
    %v3928 = vld [vmem:[%s3926 + $0x8] sm:$0xff]
    %v3929 = vld [vmem:[%s3926 + $0x10] sm:$0xff]
    %v3930 = vld [vmem:[%s3926 + $0x18] sm:$0xff]
    %v3931 = vld [vmem:[%s10 + $0x1a] sm:$0x1]
    %v3932 = vlaneseq
    %v3933 = vshrl.u32 %v3932, 7
    %v3934 = vsub.s32 0, %v3933
    %v3935 = vrot.slane %v3931, %v3934
    %v3937 = vsel %vm953, %v3925, 0
    %3939 = vmatprep.subr.mxu0 0.0
    %3940 = vmatpush1.msra.mxu0 %v3927
    %3941 = vmatprep.subr.mxu0 0.0
    %3942 = vmatpush1.msra.mxu0 %v3928
    %3943 = vmatprep.subr.mxu0 0.0
    %3944 = vmatpush1.msra.mxu0 %v3929
    %3945 = vmatprep.subr.mxu0 0.0
    %3946 = vmatpush1.msra.mxu0 %v3930
    %3947 = vmatprep.subr.mxu0 0.0
    %3948 = vmatpush1.msra.mxu0 0.0
    %3949 = vmatprep.subr.mxu0 0.0
    %3950 = vmatpush1.msra.mxu0 0.0
    %3951 = vmatprep.subr.mxu0 0.0
    %3952 = vmatpush1.msra.mxu0 0.0
    %3953 = vmatprep.subr.mxu0 0.0
    %3954 = vmatpush1.msra.mxu0 0.0
    %3955 = vmatprep.subr.mxu0 0.0
    %3956 = vmatpush1.msra.mxu0 0.0
    %3957 = vmatprep.subr.mxu0 0.0
    %3958 = vmatpush1.msra.mxu0 0.0
    %3959 = vmatprep.subr.mxu0 0.0
    %3960 = vmatpush1.msra.mxu0 0.0
    %3961 = vmatprep.subr.mxu0 0.0
    %3962 = vmatpush1.msra.mxu0 0.0
    %3963 = vmatprep.subr.mxu0 0.0
    %3964 = vmatpush1.msra.mxu0 0.0
    %3965 = vmatprep.subr.mxu0 0.0
    %3966 = vmatpush1.msra.mxu0 0.0
    %3967 = vmatprep.subr.mxu0 0.0
    %3968 = vmatpush1.msra.mxu0 0.0
    %3969 = vmatprep.subr.mxu0 0.0
    %3970 = vmatpush1.msra.mxu0 0.0
    %3971 = vmatprep.subr.mxu0 0.0
    %3972 = vmatpush1.msra.mxu0 0.0
    %3973 = vmatprep.subr.mxu0 0.0
    %3974 = vmatpush1.msra.mxu0 0.0
    %3975 = vmatprep.subr.mxu0 0.0
    %3976 = vmatpush1.msra.mxu0 0.0
    %3977 = vmatprep.subr.mxu0 0.0
    %3978 = vmatpush1.msra.mxu0 0.0
    %3979 = vmatprep.subr.mxu0 0.0
    %3980 = vmatpush1.msra.mxu0 0.0
    %3981 = vmatprep.subr.mxu0 0.0
    %3982 = vmatpush1.msra.mxu0 0.0
    %3983 = vmatprep.subr.mxu0 0.0
    %3984 = vmatpush1.msra.mxu0 0.0
    %3985 = vmatprep.subr.mxu0 0.0
    %3986 = vmatpush1.msra.mxu0 0.0
    %3987 = vmatprep.subr.mxu0 0.0
    %3988 = vmatpush1.msra.mxu0 0.0
    %3989 = vmatprep.subr.mxu0 0.0
    %3990 = vmatpush1.msra.mxu0 0.0
    %3991 = vmatprep.subr.mxu0 0.0
    %3992 = vmatpush1.msra.mxu0 0.0
    %3993 = vmatprep.subr.mxu0 0.0
    %3994 = vmatpush1.msra.mxu0 0.0
    %3995 = vmatprep.subr.mxu0 0.0
    %3996 = vmatpush1.msra.mxu0 0.0
    %3997 = vmatprep.subr.mxu0 0.0
    %3998 = vmatpush1.msra.mxu0 0.0
    %3999 = vmatprep.subr.mxu0 0.0
    %4000 = vmatpush1.msra.mxu0 0.0
    %4001 = vmatprep.subr.mxu0 0.0
    %4002 = vmatpush1.msra.mxu0 0.0
    %4003 = vmatprep.mubr.f32.mxu0 0.0
    %4004 = vmatmul.mubr.f32.gmra.mrb[0].mxu0 %v3937
    %v4005 = vpop.f32.mrb[0].mxu0
    %v4006 = vadd.f32 %v3935, %v4005
    %v4007 = vpop.f32.mrb[0].mxu0
    %4008 = vdwg.mxu0
    %s4009 = scalar_lea.vmem %s7, 256
    %v4010 = vld [vmem:[%s4009] sm:$0xff]
    %v4011 = vld [vmem:[%s4009 + $0x8] sm:$0xff]
    %v4012 = vld [vmem:[%s4009 + $0x10] sm:$0xff]
    %v4013 = vld [vmem:[%s4009 + $0x18] sm:$0xff]
    %v4014 = vld [vmem:[%s10 + $0x1b] sm:$0x1]
    %v4015 = vlaneseq
    %v4016 = vshrl.u32 %v4015, 7
    %v4017 = vsub.s32 0, %v4016
    %v4018 = vrot.slane %v4014, %v4017
    %v4020 = vsel %vm953, %v4006, 0
    %4022 = vmatprep.subr.mxu0 0.0
    %4023 = vmatpush1.msra.mxu0 %v4010
    %4024 = vmatprep.subr.mxu0 0.0
    %4025 = vmatpush1.msra.mxu0 %v4011
    %4026 = vmatprep.subr.mxu0 0.0
    %4027 = vmatpush1.msra.mxu0 %v4012
    %4028 = vmatprep.subr.mxu0 0.0
    %4029 = vmatpush1.msra.mxu0 %v4013
    %4030 = vmatprep.subr.mxu0 0.0
    %4031 = vmatpush1.msra.mxu0 0.0
    %4032 = vmatprep.subr.mxu0 0.0
    %4033 = vmatpush1.msra.mxu0 0.0
    %4034 = vmatprep.subr.mxu0 0.0
    %4035 = vmatpush1.msra.mxu0 0.0
    %4036 = vmatprep.subr.mxu0 0.0
    %4037 = vmatpush1.msra.mxu0 0.0
    %4038 = vmatprep.subr.mxu0 0.0
    %4039 = vmatpush1.msra.mxu0 0.0
    %4040 = vmatprep.subr.mxu0 0.0
    %4041 = vmatpush1.msra.mxu0 0.0
    %4042 = vmatprep.subr.mxu0 0.0
    %4043 = vmatpush1.msra.mxu0 0.0
    %4044 = vmatprep.subr.mxu0 0.0
    %4045 = vmatpush1.msra.mxu0 0.0
    %4046 = vmatprep.subr.mxu0 0.0
    %4047 = vmatpush1.msra.mxu0 0.0
    %4048 = vmatprep.subr.mxu0 0.0
    %4049 = vmatpush1.msra.mxu0 0.0
    %4050 = vmatprep.subr.mxu0 0.0
    %4051 = vmatpush1.msra.mxu0 0.0
    %4052 = vmatprep.subr.mxu0 0.0
    %4053 = vmatpush1.msra.mxu0 0.0
    %4054 = vmatprep.subr.mxu0 0.0
    %4055 = vmatpush1.msra.mxu0 0.0
    %4056 = vmatprep.subr.mxu0 0.0
    %4057 = vmatpush1.msra.mxu0 0.0
    %4058 = vmatprep.subr.mxu0 0.0
    %4059 = vmatpush1.msra.mxu0 0.0
    %4060 = vmatprep.subr.mxu0 0.0
    %4061 = vmatpush1.msra.mxu0 0.0
    %4062 = vmatprep.subr.mxu0 0.0
    %4063 = vmatpush1.msra.mxu0 0.0
    %4064 = vmatprep.subr.mxu0 0.0
    %4065 = vmatpush1.msra.mxu0 0.0
    %4066 = vmatprep.subr.mxu0 0.0
    %4067 = vmatpush1.msra.mxu0 0.0
    %4068 = vmatprep.subr.mxu0 0.0
    %4069 = vmatpush1.msra.mxu0 0.0
    %4070 = vmatprep.subr.mxu0 0.0
    %4071 = vmatpush1.msra.mxu0 0.0
    %4072 = vmatprep.subr.mxu0 0.0
    %4073 = vmatpush1.msra.mxu0 0.0
    %4074 = vmatprep.subr.mxu0 0.0
    %4075 = vmatpush1.msra.mxu0 0.0
    %4076 = vmatprep.subr.mxu0 0.0
    %4077 = vmatpush1.msra.mxu0 0.0
    %4078 = vmatprep.subr.mxu0 0.0
    %4079 = vmatpush1.msra.mxu0 0.0
    %4080 = vmatprep.subr.mxu0 0.0
    %4081 = vmatpush1.msra.mxu0 0.0
    %4082 = vmatprep.subr.mxu0 0.0
    %4083 = vmatpush1.msra.mxu0 0.0
    %4084 = vmatprep.subr.mxu0 0.0
    %4085 = vmatpush1.msra.mxu0 0.0
    %4086 = vmatprep.mubr.f32.mxu0 0.0
    %4087 = vmatmul.mubr.f32.gmra.mrb[0].mxu0 %v4020
    %v4088 = vpop.f32.mrb[0].mxu0
    %v4089 = vadd.f32 %v4018, %v4088
    %v4090 = vpop.f32.mrb[0].mxu0
    %4091 = vdwg.mxu0
    %v4092 = vadd.f32 %v3925, %v4089
    %v4093 = vld [vmem:[%s10 + $0x21] sm:$0x1]
    %v4094 = vld [vmem:[%s10 + $0x22] sm:$0x1]
    %vm4095 = vcmask 254976
    %v4096 = vsel %vm4095, %v4092, 0.0
    %4097 = vadd.xlane.f32.xlu0 %v4096
    %v4098 = vpop.xlane.xlu0 %4097
    %v4099 = vmul.f32 %v4098, %v1260
    %v4100 = vsub.f32 %v4092, %v4099
    %v4101 = vmul.f32 %v4100, %v4100
    %v4102 = vsel %vm4095, %v4101, 0.0
    %4103 = vadd.xlane.f32.xlu0 %v4102
    %v4104 = vpop.xlane.xlu0 %4103
    %v4105 = vmul.f32 %v4104, %v1260
    %v4106 = vadd.f32 %v4105, 1e-05
    %v4107 = vrsqrt.pop %v4106
    %v4108 = vmul.f32 %v4100, %v4107
    %v4109 = vlaneseq
    %v4110 = vshrl.u32 %v4109, 7
    %v4111 = vsub.s32 0, %v4110
    %v4112 = vrot.slane %v4093, %v4111
    %v4113 = vmul.f32 %v4108, %v4112
    %v4114 = vlaneseq
    %v4115 = vshrl.u32 %v4114, 7
    %v4116 = vsub.s32 0, %v4115
    %v4117 = vrot.slane %v4094, %v4116
    %v4118 = vadd.f32 %v4113, %v4117
    %s4119 = scalar_lea.vmem %s7, 288
    %v4120 = vld [vmem:[%s4119] sm:$0xff]
    %v4121 = vld [vmem:[%s4119 + $0x8] sm:$0xff]
    %v4122 = vld [vmem:[%s4119 + $0x10] sm:$0xff]
    %v4123 = vld [vmem:[%s4119 + $0x18] sm:$0xff]
    %v4124 = vld [vmem:[%s10 + $0x1c] sm:$0x1]
    %v4125 = vlaneseq
    %v4126 = vshrl.u32 %v4125, 7
    %v4127 = vsub.s32 0, %v4126
    %v4128 = vrot.slane %v4124, %v4127
    %v4130 = vsel %vm953, %v4118, 0
    %4132 = vmatprep.subr.mxu0 0.0
    %4133 = vmatpush1.msra.mxu0 %v4120
    %4134 = vmatprep.subr.mxu0 0.0
    %4135 = vmatpush1.msra.mxu0 %v4121
    %4136 = vmatprep.subr.mxu0 0.0
    %4137 = vmatpush1.msra.mxu0 %v4122
    %4138 = vmatprep.subr.mxu0 0.0
    %4139 = vmatpush1.msra.mxu0 %v4123
    %4140 = vmatprep.subr.mxu0 0.0
    %4141 = vmatpush1.msra.mxu0 0.0
    %4142 = vmatprep.subr.mxu0 0.0
    %4143 = vmatpush1.msra.mxu0 0.0
    %4144 = vmatprep.subr.mxu0 0.0
    %4145 = vmatpush1.msra.mxu0 0.0
    %4146 = vmatprep.subr.mxu0 0.0
    %4147 = vmatpush1.msra.mxu0 0.0
    %4148 = vmatprep.subr.mxu0 0.0
    %4149 = vmatpush1.msra.mxu0 0.0
    %4150 = vmatprep.subr.mxu0 0.0
    %4151 = vmatpush1.msra.mxu0 0.0
    %4152 = vmatprep.subr.mxu0 0.0
    %4153 = vmatpush1.msra.mxu0 0.0
    %4154 = vmatprep.subr.mxu0 0.0
    %4155 = vmatpush1.msra.mxu0 0.0
    %4156 = vmatprep.subr.mxu0 0.0
    %4157 = vmatpush1.msra.mxu0 0.0
    %4158 = vmatprep.subr.mxu0 0.0
    %4159 = vmatpush1.msra.mxu0 0.0
    %4160 = vmatprep.subr.mxu0 0.0
    %4161 = vmatpush1.msra.mxu0 0.0
    %4162 = vmatprep.subr.mxu0 0.0
    %4163 = vmatpush1.msra.mxu0 0.0
    %4164 = vmatprep.subr.mxu0 0.0
    %4165 = vmatpush1.msra.mxu0 0.0
    %4166 = vmatprep.subr.mxu0 0.0
    %4167 = vmatpush1.msra.mxu0 0.0
    %4168 = vmatprep.subr.mxu0 0.0
    %4169 = vmatpush1.msra.mxu0 0.0
    %4170 = vmatprep.subr.mxu0 0.0
    %4171 = vmatpush1.msra.mxu0 0.0
    %4172 = vmatprep.subr.mxu0 0.0
    %4173 = vmatpush1.msra.mxu0 0.0
    %4174 = vmatprep.subr.mxu0 0.0
    %4175 = vmatpush1.msra.mxu0 0.0
    %4176 = vmatprep.subr.mxu0 0.0
    %4177 = vmatpush1.msra.mxu0 0.0
    %4178 = vmatprep.subr.mxu0 0.0
    %4179 = vmatpush1.msra.mxu0 0.0
    %4180 = vmatprep.subr.mxu0 0.0
    %4181 = vmatpush1.msra.mxu0 0.0
    %4182 = vmatprep.subr.mxu0 0.0
    %4183 = vmatpush1.msra.mxu0 0.0
    %4184 = vmatprep.subr.mxu0 0.0
    %4185 = vmatpush1.msra.mxu0 0.0
    %4186 = vmatprep.subr.mxu0 0.0
    %4187 = vmatpush1.msra.mxu0 0.0
    %4188 = vmatprep.subr.mxu0 0.0
    %4189 = vmatpush1.msra.mxu0 0.0
    %4190 = vmatprep.subr.mxu0 0.0
    %4191 = vmatpush1.msra.mxu0 0.0
    %4192 = vmatprep.subr.mxu0 0.0
    %4193 = vmatpush1.msra.mxu0 0.0
    %4194 = vmatprep.subr.mxu0 0.0
    %4195 = vmatpush1.msra.mxu0 0.0
    %4196 = vmatprep.mubr.f32.mxu0 0.0
    %4197 = vmatmul.mubr.f32.gmra.mrb[0].mxu0 %v4130
    %v4198 = vpop.f32.mrb[0].mxu0
    %v4199 = vadd.f32 %v4128, %v4198
    %v4200 = vpop.f32.mrb[0].mxu0
    %4201 = vdwg.mxu0
    %v4204 = vunpack.c.l.s4 1966171168
    %v4205 = vunpack.c.0.s8 %v4204
    %v4206 = vlaneseq
    %v4207 = vshrl.u32 %v4206, 7
    %v4208 = vsub.s32 %v4205, %v4207
    %v4209 = vrot.slane %v4199, %v4208
    %v4210 = vcombine.high %v4209, %v4209
    %v4212 = vunpack.c.l.s4 1966171168
    %v4213 = vunpack.c.0.s8 %v4212
    %v4214 = vlaneseq
    %v4215 = vshrl.u32 %v4214, 7
    %v4216 = vsub.s32 %v4213, %v4215
    %v4217 = vrot.slane %v4209, %v4216
    %v4219 = vunpack.c.l.s4 1966171168
    %v4220 = vunpack.c.0.s8 %v4219
    %v4221 = vlaneseq
    %v4222 = vshrl.u32 %v4221, 7
    %v4223 = vsub.s32 %v4220, %v4222
    %v4224 = vrot.slane %v4210, %v4223
    %s4225 = scalar_lea.vmem %s8, 128
    %v4226 = vld [vmem:[%s4225] sm:$0xff]
    %v4227 = vld [vmem:[%s4225 + $0x8] sm:$0xff]
    %v4228 = vld [vmem:[%s4225 + $0x10] sm:$0xff]
    %v4229 = vld [vmem:[%s4225 + $0x18] sm:$0xff]
    %v4231 = vsel %vm953, %v3919, 0
    %v4234 = vsel %vm953, %v3920, 0
    %4236 = vmatprep.subr.mxu0 0.0
    %4237 = vmatpush1.msra.mxu0 %v4226
    %4238 = vmatprep.subr.mxu0 0.0
    %4239 = vmatpush1.msra.mxu0 %v4227
    %4240 = vmatprep.subr.mxu0 0.0
    %4241 = vmatpush1.msra.mxu0 %v4228
    %4242 = vmatprep.subr.mxu0 0.0
    %4243 = vmatpush1.msra.mxu0 %v4229
    %4244 = vmatprep.subr.mxu0 0.0
    %4245 = vmatpush1.msra.mxu0 0.0
    %4246 = vmatprep.subr.mxu0 0.0
    %4247 = vmatpush1.msra.mxu0 0.0
    %4248 = vmatprep.subr.mxu0 0.0
    %4249 = vmatpush1.msra.mxu0 0.0
    %4250 = vmatprep.subr.mxu0 0.0
    %4251 = vmatpush1.msra.mxu0 0.0
    %4252 = vmatprep.subr.mxu0 0.0
    %4253 = vmatpush1.msra.mxu0 0.0
    %4254 = vmatprep.subr.mxu0 0.0
    %4255 = vmatpush1.msra.mxu0 0.0
    %4256 = vmatprep.subr.mxu0 0.0
    %4257 = vmatpush1.msra.mxu0 0.0
    %4258 = vmatprep.subr.mxu0 0.0
    %4259 = vmatpush1.msra.mxu0 0.0
    %4260 = vmatprep.subr.mxu0 0.0
    %4261 = vmatpush1.msra.mxu0 0.0
    %4262 = vmatprep.subr.mxu0 0.0
    %4263 = vmatpush1.msra.mxu0 0.0
    %4264 = vmatprep.subr.mxu0 0.0
    %4265 = vmatpush1.msra.mxu0 0.0
    %4266 = vmatprep.subr.mxu0 0.0
    %4267 = vmatpush1.msra.mxu0 0.0
    %4268 = vmatprep.subr.mxu0 0.0
    %4269 = vmatpush1.msra.mxu0 0.0
    %4270 = vmatprep.subr.mxu0 0.0
    %4271 = vmatpush1.msra.mxu0 0.0
    %4272 = vmatprep.subr.mxu0 0.0
    %4273 = vmatpush1.msra.mxu0 0.0
    %4274 = vmatprep.subr.mxu0 0.0
    %4275 = vmatpush1.msra.mxu0 0.0
    %4276 = vmatprep.subr.mxu0 0.0
    %4277 = vmatpush1.msra.mxu0 0.0
    %4278 = vmatprep.subr.mxu0 0.0
    %4279 = vmatpush1.msra.mxu0 0.0
    %4280 = vmatprep.subr.mxu0 0.0
    %4281 = vmatpush1.msra.mxu0 0.0
    %4282 = vmatprep.subr.mxu0 0.0
    %4283 = vmatpush1.msra.mxu0 0.0
    %4284 = vmatprep.subr.mxu0 0.0
    %4285 = vmatpush1.msra.mxu0 0.0
    %4286 = vmatprep.subr.mxu0 0.0
    %4287 = vmatpush1.msra.mxu0 0.0
    %4288 = vmatprep.subr.mxu0 0.0
    %4289 = vmatpush1.msra.mxu0 0.0
    %4290 = vmatprep.subr.mxu0 0.0
    %4291 = vmatpush1.msra.mxu0 0.0
    %4292 = vmatprep.subr.mxu0 0.0
    %4293 = vmatpush1.msra.mxu0 0.0
    %4294 = vmatprep.subr.mxu0 0.0
    %4295 = vmatpush1.msra.mxu0 0.0
    %4296 = vmatprep.subr.mxu0 0.0
    %4297 = vmatpush1.msra.mxu0 0.0
    %4298 = vmatprep.subr.mxu0 0.0
    %4299 = vmatpush1.msra.mxu0 0.0
    %4300 = vmatprep.mubr.f32.mxu0 0.0
    %4301 = vmatmul.mubr.f32.gmra.mrb[0].mxu0 %v4231
    %v4302 = vpop.f32.mrb[0].mxu0
    %v4303 = vadd.f32 0.0, %v4302
    %v4304 = vpop.f32.mrb[0].mxu0
    %4305 = vmatprep.mubr.f32.mxu0 0.0
    %4306 = vmatmul.mubr.f32.gmra.mrb[0].mxu0 %v4234
    %v4307 = vpop.f32.mrb[0].mxu0
    %v4308 = vadd.f32 0.0, %v4307
    %v4309 = vpop.f32.mrb[0].mxu0
    %4310 = vdwg.mxu0
    %v4311 = vld [vmem:[%s10 + $0x1d] sm:$0x1]
    %v4312 = vlaneseq
    %v4313 = vshrl.u32 %v4312, 7
    %v4314 = vsub.s32 0, %v4313
    %v4315 = vrot.slane %v4311, %v4314
    %v4316 = vadd.f32 %v4303, %v4315
    %v4317 = vadd.f32 %v4308, %v4315
    %v4318 = vld [vmem:[%s10 + $0x1e] sm:$0x1]
    %v4319 = vlaneseq
    %v4320 = vshrl.u32 %v4319, 7
    %v4321 = vsub.s32 0, %v4320
    %v4322 = vrot.slane %v4318, %v4321
    %4324 = vrot.lane.b32.xlu0 %v4322, 32
    %v4325 = vpop.permute.xlu0 %4324
    %v4327 = vadd.f32 %v4303, %v4325
    %v4328 = vadd.f32 %v4308, %v4325
    %s4329 = scalar_lea.vmem %s7, 320
    %v4330 = vld [vmem:[%s4329] sm:$0xff]
    %v4331 = vld [vmem:[%s4329 + $0x8] sm:$0xff]
    %v4332 = vld [vmem:[%s4329 + $0x10] sm:$0xff]
    %v4333 = vld [vmem:[%s4329 + $0x18] sm:$0xff]
    %v4334 = vld [vmem:[%s10 + $0x1f] sm:$0x1]
    %v4335 = vsel %vm104, %v4217, 0
    %v4338 = vsel %vm104, %v4316, 0
    %4340 = vmatprep.subr.mxu0 0.0
    %4341 = vmatpush1.xpose.msra.mxu0 %v4338
    %4342 = vmatprep.subr.mxu0 0.0
    %4343 = vmatpush1.xpose.msra.mxu0 0.0
    %4344 = vmatprep.subr.mxu0 0.0
    %4345 = vmatpush1.xpose.msra.mxu0 0.0
    %4346 = vmatprep.subr.mxu0 0.0
    %4347 = vmatpush1.xpose.msra.mxu0 0.0
    %4348 = vmatprep.subr.mxu0 0.0
    %4349 = vmatpush1.xpose.msra.mxu0 0.0
    %4350 = vmatprep.subr.mxu0 0.0
    %4351 = vmatpush1.xpose.msra.mxu0 0.0
    %4352 = vmatprep.subr.mxu0 0.0
    %4353 = vmatpush1.xpose.msra.mxu0 0.0
    %4354 = vmatprep.subr.mxu0 0.0
    %4355 = vmatpush1.xpose.msra.mxu0 0.0
    %4356 = vmatprep.subr.mxu0 0.0
    %4357 = vmatpush1.xpose.msra.mxu0 0.0
    %4358 = vmatprep.subr.mxu0 0.0
    %4359 = vmatpush1.xpose.msra.mxu0 0.0
    %4360 = vmatprep.subr.mxu0 0.0
    %4361 = vmatpush1.xpose.msra.mxu0 0.0
    %4362 = vmatprep.subr.mxu0 0.0
    %4363 = vmatpush1.xpose.msra.mxu0 0.0
    %4364 = vmatprep.subr.mxu0 0.0
    %4365 = vmatpush1.xpose.msra.mxu0 0.0
    %4366 = vmatprep.subr.mxu0 0.0
    %4367 = vmatpush1.xpose.msra.mxu0 0.0
    %4368 = vmatprep.subr.mxu0 0.0
    %4369 = vmatpush1.xpose.msra.mxu0 0.0
    %4370 = vmatprep.subr.mxu0 0.0
    %4371 = vmatpush1.xpose.msra.mxu0 0.0
    %4372 = vmatprep.subr.mxu0 0.0
    %4373 = vmatpush1.xpose.msra.mxu0 0.0
    %4374 = vmatprep.subr.mxu0 0.0
    %4375 = vmatpush1.xpose.msra.mxu0 0.0
    %4376 = vmatprep.subr.mxu0 0.0
    %4377 = vmatpush1.xpose.msra.mxu0 0.0
    %4378 = vmatprep.subr.mxu0 0.0
    %4379 = vmatpush1.xpose.msra.mxu0 0.0
    %4380 = vmatprep.subr.mxu0 0.0
    %4381 = vmatpush1.xpose.msra.mxu0 0.0
    %4382 = vmatprep.subr.mxu0 0.0
    %4383 = vmatpush1.xpose.msra.mxu0 0.0
    %4384 = vmatprep.subr.mxu0 0.0
    %4385 = vmatpush1.xpose.msra.mxu0 0.0
    %4386 = vmatprep.subr.mxu0 0.0
    %4387 = vmatpush1.xpose.msra.mxu0 0.0
    %4388 = vmatprep.subr.mxu0 0.0
    %4389 = vmatpush1.xpose.msra.mxu0 0.0
    %4390 = vmatprep.subr.mxu0 0.0
    %4391 = vmatpush1.xpose.msra.mxu0 0.0
    %4392 = vmatprep.subr.mxu0 0.0
    %4393 = vmatpush1.xpose.msra.mxu0 0.0
    %4394 = vmatprep.subr.mxu0 0.0
    %4395 = vmatpush1.xpose.msra.mxu0 0.0
    %4396 = vmatprep.subr.mxu0 0.0
    %4397 = vmatpush1.xpose.msra.mxu0 0.0
    %4398 = vmatprep.subr.mxu0 0.0
    %4399 = vmatpush1.xpose.msra.mxu0 0.0
    %4400 = vmatprep.subr.mxu0 0.0
    %4401 = vmatpush1.xpose.msra.mxu0 0.0
    %4402 = vmatprep.subr.mxu0 0.0
    %4403 = vmatpush1.xpose.msra.mxu0 0.0
    %4404 = vmatprep.mubr.f32.mxu0 0.0
    %4405 = vmatmul.mubr.f32.gmra.mrb[0].mxu0 %v4335
    %v4406 = vpop.f32.mrb[0].mxu0
    %v4407 = vadd.f32 0.0, %v4406
    %v4408 = vpop.f32.mrb[0].mxu0
    %4409 = vdwg.mxu0
    %v4410 = vsel %vm104, %v4224, 0
    %v4413 = vsel %vm104, %v4317, 0
    %4415 = vmatprep.subr.mxu0 0.0
    %4416 = vmatpush1.xpose.msra.mxu0 %v4413
    %4417 = vmatprep.subr.mxu0 0.0
    %4418 = vmatpush1.xpose.msra.mxu0 0.0
    %4419 = vmatprep.subr.mxu0 0.0
    %4420 = vmatpush1.xpose.msra.mxu0 0.0
    %4421 = vmatprep.subr.mxu0 0.0
    %4422 = vmatpush1.xpose.msra.mxu0 0.0
    %4423 = vmatprep.subr.mxu0 0.0
    %4424 = vmatpush1.xpose.msra.mxu0 0.0
    %4425 = vmatprep.subr.mxu0 0.0
    %4426 = vmatpush1.xpose.msra.mxu0 0.0
    %4427 = vmatprep.subr.mxu0 0.0
    %4428 = vmatpush1.xpose.msra.mxu0 0.0
    %4429 = vmatprep.subr.mxu0 0.0
    %4430 = vmatpush1.xpose.msra.mxu0 0.0
    %4431 = vmatprep.subr.mxu0 0.0
    %4432 = vmatpush1.xpose.msra.mxu0 0.0
    %4433 = vmatprep.subr.mxu0 0.0
    %4434 = vmatpush1.xpose.msra.mxu0 0.0
    %4435 = vmatprep.subr.mxu0 0.0
    %4436 = vmatpush1.xpose.msra.mxu0 0.0
    %4437 = vmatprep.subr.mxu0 0.0
    %4438 = vmatpush1.xpose.msra.mxu0 0.0
    %4439 = vmatprep.subr.mxu0 0.0
    %4440 = vmatpush1.xpose.msra.mxu0 0.0
    %4441 = vmatprep.subr.mxu0 0.0
    %4442 = vmatpush1.xpose.msra.mxu0 0.0
    %4443 = vmatprep.subr.mxu0 0.0
    %4444 = vmatpush1.xpose.msra.mxu0 0.0
    %4445 = vmatprep.subr.mxu0 0.0
    %4446 = vmatpush1.xpose.msra.mxu0 0.0
    %4447 = vmatprep.subr.mxu0 0.0
    %4448 = vmatpush1.xpose.msra.mxu0 0.0
    %4449 = vmatprep.subr.mxu0 0.0
    %4450 = vmatpush1.xpose.msra.mxu0 0.0
    %4451 = vmatprep.subr.mxu0 0.0
    %4452 = vmatpush1.xpose.msra.mxu0 0.0
    %4453 = vmatprep.subr.mxu0 0.0
    %4454 = vmatpush1.xpose.msra.mxu0 0.0
    %4455 = vmatprep.subr.mxu0 0.0
    %4456 = vmatpush1.xpose.msra.mxu0 0.0
    %4457 = vmatprep.subr.mxu0 0.0
    %4458 = vmatpush1.xpose.msra.mxu0 0.0
    %4459 = vmatprep.subr.mxu0 0.0
    %4460 = vmatpush1.xpose.msra.mxu0 0.0
    %4461 = vmatprep.subr.mxu0 0.0
    %4462 = vmatpush1.xpose.msra.mxu0 0.0
    %4463 = vmatprep.subr.mxu0 0.0
    %4464 = vmatpush1.xpose.msra.mxu0 0.0
    %4465 = vmatprep.subr.mxu0 0.0
    %4466 = vmatpush1.xpose.msra.mxu0 0.0
    %4467 = vmatprep.subr.mxu0 0.0
    %4468 = vmatpush1.xpose.msra.mxu0 0.0
    %4469 = vmatprep.subr.mxu0 0.0
    %4470 = vmatpush1.xpose.msra.mxu0 0.0
    %4471 = vmatprep.subr.mxu0 0.0
    %4472 = vmatpush1.xpose.msra.mxu0 0.0
    %4473 = vmatprep.subr.mxu0 0.0
    %4474 = vmatpush1.xpose.msra.mxu0 0.0
    %4475 = vmatprep.subr.mxu0 0.0
    %4476 = vmatpush1.xpose.msra.mxu0 0.0
    %4477 = vmatprep.subr.mxu0 0.0
    %4478 = vmatpush1.xpose.msra.mxu0 0.0
    %4479 = vmatprep.mubr.f32.mxu0 0.0
    %4480 = vmatmul.mubr.f32.gmra.mrb[0].mxu0 %v4410
    %v4481 = vpop.f32.mrb[0].mxu0
    %v4482 = vadd.f32 0.0, %v4481
    %v4483 = vpop.f32.mrb[0].mxu0
    %4484 = vdwg.mxu0
    %v4485 = vmul.f32 %v4407, 0.25
    %v4486 = vmul.f32 %v4482, 0.25
    %v4487 = vadd.f32 %v4485, %v1051
    %v4488 = vadd.f32 %v4486, %v1058
    %vm4489 = vcmask 57344
    %v4490 = vsel %vm4489, %v4487, -inf
    %4491 = vmax.xlane.f32.xlu0 %v4490
    %v4492 = vpop.xlane.xlu0 %4491
    %v4493 = vsel %vm4489, %v4488, -inf
    %4494 = vmax.xlane.f32.xlu0 %v4493
    %v4495 = vpop.xlane.xlu0 %4494
    %v4496 = vsub.f32 %v4487, %v4492
    %v4497 = vsub.f32 %v4488, %v4495
    %v4498 = vmul.f32 %v4496, 1.442695
    %v4499 = vpow.pop %v4498
    %v4500 = vmul.f32 %v4497, 1.442695
    %v4501 = vpow.pop %v4500
    %v4502 = vsel %vm4489, %v4499, 0.0
    %4503 = vadd.xlane.f32.xlu0 %v4502
    %v4504 = vpop.xlane.xlu0 %4503
    %v4505 = vsel %vm4489, %v4501, 0.0
    %4506 = vadd.xlane.f32.xlu0 %v4505
    %v4507 = vpop.xlane.xlu0 %4506
    %v4508 = vrcp.pop %v4504
    %v4509 = vmul.f32 %v4499, %v4508
    %v4510 = vrcp.pop %v4507
    %v4511 = vmul.f32 %v4501, %v4510
    %4513 = vrot.lane.b32.xlu0 %v4327, 96
    %v4514 = vpop.permute.xlu0 %4513
    %v4517 = vsel %vm1842, %v4509, 0
    %4519 = vmatprep.subr.mxu0 0.0
    %4520 = vmatpush1.msra.mxu0 %v4514
    %4521 = vmatprep.subr.mxu0 0.0
    %4522 = vmatpush1.msra.mxu0 0.0
    %4523 = vmatprep.subr.mxu0 0.0
    %4524 = vmatpush1.msra.mxu0 0.0
    %4525 = vmatprep.subr.mxu0 0.0
    %4526 = vmatpush1.msra.mxu0 0.0
    %4527 = vmatprep.subr.mxu0 0.0
    %4528 = vmatpush1.msra.mxu0 0.0
    %4529 = vmatprep.subr.mxu0 0.0
    %4530 = vmatpush1.msra.mxu0 0.0
    %4531 = vmatprep.subr.mxu0 0.0
    %4532 = vmatpush1.msra.mxu0 0.0
    %4533 = vmatprep.subr.mxu0 0.0
    %4534 = vmatpush1.msra.mxu0 0.0
    %4535 = vmatprep.subr.mxu0 0.0
    %4536 = vmatpush1.msra.mxu0 0.0
    %4537 = vmatprep.subr.mxu0 0.0
    %4538 = vmatpush1.msra.mxu0 0.0
    %4539 = vmatprep.subr.mxu0 0.0
    %4540 = vmatpush1.msra.mxu0 0.0
    %4541 = vmatprep.subr.mxu0 0.0
    %4542 = vmatpush1.msra.mxu0 0.0
    %4543 = vmatprep.subr.mxu0 0.0
    %4544 = vmatpush1.msra.mxu0 0.0
    %4545 = vmatprep.subr.mxu0 0.0
    %4546 = vmatpush1.msra.mxu0 0.0
    %4547 = vmatprep.subr.mxu0 0.0
    %4548 = vmatpush1.msra.mxu0 0.0
    %4549 = vmatprep.subr.mxu0 0.0
    %4550 = vmatpush1.msra.mxu0 0.0
    %4551 = vmatprep.subr.mxu0 0.0
    %4552 = vmatpush1.msra.mxu0 0.0
    %4553 = vmatprep.subr.mxu0 0.0
    %4554 = vmatpush1.msra.mxu0 0.0
    %4555 = vmatprep.subr.mxu0 0.0
    %4556 = vmatpush1.msra.mxu0 0.0
    %4557 = vmatprep.subr.mxu0 0.0
    %4558 = vmatpush1.msra.mxu0 0.0
    %4559 = vmatprep.subr.mxu0 0.0
    %4560 = vmatpush1.msra.mxu0 0.0
    %4561 = vmatprep.subr.mxu0 0.0
    %4562 = vmatpush1.msra.mxu0 0.0
    %4563 = vmatprep.subr.mxu0 0.0
    %4564 = vmatpush1.msra.mxu0 0.0
    %4565 = vmatprep.subr.mxu0 0.0
    %4566 = vmatpush1.msra.mxu0 0.0
    %4567 = vmatprep.subr.mxu0 0.0
    %4568 = vmatpush1.msra.mxu0 0.0
    %4569 = vmatprep.subr.mxu0 0.0
    %4570 = vmatpush1.msra.mxu0 0.0
    %4571 = vmatprep.subr.mxu0 0.0
    %4572 = vmatpush1.msra.mxu0 0.0
    %4573 = vmatprep.subr.mxu0 0.0
    %4574 = vmatpush1.msra.mxu0 0.0
    %4575 = vmatprep.subr.mxu0 0.0
    %4576 = vmatpush1.msra.mxu0 0.0
    %4577 = vmatprep.subr.mxu0 0.0
    %4578 = vmatpush1.msra.mxu0 0.0
    %4579 = vmatprep.subr.mxu0 0.0
    %4580 = vmatpush1.msra.mxu0 0.0
    %4581 = vmatprep.subr.mxu0 0.0
    %4582 = vmatpush1.msra.mxu0 0.0
    %4583 = vmatprep.mubr.f32.mxu0 0.0
    %4584 = vmatmul.mubr.f32.gmra.mrb[0].mxu0 %v4517
    %v4585 = vpop.f32.mrb[0].mxu0
    %v4586 = vadd.f32 0.0, %v4585
    %v4587 = vpop.f32.mrb[0].mxu0
    %4588 = vdwg.mxu0
    %4590 = vrot.lane.b32.xlu0 %v4328, 96
    %v4591 = vpop.permute.xlu0 %4590
    %v4594 = vsel %vm1842, %v4511, 0
    %4596 = vmatprep.subr.mxu0 0.0
    %4597 = vmatpush1.msra.mxu0 %v4591
    %4598 = vmatprep.subr.mxu0 0.0
    %4599 = vmatpush1.msra.mxu0 0.0
    %4600 = vmatprep.subr.mxu0 0.0
    %4601 = vmatpush1.msra.mxu0 0.0
    %4602 = vmatprep.subr.mxu0 0.0
    %4603 = vmatpush1.msra.mxu0 0.0
    %4604 = vmatprep.subr.mxu0 0.0
    %4605 = vmatpush1.msra.mxu0 0.0
    %4606 = vmatprep.subr.mxu0 0.0
    %4607 = vmatpush1.msra.mxu0 0.0
    %4608 = vmatprep.subr.mxu0 0.0
    %4609 = vmatpush1.msra.mxu0 0.0
    %4610 = vmatprep.subr.mxu0 0.0
    %4611 = vmatpush1.msra.mxu0 0.0
    %4612 = vmatprep.subr.mxu0 0.0
    %4613 = vmatpush1.msra.mxu0 0.0
    %4614 = vmatprep.subr.mxu0 0.0
    %4615 = vmatpush1.msra.mxu0 0.0
    %4616 = vmatprep.subr.mxu0 0.0
    %4617 = vmatpush1.msra.mxu0 0.0
    %4618 = vmatprep.subr.mxu0 0.0
    %4619 = vmatpush1.msra.mxu0 0.0
    %4620 = vmatprep.subr.mxu0 0.0
    %4621 = vmatpush1.msra.mxu0 0.0
    %4622 = vmatprep.subr.mxu0 0.0
    %4623 = vmatpush1.msra.mxu0 0.0
    %4624 = vmatprep.subr.mxu0 0.0
    %4625 = vmatpush1.msra.mxu0 0.0
    %4626 = vmatprep.subr.mxu0 0.0
    %4627 = vmatpush1.msra.mxu0 0.0
    %4628 = vmatprep.subr.mxu0 0.0
    %4629 = vmatpush1.msra.mxu0 0.0
    %4630 = vmatprep.subr.mxu0 0.0
    %4631 = vmatpush1.msra.mxu0 0.0
    %4632 = vmatprep.subr.mxu0 0.0
    %4633 = vmatpush1.msra.mxu0 0.0
    %4634 = vmatprep.subr.mxu0 0.0
    %4635 = vmatpush1.msra.mxu0 0.0
    %4636 = vmatprep.subr.mxu0 0.0
    %4637 = vmatpush1.msra.mxu0 0.0
    %4638 = vmatprep.subr.mxu0 0.0
    %4639 = vmatpush1.msra.mxu0 0.0
    %4640 = vmatprep.subr.mxu0 0.0
    %4641 = vmatpush1.msra.mxu0 0.0
    %4642 = vmatprep.subr.mxu0 0.0
    %4643 = vmatpush1.msra.mxu0 0.0
    %4644 = vmatprep.subr.mxu0 0.0
    %4645 = vmatpush1.msra.mxu0 0.0
    %4646 = vmatprep.subr.mxu0 0.0
    %4647 = vmatpush1.msra.mxu0 0.0
    %4648 = vmatprep.subr.mxu0 0.0
    %4649 = vmatpush1.msra.mxu0 0.0
    %4650 = vmatprep.subr.mxu0 0.0
    %4651 = vmatpush1.msra.mxu0 0.0
    %4652 = vmatprep.subr.mxu0 0.0
    %4653 = vmatpush1.msra.mxu0 0.0
    %4654 = vmatprep.subr.mxu0 0.0
    %4655 = vmatpush1.msra.mxu0 0.0
    %4656 = vmatprep.subr.mxu0 0.0
    %4657 = vmatpush1.msra.mxu0 0.0
    %4658 = vmatprep.subr.mxu0 0.0
    %4659 = vmatpush1.msra.mxu0 0.0
    %4660 = vmatprep.mubr.f32.mxu0 0.0
    %4661 = vmatmul.mubr.f32.gmra.mrb[0].mxu0 %v4594
    %v4662 = vpop.f32.mrb[0].mxu0
    %v4663 = vadd.f32 0.0, %v4662
    %v4664 = vpop.f32.mrb[0].mxu0
    %4665 = vdwg.mxu0
    %v4666 = vlaneseq
    %v4667 = vshrl.u32 %v4666, 7
    %v4668 = vsub.s32 0, %v4667
    %v4669 = vrot.slane %v4217, %v4668
    %4670 = vrot.lane.b32.xlu0 %v4669, 112
    %v4671 = vpop.permute.xlu0 %4670
    %4672 = vrot.lane.b32.xlu0 %v4316, 112
    %v4673 = vpop.permute.xlu0 %4672
    %v4674 = vsel %vm104, %v4671, 0
    %v4676 = vsel %vm104, %v4673, 0
    %4678 = vmatprep.subr.mxu0 0.0
    %4679 = vmatpush1.xpose.msra.mxu0 %v4676
    %4680 = vmatprep.subr.mxu0 0.0
    %4681 = vmatpush1.xpose.msra.mxu0 0.0
    %4682 = vmatprep.subr.mxu0 0.0
    %4683 = vmatpush1.xpose.msra.mxu0 0.0
    %4684 = vmatprep.subr.mxu0 0.0
    %4685 = vmatpush1.xpose.msra.mxu0 0.0
    %4686 = vmatprep.subr.mxu0 0.0
    %4687 = vmatpush1.xpose.msra.mxu0 0.0
    %4688 = vmatprep.subr.mxu0 0.0
    %4689 = vmatpush1.xpose.msra.mxu0 0.0
    %4690 = vmatprep.subr.mxu0 0.0
    %4691 = vmatpush1.xpose.msra.mxu0 0.0
    %4692 = vmatprep.subr.mxu0 0.0
    %4693 = vmatpush1.xpose.msra.mxu0 0.0
    %4694 = vmatprep.subr.mxu0 0.0
    %4695 = vmatpush1.xpose.msra.mxu0 0.0
    %4696 = vmatprep.subr.mxu0 0.0
    %4697 = vmatpush1.xpose.msra.mxu0 0.0
    %4698 = vmatprep.subr.mxu0 0.0
    %4699 = vmatpush1.xpose.msra.mxu0 0.0
    %4700 = vmatprep.subr.mxu0 0.0
    %4701 = vmatpush1.xpose.msra.mxu0 0.0
    %4702 = vmatprep.subr.mxu0 0.0
    %4703 = vmatpush1.xpose.msra.mxu0 0.0
    %4704 = vmatprep.subr.mxu0 0.0
    %4705 = vmatpush1.xpose.msra.mxu0 0.0
    %4706 = vmatprep.subr.mxu0 0.0
    %4707 = vmatpush1.xpose.msra.mxu0 0.0
    %4708 = vmatprep.subr.mxu0 0.0
    %4709 = vmatpush1.xpose.msra.mxu0 0.0
    %4710 = vmatprep.subr.mxu0 0.0
    %4711 = vmatpush1.xpose.msra.mxu0 0.0
    %4712 = vmatprep.subr.mxu0 0.0
    %4713 = vmatpush1.xpose.msra.mxu0 0.0
    %4714 = vmatprep.subr.mxu0 0.0
    %4715 = vmatpush1.xpose.msra.mxu0 0.0
    %4716 = vmatprep.subr.mxu0 0.0
    %4717 = vmatpush1.xpose.msra.mxu0 0.0
    %4718 = vmatprep.subr.mxu0 0.0
    %4719 = vmatpush1.xpose.msra.mxu0 0.0
    %4720 = vmatprep.subr.mxu0 0.0
    %4721 = vmatpush1.xpose.msra.mxu0 0.0
    %4722 = vmatprep.subr.mxu0 0.0
    %4723 = vmatpush1.xpose.msra.mxu0 0.0
    %4724 = vmatprep.subr.mxu0 0.0
    %4725 = vmatpush1.xpose.msra.mxu0 0.0
    %4726 = vmatprep.subr.mxu0 0.0
    %4727 = vmatpush1.xpose.msra.mxu0 0.0
    %4728 = vmatprep.subr.mxu0 0.0
    %4729 = vmatpush1.xpose.msra.mxu0 0.0
    %4730 = vmatprep.subr.mxu0 0.0
    %4731 = vmatpush1.xpose.msra.mxu0 0.0
    %4732 = vmatprep.subr.mxu0 0.0
    %4733 = vmatpush1.xpose.msra.mxu0 0.0
    %4734 = vmatprep.subr.mxu0 0.0
    %4735 = vmatpush1.xpose.msra.mxu0 0.0
    %4736 = vmatprep.subr.mxu0 0.0
    %4737 = vmatpush1.xpose.msra.mxu0 0.0
    %4738 = vmatprep.subr.mxu0 0.0
    %4739 = vmatpush1.xpose.msra.mxu0 0.0
    %4740 = vmatprep.subr.mxu0 0.0
    %4741 = vmatpush1.xpose.msra.mxu0 0.0
    %4742 = vmatprep.mubr.f32.mxu0 0.0
    %4743 = vmatmul.mubr.f32.gmra.mrb[0].mxu0 %v4674
    %v4744 = vpop.f32.mrb[0].mxu0
    %v4745 = vadd.f32 0.0, %v4744
    %v4746 = vpop.f32.mrb[0].mxu0
    %4747 = vdwg.mxu0
    %v4748 = vlaneseq
    %v4749 = vshrl.u32 %v4748, 7
    %v4750 = vsub.s32 0, %v4749
    %v4751 = vrot.slane %v4224, %v4750
    %4752 = vrot.lane.b32.xlu0 %v4751, 112
    %v4753 = vpop.permute.xlu0 %4752
    %4754 = vrot.lane.b32.xlu0 %v4317, 112
    %v4755 = vpop.permute.xlu0 %4754
    %v4756 = vsel %vm104, %v4753, 0
    %v4758 = vsel %vm104, %v4755, 0
    %4760 = vmatprep.subr.mxu0 0.0
    %4761 = vmatpush1.xpose.msra.mxu0 %v4758
    %4762 = vmatprep.subr.mxu0 0.0
    %4763 = vmatpush1.xpose.msra.mxu0 0.0
    %4764 = vmatprep.subr.mxu0 0.0
    %4765 = vmatpush1.xpose.msra.mxu0 0.0
    %4766 = vmatprep.subr.mxu0 0.0
    %4767 = vmatpush1.xpose.msra.mxu0 0.0
    %4768 = vmatprep.subr.mxu0 0.0
    %4769 = vmatpush1.xpose.msra.mxu0 0.0
    %4770 = vmatprep.subr.mxu0 0.0
    %4771 = vmatpush1.xpose.msra.mxu0 0.0
    %4772 = vmatprep.subr.mxu0 0.0
    %4773 = vmatpush1.xpose.msra.mxu0 0.0
    %4774 = vmatprep.subr.mxu0 0.0
    %4775 = vmatpush1.xpose.msra.mxu0 0.0
    %4776 = vmatprep.subr.mxu0 0.0
    %4777 = vmatpush1.xpose.msra.mxu0 0.0
    %4778 = vmatprep.subr.mxu0 0.0
    %4779 = vmatpush1.xpose.msra.mxu0 0.0
    %4780 = vmatprep.subr.mxu0 0.0
    %4781 = vmatpush1.xpose.msra.mxu0 0.0
    %4782 = vmatprep.subr.mxu0 0.0
    %4783 = vmatpush1.xpose.msra.mxu0 0.0
    %4784 = vmatprep.subr.mxu0 0.0
    %4785 = vmatpush1.xpose.msra.mxu0 0.0
    %4786 = vmatprep.subr.mxu0 0.0
    %4787 = vmatpush1.xpose.msra.mxu0 0.0
    %4788 = vmatprep.subr.mxu0 0.0
    %4789 = vmatpush1.xpose.msra.mxu0 0.0
    %4790 = vmatprep.subr.mxu0 0.0
    %4791 = vmatpush1.xpose.msra.mxu0 0.0
    %4792 = vmatprep.subr.mxu0 0.0
    %4793 = vmatpush1.xpose.msra.mxu0 0.0
    %4794 = vmatprep.subr.mxu0 0.0
    %4795 = vmatpush1.xpose.msra.mxu0 0.0
    %4796 = vmatprep.subr.mxu0 0.0
    %4797 = vmatpush1.xpose.msra.mxu0 0.0
    %4798 = vmatprep.subr.mxu0 0.0
    %4799 = vmatpush1.xpose.msra.mxu0 0.0
    %4800 = vmatprep.subr.mxu0 0.0
    %4801 = vmatpush1.xpose.msra.mxu0 0.0
    %4802 = vmatprep.subr.mxu0 0.0
    %4803 = vmatpush1.xpose.msra.mxu0 0.0
    %4804 = vmatprep.subr.mxu0 0.0
    %4805 = vmatpush1.xpose.msra.mxu0 0.0
    %4806 = vmatprep.subr.mxu0 0.0
    %4807 = vmatpush1.xpose.msra.mxu0 0.0
    %4808 = vmatprep.subr.mxu0 0.0
    %4809 = vmatpush1.xpose.msra.mxu0 0.0
    %4810 = vmatprep.subr.mxu0 0.0
    %4811 = vmatpush1.xpose.msra.mxu0 0.0
    %4812 = vmatprep.subr.mxu0 0.0
    %4813 = vmatpush1.xpose.msra.mxu0 0.0
    %4814 = vmatprep.subr.mxu0 0.0
    %4815 = vmatpush1.xpose.msra.mxu0 0.0
    %4816 = vmatprep.subr.mxu0 0.0
    %4817 = vmatpush1.xpose.msra.mxu0 0.0
    %4818 = vmatprep.subr.mxu0 0.0
    %4819 = vmatpush1.xpose.msra.mxu0 0.0
    %4820 = vmatprep.subr.mxu0 0.0
    %4821 = vmatpush1.xpose.msra.mxu0 0.0
    %4822 = vmatprep.subr.mxu0 0.0
    %4823 = vmatpush1.xpose.msra.mxu0 0.0
    %4824 = vmatprep.mubr.f32.mxu0 0.0
    %4825 = vmatmul.mubr.f32.gmra.mrb[0].mxu0 %v4756
    %v4826 = vpop.f32.mrb[0].mxu0
    %v4827 = vadd.f32 0.0, %v4826
    %v4828 = vpop.f32.mrb[0].mxu0
    %4829 = vdwg.mxu0
    %v4830 = vmul.f32 %v4745, 0.25
    %v4831 = vmul.f32 %v4827, 0.25
    %v4832 = vadd.f32 %v4830, %v1051
    %v4833 = vadd.f32 %v4831, %v1058
    %v4834 = vsel %vm4489, %v4832, -inf
    %4835 = vmax.xlane.f32.xlu0 %v4834
    %v4836 = vpop.xlane.xlu0 %4835
    %v4837 = vsel %vm4489, %v4833, -inf
    %4838 = vmax.xlane.f32.xlu0 %v4837
    %v4839 = vpop.xlane.xlu0 %4838
    %v4840 = vsub.f32 %v4832, %v4836
    %v4841 = vsub.f32 %v4833, %v4839
    %v4842 = vmul.f32 %v4840, 1.442695
    %v4843 = vpow.pop %v4842
    %v4844 = vmul.f32 %v4841, 1.442695
    %v4845 = vpow.pop %v4844
    %v4846 = vsel %vm4489, %v4843, 0.0
    %4847 = vadd.xlane.f32.xlu0 %v4846
    %v4848 = vpop.xlane.xlu0 %4847
    %v4849 = vsel %vm4489, %v4845, 0.0
    %4850 = vadd.xlane.f32.xlu0 %v4849
    %v4851 = vpop.xlane.xlu0 %4850
    %v4852 = vrcp.pop %v4848
    %v4853 = vmul.f32 %v4843, %v4852
    %v4854 = vrcp.pop %v4851
    %v4855 = vmul.f32 %v4845, %v4854
    %4856 = vrot.lane.b32.xlu0 %v4327, 80
    %v4857 = vpop.permute.xlu0 %4856
    %v4860 = vsel %vm1842, %v4853, 0
    %4862 = vmatprep.subr.mxu0 0.0
    %4863 = vmatpush1.msra.mxu0 %v4857
    %4864 = vmatprep.subr.mxu0 0.0
    %4865 = vmatpush1.msra.mxu0 0.0
    %4866 = vmatprep.subr.mxu0 0.0
    %4867 = vmatpush1.msra.mxu0 0.0
    %4868 = vmatprep.subr.mxu0 0.0
    %4869 = vmatpush1.msra.mxu0 0.0
    %4870 = vmatprep.subr.mxu0 0.0
    %4871 = vmatpush1.msra.mxu0 0.0
    %4872 = vmatprep.subr.mxu0 0.0
    %4873 = vmatpush1.msra.mxu0 0.0
    %4874 = vmatprep.subr.mxu0 0.0
    %4875 = vmatpush1.msra.mxu0 0.0
    %4876 = vmatprep.subr.mxu0 0.0
    %4877 = vmatpush1.msra.mxu0 0.0
    %4878 = vmatprep.subr.mxu0 0.0
    %4879 = vmatpush1.msra.mxu0 0.0
    %4880 = vmatprep.subr.mxu0 0.0
    %4881 = vmatpush1.msra.mxu0 0.0
    %4882 = vmatprep.subr.mxu0 0.0
    %4883 = vmatpush1.msra.mxu0 0.0
    %4884 = vmatprep.subr.mxu0 0.0
    %4885 = vmatpush1.msra.mxu0 0.0
    %4886 = vmatprep.subr.mxu0 0.0
    %4887 = vmatpush1.msra.mxu0 0.0
    %4888 = vmatprep.subr.mxu0 0.0
    %4889 = vmatpush1.msra.mxu0 0.0
    %4890 = vmatprep.subr.mxu0 0.0
    %4891 = vmatpush1.msra.mxu0 0.0
    %4892 = vmatprep.subr.mxu0 0.0
    %4893 = vmatpush1.msra.mxu0 0.0
    %4894 = vmatprep.subr.mxu0 0.0
    %4895 = vmatpush1.msra.mxu0 0.0
    %4896 = vmatprep.subr.mxu0 0.0
    %4897 = vmatpush1.msra.mxu0 0.0
    %4898 = vmatprep.subr.mxu0 0.0
    %4899 = vmatpush1.msra.mxu0 0.0
    %4900 = vmatprep.subr.mxu0 0.0
    %4901 = vmatpush1.msra.mxu0 0.0
    %4902 = vmatprep.subr.mxu0 0.0
    %4903 = vmatpush1.msra.mxu0 0.0
    %4904 = vmatprep.subr.mxu0 0.0
    %4905 = vmatpush1.msra.mxu0 0.0
    %4906 = vmatprep.subr.mxu0 0.0
    %4907 = vmatpush1.msra.mxu0 0.0
    %4908 = vmatprep.subr.mxu0 0.0
    %4909 = vmatpush1.msra.mxu0 0.0
    %4910 = vmatprep.subr.mxu0 0.0
    %4911 = vmatpush1.msra.mxu0 0.0
    %4912 = vmatprep.subr.mxu0 0.0
    %4913 = vmatpush1.msra.mxu0 0.0
    %4914 = vmatprep.subr.mxu0 0.0
    %4915 = vmatpush1.msra.mxu0 0.0
    %4916 = vmatprep.subr.mxu0 0.0
    %4917 = vmatpush1.msra.mxu0 0.0
    %4918 = vmatprep.subr.mxu0 0.0
    %4919 = vmatpush1.msra.mxu0 0.0
    %4920 = vmatprep.subr.mxu0 0.0
    %4921 = vmatpush1.msra.mxu0 0.0
    %4922 = vmatprep.subr.mxu0 0.0
    %4923 = vmatpush1.msra.mxu0 0.0
    %4924 = vmatprep.subr.mxu0 0.0
    %4925 = vmatpush1.msra.mxu0 0.0
    %4926 = vmatprep.mubr.f32.mxu0 0.0
    %4927 = vmatmul.mubr.f32.gmra.mrb[0].mxu0 %v4860
    %v4928 = vpop.f32.mrb[0].mxu0
    %v4929 = vadd.f32 0.0, %v4928
    %v4930 = vpop.f32.mrb[0].mxu0
    %4931 = vdwg.mxu0
    %4932 = vrot.lane.b32.xlu0 %v4328, 80
    %v4933 = vpop.permute.xlu0 %4932
    %v4936 = vsel %vm1842, %v4855, 0
    %4938 = vmatprep.subr.mxu0 0.0
    %4939 = vmatpush1.msra.mxu0 %v4933
    %4940 = vmatprep.subr.mxu0 0.0
    %4941 = vmatpush1.msra.mxu0 0.0
    %4942 = vmatprep.subr.mxu0 0.0
    %4943 = vmatpush1.msra.mxu0 0.0
    %4944 = vmatprep.subr.mxu0 0.0
    %4945 = vmatpush1.msra.mxu0 0.0
    %4946 = vmatprep.subr.mxu0 0.0
    %4947 = vmatpush1.msra.mxu0 0.0
    %4948 = vmatprep.subr.mxu0 0.0
    %4949 = vmatpush1.msra.mxu0 0.0
    %4950 = vmatprep.subr.mxu0 0.0
    %4951 = vmatpush1.msra.mxu0 0.0
    %4952 = vmatprep.subr.mxu0 0.0
    %4953 = vmatpush1.msra.mxu0 0.0
    %4954 = vmatprep.subr.mxu0 0.0
    %4955 = vmatpush1.msra.mxu0 0.0
    %4956 = vmatprep.subr.mxu0 0.0
    %4957 = vmatpush1.msra.mxu0 0.0
    %4958 = vmatprep.subr.mxu0 0.0
    %4959 = vmatpush1.msra.mxu0 0.0
    %4960 = vmatprep.subr.mxu0 0.0
    %4961 = vmatpush1.msra.mxu0 0.0
    %4962 = vmatprep.subr.mxu0 0.0
    %4963 = vmatpush1.msra.mxu0 0.0
    %4964 = vmatprep.subr.mxu0 0.0
    %4965 = vmatpush1.msra.mxu0 0.0
    %4966 = vmatprep.subr.mxu0 0.0
    %4967 = vmatpush1.msra.mxu0 0.0
    %4968 = vmatprep.subr.mxu0 0.0
    %4969 = vmatpush1.msra.mxu0 0.0
    %4970 = vmatprep.subr.mxu0 0.0
    %4971 = vmatpush1.msra.mxu0 0.0
    %4972 = vmatprep.subr.mxu0 0.0
    %4973 = vmatpush1.msra.mxu0 0.0
    %4974 = vmatprep.subr.mxu0 0.0
    %4975 = vmatpush1.msra.mxu0 0.0
    %4976 = vmatprep.subr.mxu0 0.0
    %4977 = vmatpush1.msra.mxu0 0.0
    %4978 = vmatprep.subr.mxu0 0.0
    %4979 = vmatpush1.msra.mxu0 0.0
    %4980 = vmatprep.subr.mxu0 0.0
    %4981 = vmatpush1.msra.mxu0 0.0
    %4982 = vmatprep.subr.mxu0 0.0
    %4983 = vmatpush1.msra.mxu0 0.0
    %4984 = vmatprep.subr.mxu0 0.0
    %4985 = vmatpush1.msra.mxu0 0.0
    %4986 = vmatprep.subr.mxu0 0.0
    %4987 = vmatpush1.msra.mxu0 0.0
    %4988 = vmatprep.subr.mxu0 0.0
    %4989 = vmatpush1.msra.mxu0 0.0
    %4990 = vmatprep.subr.mxu0 0.0
    %4991 = vmatpush1.msra.mxu0 0.0
    %4992 = vmatprep.subr.mxu0 0.0
    %4993 = vmatpush1.msra.mxu0 0.0
    %4994 = vmatprep.subr.mxu0 0.0
    %4995 = vmatpush1.msra.mxu0 0.0
    %4996 = vmatprep.subr.mxu0 0.0
    %4997 = vmatpush1.msra.mxu0 0.0
    %4998 = vmatprep.subr.mxu0 0.0
    %4999 = vmatpush1.msra.mxu0 0.0
    %5000 = vmatprep.subr.mxu0 0.0
    %5001 = vmatpush1.msra.mxu0 0.0
    %5002 = vmatprep.mubr.f32.mxu0 0.0
    %5003 = vmatmul.mubr.f32.gmra.mrb[0].mxu0 %v4936
    %v5004 = vpop.f32.mrb[0].mxu0
    %v5005 = vadd.f32 0.0, %v5004
    %v5006 = vpop.f32.mrb[0].mxu0
    %5007 = vdwg.mxu0
    %5010 = vrot.lane.b32.xlu0 %v4929, 16
    %v5011 = vpop.permute.xlu0 %5010
    %5012 = vrot.lane.b32.xlu0 %v5005, 16
    %v5013 = vpop.permute.xlu0 %5012
    %v5016 = vsel %vm104, %v4586, %v5011
    %v5017 = vsel %vm104, %v4663, %v5013
    %v5018 = vlaneseq
    %v5019 = vshrl.u32 %v5018, 7
    %v5020 = vsub.s32 0, %v5019
    %v5021 = vrot.slane %v4334, %v5020
    %v5024 = vrot.slane %v5017, 7
    %vm5025 = vcmask 1041409
    %v5026 = vsel %vm5025, %v5024, %v5016
    %v5027 = vsel %vm953, %v5026, 0
    %5029 = vmatprep.subr.mxu0 0.0
    %5030 = vmatpush1.msra.mxu0 %v4330
    %5031 = vmatprep.subr.mxu0 0.0
    %5032 = vmatpush1.msra.mxu0 %v4331
    %5033 = vmatprep.subr.mxu0 0.0
    %5034 = vmatpush1.msra.mxu0 %v4332
    %5035 = vmatprep.subr.mxu0 0.0
    %5036 = vmatpush1.msra.mxu0 %v4333
    %5037 = vmatprep.subr.mxu0 0.0
    %5038 = vmatpush1.msra.mxu0 0.0
    %5039 = vmatprep.subr.mxu0 0.0
    %5040 = vmatpush1.msra.mxu0 0.0
    %5041 = vmatprep.subr.mxu0 0.0
    %5042 = vmatpush1.msra.mxu0 0.0
    %5043 = vmatprep.subr.mxu0 0.0
    %5044 = vmatpush1.msra.mxu0 0.0
    %5045 = vmatprep.subr.mxu0 0.0
    %5046 = vmatpush1.msra.mxu0 0.0
    %5047 = vmatprep.subr.mxu0 0.0
    %5048 = vmatpush1.msra.mxu0 0.0
    %5049 = vmatprep.subr.mxu0 0.0
    %5050 = vmatpush1.msra.mxu0 0.0
    %5051 = vmatprep.subr.mxu0 0.0
    %5052 = vmatpush1.msra.mxu0 0.0
    %5053 = vmatprep.subr.mxu0 0.0
    %5054 = vmatpush1.msra.mxu0 0.0
    %5055 = vmatprep.subr.mxu0 0.0
    %5056 = vmatpush1.msra.mxu0 0.0
    %5057 = vmatprep.subr.mxu0 0.0
    %5058 = vmatpush1.msra.mxu0 0.0
    %5059 = vmatprep.subr.mxu0 0.0
    %5060 = vmatpush1.msra.mxu0 0.0
    %5061 = vmatprep.subr.mxu0 0.0
    %5062 = vmatpush1.msra.mxu0 0.0
    %5063 = vmatprep.subr.mxu0 0.0
    %5064 = vmatpush1.msra.mxu0 0.0
    %5065 = vmatprep.subr.mxu0 0.0
    %5066 = vmatpush1.msra.mxu0 0.0
    %5067 = vmatprep.subr.mxu0 0.0
    %5068 = vmatpush1.msra.mxu0 0.0
    %5069 = vmatprep.subr.mxu0 0.0
    %5070 = vmatpush1.msra.mxu0 0.0
    %5071 = vmatprep.subr.mxu0 0.0
    %5072 = vmatpush1.msra.mxu0 0.0
    %5073 = vmatprep.subr.mxu0 0.0
    %5074 = vmatpush1.msra.mxu0 0.0
    %5075 = vmatprep.subr.mxu0 0.0
    %5076 = vmatpush1.msra.mxu0 0.0
    %5077 = vmatprep.subr.mxu0 0.0
    %5078 = vmatpush1.msra.mxu0 0.0
    %5079 = vmatprep.subr.mxu0 0.0
    %5080 = vmatpush1.msra.mxu0 0.0
    %5081 = vmatprep.subr.mxu0 0.0
    %5082 = vmatpush1.msra.mxu0 0.0
    %5083 = vmatprep.subr.mxu0 0.0
    %5084 = vmatpush1.msra.mxu0 0.0
    %5085 = vmatprep.subr.mxu0 0.0
    %5086 = vmatpush1.msra.mxu0 0.0
    %5087 = vmatprep.subr.mxu0 0.0
    %5088 = vmatpush1.msra.mxu0 0.0
    %5089 = vmatprep.subr.mxu0 0.0
    %5090 = vmatpush1.msra.mxu0 0.0
    %5091 = vmatprep.subr.mxu0 0.0
    %5092 = vmatpush1.msra.mxu0 0.0
    %5093 = vmatprep.mubr.f32.mxu0 0.0
    %5094 = vmatmul.mubr.f32.gmra.mrb[0].mxu0 %v5027
    %v5095 = vpop.f32.mrb[0].mxu0
    %v5096 = vadd.f32 %v5021, %v5095
    %v5097 = vpop.f32.mrb[0].mxu0
    %5098 = vdwg.mxu0
    %v5099 = vadd.f32 %v4118, %v5096
    %v5100 = vld [vmem:[%s10 + $0x23] sm:$0x1]
    %v5101 = vld [vmem:[%s10 + $0x24] sm:$0x1]
    %v5102 = vsel %vm4095, %v5099, 0.0
    %5103 = vadd.xlane.f32.xlu0 %v5102
    %v5104 = vpop.xlane.xlu0 %5103
    %v5105 = vmul.f32 %v5104, %v1260
    %v5106 = vsub.f32 %v5099, %v5105
    %v5107 = vmul.f32 %v5106, %v5106
    %v5108 = vsel %vm4095, %v5107, 0.0
    %5109 = vadd.xlane.f32.xlu0 %v5108
    %v5110 = vpop.xlane.xlu0 %5109
    %v5111 = vmul.f32 %v5110, %v1260
    %v5112 = vadd.f32 %v5111, 1e-05
    %v5113 = vrsqrt.pop %v5112
    %v5114 = vmul.f32 %v5106, %v5113
    %v5115 = vlaneseq
    %v5116 = vshrl.u32 %v5115, 7
    %v5117 = vsub.s32 0, %v5116
    %v5118 = vrot.slane %v5100, %v5117
    %v5119 = vmul.f32 %v5114, %v5118
    %v5120 = vlaneseq
    %v5121 = vshrl.u32 %v5120, 7
    %v5122 = vsub.s32 0, %v5121
    %v5123 = vrot.slane %v5101, %v5122
    %v5124 = vadd.f32 %v5119, %v5123
    %s5125 = scalar_lea.vmem %s8, 160
    %v5126 = vld [vmem:[%s5125] sm:$0xff]
    %v5127 = vld [vmem:[%s5125 + $0x8] sm:$0xff]
    %v5128 = vld [vmem:[%s5125 + $0x10] sm:$0xff]
    %v5129 = vld [vmem:[%s5125 + $0x18] sm:$0xff]
    %v5130 = vld [vmem:[%s11 + $0x2] sm:$0x1]
    %v5131 = vlaneseq
    %v5132 = vshrl.u32 %v5131, 7
    %v5133 = vsub.s32 0, %v5132
    %v5134 = vrot.slane %v5130, %v5133
    %v5136 = vsel %vm953, %v5124, 0
    %5138 = vmatprep.subr.mxu0 0.0
    %5139 = vmatpush1.msra.mxu0 %v5126
    %5140 = vmatprep.subr.mxu0 0.0
    %5141 = vmatpush1.msra.mxu0 %v5127
    %5142 = vmatprep.subr.mxu0 0.0
    %5143 = vmatpush1.msra.mxu0 %v5128
    %5144 = vmatprep.subr.mxu0 0.0
    %5145 = vmatpush1.msra.mxu0 %v5129
    %5146 = vmatprep.subr.mxu0 0.0
    %5147 = vmatpush1.msra.mxu0 0.0
    %5148 = vmatprep.subr.mxu0 0.0
    %5149 = vmatpush1.msra.mxu0 0.0
    %5150 = vmatprep.subr.mxu0 0.0
    %5151 = vmatpush1.msra.mxu0 0.0
    %5152 = vmatprep.subr.mxu0 0.0
    %5153 = vmatpush1.msra.mxu0 0.0
    %5154 = vmatprep.subr.mxu0 0.0
    %5155 = vmatpush1.msra.mxu0 0.0
    %5156 = vmatprep.subr.mxu0 0.0
    %5157 = vmatpush1.msra.mxu0 0.0
    %5158 = vmatprep.subr.mxu0 0.0
    %5159 = vmatpush1.msra.mxu0 0.0
    %5160 = vmatprep.subr.mxu0 0.0
    %5161 = vmatpush1.msra.mxu0 0.0
    %5162 = vmatprep.subr.mxu0 0.0
    %5163 = vmatpush1.msra.mxu0 0.0
    %5164 = vmatprep.subr.mxu0 0.0
    %5165 = vmatpush1.msra.mxu0 0.0
    %5166 = vmatprep.subr.mxu0 0.0
    %5167 = vmatpush1.msra.mxu0 0.0
    %5168 = vmatprep.subr.mxu0 0.0
    %5169 = vmatpush1.msra.mxu0 0.0
    %5170 = vmatprep.subr.mxu0 0.0
    %5171 = vmatpush1.msra.mxu0 0.0
    %5172 = vmatprep.subr.mxu0 0.0
    %5173 = vmatpush1.msra.mxu0 0.0
    %5174 = vmatprep.subr.mxu0 0.0
    %5175 = vmatpush1.msra.mxu0 0.0
    %5176 = vmatprep.subr.mxu0 0.0
    %5177 = vmatpush1.msra.mxu0 0.0
    %5178 = vmatprep.subr.mxu0 0.0
    %5179 = vmatpush1.msra.mxu0 0.0
    %5180 = vmatprep.subr.mxu0 0.0
    %5181 = vmatpush1.msra.mxu0 0.0
    %5182 = vmatprep.subr.mxu0 0.0
    %5183 = vmatpush1.msra.mxu0 0.0
    %5184 = vmatprep.subr.mxu0 0.0
    %5185 = vmatpush1.msra.mxu0 0.0
    %5186 = vmatprep.subr.mxu0 0.0
    %5187 = vmatpush1.msra.mxu0 0.0
    %5188 = vmatprep.subr.mxu0 0.0
    %5189 = vmatpush1.msra.mxu0 0.0
    %5190 = vmatprep.subr.mxu0 0.0
    %5191 = vmatpush1.msra.mxu0 0.0
    %5192 = vmatprep.subr.mxu0 0.0
    %5193 = vmatpush1.msra.mxu0 0.0
    %5194 = vmatprep.subr.mxu0 0.0
    %5195 = vmatpush1.msra.mxu0 0.0
    %5196 = vmatprep.subr.mxu0 0.0
    %5197 = vmatpush1.msra.mxu0 0.0
    %5198 = vmatprep.subr.mxu0 0.0
    %5199 = vmatpush1.msra.mxu0 0.0
    %5200 = vmatprep.subr.mxu0 0.0
    %5201 = vmatpush1.msra.mxu0 0.0
    %5202 = vmatprep.mubr.f32.mxu0 0.0
    %5203 = vmatmul.mubr.f32.gmra.mrb[0].mxu0 %v5136
    %v5204 = vpop.f32.mrb[0].mxu0
    %v5205 = vadd.f32 %v5134, %v5204
    %v5206 = vpop.f32.mrb[0].mxu0
    %5207 = vdwg.mxu0
    %v5208 = vmax.f32 %v5205, 0.0
    %s5209 = scalar_lea.vmem %s9, 256
    %v5210 = vld [vmem:[%s5209] sm:$0xff]
    %v5211 = vld [vmem:[%s5209 + $0x8] sm:$0xff]
    %v5212 = vld [vmem:[%s5209 + $0x10] sm:$0xff]
    %v5213 = vld [vmem:[%s5209 + $0x18] sm:$0xff]
    %v5214 = vld [vmem:[%s5209 + $0x20] sm:$0xff]
    %v5215 = vld [vmem:[%s5209 + $0x28] sm:$0xff]
    %v5216 = vld [vmem:[%s5209 + $0x30] sm:$0xff]
    %v5217 = vld [vmem:[%s5209 + $0x38] sm:$0xff]
    %v5218 = vld [vmem:[%s5209 + $0x40] sm:$0xff]
    %v5219 = vld [vmem:[%s5209 + $0x48] sm:$0xff]
    %v5220 = vld [vmem:[%s5209 + $0x50] sm:$0xff]
    %v5221 = vld [vmem:[%s5209 + $0x58] sm:$0xff]
    %v5222 = vld [vmem:[%s5209 + $0x60] sm:$0xff]
    %v5223 = vld [vmem:[%s5209 + $0x68] sm:$0xff]
    %v5224 = vld [vmem:[%s5209 + $0x70] sm:$0xff]
    %v5225 = vld [vmem:[%s5209 + $0x78] sm:$0xff]
    %v5226 = vld [vmem:[%s10 + $0x20] sm:$0x1]
    %v5227 = vlaneseq
    %v5228 = vshrl.u32 %v5227, 7
    %v5229 = vsub.s32 0, %v5228
    %v5230 = vrot.slane %v5226, %v5229
    %5231 = vmatprep.subr.mxu0 0.0
    %5232 = vmatpush1.msra.mxu0 %v5210
    %5233 = vmatprep.subr.mxu0 0.0
    %5234 = vmatpush1.msra.mxu0 %v5211
    %5235 = vmatprep.subr.mxu0 0.0
    %5236 = vmatpush1.msra.mxu0 %v5212
    %5237 = vmatprep.subr.mxu0 0.0
    %5238 = vmatpush1.msra.mxu0 %v5213
    %5239 = vmatprep.subr.mxu0 0.0
    %5240 = vmatpush1.msra.mxu0 %v5214
    %5241 = vmatprep.subr.mxu0 0.0
    %5242 = vmatpush1.msra.mxu0 %v5215
    %5243 = vmatprep.subr.mxu0 0.0
    %5244 = vmatpush1.msra.mxu0 %v5216
    %5245 = vmatprep.subr.mxu0 0.0
    %5246 = vmatpush1.msra.mxu0 %v5217
    %5247 = vmatprep.subr.mxu0 0.0
    %5248 = vmatpush1.msra.mxu0 %v5218
    %5249 = vmatprep.subr.mxu0 0.0
    %5250 = vmatpush1.msra.mxu0 %v5219
    %5251 = vmatprep.subr.mxu0 0.0
    %5252 = vmatpush1.msra.mxu0 %v5220
    %5253 = vmatprep.subr.mxu0 0.0
    %5254 = vmatpush1.msra.mxu0 %v5221
    %5255 = vmatprep.subr.mxu0 0.0
    %5256 = vmatpush1.msra.mxu0 %v5222
    %5257 = vmatprep.subr.mxu0 0.0
    %5258 = vmatpush1.msra.mxu0 %v5223
    %5259 = vmatprep.subr.mxu0 0.0
    %5260 = vmatpush1.msra.mxu0 %v5224
    %5261 = vmatprep.subr.mxu0 0.0
    %5262 = vmatpush1.msra.mxu0 %v5225
    %5263 = vmatprep.subr.mxu0 0.0
    %5264 = vmatpush1.msra.mxu0 0.0
    %5265 = vmatprep.subr.mxu0 0.0
    %5266 = vmatpush1.msra.mxu0 0.0
    %5267 = vmatprep.subr.mxu0 0.0
    %5268 = vmatpush1.msra.mxu0 0.0
    %5269 = vmatprep.subr.mxu0 0.0
    %5270 = vmatpush1.msra.mxu0 0.0
    %5271 = vmatprep.subr.mxu0 0.0
    %5272 = vmatpush1.msra.mxu0 0.0
    %5273 = vmatprep.subr.mxu0 0.0
    %5274 = vmatpush1.msra.mxu0 0.0
    %5275 = vmatprep.subr.mxu0 0.0
    %5276 = vmatpush1.msra.mxu0 0.0
    %5277 = vmatprep.subr.mxu0 0.0
    %5278 = vmatpush1.msra.mxu0 0.0
    %5279 = vmatprep.subr.mxu0 0.0
    %5280 = vmatpush1.msra.mxu0 0.0
    %5281 = vmatprep.subr.mxu0 0.0
    %5282 = vmatpush1.msra.mxu0 0.0
    %5283 = vmatprep.subr.mxu0 0.0
    %5284 = vmatpush1.msra.mxu0 0.0
    %5285 = vmatprep.subr.mxu0 0.0
    %5286 = vmatpush1.msra.mxu0 0.0
    %5287 = vmatprep.subr.mxu0 0.0
    %5288 = vmatpush1.msra.mxu0 0.0
    %5289 = vmatprep.subr.mxu0 0.0
    %5290 = vmatpush1.msra.mxu0 0.0
    %5291 = vmatprep.subr.mxu0 0.0
    %5292 = vmatpush1.msra.mxu0 0.0
    %5293 = vmatprep.subr.mxu0 0.0
    %5294 = vmatpush1.msra.mxu0 0.0
    %5295 = vmatprep.mubr.f32.mxu0 0.0
    %5296 = vmatmul.mubr.f32.gmra.mrb[0].mxu0 %v5208
    %v5297 = vpop.f32.mrb[0].mxu0
    %v5298 = vadd.f32 %v5230, %v5297
    %v5299 = vpop.f32.mrb[0].mxu0
    %5300 = vdwg.mxu0
    %v5301 = vadd.f32 %v5124, %v5298
    %v5302 = vld [vmem:[%s10 + $0x25] sm:$0x1]
    %v5303 = vld [vmem:[%s10 + $0x26] sm:$0x1]
    %v5304 = vsel %vm4095, %v5301, 0.0
    %5305 = vadd.xlane.f32.xlu0 %v5304
    %v5306 = vpop.xlane.xlu0 %5305
    %v5307 = vmul.f32 %v5306, %v1260
    %v5308 = vsub.f32 %v5301, %v5307
    %v5309 = vmul.f32 %v5308, %v5308
    %v5310 = vsel %vm4095, %v5309, 0.0
    %5311 = vadd.xlane.f32.xlu0 %v5310
    %v5312 = vpop.xlane.xlu0 %5311
    %v5313 = vmul.f32 %v5312, %v1260
    %v5314 = vadd.f32 %v5313, 1e-05
    %v5315 = vrsqrt.pop %v5314
    %v5316 = vmul.f32 %v5308, %v5315
    %v5317 = vlaneseq
    %v5318 = vshrl.u32 %v5317, 7
    %v5319 = vsub.s32 0, %v5318
    %v5320 = vrot.slane %v5302, %v5319
    %v5321 = vmul.f32 %v5316, %v5320
    %v5322 = vlaneseq
    %v5323 = vshrl.u32 %v5322, 7
    %v5324 = vsub.s32 0, %v5323
    %v5325 = vrot.slane %v5303, %v5324
    %v5326 = vadd.f32 %v5321, %v5325
    %s5327 = scalar_lea.vmem %s7, 352
    %v5328 = vld [vmem:[%s5327] sm:$0xff]
    %v5329 = vld [vmem:[%s5327 + $0x8] sm:$0xff]
    %v5330 = vld [vmem:[%s5327 + $0x10] sm:$0xff]
    %v5331 = vld [vmem:[%s5327 + $0x18] sm:$0xff]
    %v5332 = vld [vmem:[%s10 + $0x27] sm:$0x1]
    %v5333 = vlaneseq
    %v5334 = vshrl.u32 %v5333, 7
    %v5335 = vsub.s32 0, %v5334
    %v5336 = vrot.slane %v5332, %v5335
    %v5338 = vsel %vm953, %v5326, 0
    %5340 = vmatprep.subr.mxu0 0.0
    %5341 = vmatpush1.msra.mxu0 %v5328
    %5342 = vmatprep.subr.mxu0 0.0
    %5343 = vmatpush1.msra.mxu0 %v5329
    %5344 = vmatprep.subr.mxu0 0.0
    %5345 = vmatpush1.msra.mxu0 %v5330
    %5346 = vmatprep.subr.mxu0 0.0
    %5347 = vmatpush1.msra.mxu0 %v5331
    %5348 = vmatprep.subr.mxu0 0.0
    %5349 = vmatpush1.msra.mxu0 0.0
    %5350 = vmatprep.subr.mxu0 0.0
    %5351 = vmatpush1.msra.mxu0 0.0
    %5352 = vmatprep.subr.mxu0 0.0
    %5353 = vmatpush1.msra.mxu0 0.0
    %5354 = vmatprep.subr.mxu0 0.0
    %5355 = vmatpush1.msra.mxu0 0.0
    %5356 = vmatprep.subr.mxu0 0.0
    %5357 = vmatpush1.msra.mxu0 0.0
    %5358 = vmatprep.subr.mxu0 0.0
    %5359 = vmatpush1.msra.mxu0 0.0
    %5360 = vmatprep.subr.mxu0 0.0
    %5361 = vmatpush1.msra.mxu0 0.0
    %5362 = vmatprep.subr.mxu0 0.0
    %5363 = vmatpush1.msra.mxu0 0.0
    %5364 = vmatprep.subr.mxu0 0.0
    %5365 = vmatpush1.msra.mxu0 0.0
    %5366 = vmatprep.subr.mxu0 0.0
    %5367 = vmatpush1.msra.mxu0 0.0
    %5368 = vmatprep.subr.mxu0 0.0
    %5369 = vmatpush1.msra.mxu0 0.0
    %5370 = vmatprep.subr.mxu0 0.0
    %5371 = vmatpush1.msra.mxu0 0.0
    %5372 = vmatprep.subr.mxu0 0.0
    %5373 = vmatpush1.msra.mxu0 0.0
    %5374 = vmatprep.subr.mxu0 0.0
    %5375 = vmatpush1.msra.mxu0 0.0
    %5376 = vmatprep.subr.mxu0 0.0
    %5377 = vmatpush1.msra.mxu0 0.0
    %5378 = vmatprep.subr.mxu0 0.0
    %5379 = vmatpush1.msra.mxu0 0.0
    %5380 = vmatprep.subr.mxu0 0.0
    %5381 = vmatpush1.msra.mxu0 0.0
    %5382 = vmatprep.subr.mxu0 0.0
    %5383 = vmatpush1.msra.mxu0 0.0
    %5384 = vmatprep.subr.mxu0 0.0
    %5385 = vmatpush1.msra.mxu0 0.0
    %5386 = vmatprep.subr.mxu0 0.0
    %5387 = vmatpush1.msra.mxu0 0.0
    %5388 = vmatprep.subr.mxu0 0.0
    %5389 = vmatpush1.msra.mxu0 0.0
    %5390 = vmatprep.subr.mxu0 0.0
    %5391 = vmatpush1.msra.mxu0 0.0
    %5392 = vmatprep.subr.mxu0 0.0
    %5393 = vmatpush1.msra.mxu0 0.0
    %5394 = vmatprep.subr.mxu0 0.0
    %5395 = vmatpush1.msra.mxu0 0.0
    %5396 = vmatprep.subr.mxu0 0.0
    %5397 = vmatpush1.msra.mxu0 0.0
    %5398 = vmatprep.subr.mxu0 0.0
    %5399 = vmatpush1.msra.mxu0 0.0
    %5400 = vmatprep.subr.mxu0 0.0
    %5401 = vmatpush1.msra.mxu0 0.0
    %5402 = vmatprep.subr.mxu0 0.0
    %5403 = vmatpush1.msra.mxu0 0.0
    %5404 = vmatprep.mubr.f32.mxu0 0.0
    %5405 = vmatmul.mubr.f32.gmra.mrb[0].mxu0 %v5338
    %v5406 = vpop.f32.mrb[0].mxu0
    %v5407 = vadd.f32 %v5336, %v5406
    %v5408 = vpop.f32.mrb[0].mxu0
    %5409 = vdwg.mxu0
    %s5410 = scalar_lea.vmem %s7, 384
    %v5411 = vld [vmem:[%s5410] sm:$0xff]
    %v5412 = vld [vmem:[%s5410 + $0x8] sm:$0xff]
    %v5413 = vld [vmem:[%s5410 + $0x10] sm:$0xff]
    %v5414 = vld [vmem:[%s5410 + $0x18] sm:$0xff]
    %v5415 = vld [vmem:[%s10 + $0x28] sm:$0x1]
    %v5416 = vlaneseq
    %v5417 = vshrl.u32 %v5416, 7
    %v5418 = vsub.s32 0, %v5417
    %v5419 = vrot.slane %v5415, %v5418
    %v5421 = vsel %vm953, %v5407, 0
    %5423 = vmatprep.subr.mxu0 0.0
    %5424 = vmatpush1.msra.mxu0 %v5411
    %5425 = vmatprep.subr.mxu0 0.0
    %5426 = vmatpush1.msra.mxu0 %v5412
    %5427 = vmatprep.subr.mxu0 0.0
    %5428 = vmatpush1.msra.mxu0 %v5413
    %5429 = vmatprep.subr.mxu0 0.0
    %5430 = vmatpush1.msra.mxu0 %v5414
    %5431 = vmatprep.subr.mxu0 0.0
    %5432 = vmatpush1.msra.mxu0 0.0
    %5433 = vmatprep.subr.mxu0 0.0
    %5434 = vmatpush1.msra.mxu0 0.0
    %5435 = vmatprep.subr.mxu0 0.0
    %5436 = vmatpush1.msra.mxu0 0.0
    %5437 = vmatprep.subr.mxu0 0.0
    %5438 = vmatpush1.msra.mxu0 0.0
    %5439 = vmatprep.subr.mxu0 0.0
    %5440 = vmatpush1.msra.mxu0 0.0
    %5441 = vmatprep.subr.mxu0 0.0
    %5442 = vmatpush1.msra.mxu0 0.0
    %5443 = vmatprep.subr.mxu0 0.0
    %5444 = vmatpush1.msra.mxu0 0.0
    %5445 = vmatprep.subr.mxu0 0.0
    %5446 = vmatpush1.msra.mxu0 0.0
    %5447 = vmatprep.subr.mxu0 0.0
    %5448 = vmatpush1.msra.mxu0 0.0
    %5449 = vmatprep.subr.mxu0 0.0
    %5450 = vmatpush1.msra.mxu0 0.0
    %5451 = vmatprep.subr.mxu0 0.0
    %5452 = vmatpush1.msra.mxu0 0.0
    %5453 = vmatprep.subr.mxu0 0.0
    %5454 = vmatpush1.msra.mxu0 0.0
    %5455 = vmatprep.subr.mxu0 0.0
    %5456 = vmatpush1.msra.mxu0 0.0
    %5457 = vmatprep.subr.mxu0 0.0
    %5458 = vmatpush1.msra.mxu0 0.0
    %5459 = vmatprep.subr.mxu0 0.0
    %5460 = vmatpush1.msra.mxu0 0.0
    %5461 = vmatprep.subr.mxu0 0.0
    %5462 = vmatpush1.msra.mxu0 0.0
    %5463 = vmatprep.subr.mxu0 0.0
    %5464 = vmatpush1.msra.mxu0 0.0
    %5465 = vmatprep.subr.mxu0 0.0
    %5466 = vmatpush1.msra.mxu0 0.0
    %5467 = vmatprep.subr.mxu0 0.0
    %5468 = vmatpush1.msra.mxu0 0.0
    %5469 = vmatprep.subr.mxu0 0.0
    %5470 = vmatpush1.msra.mxu0 0.0
    %5471 = vmatprep.subr.mxu0 0.0
    %5472 = vmatpush1.msra.mxu0 0.0
    %5473 = vmatprep.subr.mxu0 0.0
    %5474 = vmatpush1.msra.mxu0 0.0
    %5475 = vmatprep.subr.mxu0 0.0
    %5476 = vmatpush1.msra.mxu0 0.0
    %5477 = vmatprep.subr.mxu0 0.0
    %5478 = vmatpush1.msra.mxu0 0.0
    %5479 = vmatprep.subr.mxu0 0.0
    %5480 = vmatpush1.msra.mxu0 0.0
    %5481 = vmatprep.subr.mxu0 0.0
    %5482 = vmatpush1.msra.mxu0 0.0
    %5483 = vmatprep.subr.mxu0 0.0
    %5484 = vmatpush1.msra.mxu0 0.0
    %5485 = vmatprep.subr.mxu0 0.0
    %5486 = vmatpush1.msra.mxu0 0.0
    %5487 = vmatprep.mubr.f32.mxu0 0.0
    %5488 = vmatmul.mubr.f32.gmra.mrb[0].mxu0 %v5421
    %v5489 = vpop.f32.mrb[0].mxu0
    %v5490 = vadd.f32 %v5419, %v5489
    %v5491 = vpop.f32.mrb[0].mxu0
    %5492 = vdwg.mxu0
    %v5493 = vadd.f32 %v5326, %v5490
    %v5494 = vld [vmem:[%s10 + $0x2e] sm:$0x1]
    %v5495 = vld [vmem:[%s10 + $0x2f] sm:$0x1]
    %v5496 = vsel %vm4095, %v5493, 0.0
    %5497 = vadd.xlane.f32.xlu0 %v5496
    %v5498 = vpop.xlane.xlu0 %5497
    %v5499 = vmul.f32 %v5498, %v1260
    %v5500 = vsub.f32 %v5493, %v5499
    %v5501 = vmul.f32 %v5500, %v5500
    %v5502 = vsel %vm4095, %v5501, 0.0
    %5503 = vadd.xlane.f32.xlu0 %v5502
    %v5504 = vpop.xlane.xlu0 %5503
    %v5505 = vmul.f32 %v5504, %v1260
    %v5506 = vadd.f32 %v5505, 1e-05
    %v5507 = vrsqrt.pop %v5506
    %v5508 = vmul.f32 %v5500, %v5507
    %v5509 = vlaneseq
    %v5510 = vshrl.u32 %v5509, 7
    %v5511 = vsub.s32 0, %v5510
    %v5512 = vrot.slane %v5494, %v5511
    %v5513 = vmul.f32 %v5508, %v5512
    %v5514 = vlaneseq
    %v5515 = vshrl.u32 %v5514, 7
    %v5516 = vsub.s32 0, %v5515
    %v5517 = vrot.slane %v5495, %v5516
    %v5518 = vadd.f32 %v5513, %v5517
    %s5519 = scalar_lea.vmem %s7, 416
    %v5520 = vld [vmem:[%s5519] sm:$0xff]
    %v5521 = vld [vmem:[%s5519 + $0x8] sm:$0xff]
    %v5522 = vld [vmem:[%s5519 + $0x10] sm:$0xff]
    %v5523 = vld [vmem:[%s5519 + $0x18] sm:$0xff]
    %v5524 = vld [vmem:[%s10 + $0x29] sm:$0x1]
    %v5525 = vlaneseq
    %v5526 = vshrl.u32 %v5525, 7
    %v5527 = vsub.s32 0, %v5526
    %v5528 = vrot.slane %v5524, %v5527
    %v5530 = vsel %vm953, %v5518, 0
    %5532 = vmatprep.subr.mxu0 0.0
    %5533 = vmatpush1.msra.mxu0 %v5520
    %5534 = vmatprep.subr.mxu0 0.0
    %5535 = vmatpush1.msra.mxu0 %v5521
    %5536 = vmatprep.subr.mxu0 0.0
    %5537 = vmatpush1.msra.mxu0 %v5522
    %5538 = vmatprep.subr.mxu0 0.0
    %5539 = vmatpush1.msra.mxu0 %v5523
    %5540 = vmatprep.subr.mxu0 0.0
    %5541 = vmatpush1.msra.mxu0 0.0
    %5542 = vmatprep.subr.mxu0 0.0
    %5543 = vmatpush1.msra.mxu0 0.0
    %5544 = vmatprep.subr.mxu0 0.0
    %5545 = vmatpush1.msra.mxu0 0.0
    %5546 = vmatprep.subr.mxu0 0.0
    %5547 = vmatpush1.msra.mxu0 0.0
    %5548 = vmatprep.subr.mxu0 0.0
    %5549 = vmatpush1.msra.mxu0 0.0
    %5550 = vmatprep.subr.mxu0 0.0
    %5551 = vmatpush1.msra.mxu0 0.0
    %5552 = vmatprep.subr.mxu0 0.0
    %5553 = vmatpush1.msra.mxu0 0.0
    %5554 = vmatprep.subr.mxu0 0.0
    %5555 = vmatpush1.msra.mxu0 0.0
    %5556 = vmatprep.subr.mxu0 0.0
    %5557 = vmatpush1.msra.mxu0 0.0
    %5558 = vmatprep.subr.mxu0 0.0
    %5559 = vmatpush1.msra.mxu0 0.0
    %5560 = vmatprep.subr.mxu0 0.0
    %5561 = vmatpush1.msra.mxu0 0.0
    %5562 = vmatprep.subr.mxu0 0.0
    %5563 = vmatpush1.msra.mxu0 0.0
    %5564 = vmatprep.subr.mxu0 0.0
    %5565 = vmatpush1.msra.mxu0 0.0
    %5566 = vmatprep.subr.mxu0 0.0
    %5567 = vmatpush1.msra.mxu0 0.0
    %5568 = vmatprep.subr.mxu0 0.0
    %5569 = vmatpush1.msra.mxu0 0.0
    %5570 = vmatprep.subr.mxu0 0.0
    %5571 = vmatpush1.msra.mxu0 0.0
    %5572 = vmatprep.subr.mxu0 0.0
    %5573 = vmatpush1.msra.mxu0 0.0
    %5574 = vmatprep.subr.mxu0 0.0
    %5575 = vmatpush1.msra.mxu0 0.0
    %5576 = vmatprep.subr.mxu0 0.0
    %5577 = vmatpush1.msra.mxu0 0.0
    %5578 = vmatprep.subr.mxu0 0.0
    %5579 = vmatpush1.msra.mxu0 0.0
    %5580 = vmatprep.subr.mxu0 0.0
    %5581 = vmatpush1.msra.mxu0 0.0
    %5582 = vmatprep.subr.mxu0 0.0
    %5583 = vmatpush1.msra.mxu0 0.0
    %5584 = vmatprep.subr.mxu0 0.0
    %5585 = vmatpush1.msra.mxu0 0.0
    %5586 = vmatprep.subr.mxu0 0.0
    %5587 = vmatpush1.msra.mxu0 0.0
    %5588 = vmatprep.subr.mxu0 0.0
    %5589 = vmatpush1.msra.mxu0 0.0
    %5590 = vmatprep.subr.mxu0 0.0
    %5591 = vmatpush1.msra.mxu0 0.0
    %5592 = vmatprep.subr.mxu0 0.0
    %5593 = vmatpush1.msra.mxu0 0.0
    %5594 = vmatprep.subr.mxu0 0.0
    %5595 = vmatpush1.msra.mxu0 0.0
    %5596 = vmatprep.mubr.f32.mxu0 0.0
    %5597 = vmatmul.mubr.f32.gmra.mrb[0].mxu0 %v5530
    %v5598 = vpop.f32.mrb[0].mxu0
    %v5599 = vadd.f32 %v5528, %v5598
    %v5600 = vpop.f32.mrb[0].mxu0
    %5601 = vdwg.mxu0
    %v5604 = vunpack.c.l.s4 1966171168
    %v5605 = vunpack.c.0.s8 %v5604
    %v5606 = vlaneseq
    %v5607 = vshrl.u32 %v5606, 7
    %v5608 = vsub.s32 %v5605, %v5607
    %v5609 = vrot.slane %v5599, %v5608
    %v5610 = vcombine.high %v5609, %v5609
    %v5612 = vunpack.c.l.s4 1966171168
    %v5613 = vunpack.c.0.s8 %v5612
    %v5614 = vlaneseq
    %v5615 = vshrl.u32 %v5614, 7
    %v5616 = vsub.s32 %v5613, %v5615
    %v5617 = vrot.slane %v5609, %v5616
    %v5619 = vunpack.c.l.s4 1966171168
    %v5620 = vunpack.c.0.s8 %v5619
    %v5621 = vlaneseq
    %v5622 = vshrl.u32 %v5621, 7
    %v5623 = vsub.s32 %v5620, %v5622
    %v5624 = vrot.slane %v5610, %v5623
    %s5625 = scalar_lea.vmem %s8, 192
    %v5626 = vld [vmem:[%s5625] sm:$0xff]
    %v5627 = vld [vmem:[%s5625 + $0x8] sm:$0xff]
    %v5628 = vld [vmem:[%s5625 + $0x10] sm:$0xff]
    %v5629 = vld [vmem:[%s5625 + $0x18] sm:$0xff]
    %5630 = vmatprep.subr.mxu0 0.0
    %5631 = vmatpush1.msra.mxu0 %v5626
    %5632 = vmatprep.subr.mxu0 0.0
    %5633 = vmatpush1.msra.mxu0 %v5627
    %5634 = vmatprep.subr.mxu0 0.0
    %5635 = vmatpush1.msra.mxu0 %v5628
    %5636 = vmatprep.subr.mxu0 0.0
    %5637 = vmatpush1.msra.mxu0 %v5629
    %5638 = vmatprep.subr.mxu0 0.0
    %5639 = vmatpush1.msra.mxu0 0.0
    %5640 = vmatprep.subr.mxu0 0.0
    %5641 = vmatpush1.msra.mxu0 0.0
    %5642 = vmatprep.subr.mxu0 0.0
    %5643 = vmatpush1.msra.mxu0 0.0
    %5644 = vmatprep.subr.mxu0 0.0
    %5645 = vmatpush1.msra.mxu0 0.0
    %5646 = vmatprep.subr.mxu0 0.0
    %5647 = vmatpush1.msra.mxu0 0.0
    %5648 = vmatprep.subr.mxu0 0.0
    %5649 = vmatpush1.msra.mxu0 0.0
    %5650 = vmatprep.subr.mxu0 0.0
    %5651 = vmatpush1.msra.mxu0 0.0
    %5652 = vmatprep.subr.mxu0 0.0
    %5653 = vmatpush1.msra.mxu0 0.0
    %5654 = vmatprep.subr.mxu0 0.0
    %5655 = vmatpush1.msra.mxu0 0.0
    %5656 = vmatprep.subr.mxu0 0.0
    %5657 = vmatpush1.msra.mxu0 0.0
    %5658 = vmatprep.subr.mxu0 0.0
    %5659 = vmatpush1.msra.mxu0 0.0
    %5660 = vmatprep.subr.mxu0 0.0
    %5661 = vmatpush1.msra.mxu0 0.0
    %5662 = vmatprep.subr.mxu0 0.0
    %5663 = vmatpush1.msra.mxu0 0.0
    %5664 = vmatprep.subr.mxu0 0.0
    %5665 = vmatpush1.msra.mxu0 0.0
    %5666 = vmatprep.subr.mxu0 0.0
    %5667 = vmatpush1.msra.mxu0 0.0
    %5668 = vmatprep.subr.mxu0 0.0
    %5669 = vmatpush1.msra.mxu0 0.0
    %5670 = vmatprep.subr.mxu0 0.0
    %5671 = vmatpush1.msra.mxu0 0.0
    %5672 = vmatprep.subr.mxu0 0.0
    %5673 = vmatpush1.msra.mxu0 0.0
    %5674 = vmatprep.subr.mxu0 0.0
    %5675 = vmatpush1.msra.mxu0 0.0
    %5676 = vmatprep.subr.mxu0 0.0
    %5677 = vmatpush1.msra.mxu0 0.0
    %5678 = vmatprep.subr.mxu0 0.0
    %5679 = vmatpush1.msra.mxu0 0.0
    %5680 = vmatprep.subr.mxu0 0.0
    %5681 = vmatpush1.msra.mxu0 0.0
    %5682 = vmatprep.subr.mxu0 0.0
    %5683 = vmatpush1.msra.mxu0 0.0
    %5684 = vmatprep.subr.mxu0 0.0
    %5685 = vmatpush1.msra.mxu0 0.0
    %5686 = vmatprep.subr.mxu0 0.0
    %5687 = vmatpush1.msra.mxu0 0.0
    %5688 = vmatprep.subr.mxu0 0.0
    %5689 = vmatpush1.msra.mxu0 0.0
    %5690 = vmatprep.subr.mxu0 0.0
    %5691 = vmatpush1.msra.mxu0 0.0
    %5692 = vmatprep.subr.mxu0 0.0
    %5693 = vmatpush1.msra.mxu0 0.0
    %5694 = vmatprep.mubr.f32.mxu0 0.0
    %5695 = vmatmul.mubr.f32.gmra.mrb[0].mxu0 %v4231
    %v5696 = vpop.f32.mrb[0].mxu0
    %v5697 = vadd.f32 0.0, %v5696
    %v5698 = vpop.f32.mrb[0].mxu0
    %5699 = vmatprep.mubr.f32.mxu0 0.0
    %5700 = vmatmul.mubr.f32.gmra.mrb[0].mxu0 %v4234
    %v5701 = vpop.f32.mrb[0].mxu0
    %v5702 = vadd.f32 0.0, %v5701
    %v5703 = vpop.f32.mrb[0].mxu0
    %5704 = vdwg.mxu0
    %v5705 = vld [vmem:[%s10 + $0x2a] sm:$0x1]
    %v5706 = vlaneseq
    %v5707 = vshrl.u32 %v5706, 7
    %v5708 = vsub.s32 0, %v5707
    %v5709 = vrot.slane %v5705, %v5708
    %v5710 = vadd.f32 %v5697, %v5709
    %v5711 = vadd.f32 %v5702, %v5709
    %v5712 = vld [vmem:[%s10 + $0x2b] sm:$0x1]
    %v5713 = vlaneseq
    %v5714 = vshrl.u32 %v5713, 7
    %v5715 = vsub.s32 0, %v5714
    %v5716 = vrot.slane %v5712, %v5715
    %5718 = vrot.lane.b32.xlu0 %v5716, 32
    %v5719 = vpop.permute.xlu0 %5718
    %v5721 = vadd.f32 %v5697, %v5719
    %v5722 = vadd.f32 %v5702, %v5719
    %s5723 = scalar_lea.vmem %s7, 448
    %v5724 = vld [vmem:[%s5723] sm:$0xff]
    %v5725 = vld [vmem:[%s5723 + $0x8] sm:$0xff]
    %v5726 = vld [vmem:[%s5723 + $0x10] sm:$0xff]
    %v5727 = vld [vmem:[%s5723 + $0x18] sm:$0xff]
    %v5728 = vld [vmem:[%s10 + $0x2c] sm:$0x1]
    %v5729 = vsel %vm104, %v5617, 0
    %v5732 = vsel %vm104, %v5710, 0
    %5734 = vmatprep.subr.mxu0 0.0
    %5735 = vmatpush1.xpose.msra.mxu0 %v5732
    %5736 = vmatprep.subr.mxu0 0.0
    %5737 = vmatpush1.xpose.msra.mxu0 0.0
    %5738 = vmatprep.subr.mxu0 0.0
    %5739 = vmatpush1.xpose.msra.mxu0 0.0
    %5740 = vmatprep.subr.mxu0 0.0
    %5741 = vmatpush1.xpose.msra.mxu0 0.0
    %5742 = vmatprep.subr.mxu0 0.0
    %5743 = vmatpush1.xpose.msra.mxu0 0.0
    %5744 = vmatprep.subr.mxu0 0.0
    %5745 = vmatpush1.xpose.msra.mxu0 0.0
    %5746 = vmatprep.subr.mxu0 0.0
    %5747 = vmatpush1.xpose.msra.mxu0 0.0
    %5748 = vmatprep.subr.mxu0 0.0
    %5749 = vmatpush1.xpose.msra.mxu0 0.0
    %5750 = vmatprep.subr.mxu0 0.0
    %5751 = vmatpush1.xpose.msra.mxu0 0.0
    %5752 = vmatprep.subr.mxu0 0.0
    %5753 = vmatpush1.xpose.msra.mxu0 0.0
    %5754 = vmatprep.subr.mxu0 0.0
    %5755 = vmatpush1.xpose.msra.mxu0 0.0
    %5756 = vmatprep.subr.mxu0 0.0
    %5757 = vmatpush1.xpose.msra.mxu0 0.0
    %5758 = vmatprep.subr.mxu0 0.0
    %5759 = vmatpush1.xpose.msra.mxu0 0.0
    %5760 = vmatprep.subr.mxu0 0.0
    %5761 = vmatpush1.xpose.msra.mxu0 0.0
    %5762 = vmatprep.subr.mxu0 0.0
    %5763 = vmatpush1.xpose.msra.mxu0 0.0
    %5764 = vmatprep.subr.mxu0 0.0
    %5765 = vmatpush1.xpose.msra.mxu0 0.0
    %5766 = vmatprep.subr.mxu0 0.0
    %5767 = vmatpush1.xpose.msra.mxu0 0.0
    %5768 = vmatprep.subr.mxu0 0.0
    %5769 = vmatpush1.xpose.msra.mxu0 0.0
    %5770 = vmatprep.subr.mxu0 0.0
    %5771 = vmatpush1.xpose.msra.mxu0 0.0
    %5772 = vmatprep.subr.mxu0 0.0
    %5773 = vmatpush1.xpose.msra.mxu0 0.0
    %5774 = vmatprep.subr.mxu0 0.0
    %5775 = vmatpush1.xpose.msra.mxu0 0.0
    %5776 = vmatprep.subr.mxu0 0.0
    %5777 = vmatpush1.xpose.msra.mxu0 0.0
    %5778 = vmatprep.subr.mxu0 0.0
    %5779 = vmatpush1.xpose.msra.mxu0 0.0
    %5780 = vmatprep.subr.mxu0 0.0
    %5781 = vmatpush1.xpose.msra.mxu0 0.0
    %5782 = vmatprep.subr.mxu0 0.0
    %5783 = vmatpush1.xpose.msra.mxu0 0.0
    %5784 = vmatprep.subr.mxu0 0.0
    %5785 = vmatpush1.xpose.msra.mxu0 0.0
    %5786 = vmatprep.subr.mxu0 0.0
    %5787 = vmatpush1.xpose.msra.mxu0 0.0
    %5788 = vmatprep.subr.mxu0 0.0
    %5789 = vmatpush1.xpose.msra.mxu0 0.0
    %5790 = vmatprep.subr.mxu0 0.0
    %5791 = vmatpush1.xpose.msra.mxu0 0.0
    %5792 = vmatprep.subr.mxu0 0.0
    %5793 = vmatpush1.xpose.msra.mxu0 0.0
    %5794 = vmatprep.subr.mxu0 0.0
    %5795 = vmatpush1.xpose.msra.mxu0 0.0
    %5796 = vmatprep.subr.mxu0 0.0
    %5797 = vmatpush1.xpose.msra.mxu0 0.0
    %5798 = vmatprep.mubr.f32.mxu0 0.0
    %5799 = vmatmul.mubr.f32.gmra.mrb[0].mxu0 %v5729
    %v5800 = vpop.f32.mrb[0].mxu0
    %v5801 = vadd.f32 0.0, %v5800
    %v5802 = vpop.f32.mrb[0].mxu0
    %5803 = vdwg.mxu0
    %v5804 = vsel %vm104, %v5624, 0
    %v5807 = vsel %vm104, %v5711, 0
    %5809 = vmatprep.subr.mxu0 0.0
    %5810 = vmatpush1.xpose.msra.mxu0 %v5807
    %5811 = vmatprep.subr.mxu0 0.0
    %5812 = vmatpush1.xpose.msra.mxu0 0.0
    %5813 = vmatprep.subr.mxu0 0.0
    %5814 = vmatpush1.xpose.msra.mxu0 0.0
    %5815 = vmatprep.subr.mxu0 0.0
    %5816 = vmatpush1.xpose.msra.mxu0 0.0
    %5817 = vmatprep.subr.mxu0 0.0
    %5818 = vmatpush1.xpose.msra.mxu0 0.0
    %5819 = vmatprep.subr.mxu0 0.0
    %5820 = vmatpush1.xpose.msra.mxu0 0.0
    %5821 = vmatprep.subr.mxu0 0.0
    %5822 = vmatpush1.xpose.msra.mxu0 0.0
    %5823 = vmatprep.subr.mxu0 0.0
    %5824 = vmatpush1.xpose.msra.mxu0 0.0
    %5825 = vmatprep.subr.mxu0 0.0
    %5826 = vmatpush1.xpose.msra.mxu0 0.0
    %5827 = vmatprep.subr.mxu0 0.0
    %5828 = vmatpush1.xpose.msra.mxu0 0.0
    %5829 = vmatprep.subr.mxu0 0.0
    %5830 = vmatpush1.xpose.msra.mxu0 0.0
    %5831 = vmatprep.subr.mxu0 0.0
    %5832 = vmatpush1.xpose.msra.mxu0 0.0
    %5833 = vmatprep.subr.mxu0 0.0
    %5834 = vmatpush1.xpose.msra.mxu0 0.0
    %5835 = vmatprep.subr.mxu0 0.0
    %5836 = vmatpush1.xpose.msra.mxu0 0.0
    %5837 = vmatprep.subr.mxu0 0.0
    %5838 = vmatpush1.xpose.msra.mxu0 0.0
    %5839 = vmatprep.subr.mxu0 0.0
    %5840 = vmatpush1.xpose.msra.mxu0 0.0
    %5841 = vmatprep.subr.mxu0 0.0
    %5842 = vmatpush1.xpose.msra.mxu0 0.0
    %5843 = vmatprep.subr.mxu0 0.0
    %5844 = vmatpush1.xpose.msra.mxu0 0.0
    %5845 = vmatprep.subr.mxu0 0.0
    %5846 = vmatpush1.xpose.msra.mxu0 0.0
    %5847 = vmatprep.subr.mxu0 0.0
    %5848 = vmatpush1.xpose.msra.mxu0 0.0
    %5849 = vmatprep.subr.mxu0 0.0
    %5850 = vmatpush1.xpose.msra.mxu0 0.0
    %5851 = vmatprep.subr.mxu0 0.0
    %5852 = vmatpush1.xpose.msra.mxu0 0.0
    %5853 = vmatprep.subr.mxu0 0.0
    %5854 = vmatpush1.xpose.msra.mxu0 0.0
    %5855 = vmatprep.subr.mxu0 0.0
    %5856 = vmatpush1.xpose.msra.mxu0 0.0
    %5857 = vmatprep.subr.mxu0 0.0
    %5858 = vmatpush1.xpose.msra.mxu0 0.0
    %5859 = vmatprep.subr.mxu0 0.0
    %5860 = vmatpush1.xpose.msra.mxu0 0.0
    %5861 = vmatprep.subr.mxu0 0.0
    %5862 = vmatpush1.xpose.msra.mxu0 0.0
    %5863 = vmatprep.subr.mxu0 0.0
    %5864 = vmatpush1.xpose.msra.mxu0 0.0
    %5865 = vmatprep.subr.mxu0 0.0
    %5866 = vmatpush1.xpose.msra.mxu0 0.0
    %5867 = vmatprep.subr.mxu0 0.0
    %5868 = vmatpush1.xpose.msra.mxu0 0.0
    %5869 = vmatprep.subr.mxu0 0.0
    %5870 = vmatpush1.xpose.msra.mxu0 0.0
    %5871 = vmatprep.subr.mxu0 0.0
    %5872 = vmatpush1.xpose.msra.mxu0 0.0
    %5873 = vmatprep.mubr.f32.mxu0 0.0
    %5874 = vmatmul.mubr.f32.gmra.mrb[0].mxu0 %v5804
    %v5875 = vpop.f32.mrb[0].mxu0
    %v5876 = vadd.f32 0.0, %v5875
    %v5877 = vpop.f32.mrb[0].mxu0
    %5878 = vdwg.mxu0
    %v5879 = vmul.f32 %v5801, 0.25
    %v5880 = vmul.f32 %v5876, 0.25
    %v5881 = vadd.f32 %v5879, %v1051
    %v5882 = vadd.f32 %v5880, %v1058
    %v5883 = vsel %vm4489, %v5881, -inf
    %5884 = vmax.xlane.f32.xlu0 %v5883
    %v5885 = vpop.xlane.xlu0 %5884
    %v5886 = vsel %vm4489, %v5882, -inf
    %5887 = vmax.xlane.f32.xlu0 %v5886
    %v5888 = vpop.xlane.xlu0 %5887
    %v5889 = vsub.f32 %v5881, %v5885
    %v5890 = vsub.f32 %v5882, %v5888
    %v5891 = vmul.f32 %v5889, 1.442695
    %v5892 = vpow.pop %v5891
    %v5893 = vmul.f32 %v5890, 1.442695
    %v5894 = vpow.pop %v5893
    %v5895 = vsel %vm4489, %v5892, 0.0
    %5896 = vadd.xlane.f32.xlu0 %v5895
    %v5897 = vpop.xlane.xlu0 %5896
    %v5898 = vsel %vm4489, %v5894, 0.0
    %5899 = vadd.xlane.f32.xlu0 %v5898
    %v5900 = vpop.xlane.xlu0 %5899
    %v5901 = vrcp.pop %v5897
    %v5902 = vmul.f32 %v5892, %v5901
    %v5903 = vrcp.pop %v5900
    %v5904 = vmul.f32 %v5894, %v5903
    %5906 = vrot.lane.b32.xlu0 %v5721, 96
    %v5907 = vpop.permute.xlu0 %5906
    %v5910 = vsel %vm1842, %v5902, 0
    %5912 = vmatprep.subr.mxu0 0.0
    %5913 = vmatpush1.msra.mxu0 %v5907
    %5914 = vmatprep.subr.mxu0 0.0
    %5915 = vmatpush1.msra.mxu0 0.0
    %5916 = vmatprep.subr.mxu0 0.0
    %5917 = vmatpush1.msra.mxu0 0.0
    %5918 = vmatprep.subr.mxu0 0.0
    %5919 = vmatpush1.msra.mxu0 0.0
    %5920 = vmatprep.subr.mxu0 0.0
    %5921 = vmatpush1.msra.mxu0 0.0
    %5922 = vmatprep.subr.mxu0 0.0
    %5923 = vmatpush1.msra.mxu0 0.0
    %5924 = vmatprep.subr.mxu0 0.0
    %5925 = vmatpush1.msra.mxu0 0.0
    %5926 = vmatprep.subr.mxu0 0.0
    %5927 = vmatpush1.msra.mxu0 0.0
    %5928 = vmatprep.subr.mxu0 0.0
    %5929 = vmatpush1.msra.mxu0 0.0
    %5930 = vmatprep.subr.mxu0 0.0
    %5931 = vmatpush1.msra.mxu0 0.0
    %5932 = vmatprep.subr.mxu0 0.0
    %5933 = vmatpush1.msra.mxu0 0.0
    %5934 = vmatprep.subr.mxu0 0.0
    %5935 = vmatpush1.msra.mxu0 0.0
    %5936 = vmatprep.subr.mxu0 0.0
    %5937 = vmatpush1.msra.mxu0 0.0
    %5938 = vmatprep.subr.mxu0 0.0
    %5939 = vmatpush1.msra.mxu0 0.0
    %5940 = vmatprep.subr.mxu0 0.0
    %5941 = vmatpush1.msra.mxu0 0.0
    %5942 = vmatprep.subr.mxu0 0.0
    %5943 = vmatpush1.msra.mxu0 0.0
    %5944 = vmatprep.subr.mxu0 0.0
    %5945 = vmatpush1.msra.mxu0 0.0
    %5946 = vmatprep.subr.mxu0 0.0
    %5947 = vmatpush1.msra.mxu0 0.0
    %5948 = vmatprep.subr.mxu0 0.0
    %5949 = vmatpush1.msra.mxu0 0.0
    %5950 = vmatprep.subr.mxu0 0.0
    %5951 = vmatpush1.msra.mxu0 0.0
    %5952 = vmatprep.subr.mxu0 0.0
    %5953 = vmatpush1.msra.mxu0 0.0
    %5954 = vmatprep.subr.mxu0 0.0
    %5955 = vmatpush1.msra.mxu0 0.0
    %5956 = vmatprep.subr.mxu0 0.0
    %5957 = vmatpush1.msra.mxu0 0.0
    %5958 = vmatprep.subr.mxu0 0.0
    %5959 = vmatpush1.msra.mxu0 0.0
    %5960 = vmatprep.subr.mxu0 0.0
    %5961 = vmatpush1.msra.mxu0 0.0
    %5962 = vmatprep.subr.mxu0 0.0
    %5963 = vmatpush1.msra.mxu0 0.0
    %5964 = vmatprep.subr.mxu0 0.0
    %5965 = vmatpush1.msra.mxu0 0.0
    %5966 = vmatprep.subr.mxu0 0.0
    %5967 = vmatpush1.msra.mxu0 0.0
    %5968 = vmatprep.subr.mxu0 0.0
    %5969 = vmatpush1.msra.mxu0 0.0
    %5970 = vmatprep.subr.mxu0 0.0
    %5971 = vmatpush1.msra.mxu0 0.0
    %5972 = vmatprep.subr.mxu0 0.0
    %5973 = vmatpush1.msra.mxu0 0.0
    %5974 = vmatprep.subr.mxu0 0.0
    %5975 = vmatpush1.msra.mxu0 0.0
    %5976 = vmatprep.mubr.f32.mxu0 0.0
    %5977 = vmatmul.mubr.f32.gmra.mrb[0].mxu0 %v5910
    %v5978 = vpop.f32.mrb[0].mxu0
    %v5979 = vadd.f32 0.0, %v5978
    %v5980 = vpop.f32.mrb[0].mxu0
    %5981 = vdwg.mxu0
    %5983 = vrot.lane.b32.xlu0 %v5722, 96
    %v5984 = vpop.permute.xlu0 %5983
    %v5987 = vsel %vm1842, %v5904, 0
    %5989 = vmatprep.subr.mxu0 0.0
    %5990 = vmatpush1.msra.mxu0 %v5984
    %5991 = vmatprep.subr.mxu0 0.0
    %5992 = vmatpush1.msra.mxu0 0.0
    %5993 = vmatprep.subr.mxu0 0.0
    %5994 = vmatpush1.msra.mxu0 0.0
    %5995 = vmatprep.subr.mxu0 0.0
    %5996 = vmatpush1.msra.mxu0 0.0
    %5997 = vmatprep.subr.mxu0 0.0
    %5998 = vmatpush1.msra.mxu0 0.0
    %5999 = vmatprep.subr.mxu0 0.0
    %6000 = vmatpush1.msra.mxu0 0.0
    %6001 = vmatprep.subr.mxu0 0.0
    %6002 = vmatpush1.msra.mxu0 0.0
    %6003 = vmatprep.subr.mxu0 0.0
    %6004 = vmatpush1.msra.mxu0 0.0
    %6005 = vmatprep.subr.mxu0 0.0
    %6006 = vmatpush1.msra.mxu0 0.0
    %6007 = vmatprep.subr.mxu0 0.0
    %6008 = vmatpush1.msra.mxu0 0.0
    %6009 = vmatprep.subr.mxu0 0.0
    %6010 = vmatpush1.msra.mxu0 0.0
    %6011 = vmatprep.subr.mxu0 0.0
    %6012 = vmatpush1.msra.mxu0 0.0
    %6013 = vmatprep.subr.mxu0 0.0
    %6014 = vmatpush1.msra.mxu0 0.0
    %6015 = vmatprep.subr.mxu0 0.0
    %6016 = vmatpush1.msra.mxu0 0.0
    %6017 = vmatprep.subr.mxu0 0.0
    %6018 = vmatpush1.msra.mxu0 0.0
    %6019 = vmatprep.subr.mxu0 0.0
    %6020 = vmatpush1.msra.mxu0 0.0
    %6021 = vmatprep.subr.mxu0 0.0
    %6022 = vmatpush1.msra.mxu0 0.0
    %6023 = vmatprep.subr.mxu0 0.0
    %6024 = vmatpush1.msra.mxu0 0.0
    %6025 = vmatprep.subr.mxu0 0.0
    %6026 = vmatpush1.msra.mxu0 0.0
    %6027 = vmatprep.subr.mxu0 0.0
    %6028 = vmatpush1.msra.mxu0 0.0
    %6029 = vmatprep.subr.mxu0 0.0
    %6030 = vmatpush1.msra.mxu0 0.0
    %6031 = vmatprep.subr.mxu0 0.0
    %6032 = vmatpush1.msra.mxu0 0.0
    %6033 = vmatprep.subr.mxu0 0.0
    %6034 = vmatpush1.msra.mxu0 0.0
    %6035 = vmatprep.subr.mxu0 0.0
    %6036 = vmatpush1.msra.mxu0 0.0
    %6037 = vmatprep.subr.mxu0 0.0
    %6038 = vmatpush1.msra.mxu0 0.0
    %6039 = vmatprep.subr.mxu0 0.0
    %6040 = vmatpush1.msra.mxu0 0.0
    %6041 = vmatprep.subr.mxu0 0.0
    %6042 = vmatpush1.msra.mxu0 0.0
    %6043 = vmatprep.subr.mxu0 0.0
    %6044 = vmatpush1.msra.mxu0 0.0
    %6045 = vmatprep.subr.mxu0 0.0
    %6046 = vmatpush1.msra.mxu0 0.0
    %6047 = vmatprep.subr.mxu0 0.0
    %6048 = vmatpush1.msra.mxu0 0.0
    %6049 = vmatprep.subr.mxu0 0.0
    %6050 = vmatpush1.msra.mxu0 0.0
    %6051 = vmatprep.subr.mxu0 0.0
    %6052 = vmatpush1.msra.mxu0 0.0
    %6053 = vmatprep.mubr.f32.mxu0 0.0
    %6054 = vmatmul.mubr.f32.gmra.mrb[0].mxu0 %v5987
    %v6055 = vpop.f32.mrb[0].mxu0
    %v6056 = vadd.f32 0.0, %v6055
    %v6057 = vpop.f32.mrb[0].mxu0
    %6058 = vdwg.mxu0
    %v6059 = vlaneseq
    %v6060 = vshrl.u32 %v6059, 7
    %v6061 = vsub.s32 0, %v6060
    %v6062 = vrot.slane %v5617, %v6061
    %6063 = vrot.lane.b32.xlu0 %v6062, 112
    %v6064 = vpop.permute.xlu0 %6063
    %6065 = vrot.lane.b32.xlu0 %v5710, 112
    %v6066 = vpop.permute.xlu0 %6065
    %v6067 = vsel %vm104, %v6064, 0
    %v6069 = vsel %vm104, %v6066, 0
    %6071 = vmatprep.subr.mxu0 0.0
    %6072 = vmatpush1.xpose.msra.mxu0 %v6069
    %6073 = vmatprep.subr.mxu0 0.0
    %6074 = vmatpush1.xpose.msra.mxu0 0.0
    %6075 = vmatprep.subr.mxu0 0.0
    %6076 = vmatpush1.xpose.msra.mxu0 0.0
    %6077 = vmatprep.subr.mxu0 0.0
    %6078 = vmatpush1.xpose.msra.mxu0 0.0
    %6079 = vmatprep.subr.mxu0 0.0
    %6080 = vmatpush1.xpose.msra.mxu0 0.0
    %6081 = vmatprep.subr.mxu0 0.0
    %6082 = vmatpush1.xpose.msra.mxu0 0.0
    %6083 = vmatprep.subr.mxu0 0.0
    %6084 = vmatpush1.xpose.msra.mxu0 0.0
    %6085 = vmatprep.subr.mxu0 0.0
    %6086 = vmatpush1.xpose.msra.mxu0 0.0
    %6087 = vmatprep.subr.mxu0 0.0
    %6088 = vmatpush1.xpose.msra.mxu0 0.0
    %6089 = vmatprep.subr.mxu0 0.0
    %6090 = vmatpush1.xpose.msra.mxu0 0.0
    %6091 = vmatprep.subr.mxu0 0.0
    %6092 = vmatpush1.xpose.msra.mxu0 0.0
    %6093 = vmatprep.subr.mxu0 0.0
    %6094 = vmatpush1.xpose.msra.mxu0 0.0
    %6095 = vmatprep.subr.mxu0 0.0
    %6096 = vmatpush1.xpose.msra.mxu0 0.0
    %6097 = vmatprep.subr.mxu0 0.0
    %6098 = vmatpush1.xpose.msra.mxu0 0.0
    %6099 = vmatprep.subr.mxu0 0.0
    %6100 = vmatpush1.xpose.msra.mxu0 0.0
    %6101 = vmatprep.subr.mxu0 0.0
    %6102 = vmatpush1.xpose.msra.mxu0 0.0
    %6103 = vmatprep.subr.mxu0 0.0
    %6104 = vmatpush1.xpose.msra.mxu0 0.0
    %6105 = vmatprep.subr.mxu0 0.0
    %6106 = vmatpush1.xpose.msra.mxu0 0.0
    %6107 = vmatprep.subr.mxu0 0.0
    %6108 = vmatpush1.xpose.msra.mxu0 0.0
    %6109 = vmatprep.subr.mxu0 0.0
    %6110 = vmatpush1.xpose.msra.mxu0 0.0
    %6111 = vmatprep.subr.mxu0 0.0
    %6112 = vmatpush1.xpose.msra.mxu0 0.0
    %6113 = vmatprep.subr.mxu0 0.0
    %6114 = vmatpush1.xpose.msra.mxu0 0.0
    %6115 = vmatprep.subr.mxu0 0.0
    %6116 = vmatpush1.xpose.msra.mxu0 0.0
    %6117 = vmatprep.subr.mxu0 0.0
    %6118 = vmatpush1.xpose.msra.mxu0 0.0
    %6119 = vmatprep.subr.mxu0 0.0
    %6120 = vmatpush1.xpose.msra.mxu0 0.0
    %6121 = vmatprep.subr.mxu0 0.0
    %6122 = vmatpush1.xpose.msra.mxu0 0.0
    %6123 = vmatprep.subr.mxu0 0.0
    %6124 = vmatpush1.xpose.msra.mxu0 0.0
    %6125 = vmatprep.subr.mxu0 0.0
    %6126 = vmatpush1.xpose.msra.mxu0 0.0
    %6127 = vmatprep.subr.mxu0 0.0
    %6128 = vmatpush1.xpose.msra.mxu0 0.0
    %6129 = vmatprep.subr.mxu0 0.0
    %6130 = vmatpush1.xpose.msra.mxu0 0.0
    %6131 = vmatprep.subr.mxu0 0.0
    %6132 = vmatpush1.xpose.msra.mxu0 0.0
    %6133 = vmatprep.subr.mxu0 0.0
    %6134 = vmatpush1.xpose.msra.mxu0 0.0
    %6135 = vmatprep.mubr.f32.mxu0 0.0
    %6136 = vmatmul.mubr.f32.gmra.mrb[0].mxu0 %v6067
    %v6137 = vpop.f32.mrb[0].mxu0
    %v6138 = vadd.f32 0.0, %v6137
    %v6139 = vpop.f32.mrb[0].mxu0
    %6140 = vdwg.mxu0
    %v6141 = vlaneseq
    %v6142 = vshrl.u32 %v6141, 7
    %v6143 = vsub.s32 0, %v6142
    %v6144 = vrot.slane %v5624, %v6143
    %6145 = vrot.lane.b32.xlu0 %v6144, 112
    %v6146 = vpop.permute.xlu0 %6145
    %6147 = vrot.lane.b32.xlu0 %v5711, 112
    %v6148 = vpop.permute.xlu0 %6147
    %v6149 = vsel %vm104, %v6146, 0
    %v6151 = vsel %vm104, %v6148, 0
    %6153 = vmatprep.subr.mxu0 0.0
    %6154 = vmatpush1.xpose.msra.mxu0 %v6151
    %6155 = vmatprep.subr.mxu0 0.0
    %6156 = vmatpush1.xpose.msra.mxu0 0.0
    %6157 = vmatprep.subr.mxu0 0.0
    %6158 = vmatpush1.xpose.msra.mxu0 0.0
    %6159 = vmatprep.subr.mxu0 0.0
    %6160 = vmatpush1.xpose.msra.mxu0 0.0
    %6161 = vmatprep.subr.mxu0 0.0
    %6162 = vmatpush1.xpose.msra.mxu0 0.0
    %6163 = vmatprep.subr.mxu0 0.0
    %6164 = vmatpush1.xpose.msra.mxu0 0.0
    %6165 = vmatprep.subr.mxu0 0.0
    %6166 = vmatpush1.xpose.msra.mxu0 0.0
    %6167 = vmatprep.subr.mxu0 0.0
    %6168 = vmatpush1.xpose.msra.mxu0 0.0
    %6169 = vmatprep.subr.mxu0 0.0
    %6170 = vmatpush1.xpose.msra.mxu0 0.0
    %6171 = vmatprep.subr.mxu0 0.0
    %6172 = vmatpush1.xpose.msra.mxu0 0.0
    %6173 = vmatprep.subr.mxu0 0.0
    %6174 = vmatpush1.xpose.msra.mxu0 0.0
    %6175 = vmatprep.subr.mxu0 0.0
    %6176 = vmatpush1.xpose.msra.mxu0 0.0
    %6177 = vmatprep.subr.mxu0 0.0
    %6178 = vmatpush1.xpose.msra.mxu0 0.0
    %6179 = vmatprep.subr.mxu0 0.0
    %6180 = vmatpush1.xpose.msra.mxu0 0.0
    %6181 = vmatprep.subr.mxu0 0.0
    %6182 = vmatpush1.xpose.msra.mxu0 0.0
    %6183 = vmatprep.subr.mxu0 0.0
    %6184 = vmatpush1.xpose.msra.mxu0 0.0
    %6185 = vmatprep.subr.mxu0 0.0
    %6186 = vmatpush1.xpose.msra.mxu0 0.0
    %6187 = vmatprep.subr.mxu0 0.0
    %6188 = vmatpush1.xpose.msra.mxu0 0.0
    %6189 = vmatprep.subr.mxu0 0.0
    %6190 = vmatpush1.xpose.msra.mxu0 0.0
    %6191 = vmatprep.subr.mxu0 0.0
    %6192 = vmatpush1.xpose.msra.mxu0 0.0
    %6193 = vmatprep.subr.mxu0 0.0
    %6194 = vmatpush1.xpose.msra.mxu0 0.0
    %6195 = vmatprep.subr.mxu0 0.0
    %6196 = vmatpush1.xpose.msra.mxu0 0.0
    %6197 = vmatprep.subr.mxu0 0.0
    %6198 = vmatpush1.xpose.msra.mxu0 0.0
    %6199 = vmatprep.subr.mxu0 0.0
    %6200 = vmatpush1.xpose.msra.mxu0 0.0
    %6201 = vmatprep.subr.mxu0 0.0
    %6202 = vmatpush1.xpose.msra.mxu0 0.0
    %6203 = vmatprep.subr.mxu0 0.0
    %6204 = vmatpush1.xpose.msra.mxu0 0.0
    %6205 = vmatprep.subr.mxu0 0.0
    %6206 = vmatpush1.xpose.msra.mxu0 0.0
    %6207 = vmatprep.subr.mxu0 0.0
    %6208 = vmatpush1.xpose.msra.mxu0 0.0
    %6209 = vmatprep.subr.mxu0 0.0
    %6210 = vmatpush1.xpose.msra.mxu0 0.0
    %6211 = vmatprep.subr.mxu0 0.0
    %6212 = vmatpush1.xpose.msra.mxu0 0.0
    %6213 = vmatprep.subr.mxu0 0.0
    %6214 = vmatpush1.xpose.msra.mxu0 0.0
    %6215 = vmatprep.subr.mxu0 0.0
    %6216 = vmatpush1.xpose.msra.mxu0 0.0
    %6217 = vmatprep.mubr.f32.mxu0 0.0
    %6218 = vmatmul.mubr.f32.gmra.mrb[0].mxu0 %v6149
    %v6219 = vpop.f32.mrb[0].mxu0
    %v6220 = vadd.f32 0.0, %v6219
    %v6221 = vpop.f32.mrb[0].mxu0
    %6222 = vdwg.mxu0
    %v6223 = vmul.f32 %v6138, 0.25
    %v6224 = vmul.f32 %v6220, 0.25
    %v6225 = vadd.f32 %v6223, %v1051
    %v6226 = vadd.f32 %v6224, %v1058
    %v6227 = vsel %vm4489, %v6225, -inf
    %6228 = vmax.xlane.f32.xlu0 %v6227
    %v6229 = vpop.xlane.xlu0 %6228
    %v6230 = vsel %vm4489, %v6226, -inf
    %6231 = vmax.xlane.f32.xlu0 %v6230
    %v6232 = vpop.xlane.xlu0 %6231
    %v6233 = vsub.f32 %v6225, %v6229
    %v6234 = vsub.f32 %v6226, %v6232
    %v6235 = vmul.f32 %v6233, 1.442695
    %v6236 = vpow.pop %v6235
    %v6237 = vmul.f32 %v6234, 1.442695
    %v6238 = vpow.pop %v6237
    %v6239 = vsel %vm4489, %v6236, 0.0
    %6240 = vadd.xlane.f32.xlu0 %v6239
    %v6241 = vpop.xlane.xlu0 %6240
    %v6242 = vsel %vm4489, %v6238, 0.0
    %6243 = vadd.xlane.f32.xlu0 %v6242
    %v6244 = vpop.xlane.xlu0 %6243
    %v6245 = vrcp.pop %v6241
    %v6246 = vmul.f32 %v6236, %v6245
    %v6247 = vrcp.pop %v6244
    %v6248 = vmul.f32 %v6238, %v6247
    %6249 = vrot.lane.b32.xlu0 %v5721, 80
    %v6250 = vpop.permute.xlu0 %6249
    %v6253 = vsel %vm1842, %v6246, 0
    %6255 = vmatprep.subr.mxu0 0.0
    %6256 = vmatpush1.msra.mxu0 %v6250
    %6257 = vmatprep.subr.mxu0 0.0
    %6258 = vmatpush1.msra.mxu0 0.0
    %6259 = vmatprep.subr.mxu0 0.0
    %6260 = vmatpush1.msra.mxu0 0.0
    %6261 = vmatprep.subr.mxu0 0.0
    %6262 = vmatpush1.msra.mxu0 0.0
    %6263 = vmatprep.subr.mxu0 0.0
    %6264 = vmatpush1.msra.mxu0 0.0
    %6265 = vmatprep.subr.mxu0 0.0
    %6266 = vmatpush1.msra.mxu0 0.0
    %6267 = vmatprep.subr.mxu0 0.0
    %6268 = vmatpush1.msra.mxu0 0.0
    %6269 = vmatprep.subr.mxu0 0.0
    %6270 = vmatpush1.msra.mxu0 0.0
    %6271 = vmatprep.subr.mxu0 0.0
    %6272 = vmatpush1.msra.mxu0 0.0
    %6273 = vmatprep.subr.mxu0 0.0
    %6274 = vmatpush1.msra.mxu0 0.0
    %6275 = vmatprep.subr.mxu0 0.0
    %6276 = vmatpush1.msra.mxu0 0.0
    %6277 = vmatprep.subr.mxu0 0.0
    %6278 = vmatpush1.msra.mxu0 0.0
    %6279 = vmatprep.subr.mxu0 0.0
    %6280 = vmatpush1.msra.mxu0 0.0
    %6281 = vmatprep.subr.mxu0 0.0
    %6282 = vmatpush1.msra.mxu0 0.0
    %6283 = vmatprep.subr.mxu0 0.0
    %6284 = vmatpush1.msra.mxu0 0.0
    %6285 = vmatprep.subr.mxu0 0.0
    %6286 = vmatpush1.msra.mxu0 0.0
    %6287 = vmatprep.subr.mxu0 0.0
    %6288 = vmatpush1.msra.mxu0 0.0
    %6289 = vmatprep.subr.mxu0 0.0
    %6290 = vmatpush1.msra.mxu0 0.0
    %6291 = vmatprep.subr.mxu0 0.0
    %6292 = vmatpush1.msra.mxu0 0.0
    %6293 = vmatprep.subr.mxu0 0.0
    %6294 = vmatpush1.msra.mxu0 0.0
    %6295 = vmatprep.subr.mxu0 0.0
    %6296 = vmatpush1.msra.mxu0 0.0
    %6297 = vmatprep.subr.mxu0 0.0
    %6298 = vmatpush1.msra.mxu0 0.0
    %6299 = vmatprep.subr.mxu0 0.0
    %6300 = vmatpush1.msra.mxu0 0.0
    %6301 = vmatprep.subr.mxu0 0.0
    %6302 = vmatpush1.msra.mxu0 0.0
    %6303 = vmatprep.subr.mxu0 0.0
    %6304 = vmatpush1.msra.mxu0 0.0
    %6305 = vmatprep.subr.mxu0 0.0
    %6306 = vmatpush1.msra.mxu0 0.0
    %6307 = vmatprep.subr.mxu0 0.0
    %6308 = vmatpush1.msra.mxu0 0.0
    %6309 = vmatprep.subr.mxu0 0.0
    %6310 = vmatpush1.msra.mxu0 0.0
    %6311 = vmatprep.subr.mxu0 0.0
    %6312 = vmatpush1.msra.mxu0 0.0
    %6313 = vmatprep.subr.mxu0 0.0
    %6314 = vmatpush1.msra.mxu0 0.0
    %6315 = vmatprep.subr.mxu0 0.0
    %6316 = vmatpush1.msra.mxu0 0.0
    %6317 = vmatprep.subr.mxu0 0.0
    %6318 = vmatpush1.msra.mxu0 0.0
    %6319 = vmatprep.mubr.f32.mxu0 0.0
    %6320 = vmatmul.mubr.f32.gmra.mrb[0].mxu0 %v6253
    %v6321 = vpop.f32.mrb[0].mxu0
    %v6322 = vadd.f32 0.0, %v6321
    %v6323 = vpop.f32.mrb[0].mxu0
    %6324 = vdwg.mxu0
    %6325 = vrot.lane.b32.xlu0 %v5722, 80
    %v6326 = vpop.permute.xlu0 %6325
    %v6329 = vsel %vm1842, %v6248, 0
    %6331 = vmatprep.subr.mxu0 0.0
    %6332 = vmatpush1.msra.mxu0 %v6326
    %6333 = vmatprep.subr.mxu0 0.0
    %6334 = vmatpush1.msra.mxu0 0.0
    %6335 = vmatprep.subr.mxu0 0.0
    %6336 = vmatpush1.msra.mxu0 0.0
    %6337 = vmatprep.subr.mxu0 0.0
    %6338 = vmatpush1.msra.mxu0 0.0
    %6339 = vmatprep.subr.mxu0 0.0
    %6340 = vmatpush1.msra.mxu0 0.0
    %6341 = vmatprep.subr.mxu0 0.0
    %6342 = vmatpush1.msra.mxu0 0.0
    %6343 = vmatprep.subr.mxu0 0.0
    %6344 = vmatpush1.msra.mxu0 0.0
    %6345 = vmatprep.subr.mxu0 0.0
    %6346 = vmatpush1.msra.mxu0 0.0
    %6347 = vmatprep.subr.mxu0 0.0
    %6348 = vmatpush1.msra.mxu0 0.0
    %6349 = vmatprep.subr.mxu0 0.0
    %6350 = vmatpush1.msra.mxu0 0.0
    %6351 = vmatprep.subr.mxu0 0.0
    %6352 = vmatpush1.msra.mxu0 0.0
    %6353 = vmatprep.subr.mxu0 0.0
    %6354 = vmatpush1.msra.mxu0 0.0
    %6355 = vmatprep.subr.mxu0 0.0
    %6356 = vmatpush1.msra.mxu0 0.0
    %6357 = vmatprep.subr.mxu0 0.0
    %6358 = vmatpush1.msra.mxu0 0.0
    %6359 = vmatprep.subr.mxu0 0.0
    %6360 = vmatpush1.msra.mxu0 0.0
    %6361 = vmatprep.subr.mxu0 0.0
    %6362 = vmatpush1.msra.mxu0 0.0
    %6363 = vmatprep.subr.mxu0 0.0
    %6364 = vmatpush1.msra.mxu0 0.0
    %6365 = vmatprep.subr.mxu0 0.0
    %6366 = vmatpush1.msra.mxu0 0.0
    %6367 = vmatprep.subr.mxu0 0.0
    %6368 = vmatpush1.msra.mxu0 0.0
    %6369 = vmatprep.subr.mxu0 0.0
    %6370 = vmatpush1.msra.mxu0 0.0
    %6371 = vmatprep.subr.mxu0 0.0
    %6372 = vmatpush1.msra.mxu0 0.0
    %6373 = vmatprep.subr.mxu0 0.0
    %6374 = vmatpush1.msra.mxu0 0.0
    %6375 = vmatprep.subr.mxu0 0.0
    %6376 = vmatpush1.msra.mxu0 0.0
    %6377 = vmatprep.subr.mxu0 0.0
    %6378 = vmatpush1.msra.mxu0 0.0
    %6379 = vmatprep.subr.mxu0 0.0
    %6380 = vmatpush1.msra.mxu0 0.0
    %6381 = vmatprep.subr.mxu0 0.0
    %6382 = vmatpush1.msra.mxu0 0.0
    %6383 = vmatprep.subr.mxu0 0.0
    %6384 = vmatpush1.msra.mxu0 0.0
    %6385 = vmatprep.subr.mxu0 0.0
    %6386 = vmatpush1.msra.mxu0 0.0
    %6387 = vmatprep.subr.mxu0 0.0
    %6388 = vmatpush1.msra.mxu0 0.0
    %6389 = vmatprep.subr.mxu0 0.0
    %6390 = vmatpush1.msra.mxu0 0.0
    %6391 = vmatprep.subr.mxu0 0.0
    %6392 = vmatpush1.msra.mxu0 0.0
    %6393 = vmatprep.subr.mxu0 0.0
    %6394 = vmatpush1.msra.mxu0 0.0
    %6395 = vmatprep.mubr.f32.mxu0 0.0
    %6396 = vmatmul.mubr.f32.gmra.mrb[0].mxu0 %v6329
    %v6397 = vpop.f32.mrb[0].mxu0
    %v6398 = vadd.f32 0.0, %v6397
    %v6399 = vpop.f32.mrb[0].mxu0
    %6400 = vdwg.mxu0
    %6403 = vrot.lane.b32.xlu0 %v6322, 16
    %v6404 = vpop.permute.xlu0 %6403
    %6405 = vrot.lane.b32.xlu0 %v6398, 16
    %v6406 = vpop.permute.xlu0 %6405
    %v6409 = vsel %vm104, %v5979, %v6404
    %v6410 = vsel %vm104, %v6056, %v6406
    %v6411 = vlaneseq
    %v6412 = vshrl.u32 %v6411, 7
    %v6413 = vsub.s32 0, %v6412
    %v6414 = vrot.slane %v5728, %v6413
    %v6417 = vrot.slane %v6410, 7
    %v6418 = vsel %vm5025, %v6417, %v6409
    %v6419 = vsel %vm953, %v6418, 0
    %6421 = vmatprep.subr.mxu0 0.0
    %6422 = vmatpush1.msra.mxu0 %v5724
    %6423 = vmatprep.subr.mxu0 0.0
    %6424 = vmatpush1.msra.mxu0 %v5725
    %6425 = vmatprep.subr.mxu0 0.0
    %6426 = vmatpush1.msra.mxu0 %v5726
    %6427 = vmatprep.subr.mxu0 0.0
    %6428 = vmatpush1.msra.mxu0 %v5727
    %6429 = vmatprep.subr.mxu0 0.0
    %6430 = vmatpush1.msra.mxu0 0.0
    %6431 = vmatprep.subr.mxu0 0.0
    %6432 = vmatpush1.msra.mxu0 0.0
    %6433 = vmatprep.subr.mxu0 0.0
    %6434 = vmatpush1.msra.mxu0 0.0
    %6435 = vmatprep.subr.mxu0 0.0
    %6436 = vmatpush1.msra.mxu0 0.0
    %6437 = vmatprep.subr.mxu0 0.0
    %6438 = vmatpush1.msra.mxu0 0.0
    %6439 = vmatprep.subr.mxu0 0.0
    %6440 = vmatpush1.msra.mxu0 0.0
    %6441 = vmatprep.subr.mxu0 0.0
    %6442 = vmatpush1.msra.mxu0 0.0
    %6443 = vmatprep.subr.mxu0 0.0
    %6444 = vmatpush1.msra.mxu0 0.0
    %6445 = vmatprep.subr.mxu0 0.0
    %6446 = vmatpush1.msra.mxu0 0.0
    %6447 = vmatprep.subr.mxu0 0.0
    %6448 = vmatpush1.msra.mxu0 0.0
    %6449 = vmatprep.subr.mxu0 0.0
    %6450 = vmatpush1.msra.mxu0 0.0
    %6451 = vmatprep.subr.mxu0 0.0
    %6452 = vmatpush1.msra.mxu0 0.0
    %6453 = vmatprep.subr.mxu0 0.0
    %6454 = vmatpush1.msra.mxu0 0.0
    %6455 = vmatprep.subr.mxu0 0.0
    %6456 = vmatpush1.msra.mxu0 0.0
    %6457 = vmatprep.subr.mxu0 0.0
    %6458 = vmatpush1.msra.mxu0 0.0
    %6459 = vmatprep.subr.mxu0 0.0
    %6460 = vmatpush1.msra.mxu0 0.0
    %6461 = vmatprep.subr.mxu0 0.0
    %6462 = vmatpush1.msra.mxu0 0.0
    %6463 = vmatprep.subr.mxu0 0.0
    %6464 = vmatpush1.msra.mxu0 0.0
    %6465 = vmatprep.subr.mxu0 0.0
    %6466 = vmatpush1.msra.mxu0 0.0
    %6467 = vmatprep.subr.mxu0 0.0
    %6468 = vmatpush1.msra.mxu0 0.0
    %6469 = vmatprep.subr.mxu0 0.0
    %6470 = vmatpush1.msra.mxu0 0.0
    %6471 = vmatprep.subr.mxu0 0.0
    %6472 = vmatpush1.msra.mxu0 0.0
    %6473 = vmatprep.subr.mxu0 0.0
    %6474 = vmatpush1.msra.mxu0 0.0
    %6475 = vmatprep.subr.mxu0 0.0
    %6476 = vmatpush1.msra.mxu0 0.0
    %6477 = vmatprep.subr.mxu0 0.0
    %6478 = vmatpush1.msra.mxu0 0.0
    %6479 = vmatprep.subr.mxu0 0.0
    %6480 = vmatpush1.msra.mxu0 0.0
    %6481 = vmatprep.subr.mxu0 0.0
    %6482 = vmatpush1.msra.mxu0 0.0
    %6483 = vmatprep.subr.mxu0 0.0
    %6484 = vmatpush1.msra.mxu0 0.0
    %6485 = vmatprep.mubr.f32.mxu0 0.0
    %6486 = vmatmul.mubr.f32.gmra.mrb[0].mxu0 %v6419
    %v6487 = vpop.f32.mrb[0].mxu0
    %v6488 = vadd.f32 %v6414, %v6487
    %v6489 = vpop.f32.mrb[0].mxu0
    %6490 = vdwg.mxu0
    %v6491 = vadd.f32 %v5518, %v6488
    %v6492 = vld [vmem:[%s10 + $0x30] sm:$0x1]
    %v6493 = vld [vmem:[%s10 + $0x31] sm:$0x1]
    %v6494 = vsel %vm4095, %v6491, 0.0
    %6495 = vadd.xlane.f32.xlu0 %v6494
    %v6496 = vpop.xlane.xlu0 %6495
    %v6497 = vmul.f32 %v6496, %v1260
    %v6498 = vsub.f32 %v6491, %v6497
    %v6499 = vmul.f32 %v6498, %v6498
    %v6500 = vsel %vm4095, %v6499, 0.0
    %6501 = vadd.xlane.f32.xlu0 %v6500
    %v6502 = vpop.xlane.xlu0 %6501
    %v6503 = vmul.f32 %v6502, %v1260
    %v6504 = vadd.f32 %v6503, 1e-05
    %v6505 = vrsqrt.pop %v6504
    %v6506 = vmul.f32 %v6498, %v6505
    %v6507 = vlaneseq
    %v6508 = vshrl.u32 %v6507, 7
    %v6509 = vsub.s32 0, %v6508
    %v6510 = vrot.slane %v6492, %v6509
    %v6511 = vmul.f32 %v6506, %v6510
    %v6512 = vlaneseq
    %v6513 = vshrl.u32 %v6512, 7
    %v6514 = vsub.s32 0, %v6513
    %v6515 = vrot.slane %v6493, %v6514
    %v6516 = vadd.f32 %v6511, %v6515
    %s6517 = scalar_lea.vmem %s8, 224
    %v6518 = vld [vmem:[%s6517] sm:$0xff]
    %v6519 = vld [vmem:[%s6517 + $0x8] sm:$0xff]
    %v6520 = vld [vmem:[%s6517 + $0x10] sm:$0xff]
    %v6521 = vld [vmem:[%s6517 + $0x18] sm:$0xff]
    %v6522 = vld [vmem:[%s11 + $0x3] sm:$0x1]
    %v6523 = vlaneseq
    %v6524 = vshrl.u32 %v6523, 7
    %v6525 = vsub.s32 0, %v6524
    %v6526 = vrot.slane %v6522, %v6525
    %v6528 = vsel %vm953, %v6516, 0
    %6530 = vmatprep.subr.mxu0 0.0
    %6531 = vmatpush1.msra.mxu0 %v6518
    %6532 = vmatprep.subr.mxu0 0.0
    %6533 = vmatpush1.msra.mxu0 %v6519
    %6534 = vmatprep.subr.mxu0 0.0
    %6535 = vmatpush1.msra.mxu0 %v6520
    %6536 = vmatprep.subr.mxu0 0.0
    %6537 = vmatpush1.msra.mxu0 %v6521
    %6538 = vmatprep.subr.mxu0 0.0
    %6539 = vmatpush1.msra.mxu0 0.0
    %6540 = vmatprep.subr.mxu0 0.0
    %6541 = vmatpush1.msra.mxu0 0.0
    %6542 = vmatprep.subr.mxu0 0.0
    %6543 = vmatpush1.msra.mxu0 0.0
    %6544 = vmatprep.subr.mxu0 0.0
    %6545 = vmatpush1.msra.mxu0 0.0
    %6546 = vmatprep.subr.mxu0 0.0
    %6547 = vmatpush1.msra.mxu0 0.0
    %6548 = vmatprep.subr.mxu0 0.0
    %6549 = vmatpush1.msra.mxu0 0.0
    %6550 = vmatprep.subr.mxu0 0.0
    %6551 = vmatpush1.msra.mxu0 0.0
    %6552 = vmatprep.subr.mxu0 0.0
    %6553 = vmatpush1.msra.mxu0 0.0
    %6554 = vmatprep.subr.mxu0 0.0
    %6555 = vmatpush1.msra.mxu0 0.0
    %6556 = vmatprep.subr.mxu0 0.0
    %6557 = vmatpush1.msra.mxu0 0.0
    %6558 = vmatprep.subr.mxu0 0.0
    %6559 = vmatpush1.msra.mxu0 0.0
    %6560 = vmatprep.subr.mxu0 0.0
    %6561 = vmatpush1.msra.mxu0 0.0
    %6562 = vmatprep.subr.mxu0 0.0
    %6563 = vmatpush1.msra.mxu0 0.0
    %6564 = vmatprep.subr.mxu0 0.0
    %6565 = vmatpush1.msra.mxu0 0.0
    %6566 = vmatprep.subr.mxu0 0.0
    %6567 = vmatpush1.msra.mxu0 0.0
    %6568 = vmatprep.subr.mxu0 0.0
    %6569 = vmatpush1.msra.mxu0 0.0
    %6570 = vmatprep.subr.mxu0 0.0
    %6571 = vmatpush1.msra.mxu0 0.0
    %6572 = vmatprep.subr.mxu0 0.0
    %6573 = vmatpush1.msra.mxu0 0.0
    %6574 = vmatprep.subr.mxu0 0.0
    %6575 = vmatpush1.msra.mxu0 0.0
    %6576 = vmatprep.subr.mxu0 0.0
    %6577 = vmatpush1.msra.mxu0 0.0
    %6578 = vmatprep.subr.mxu0 0.0
    %6579 = vmatpush1.msra.mxu0 0.0
    %6580 = vmatprep.subr.mxu0 0.0
    %6581 = vmatpush1.msra.mxu0 0.0
    %6582 = vmatprep.subr.mxu0 0.0
    %6583 = vmatpush1.msra.mxu0 0.0
    %6584 = vmatprep.subr.mxu0 0.0
    %6585 = vmatpush1.msra.mxu0 0.0
    %6586 = vmatprep.subr.mxu0 0.0
    %6587 = vmatpush1.msra.mxu0 0.0
    %6588 = vmatprep.subr.mxu0 0.0
    %6589 = vmatpush1.msra.mxu0 0.0
    %6590 = vmatprep.subr.mxu0 0.0
    %6591 = vmatpush1.msra.mxu0 0.0
    %6592 = vmatprep.subr.mxu0 0.0
    %6593 = vmatpush1.msra.mxu0 0.0
    %6594 = vmatprep.mubr.f32.mxu0 0.0
    %6595 = vmatmul.mubr.f32.gmra.mrb[0].mxu0 %v6528
    %v6596 = vpop.f32.mrb[0].mxu0
    %v6597 = vadd.f32 %v6526, %v6596
    %v6598 = vpop.f32.mrb[0].mxu0
    %6599 = vdwg.mxu0
    %v6600 = vmax.f32 %v6597, 0.0
    %s6601 = scalar_lea.vmem %s9, 384
    %v6602 = vld [vmem:[%s6601] sm:$0xff]
    %v6603 = vld [vmem:[%s6601 + $0x8] sm:$0xff]
    %v6604 = vld [vmem:[%s6601 + $0x10] sm:$0xff]
    %v6605 = vld [vmem:[%s6601 + $0x18] sm:$0xff]
    %v6606 = vld [vmem:[%s6601 + $0x20] sm:$0xff]
    %v6607 = vld [vmem:[%s6601 + $0x28] sm:$0xff]
    %v6608 = vld [vmem:[%s6601 + $0x30] sm:$0xff]
    %v6609 = vld [vmem:[%s6601 + $0x38] sm:$0xff]
    %v6610 = vld [vmem:[%s6601 + $0x40] sm:$0xff]
    %v6611 = vld [vmem:[%s6601 + $0x48] sm:$0xff]
    %v6612 = vld [vmem:[%s6601 + $0x50] sm:$0xff]
    %v6613 = vld [vmem:[%s6601 + $0x58] sm:$0xff]
    %v6614 = vld [vmem:[%s6601 + $0x60] sm:$0xff]
    %v6615 = vld [vmem:[%s6601 + $0x68] sm:$0xff]
    %v6616 = vld [vmem:[%s6601 + $0x70] sm:$0xff]
    %v6617 = vld [vmem:[%s6601 + $0x78] sm:$0xff]
    %v6618 = vld [vmem:[%s10 + $0x2d] sm:$0x1]
    %v6619 = vlaneseq
    %v6620 = vshrl.u32 %v6619, 7
    %v6621 = vsub.s32 0, %v6620
    %v6622 = vrot.slane %v6618, %v6621
    %6623 = vmatprep.subr.mxu0 0.0
    %6624 = vmatpush1.msra.mxu0 %v6602
    %6625 = vmatprep.subr.mxu0 0.0
    %6626 = vmatpush1.msra.mxu0 %v6603
    %6627 = vmatprep.subr.mxu0 0.0
    %6628 = vmatpush1.msra.mxu0 %v6604
    %6629 = vmatprep.subr.mxu0 0.0
    %6630 = vmatpush1.msra.mxu0 %v6605
    %6631 = vmatprep.subr.mxu0 0.0
    %6632 = vmatpush1.msra.mxu0 %v6606
    %6633 = vmatprep.subr.mxu0 0.0
    %6634 = vmatpush1.msra.mxu0 %v6607
    %6635 = vmatprep.subr.mxu0 0.0
    %6636 = vmatpush1.msra.mxu0 %v6608
    %6637 = vmatprep.subr.mxu0 0.0
    %6638 = vmatpush1.msra.mxu0 %v6609
    %6639 = vmatprep.subr.mxu0 0.0
    %6640 = vmatpush1.msra.mxu0 %v6610
    %6641 = vmatprep.subr.mxu0 0.0
    %6642 = vmatpush1.msra.mxu0 %v6611
    %6643 = vmatprep.subr.mxu0 0.0
    %6644 = vmatpush1.msra.mxu0 %v6612
    %6645 = vmatprep.subr.mxu0 0.0
    %6646 = vmatpush1.msra.mxu0 %v6613
    %6647 = vmatprep.subr.mxu0 0.0
    %6648 = vmatpush1.msra.mxu0 %v6614
    %6649 = vmatprep.subr.mxu0 0.0
    %6650 = vmatpush1.msra.mxu0 %v6615
    %6651 = vmatprep.subr.mxu0 0.0
    %6652 = vmatpush1.msra.mxu0 %v6616
    %6653 = vmatprep.subr.mxu0 0.0
    %6654 = vmatpush1.msra.mxu0 %v6617
    %6655 = vmatprep.subr.mxu0 0.0
    %6656 = vmatpush1.msra.mxu0 0.0
    %6657 = vmatprep.subr.mxu0 0.0
    %6658 = vmatpush1.msra.mxu0 0.0
    %6659 = vmatprep.subr.mxu0 0.0
    %6660 = vmatpush1.msra.mxu0 0.0
    %6661 = vmatprep.subr.mxu0 0.0
    %6662 = vmatpush1.msra.mxu0 0.0
    %6663 = vmatprep.subr.mxu0 0.0
    %6664 = vmatpush1.msra.mxu0 0.0
    %6665 = vmatprep.subr.mxu0 0.0
    %6666 = vmatpush1.msra.mxu0 0.0
    %6667 = vmatprep.subr.mxu0 0.0
    %6668 = vmatpush1.msra.mxu0 0.0
    %6669 = vmatprep.subr.mxu0 0.0
    %6670 = vmatpush1.msra.mxu0 0.0
    %6671 = vmatprep.subr.mxu0 0.0
    %6672 = vmatpush1.msra.mxu0 0.0
    %6673 = vmatprep.subr.mxu0 0.0
    %6674 = vmatpush1.msra.mxu0 0.0
    %6675 = vmatprep.subr.mxu0 0.0
    %6676 = vmatpush1.msra.mxu0 0.0
    %6677 = vmatprep.subr.mxu0 0.0
    %6678 = vmatpush1.msra.mxu0 0.0
    %6679 = vmatprep.subr.mxu0 0.0
    %6680 = vmatpush1.msra.mxu0 0.0
    %6681 = vmatprep.subr.mxu0 0.0
    %6682 = vmatpush1.msra.mxu0 0.0
    %6683 = vmatprep.subr.mxu0 0.0
    %6684 = vmatpush1.msra.mxu0 0.0
    %6685 = vmatprep.subr.mxu0 0.0
    %6686 = vmatpush1.msra.mxu0 0.0
    %6687 = vmatprep.mubr.f32.mxu0 0.0
    %6688 = vmatmul.mubr.f32.gmra.mrb[0].mxu0 %v6600
    %v6689 = vpop.f32.mrb[0].mxu0
    %v6690 = vadd.f32 %v6622, %v6689
    %v6691 = vpop.f32.mrb[0].mxu0
    %6692 = vdwg.mxu0
    %v6693 = vadd.f32 %v6516, %v6690
    %v6694 = vld [vmem:[%s10 + $0x32] sm:$0x1]
    %v6695 = vld [vmem:[%s10 + $0x33] sm:$0x1]
    %v6696 = vsel %vm4095, %v6693, 0.0
    %6697 = vadd.xlane.f32.xlu0 %v6696
    %v6698 = vpop.xlane.xlu0 %6697
    %v6699 = vmul.f32 %v6698, %v1260
    %v6700 = vsub.f32 %v6693, %v6699
    %v6701 = vmul.f32 %v6700, %v6700
    %v6702 = vsel %vm4095, %v6701, 0.0
    %6703 = vadd.xlane.f32.xlu0 %v6702
    %v6704 = vpop.xlane.xlu0 %6703
    %v6705 = vmul.f32 %v6704, %v1260
    %v6706 = vadd.f32 %v6705, 1e-05
    %v6707 = vrsqrt.pop %v6706
    %v6708 = vmul.f32 %v6700, %v6707
    %v6709 = vlaneseq
    %v6710 = vshrl.u32 %v6709, 7
    %v6711 = vsub.s32 0, %v6710
    %v6712 = vrot.slane %v6694, %v6711
    %v6713 = vmul.f32 %v6708, %v6712
    %v6714 = vlaneseq
    %v6715 = vshrl.u32 %v6714, 7
    %v6716 = vsub.s32 0, %v6715
    %v6717 = vrot.slane %v6695, %v6716
    %v6718 = vadd.f32 %v6713, %v6717
    %v6719 = vld [vmem:[%s10 + $0x34] sm:$0x1]
    %v6720 = vld [vmem:[%s10 + $0x35] sm:$0x1]
    %v6721 = vsel %vm4095, %v6718, 0.0
    %6722 = vadd.xlane.f32.xlu0 %v6721
    %v6723 = vpop.xlane.xlu0 %6722
    %v6724 = vmul.f32 %v6723, %v1260
    %v6725 = vsub.f32 %v6718, %v6724
    %v6726 = vmul.f32 %v6725, %v6725
    %v6727 = vsel %vm4095, %v6726, 0.0
    %6728 = vadd.xlane.f32.xlu0 %v6727
    %v6729 = vpop.xlane.xlu0 %6728
    %v6730 = vmul.f32 %v6729, %v1260
    %v6731 = vadd.f32 %v6730, 1e-05
    %v6732 = vrsqrt.pop %v6731
    %v6733 = vmul.f32 %v6725, %v6732
    %v6734 = vlaneseq
    %v6735 = vshrl.u32 %v6734, 7
    %v6736 = vsub.s32 0, %v6735
    %v6737 = vrot.slane %v6719, %v6736
    %v6738 = vmul.f32 %v6733, %v6737
    %v6739 = vlaneseq
    %v6740 = vshrl.u32 %v6739, 7
    %v6741 = vsub.s32 0, %v6740
    %v6742 = vrot.slane %v6720, %v6741
    %v6743 = vadd.f32 %v6738, %v6742
    %s6744 = scalar_lea.vmem %s8, 256
    %v6745 = vld [vmem:[%s6744] sm:$0xff]
    %v6746 = vld [vmem:[%s6744 + $0x8] sm:$0xff]
    %v6747 = vld [vmem:[%s6744 + $0x10] sm:$0xff]
    %v6748 = vld [vmem:[%s6744 + $0x18] sm:$0xff]
    %v6749 = vld [vmem:[%s11 + $0x4] sm:$0x1]
    %v6750 = vlaneseq
    %v6751 = vshrl.u32 %v6750, 7
    %v6752 = vsub.s32 0, %v6751
    %v6753 = vrot.slane %v6749, %v6752
    %v6755 = vsel %vm953, %v6743, 0
    %6757 = vmatprep.subr.mxu0 0.0
    %6758 = vmatpush1.msra.mxu0 %v6745
    %6759 = vmatprep.subr.mxu0 0.0
    %6760 = vmatpush1.msra.mxu0 %v6746
    %6761 = vmatprep.subr.mxu0 0.0
    %6762 = vmatpush1.msra.mxu0 %v6747
    %6763 = vmatprep.subr.mxu0 0.0
    %6764 = vmatpush1.msra.mxu0 %v6748
    %6765 = vmatprep.subr.mxu0 0.0
    %6766 = vmatpush1.msra.mxu0 0.0
    %6767 = vmatprep.subr.mxu0 0.0
    %6768 = vmatpush1.msra.mxu0 0.0
    %6769 = vmatprep.subr.mxu0 0.0
    %6770 = vmatpush1.msra.mxu0 0.0
    %6771 = vmatprep.subr.mxu0 0.0
    %6772 = vmatpush1.msra.mxu0 0.0
    %6773 = vmatprep.subr.mxu0 0.0
    %6774 = vmatpush1.msra.mxu0 0.0
    %6775 = vmatprep.subr.mxu0 0.0
    %6776 = vmatpush1.msra.mxu0 0.0
    %6777 = vmatprep.subr.mxu0 0.0
    %6778 = vmatpush1.msra.mxu0 0.0
    %6779 = vmatprep.subr.mxu0 0.0
    %6780 = vmatpush1.msra.mxu0 0.0
    %6781 = vmatprep.subr.mxu0 0.0
    %6782 = vmatpush1.msra.mxu0 0.0
    %6783 = vmatprep.subr.mxu0 0.0
    %6784 = vmatpush1.msra.mxu0 0.0
    %6785 = vmatprep.subr.mxu0 0.0
    %6786 = vmatpush1.msra.mxu0 0.0
    %6787 = vmatprep.subr.mxu0 0.0
    %6788 = vmatpush1.msra.mxu0 0.0
    %6789 = vmatprep.subr.mxu0 0.0
    %6790 = vmatpush1.msra.mxu0 0.0
    %6791 = vmatprep.subr.mxu0 0.0
    %6792 = vmatpush1.msra.mxu0 0.0
    %6793 = vmatprep.subr.mxu0 0.0
    %6794 = vmatpush1.msra.mxu0 0.0
    %6795 = vmatprep.subr.mxu0 0.0
    %6796 = vmatpush1.msra.mxu0 0.0
    %6797 = vmatprep.subr.mxu0 0.0
    %6798 = vmatpush1.msra.mxu0 0.0
    %6799 = vmatprep.subr.mxu0 0.0
    %6800 = vmatpush1.msra.mxu0 0.0
    %6801 = vmatprep.subr.mxu0 0.0
    %6802 = vmatpush1.msra.mxu0 0.0
    %6803 = vmatprep.subr.mxu0 0.0
    %6804 = vmatpush1.msra.mxu0 0.0
    %6805 = vmatprep.subr.mxu0 0.0
    %6806 = vmatpush1.msra.mxu0 0.0
    %6807 = vmatprep.subr.mxu0 0.0
    %6808 = vmatpush1.msra.mxu0 0.0
    %6809 = vmatprep.subr.mxu0 0.0
    %6810 = vmatpush1.msra.mxu0 0.0
    %6811 = vmatprep.subr.mxu0 0.0
    %6812 = vmatpush1.msra.mxu0 0.0
    %6813 = vmatprep.subr.mxu0 0.0
    %6814 = vmatpush1.msra.mxu0 0.0
    %6815 = vmatprep.subr.mxu0 0.0
    %6816 = vmatpush1.msra.mxu0 0.0
    %6817 = vmatprep.subr.mxu0 0.0
    %6818 = vmatpush1.msra.mxu0 0.0
    %6819 = vmatprep.subr.mxu0 0.0
    %6820 = vmatpush1.msra.mxu0 0.0
    %6821 = vmatprep.mubr.f32.mxu0 0.0
    %6822 = vmatmul.mubr.f32.gmra.mrb[0].mxu0 %v6755
    %v6823 = vpop.f32.mrb[0].mxu0
    %v6824 = vadd.f32 %v6753, %v6823
    %v6825 = vpop.f32.mrb[0].mxu0
    %6826 = vdwg.mxu0
    %v6827 = vtanh.pop %v6824
    %s6828 = scalar_lea.vmem %s8, 288
    %v6829 = vld [vmem:[%s6828] sm:$0xff]
    %v6830 = vld [vmem:[%s6828 + $0x8] sm:$0xff]
    %v6831 = vld [vmem:[%s6828 + $0x10] sm:$0xff]
    %v6832 = vld [vmem:[%s6828 + $0x18] sm:$0xff]
    %v6833 = vld [vmem:[%s11 + $0x5] sm:$0x1]
    %v6834 = vlaneseq
    %v6835 = vshrl.u32 %v6834, 7
    %v6836 = vsub.s32 0, %v6835
    %v6837 = vrot.slane %v6833, %v6836
    %6838 = vmatprep.subr.mxu0 0.0
    %6839 = vmatpush1.msra.mxu0 %v6829
    %6840 = vmatprep.subr.mxu0 0.0
    %6841 = vmatpush1.msra.mxu0 %v6830
    %6842 = vmatprep.subr.mxu0 0.0
    %6843 = vmatpush1.msra.mxu0 %v6831
    %6844 = vmatprep.subr.mxu0 0.0
    %6845 = vmatpush1.msra.mxu0 %v6832
    %6846 = vmatprep.subr.mxu0 0.0
    %6847 = vmatpush1.msra.mxu0 0.0
    %6848 = vmatprep.subr.mxu0 0.0
    %6849 = vmatpush1.msra.mxu0 0.0
    %6850 = vmatprep.subr.mxu0 0.0
    %6851 = vmatpush1.msra.mxu0 0.0
    %6852 = vmatprep.subr.mxu0 0.0
    %6853 = vmatpush1.msra.mxu0 0.0
    %6854 = vmatprep.subr.mxu0 0.0
    %6855 = vmatpush1.msra.mxu0 0.0
    %6856 = vmatprep.subr.mxu0 0.0
    %6857 = vmatpush1.msra.mxu0 0.0
    %6858 = vmatprep.subr.mxu0 0.0
    %6859 = vmatpush1.msra.mxu0 0.0
    %6860 = vmatprep.subr.mxu0 0.0
    %6861 = vmatpush1.msra.mxu0 0.0
    %6862 = vmatprep.subr.mxu0 0.0
    %6863 = vmatpush1.msra.mxu0 0.0
    %6864 = vmatprep.subr.mxu0 0.0
    %6865 = vmatpush1.msra.mxu0 0.0
    %6866 = vmatprep.subr.mxu0 0.0
    %6867 = vmatpush1.msra.mxu0 0.0
    %6868 = vmatprep.subr.mxu0 0.0
    %6869 = vmatpush1.msra.mxu0 0.0
    %6870 = vmatprep.subr.mxu0 0.0
    %6871 = vmatpush1.msra.mxu0 0.0
    %6872 = vmatprep.subr.mxu0 0.0
    %6873 = vmatpush1.msra.mxu0 0.0
    %6874 = vmatprep.subr.mxu0 0.0
    %6875 = vmatpush1.msra.mxu0 0.0
    %6876 = vmatprep.subr.mxu0 0.0
    %6877 = vmatpush1.msra.mxu0 0.0
    %6878 = vmatprep.subr.mxu0 0.0
    %6879 = vmatpush1.msra.mxu0 0.0
    %6880 = vmatprep.subr.mxu0 0.0
    %6881 = vmatpush1.msra.mxu0 0.0
    %6882 = vmatprep.subr.mxu0 0.0
    %6883 = vmatpush1.msra.mxu0 0.0
    %6884 = vmatprep.subr.mxu0 0.0
    %6885 = vmatpush1.msra.mxu0 0.0
    %6886 = vmatprep.subr.mxu0 0.0
    %6887 = vmatpush1.msra.mxu0 0.0
    %6888 = vmatprep.subr.mxu0 0.0
    %6889 = vmatpush1.msra.mxu0 0.0
    %6890 = vmatprep.subr.mxu0 0.0
    %6891 = vmatpush1.msra.mxu0 0.0
    %6892 = vmatprep.subr.mxu0 0.0
    %6893 = vmatpush1.msra.mxu0 0.0
    %6894 = vmatprep.subr.mxu0 0.0
    %6895 = vmatpush1.msra.mxu0 0.0
    %6896 = vmatprep.subr.mxu0 0.0
    %6897 = vmatpush1.msra.mxu0 0.0
    %6898 = vmatprep.subr.mxu0 0.0
    %6899 = vmatpush1.msra.mxu0 0.0
    %6900 = vmatprep.subr.mxu0 0.0
    %6901 = vmatpush1.msra.mxu0 0.0
    %6902 = vmatprep.mubr.f32.mxu0 0.0
    %6903 = vmatmul.mubr.f32.gmra.mrb[0].mxu0 %v6755
    %v6904 = vpop.f32.mrb[0].mxu0
    %v6905 = vadd.f32 %v6837, %v6904
    %v6906 = vpop.f32.mrb[0].mxu0
    %6907 = vdwg.mxu0
    %v6908 = vmax.f32 %v6905, 0.0
    %v6909 = vld [vmem:[%s12] sm:$0xff]
    %v6910 = vld [vmem:[%s12 + $0x8] sm:$0xff]
    %v6911 = vld [vmem:[%s12 + $0x10] sm:$0xff]
    %v6912 = vld [vmem:[%s12 + $0x18] sm:$0xff]
    %v6913 = vld [vmem:[%s12 + $0x20] sm:$0xff]
    %v6914 = vld [vmem:[%s12 + $0x28] sm:$0xff]
    %v6915 = vld [vmem:[%s12 + $0x30] sm:$0xff]
    %v6916 = vld [vmem:[%s12 + $0x38] sm:$0xff]
    %v6917 = vld [vmem:[%s12 + $0x40] sm:$0xff]
    %v6918 = vld [vmem:[%s12 + $0x48] sm:$0xff]
    %v6919 = vld [vmem:[%s12 + $0x50] sm:$0xff]
    %v6920 = vld [vmem:[%s12 + $0x58] sm:$0xff]
    %v6921 = vld [vmem:[%s12 + $0x60] sm:$0xff]
    %v6922 = vld [vmem:[%s12 + $0x68] sm:$0xff]
    %v6923 = vld [vmem:[%s12 + $0x70] sm:$0xff]
    %v6924 = vld [vmem:[%s12 + $0x78] sm:$0xff]
    %v6925 = vld [vmem:[%s11 + $0x6] sm:$0x1]
    %v6926 = vlaneseq
    %v6927 = vshrl.u32 %v6926, 7
    %v6928 = vsub.s32 0, %v6927
    %v6929 = vrot.slane %v6925, %v6928
    %6930 = vmatprep.subr.mxu0 0.0
    %6931 = vmatpush1.msra.mxu0 %v6909
    %6932 = vmatprep.subr.mxu0 0.0
    %6933 = vmatpush1.msra.mxu0 %v6910
    %6934 = vmatprep.subr.mxu0 0.0
    %6935 = vmatpush1.msra.mxu0 %v6911
    %6936 = vmatprep.subr.mxu0 0.0
    %6937 = vmatpush1.msra.mxu0 %v6912
    %6938 = vmatprep.subr.mxu0 0.0
    %6939 = vmatpush1.msra.mxu0 %v6913
    %6940 = vmatprep.subr.mxu0 0.0
    %6941 = vmatpush1.msra.mxu0 %v6914
    %6942 = vmatprep.subr.mxu0 0.0
    %6943 = vmatpush1.msra.mxu0 %v6915
    %6944 = vmatprep.subr.mxu0 0.0
    %6945 = vmatpush1.msra.mxu0 %v6916
    %6946 = vmatprep.subr.mxu0 0.0
    %6947 = vmatpush1.msra.mxu0 %v6917
    %6948 = vmatprep.subr.mxu0 0.0
    %6949 = vmatpush1.msra.mxu0 %v6918
    %6950 = vmatprep.subr.mxu0 0.0
    %6951 = vmatpush1.msra.mxu0 %v6919
    %6952 = vmatprep.subr.mxu0 0.0
    %6953 = vmatpush1.msra.mxu0 %v6920
    %6954 = vmatprep.subr.mxu0 0.0
    %6955 = vmatpush1.msra.mxu0 %v6921
    %6956 = vmatprep.subr.mxu0 0.0
    %6957 = vmatpush1.msra.mxu0 %v6922
    %6958 = vmatprep.subr.mxu0 0.0
    %6959 = vmatpush1.msra.mxu0 %v6923
    %6960 = vmatprep.subr.mxu0 0.0
    %6961 = vmatpush1.msra.mxu0 %v6924
    %6962 = vmatprep.subr.mxu0 0.0
    %6963 = vmatpush1.msra.mxu0 0.0
    %6964 = vmatprep.subr.mxu0 0.0
    %6965 = vmatpush1.msra.mxu0 0.0
    %6966 = vmatprep.subr.mxu0 0.0
    %6967 = vmatpush1.msra.mxu0 0.0
    %6968 = vmatprep.subr.mxu0 0.0
    %6969 = vmatpush1.msra.mxu0 0.0
    %6970 = vmatprep.subr.mxu0 0.0
    %6971 = vmatpush1.msra.mxu0 0.0
    %6972 = vmatprep.subr.mxu0 0.0
    %6973 = vmatpush1.msra.mxu0 0.0
    %6974 = vmatprep.subr.mxu0 0.0
    %6975 = vmatpush1.msra.mxu0 0.0
    %6976 = vmatprep.subr.mxu0 0.0
    %6977 = vmatpush1.msra.mxu0 0.0
    %6978 = vmatprep.subr.mxu0 0.0
    %6979 = vmatpush1.msra.mxu0 0.0
    %6980 = vmatprep.subr.mxu0 0.0
    %6981 = vmatpush1.msra.mxu0 0.0
    %6982 = vmatprep.subr.mxu0 0.0
    %6983 = vmatpush1.msra.mxu0 0.0
    %6984 = vmatprep.subr.mxu0 0.0
    %6985 = vmatpush1.msra.mxu0 0.0
    %6986 = vmatprep.subr.mxu0 0.0
    %6987 = vmatpush1.msra.mxu0 0.0
    %6988 = vmatprep.subr.mxu0 0.0
    %6989 = vmatpush1.msra.mxu0 0.0
    %6990 = vmatprep.subr.mxu0 0.0
    %6991 = vmatpush1.msra.mxu0 0.0
    %6992 = vmatprep.subr.mxu0 0.0
    %6993 = vmatpush1.msra.mxu0 0.0
    %6994 = vmatprep.mubr.f32.mxu0 0.0
    %6995 = vmatmul.mubr.f32.gmra.mrb[0].mxu0 %v6908
    %v6996 = vpop.f32.mrb[0].mxu0
    %v6997 = vadd.f32 %v6929, %v6996
    %v6998 = vpop.f32.mrb[0].mxu0
    %6999 = vdwg.mxu0
    %v7000 = vmax.f32 %v6997, 0.0
    %s7001 = scalar_lea.vmem %s12, 128
    %v7002 = vld [vmem:[%s7001] sm:$0xff]
    %v7003 = vld [vmem:[%s7001 + $0x8] sm:$0xff]
    %v7004 = vld [vmem:[%s7001 + $0x10] sm:$0xff]
    %v7005 = vld [vmem:[%s7001 + $0x18] sm:$0xff]
    %v7006 = vld [vmem:[%s7001 + $0x20] sm:$0xff]
    %v7007 = vld [vmem:[%s7001 + $0x28] sm:$0xff]
    %v7008 = vld [vmem:[%s7001 + $0x30] sm:$0xff]
    %v7009 = vld [vmem:[%s7001 + $0x38] sm:$0xff]
    %v7010 = vld [vmem:[%s7001 + $0x40] sm:$0xff]
    %v7011 = vld [vmem:[%s7001 + $0x48] sm:$0xff]
    %v7012 = vld [vmem:[%s7001 + $0x50] sm:$0xff]
    %v7013 = vld [vmem:[%s7001 + $0x58] sm:$0xff]
    %v7014 = vld [vmem:[%s7001 + $0x60] sm:$0xff]
    %v7015 = vld [vmem:[%s7001 + $0x68] sm:$0xff]
    %v7016 = vld [vmem:[%s7001 + $0x70] sm:$0xff]
    %v7017 = vld [vmem:[%s7001 + $0x78] sm:$0xff]
    %v7018 = vld [vmem:[%s11 + $0x7] sm:$0x1]
    %v7019 = vlaneseq
    %v7020 = vshrl.u32 %v7019, 7
    %v7021 = vsub.s32 0, %v7020
    %v7022 = vrot.slane %v7018, %v7021
    %7023 = vmatprep.subr.mxu0 0.0
    %7024 = vmatpush1.msra.mxu0 %v7002
    %7025 = vmatprep.subr.mxu0 0.0
    %7026 = vmatpush1.msra.mxu0 %v7003
    %7027 = vmatprep.subr.mxu0 0.0
    %7028 = vmatpush1.msra.mxu0 %v7004
    %7029 = vmatprep.subr.mxu0 0.0
    %7030 = vmatpush1.msra.mxu0 %v7005
    %7031 = vmatprep.subr.mxu0 0.0
    %7032 = vmatpush1.msra.mxu0 %v7006
    %7033 = vmatprep.subr.mxu0 0.0
    %7034 = vmatpush1.msra.mxu0 %v7007
    %7035 = vmatprep.subr.mxu0 0.0
    %7036 = vmatpush1.msra.mxu0 %v7008
    %7037 = vmatprep.subr.mxu0 0.0
    %7038 = vmatpush1.msra.mxu0 %v7009
    %7039 = vmatprep.subr.mxu0 0.0
    %7040 = vmatpush1.msra.mxu0 %v7010
    %7041 = vmatprep.subr.mxu0 0.0
    %7042 = vmatpush1.msra.mxu0 %v7011
    %7043 = vmatprep.subr.mxu0 0.0
    %7044 = vmatpush1.msra.mxu0 %v7012
    %7045 = vmatprep.subr.mxu0 0.0
    %7046 = vmatpush1.msra.mxu0 %v7013
    %7047 = vmatprep.subr.mxu0 0.0
    %7048 = vmatpush1.msra.mxu0 %v7014
    %7049 = vmatprep.subr.mxu0 0.0
    %7050 = vmatpush1.msra.mxu0 %v7015
    %7051 = vmatprep.subr.mxu0 0.0
    %7052 = vmatpush1.msra.mxu0 %v7016
    %7053 = vmatprep.subr.mxu0 0.0
    %7054 = vmatpush1.msra.mxu0 %v7017
    %7055 = vmatprep.subr.mxu0 0.0
    %7056 = vmatpush1.msra.mxu0 0.0
    %7057 = vmatprep.subr.mxu0 0.0
    %7058 = vmatpush1.msra.mxu0 0.0
    %7059 = vmatprep.subr.mxu0 0.0
    %7060 = vmatpush1.msra.mxu0 0.0
    %7061 = vmatprep.subr.mxu0 0.0
    %7062 = vmatpush1.msra.mxu0 0.0
    %7063 = vmatprep.subr.mxu0 0.0
    %7064 = vmatpush1.msra.mxu0 0.0
    %7065 = vmatprep.subr.mxu0 0.0
    %7066 = vmatpush1.msra.mxu0 0.0
    %7067 = vmatprep.subr.mxu0 0.0
    %7068 = vmatpush1.msra.mxu0 0.0
    %7069 = vmatprep.subr.mxu0 0.0
    %7070 = vmatpush1.msra.mxu0 0.0
    %7071 = vmatprep.subr.mxu0 0.0
    %7072 = vmatpush1.msra.mxu0 0.0
    %7073 = vmatprep.subr.mxu0 0.0
    %7074 = vmatpush1.msra.mxu0 0.0
    %7075 = vmatprep.subr.mxu0 0.0
    %7076 = vmatpush1.msra.mxu0 0.0
    %7077 = vmatprep.subr.mxu0 0.0
    %7078 = vmatpush1.msra.mxu0 0.0
    %7079 = vmatprep.subr.mxu0 0.0
    %7080 = vmatpush1.msra.mxu0 0.0
    %7081 = vmatprep.subr.mxu0 0.0
    %7082 = vmatpush1.msra.mxu0 0.0
    %7083 = vmatprep.subr.mxu0 0.0
    %7084 = vmatpush1.msra.mxu0 0.0
    %7085 = vmatprep.subr.mxu0 0.0
    %7086 = vmatpush1.msra.mxu0 0.0
    %7087 = vmatprep.mubr.f32.mxu0 0.0
    %7088 = vmatmul.mubr.f32.gmra.mrb[0].mxu0 %v7000
    %v7089 = vpop.f32.mrb[0].mxu0
    %v7090 = vadd.f32 %v7022, %v7089
    %v7091 = vpop.f32.mrb[0].mxu0
    %7092 = vdwg.mxu0
    %v7093 = vadd.f32 %v6827, %v7090
    %7094 = vst [vmem:[%s13] sm:$0x3] %v7093
    // Predicated region
    $region62: #{_lambda_.1} parent=1 // pred_check
      _
    $region63: #{_lambda_.1} parent=1 // pred_check_branch
      %7096 = sbr.rel (0) target = $region65
    $region64: #{_lambda_.1} parent=1 // pred_region
      _
    $region65: #{_lambda_.1} parent=1 // pred_fallthru
      _
    // Predicated region
    $region66: #{_lambda_.1} parent=1 // pred_check
      _
    $region67: #{_lambda_.1} parent=1 // pred_check_branch
      %7098 = sbr.rel (0) target = $region69
    $region68: #{_lambda_.1} parent=1 // pred_region
      _
    $region69: #{_lambda_.1} parent=1 // pred_fallthru
      _
    %7099 = vsyncpa [#allocation3], 1
    %7100 = vsyncpa [#allocation5], 1

</llo_original>
